<compile_context>
chip_gen: v5e
topology: v5e:2x2
jax: 0.10.0
libtpu: 0.0.40
codegen_flags: <defaults>
</compile_context>

<pallas_src>
import functools

import jax
import jax.numpy as jnp
from jax.experimental import pallas as pl
from jax.experimental.pallas import tpu as pltpu

_VMEM_LIMIT = 32 * 1024 * 1024  # safe on v5e/v6e/v7x; tiles below fit easily


def _round_up(x, m):
    return (x + m - 1) // m * m


# ----------------------------------------------------------------------------
# Tiled matmul + bias (+ optional tanh) Pallas kernel (MXU)
# ----------------------------------------------------------------------------
def _matmul_bias_kernel(a_ref, b_ref, bias_ref, o_ref, acc_ref, *, activation):
    k = pl.program_id(2)

    @pl.when(k == 0)
    def _():
        acc_ref[...] = jnp.zeros_like(acc_ref)

    acc_ref[...] += jnp.dot(a_ref[...], b_ref[...],
                            preferred_element_type=jnp.float32)

    @pl.when(k == pl.num_programs(2) - 1)
    def _():
        acc = acc_ref[...] + bias_ref[...]
        if activation == "tanh":
            acc = jnp.tanh(acc)
        o_ref[...] = acc.astype(o_ref.dtype)


def matmul_bias(a, b, bias, activation="none", out_dtype=jnp.bfloat16):
    """(M,K) @ (K,N) + bias(N,), optional tanh epilogue.

    Operands are cast to bf16 (f32 accumulation); K and N are zero padded to
    multiples of 128 (lane-dense output, full-width MXU), M padded to the row
    tile; the GEMM is tiled and pipelined with a K-reduction accumulator."""
    M, K = a.shape
    K2, N = b.shape
    assert K == K2
    Kp = _round_up(K, 128)
    Np = _round_up(N, 128)
    tm = 512 if M >= 512 else _round_up(M, 8)
    Mp = _round_up(M, tm)
    tn = 256 if Np % 256 == 0 else 128       # MXU-native width on v6e/v7x
    tk = 256 if Kp % 256 == 0 else 128

    a_p = jnp.pad(a.astype(jnp.bfloat16), ((0, Mp - M), (0, Kp - K)))
    b_p = jnp.pad(b.astype(jnp.bfloat16), ((0, Kp - K), (0, Np - N)))
    bias_p = jnp.pad(bias.astype(jnp.float32), (0, Np - N)).reshape(1, Np)

    out = pl.pallas_call(
        functools.partial(_matmul_bias_kernel, activation=activation),
        out_shape=jax.ShapeDtypeStruct((Mp, Np), out_dtype),
        grid_spec=pltpu.PrefetchScalarGridSpec(
            num_scalar_prefetch=0,
            grid=(Mp // tm, Np // tn, Kp // tk),
            in_specs=[
                pl.BlockSpec((tm, tk), lambda i, j, k: (i, k)),
                pl.BlockSpec((tk, tn), lambda i, j, k: (k, j)),
                pl.BlockSpec((1, tn), lambda i, j, k: (0, j)),
            ],
            out_specs=pl.BlockSpec((tm, tn), lambda i, j, k: (i, j)),
            scratch_shapes=[pltpu.VMEM((tm, tn), jnp.float32)],
        ),
        compiler_params=pltpu.CompilerParams(
            dimension_semantics=("parallel", "parallel", "arbitrary"),
            vmem_limit_bytes=_VMEM_LIMIT),
    )(a_p, b_p, bias_p)
    return out[:M, :N]


# ----------------------------------------------------------------------------
# InstanceNorm2d (+ fused ReLU or residual add) Pallas kernel
# ----------------------------------------------------------------------------
def _inorm_kernel(x_ref, o_ref, *, activation, eps):
    x = x_ref[...].astype(jnp.float32)                  # (1, HW, 128)
    mean = jnp.mean(x, axis=1, keepdims=True)
    c = x - mean
    var = jnp.mean(c * c, axis=1, keepdims=True)        # biased var (PyTorch IN)
    y = c * jax.lax.rsqrt(var + eps)
    if activation == "relu":
        y = jnp.maximum(y, 0.0)
    o_ref[...] = y.astype(o_ref.dtype)


def _inorm_residual_kernel(x_ref, skip_ref, o_ref, *, eps):
    x = x_ref[...].astype(jnp.float32)
    mean = jnp.mean(x, axis=1, keepdims=True)
    c = x - mean
    var = jnp.mean(c * c, axis=1, keepdims=True)
    y = skip_ref[...].astype(jnp.float32) + c * jax.lax.rsqrt(var + eps)
    o_ref[...] = y.astype(o_ref.dtype)


def instance_norm(x_nhwc, activation="none", skip=None, eps=1e-5):
    """InstanceNorm2d (affine=False) + optional ReLU or residual add.

    Tiled over (batch, C/128): channels on lanes, spatial reduction on
    sublanes.  Math in f32 (v5e-safe), activations stored bf16."""
    N, H, W, C = x_nhwc.shape
    HW = H * W
    Cp = _round_up(C, 128)
    ct = 128

    def prep(t):
        t = t.reshape(N, HW, C).astype(jnp.bfloat16)
        return jnp.pad(t, ((0, 0), (0, 0), (0, Cp - C)))

    spec = pl.BlockSpec((1, HW, ct), lambda n, c: (n, 0, c))
    cparams = pltpu.CompilerParams(
        dimension_semantics=("parallel", "parallel"),
        vmem_limit_bytes=_VMEM_LIMIT)

    # TODO(synk): for very large H*W a two-pass (spatially tiled) reduction is
    # needed to keep each block inside VMEM; full-H*W blocks are fine here.
    if skip is None:
        out = pl.pallas_call(
            functools.partial(_inorm_kernel, activation=activation, eps=eps),
            out_shape=jax.ShapeDtypeStruct((N, HW, Cp), jnp.bfloat16),
            grid=(N, Cp // ct),
            in_specs=[spec],
            out_specs=spec,
            compiler_params=cparams,
        )(prep(x_nhwc))
    else:
        out = pl.pallas_call(
            functools.partial(_inorm_residual_kernel, eps=eps),
            out_shape=jax.ShapeDtypeStruct((N, HW, Cp), jnp.bfloat16),
            grid=(N, Cp // ct),
            in_specs=[spec, spec],
            out_specs=spec,
            compiler_params=cparams,
        )(prep(x_nhwc), prep(skip))
    return out[:, :, :C].reshape(N, H, W, C)


# ----------------------------------------------------------------------------
# Convolution wrappers (patch gather in plain JAX, GEMM in Pallas)
# ----------------------------------------------------------------------------
def _im2col(x, kh, kw, stride):
    N, H, W, C = x.shape
    oh = (H - kh) // stride + 1
    ow = (W - kw) // stride + 1
    cols = []
    for i in range(kh):
        for j in range(kw):
            cols.append(
                x[:, i:i + stride * (oh - 1) + 1:stride,
                     j:j + stride * (ow - 1) + 1:stride, :])
    patches = jnp.stack(cols, axis=3)                    # (N, oh, ow, kh*kw, C)
    return patches.reshape(N, oh, ow, kh * kw * C), oh, ow


def conv2d(x, w, b, *, stride=1, pad=0, activation="none"):
    """nn.Conv2d with padding_mode='reflect' (as the spec uses everywhere).
    w: (Cout, Cin, kh, kw) f32; x: NHWC bf16."""
    if pad > 0:
        x = jnp.pad(x, ((0, 0), (pad, pad), (pad, pad), (0, 0)), mode="reflect")
    Cout, Cin, kh, kw = w.shape
    N = x.shape[0]
    # TODO(synk): the im2col patch matrix is still materialized in HBM (kh*kw
    # traffic inflation, halved by bf16); fusing the tap gather into the
    # kernel's DMA/index_map is the remaining improvement from the review.
    patches, oh, ow = _im2col(x, kh, kw, stride)
    a = patches.reshape(N * oh * ow, kh * kw * Cin)
    wm = jnp.transpose(w, (2, 3, 1, 0)).reshape(kh * kw * Cin, Cout)
    out = matmul_bias(a, wm, b, activation=activation)
    return out.reshape(N, oh, ow, Cout)


def _convT_weight_subpixel(w):
    """Build the (4*Cin, 4*Cout) GEMM weight for ConvTranspose2d(k=3, stride=2,
    padding=1, output_padding=1) in subpixel form.  Rows are grouped by the
    2x2 input tap (di, dj) (matching _im2col order), columns by the output
    phase (r, s):  y[2a+r, 2b+s] += x[a+di, b+dj] @ w[:, :, r+1-2di, s+1-2dj]."""
    Cin, Cout, kh, kw = w.shape
    tap_rows = []
    for di in range(2):
        for dj in range(2):
            phase_cols = []
            for r in range(2):
                for s in range(2):
                    ki = r + 1 - 2 * di
                    kj = s + 1 - 2 * dj
                    if 0 <= ki < kh and 0 <= kj < kw:
                        phase_cols.append(w[:, :, ki, kj])           # (Cin, Cout)
                    else:
                        phase_cols.append(jnp.zeros((Cin, Cout), w.dtype))
            tap_rows.append(jnp.concatenate(phase_cols, axis=1))     # (Cin, 4*Cout)
    return jnp.concatenate(tap_rows, axis=0)                         # (4Cin, 4Cout)


def conv_transpose2d(x, w, b):
    """nn.ConvTranspose2d(kernel=3, stride=2, padding=1, output_padding=1)
    via subpixel decomposition: one GEMM on the un-dilated input (no zero
    multiplies, no dilated tensor), lane-dense 4*Cout output, then a cheap
    pixel-shuffle in glue.  w: (Cin, Cout, 3, 3)."""
    Cin, Cout, kh, kw = w.shape
    assert kh == 3 and kw == 3, "specialized to the Generator's 3x3 upsamplers"
    N, H, W, _ = x.shape
    xp = jnp.pad(x, ((0, 0), (0, 1), (0, 1), (0, 0)))    # zero halo bottom/right
    patches, oh, ow = _im2col(xp, 2, 2, 1)               # (N, H, W, 4*Cin)
    a = patches.reshape(N * H * W, 4 * Cin)
    wm = _convT_weight_subpixel(w)                       # (4*Cin, 4*Cout)
    bias4 = jnp.tile(b, 4)                               # (4*Cout,)
    out = matmul_bias(a, wm, bias4)                      # (N*H*W, 4*Cout)
    out = out.reshape(N, H, W, 2, 2, Cout)
    out = out.transpose(0, 1, 3, 2, 4, 5).reshape(N, 2 * H, 2 * W, Cout)
    return out


# ----------------------------------------------------------------------------
# Generator
# ----------------------------------------------------------------------------
def init_generator_params(key, in_channels=3, filters=8, num_resid=2):
    def conv_init(key, cout, cin, k):
        kw_, kb_ = jax.random.split(key)
        fan_in = cin * k * k
        w = jax.random.normal(kw_, (cout, cin, k, k), jnp.float32) / jnp.sqrt(fan_in)
        b = 0.01 * jax.random.normal(kb_, (cout,), jnp.float32)
        return w, b

    def convT_init(key, cin, cout, k):
        kw_, kb_ = jax.random.split(key)
        fan_in = cin * k * k
        w = jax.random.normal(kw_, (cin, cout, k, k), jnp.float32) / jnp.sqrt(fan_in)
        b = 0.01 * jax.random.normal(kb_, (cout,), jnp.float32)
        return w, b

    keys = jax.random.split(key, 6 + 2 * num_resid)
    F = filters
    p = {}
    p["down0_w"], p["down0_b"] = conv_init(keys[0], F, in_channels, 7)
    p["down1_w"], p["down1_b"] = conv_init(keys[1], 2 * F, F, 3)
    p["down2_w"], p["down2_b"] = conv_init(keys[2], 4 * F, 2 * F, 3)
    p["resid"] = []
    for r in range(num_resid):
        w1, b1 = conv_init(keys[3 + 2 * r], 4 * F, 4 * F, 3)
        w2, b2 = conv_init(keys[4 + 2 * r], 4 * F, 4 * F, 3)
        p["resid"].append({"w1": w1, "b1": b1, "w2": w2, "b2": b2})
    p["up0_w"], p["up0_b"] = convT_init(keys[3 + 2 * num_resid], 4 * F, 2 * F, 3)
    p["up1_w"], p["up1_b"] = convT_init(keys[4 + 2 * num_resid], 2 * F, F, 3)
    p["last_w"], p["last_b"] = conv_init(keys[5 + 2 * num_resid], in_channels, F, 7)
    return p


def generator_forward(params, x_nchw):
    x = jnp.transpose(x_nchw, (0, 2, 3, 1)).astype(jnp.bfloat16)  # NCHW -> NHWC

    # down path (reflect padding everywhere, per the spec's DownConvLayer)
    y = conv2d(x, params["down0_w"], params["down0_b"], stride=1, pad=3)
    y = instance_norm(y, activation="relu")
    y = conv2d(y, params["down1_w"], params["down1_b"], stride=2, pad=1)
    y = instance_norm(y, activation="relu")
    y = conv2d(y, params["down2_w"], params["down2_b"], stride=2, pad=1)
    y = instance_norm(y, activation="relu")

    # residual blocks (second IN has no activation; skip-add fused in kernel)
    for rb in params["resid"]:
        skip = y
        z = conv2d(y, rb["w1"], rb["b1"], stride=1, pad=1)
        z = instance_norm(z, activation="relu")
        z = conv2d(z, rb["w2"], rb["b2"], stride=1, pad=1)
        y = instance_norm(z, activation="none", skip=skip)

    # up path (subpixel transposed convs, zero padding semantics)
    y = conv_transpose2d(y, params["up0_w"], params["up0_b"])
    y = instance_norm(y, activation="relu")
    y = conv_transpose2d(y, params["up1_w"], params["up1_b"])
    y = instance_norm(y, activation="relu")

    # last: reflect-pad 7x7 conv + tanh (tanh fused into the GEMM epilogue)
    y = conv2d(y, params["last_w"], params["last_b"], stride=1, pad=3,
               activation="tanh")

    return jnp.transpose(y, (0, 3, 1, 2)).astype(jnp.float32)   # NHWC -> NCHW


# ----------------------------------------------------------------------------
if __name__ == "__main__":
    key = jax.random.PRNGKey(0)
    k_x, k_p = jax.random.split(key)

    batch, in_channels, H, W = 2, 3, 16, 16
    filters, num_resid = 8, 2

    x = jax.random.normal(k_x, (batch, in_channels, H, W), jnp.float32)
    params = init_generator_params(k_p, in_channels=in_channels,
                                   filters=filters, num_resid=num_resid)

    fwd = jax.jit(generator_forward)
    out = fwd(params, x)
    jax.block_until_ready(out)

    assert out.shape == (batch, in_channels, H, W), out.shape
    assert bool(jnp.all(jnp.isfinite(out)))
    assert bool(jnp.all(jnp.abs(out) <= 1.0 + 1e-6))   # tanh range

    print("KERNEL_OK")
</pallas_src>

<mosaic_0001>
module attributes {stable_mosaic.version = 11 : i64} {
  func.func @_inorm_kernel(%arg0: i32, %arg1: i32, %arg2: memref<1x256x128xbf16, #tpu.memory_space<vmem>>, %arg3: memref<1x256x128xbf16, #tpu.memory_space<vmem>>) attributes {dimension_semantics = [#tpu.dimension_semantics<parallel>, #tpu.dimension_semantics<parallel>], iteration_bounds = array<i64: 2, 1>, scalar_prefetch = 0 : i64, scratch_operands = 0 : i64, tpu.core_type = #tpu.core_type<tc>, window_params = [{transform_indices = @transform_0, window_bounds = array<i64: 1, 256, 128>}, {transform_indices = @transform_1, window_bounds = array<i64: 1, 256, 128>}]} {
    %c0 = arith.constant 0 : index
    %c0_0 = arith.constant 0 : index
    %c0_1 = arith.constant 0 : index
    %0 = vector.load %arg2[%c0, %c0_0, %c0_1] : memref<1x256x128xbf16, #tpu.memory_space<vmem>>, vector<1x256x128xbf16>
    %1 = arith.extf %0 : vector<1x256x128xbf16> to vector<1x256x128xf32>
    %cst = arith.constant dense<0.000000e+00> : vector<1x128xf32>
    %2 = vector.multi_reduction <add>, %1, %cst [1] : vector<1x256x128xf32> to vector<1x128xf32>
    %3 = vector.shape_cast %2 : vector<1x128xf32> to vector<1x1x128xf32>
    %cst_2 = arith.constant 2.560000e+02 : f32
    %4 = vector.broadcast %cst_2 : f32 to vector<1x1x128xf32>
    %5 = arith.divf %3, %4 : vector<1x1x128xf32>
    %6 = vector.broadcast %5 : vector<1x1x128xf32> to vector<1x256x128xf32>
    %7 = arith.subf %1, %6 : vector<1x256x128xf32>
    %8 = arith.mulf %7, %7 : vector<1x256x128xf32>
    %cst_3 = arith.constant dense<0.000000e+00> : vector<1x128xf32>
    %9 = vector.multi_reduction <add>, %8, %cst_3 [1] : vector<1x256x128xf32> to vector<1x128xf32>
    %10 = vector.shape_cast %9 : vector<1x128xf32> to vector<1x1x128xf32>
    %cst_4 = arith.constant 2.560000e+02 : f32
    %11 = vector.broadcast %cst_4 : f32 to vector<1x1x128xf32>
    %12 = arith.divf %10, %11 : vector<1x1x128xf32>
    %cst_5 = arith.constant 9.99999974E-6 : f32
    %13 = vector.broadcast %cst_5 : f32 to vector<1x1x128xf32>
    %14 = arith.addf %12, %13 : vector<1x1x128xf32>
    %15 = math.rsqrt %14 : vector<1x1x128xf32>
    %16 = vector.broadcast %15 : vector<1x1x128xf32> to vector<1x256x128xf32>
    %17 = arith.mulf %7, %16 : vector<1x256x128xf32>
    %cst_6 = arith.constant 0.000000e+00 : f32
    %18 = vector.broadcast %cst_6 : f32 to vector<1x256x128xf32>
    %19 = arith.maximumf %17, %18 : vector<1x256x128xf32>
    %20 = arith.truncf %19 : vector<1x256x128xf32> to vector<1x256x128xbf16>
    %c0_7 = arith.constant 0 : index
    %c0_8 = arith.constant 0 : index
    %c0_9 = arith.constant 0 : index
    %21 = vector.load %arg3[%c0_7, %c0_8, %c0_9] : memref<1x256x128xbf16, #tpu.memory_space<vmem>>, vector<1x256x128xbf16>
    tpu.vector_store %arg3[%c0_7, %c0_8, %c0_9], %20 {strides = array<i32>} : memref<1x256x128xbf16, #tpu.memory_space<vmem>>, vector<1x256x128xbf16>,
    return
  }
  func.func @transform_0(%arg0: i32, %arg1: i32) -> (i32, i32, i32) {
    %c0_i32 = arith.constant 0 : i32
    %c0_i32_0 = arith.constant 0 : i32
    return %arg0, %c0_i32, %arg1 : i32, i32, i32
  }
  func.func @transform_1(%arg0: i32, %arg1: i32) -> (i32, i32, i32) {
    %c0_i32 = arith.constant 0 : i32
    %c0_i32_0 = arith.constant 0 : i32
    return %arg0, %c0_i32, %arg1 : i32, i32, i32
  }
}

module attributes {stable_mosaic.version = 11 : i64} {
  func.func @_matmul_bias_kernel(%arg0: i32, %arg1: i32, %arg2: i32, %arg3: memref<512x256xbf16, #tpu.memory_space<vmem>>, %arg4: memref<256x128xbf16, #tpu.memory_space<vmem>>, %arg5: memref<1x128xf32, #tpu.memory_space<vmem>>, %arg6: memref<512x128xbf16, #tpu.memory_space<vmem>>, %arg7: memref<512x128xf32, #tpu.memory_space<vmem>>) attributes {dimension_semantics = [#tpu.dimension_semantics<parallel>, #tpu.dimension_semantics<parallel>, #tpu.dimension_semantics<arbitrary>], iteration_bounds = array<i64: 1, 1, 1>, scalar_prefetch = 0 : i64, scratch_operands = 1 : i64, tpu.core_type = #tpu.core_type<tc>, window_params = [{transform_indices = @transform_0, window_bounds = array<i64: 512, 256>}, {transform_indices = @transform_1, window_bounds = array<i64: 256, 128>}, {transform_indices = @transform_2, window_bounds = array<i64: 1, 128>}, {transform_indices = @transform_3, window_bounds = array<i64: 512, 128>}]} {
    %c0_i32 = arith.constant 0 : i32
    %0 = arith.cmpi eq, %arg2, %c0_i32 : i32
    %1 = arith.extui %0 : i1 to i32
    %c0_i32_0 = arith.constant 0 : i32
    %2 = arith.cmpi ne, %1, %c0_i32_0 : i32
    scf.if %2 {
      %cst_10 = arith.constant 0.000000e+00 : f32
      %12 = vector.broadcast %cst_10 : f32 to vector<512x128xf32>
      %c0_11 = arith.constant 0 : index
      %c0_12 = arith.constant 0 : index
      %13 = vector.load %arg7[%c0_11, %c0_12] : memref<512x128xf32, #tpu.memory_space<vmem>>, vector<512x128xf32>
      tpu.vector_store %arg7[%c0_11, %c0_12], %12 {strides = array<i32>} : memref<512x128xf32, #tpu.memory_space<vmem>>, vector<512x128xf32>,
    } else {
    }
    %c0 = arith.constant 0 : index
    %c0_1 = arith.constant 0 : index
    %3 = vector.load %arg7[%c0, %c0_1] : memref<512x128xf32, #tpu.memory_space<vmem>>, vector<512x128xf32>
    %c0_2 = arith.constant 0 : index
    %c0_3 = arith.constant 0 : index
    %4 = vector.load %arg3[%c0_2, %c0_3] : memref<512x256xbf16, #tpu.memory_space<vmem>>, vector<512x256xbf16>
    %c0_4 = arith.constant 0 : index
    %c0_5 = arith.constant 0 : index
    %5 = vector.load %arg4[%c0_4, %c0_5] : memref<256x128xbf16, #tpu.memory_space<vmem>>, vector<256x128xbf16>
    %cst = arith.constant dense<0.000000e+00> : vector<512x128xf32>
    %6 = tpu.matmul %4, %5, %cst {dimension_numbers = #tpu.dot_dimension_numbers<[1], [0], [0], [1], [0, 0, 1, 1], [], []>} : vector<512x256xbf16>, vector<256x128xbf16>, vector<512x128xf32> -> vector<512x128xf32>
    %7 = arith.addf %3, %6 : vector<512x128xf32>
    %c0_6 = arith.constant 0 : index
    %c0_7 = arith.constant 0 : index
    %8 = vector.load %arg7[%c0_6, %c0_7] : memref<512x128xf32, #tpu.memory_space<vmem>>, vector<512x128xf32>
    tpu.vector_store %arg7[%c0_6, %c0_7], %7 {strides = array<i32>} : memref<512x128xf32, #tpu.memory_space<vmem>>, vector<512x128xf32>,
    %c0_i32_8 = arith.constant 0 : i32
    %9 = arith.cmpi eq, %arg2, %c0_i32_8 : i32
    %10 = arith.extui %9 : i1 to i32
    %c0_i32_9 = arith.constant 0 : i32
    %11 = arith.cmpi ne, %10, %c0_i32_9 : i32
    scf.if %11 {
      %c0_10 = arith.constant 0 : index
      %c0_11 = arith.constant 0 : index
      %12 = vector.load %arg7[%c0_10, %c0_11] : memref<512x128xf32, #tpu.memory_space<vmem>>, vector<512x128xf32>
      %c0_12 = arith.constant 0 : index
      %c0_13 = arith.constant 0 : index
      %13 = vector.load %arg5[%c0_12, %c0_13] : memref<1x128xf32, #tpu.memory_space<vmem>>, vector<1x128xf32>
      %14 = vector.broadcast %13 : vector<1x128xf32> to vector<512x128xf32>
      %15 = arith.addf %12, %14 : vector<512x128xf32>
      %16 = arith.truncf %15 : vector<512x128xf32> to vector<512x128xbf16>
      %c0_14 = arith.constant 0 : index
      %c0_15 = arith.constant 0 : index
      %17 = vector.load %arg6[%c0_14, %c0_15] : memref<512x128xbf16, #tpu.memory_space<vmem>>, vector<512x128xbf16>
      tpu.vector_store %arg6[%c0_14, %c0_15], %16 {strides = array<i32>} : memref<512x128xbf16, #tpu.memory_space<vmem>>, vector<512x128xbf16>,
    } else {
    }
    return
  }
  func.func @transform_0(%arg0: i32, %arg1: i32, %arg2: i32) -> (i32, i32) {
    %c0_i32 = arith.constant 0 : i32
    return %arg0, %arg2 : i32, i32
  }
  func.func @transform_1(%arg0: i32, %arg1: i32, %arg2: i32) -> (i32, i32) {
    %c0_i32 = arith.constant 0 : i32
    return %arg2, %arg1 : i32, i32
  }
  func.func @transform_2(%arg0: i32, %arg1: i32, %arg2: i32) -> (i32, i32) {
    %c0_i32 = arith.constant 0 : i32
    %c0_i32_0 = arith.constant 0 : i32
    return %c0_i32, %arg1 : i32, i32
  }
  func.func @transform_3(%arg0: i32, %arg1: i32, %arg2: i32) -> (i32, i32) {
    %c0_i32 = arith.constant 0 : i32
    return %arg0, %arg1 : i32, i32
  }
}

module attributes {stable_mosaic.version = 11 : i64} {
  func.func @_matmul_bias_kernel(%arg0: i32, %arg1: i32, %arg2: i32, %arg3: memref<128x128xbf16, #tpu.memory_space<vmem>>, %arg4: memref<128x128xbf16, #tpu.memory_space<vmem>>, %arg5: memref<1x128xf32, #tpu.memory_space<vmem>>, %arg6: memref<128x128xbf16, #tpu.memory_space<vmem>>, %arg7: memref<128x128xf32, #tpu.memory_space<vmem>>) attributes {dimension_semantics = [#tpu.dimension_semantics<parallel>, #tpu.dimension_semantics<parallel>, #tpu.dimension_semantics<arbitrary>], iteration_bounds = array<i64: 1, 1, 1>, scalar_prefetch = 0 : i64, scratch_operands = 1 : i64, tpu.core_type = #tpu.core_type<tc>, window_params = [{transform_indices = @transform_0, window_bounds = array<i64: 128, 128>}, {transform_indices = @transform_1, window_bounds = array<i64: 128, 128>}, {transform_indices = @transform_2, window_bounds = array<i64: 1, 128>}, {transform_indices = @transform_3, window_bounds = array<i64: 128, 128>}]} {
    %c0_i32 = arith.constant 0 : i32
    %0 = arith.cmpi eq, %arg2, %c0_i32 : i32
    %1 = arith.extui %0 : i1 to i32
    %c0_i32_0 = arith.constant 0 : i32
    %2 = arith.cmpi ne, %1, %c0_i32_0 : i32
    scf.if %2 {
      %cst_10 = arith.constant 0.000000e+00 : f32
      %12 = vector.broadcast %cst_10 : f32 to vector<128x128xf32>
      %c0_11 = arith.constant 0 : index
      %c0_12 = arith.constant 0 : index
      %13 = vector.load %arg7[%c0_11, %c0_12] : memref<128x128xf32, #tpu.memory_space<vmem>>, vector<128x128xf32>
      tpu.vector_store %arg7[%c0_11, %c0_12], %12 {strides = array<i32>} : memref<128x128xf32, #tpu.memory_space<vmem>>, vector<128x128xf32>,
    } else {
    }
    %c0 = arith.constant 0 : index
    %c0_1 = arith.constant 0 : index
    %3 = vector.load %arg7[%c0, %c0_1] : memref<128x128xf32, #tpu.memory_space<vmem>>, vector<128x128xf32>
    %c0_2 = arith.constant 0 : index
    %c0_3 = arith.constant 0 : index
    %4 = vector.load %arg3[%c0_2, %c0_3] : memref<128x128xbf16, #tpu.memory_space<vmem>>, vector<128x128xbf16>
    %c0_4 = arith.constant 0 : index
    %c0_5 = arith.constant 0 : index
    %5 = vector.load %arg4[%c0_4, %c0_5] : memref<128x128xbf16, #tpu.memory_space<vmem>>, vector<128x128xbf16>
    %cst = arith.constant dense<0.000000e+00> : vector<128x128xf32>
    %6 = tpu.matmul %4, %5, %cst {dimension_numbers = #tpu.dot_dimension_numbers<[1], [0], [0], [1], [0, 0, 1, 1], [], []>} : vector<128x128xbf16>, vector<128x128xbf16>, vector<128x128xf32> -> vector<128x128xf32>
    %7 = arith.addf %3, %6 : vector<128x128xf32>
    %c0_6 = arith.constant 0 : index
    %c0_7 = arith.constant 0 : index
    %8 = vector.load %arg7[%c0_6, %c0_7] : memref<128x128xf32, #tpu.memory_space<vmem>>, vector<128x128xf32>
    tpu.vector_store %arg7[%c0_6, %c0_7], %7 {strides = array<i32>} : memref<128x128xf32, #tpu.memory_space<vmem>>, vector<128x128xf32>,
    %c0_i32_8 = arith.constant 0 : i32
    %9 = arith.cmpi eq, %arg2, %c0_i32_8 : i32
    %10 = arith.extui %9 : i1 to i32
    %c0_i32_9 = arith.constant 0 : i32
    %11 = arith.cmpi ne, %10, %c0_i32_9 : i32
    scf.if %11 {
      %c0_10 = arith.constant 0 : index
      %c0_11 = arith.constant 0 : index
      %12 = vector.load %arg7[%c0_10, %c0_11] : memref<128x128xf32, #tpu.memory_space<vmem>>, vector<128x128xf32>
      %c0_12 = arith.constant 0 : index
      %c0_13 = arith.constant 0 : index
      %13 = vector.load %arg5[%c0_12, %c0_13] : memref<1x128xf32, #tpu.memory_space<vmem>>, vector<1x128xf32>
      %14 = vector.broadcast %13 : vector<1x128xf32> to vector<128x128xf32>
      %15 = arith.addf %12, %14 : vector<128x128xf32>
      %16 = arith.truncf %15 : vector<128x128xf32> to vector<128x128xbf16>
      %c0_14 = arith.constant 0 : index
      %c0_15 = arith.constant 0 : index
      %17 = vector.load %arg6[%c0_14, %c0_15] : memref<128x128xbf16, #tpu.memory_space<vmem>>, vector<128x128xbf16>
      tpu.vector_store %arg6[%c0_14, %c0_15], %16 {strides = array<i32>} : memref<128x128xbf16, #tpu.memory_space<vmem>>, vector<128x128xbf16>,
    } else {
    }
    return
  }
  func.func @transform_0(%arg0: i32, %arg1: i32, %arg2: i32) -> (i32, i32) {
    %c0_i32 = arith.constant 0 : i32
    return %arg0, %arg2 : i32, i32
  }
  func.func @transform_1(%arg0: i32, %arg1: i32, %arg2: i32) -> (i32, i32) {
    %c0_i32 = arith.constant 0 : i32
    return %arg2, %arg1 : i32, i32
  }
  func.func @transform_2(%arg0: i32, %arg1: i32, %arg2: i32) -> (i32, i32) {
    %c0_i32 = arith.constant 0 : i32
    %c0_i32_0 = arith.constant 0 : i32
    return %c0_i32, %arg1 : i32, i32
  }
  func.func @transform_3(%arg0: i32, %arg1: i32, %arg2: i32) -> (i32, i32) {
    %c0_i32 = arith.constant 0 : i32
    return %arg0, %arg1 : i32, i32
  }
}

module attributes {stable_mosaic.version = 11 : i64} {
  func.func @_inorm_kernel(%arg0: i32, %arg1: i32, %arg2: memref<1x64x128xbf16, #tpu.memory_space<vmem>>, %arg3: memref<1x64x128xbf16, #tpu.memory_space<vmem>>) attributes {dimension_semantics = [#tpu.dimension_semantics<parallel>, #tpu.dimension_semantics<parallel>], iteration_bounds = array<i64: 2, 1>, scalar_prefetch = 0 : i64, scratch_operands = 0 : i64, tpu.core_type = #tpu.core_type<tc>, window_params = [{transform_indices = @transform_0, window_bounds = array<i64: 1, 64, 128>}, {transform_indices = @transform_1, window_bounds = array<i64: 1, 64, 128>}]} {
    %c0 = arith.constant 0 : index
    %c0_0 = arith.constant 0 : index
    %c0_1 = arith.constant 0 : index
    %0 = vector.load %arg2[%c0, %c0_0, %c0_1] : memref<1x64x128xbf16, #tpu.memory_space<vmem>>, vector<1x64x128xbf16>
    %1 = arith.extf %0 : vector<1x64x128xbf16> to vector<1x64x128xf32>
    %cst = arith.constant dense<0.000000e+00> : vector<1x128xf32>
    %2 = vector.multi_reduction <add>, %1, %cst [1] : vector<1x64x128xf32> to vector<1x128xf32>
    %3 = vector.shape_cast %2 : vector<1x128xf32> to vector<1x1x128xf32>
    %cst_2 = arith.constant 6.400000e+01 : f32
    %4 = vector.broadcast %cst_2 : f32 to vector<1x1x128xf32>
    %5 = arith.divf %3, %4 : vector<1x1x128xf32>
    %6 = vector.broadcast %5 : vector<1x1x128xf32> to vector<1x64x128xf32>
    %7 = arith.subf %1, %6 : vector<1x64x128xf32>
    %8 = arith.mulf %7, %7 : vector<1x64x128xf32>
    %cst_3 = arith.constant dense<0.000000e+00> : vector<1x128xf32>
    %9 = vector.multi_reduction <add>, %8, %cst_3 [1] : vector<1x64x128xf32> to vector<1x128xf32>
    %10 = vector.shape_cast %9 : vector<1x128xf32> to vector<1x1x128xf32>
    %cst_4 = arith.constant 6.400000e+01 : f32
    %11 = vector.broadcast %cst_4 : f32 to vector<1x1x128xf32>
    %12 = arith.divf %10, %11 : vector<1x1x128xf32>
    %cst_5 = arith.constant 9.99999974E-6 : f32
    %13 = vector.broadcast %cst_5 : f32 to vector<1x1x128xf32>
    %14 = arith.addf %12, %13 : vector<1x1x128xf32>
    %15 = math.rsqrt %14 : vector<1x1x128xf32>
    %16 = vector.broadcast %15 : vector<1x1x128xf32> to vector<1x64x128xf32>
    %17 = arith.mulf %7, %16 : vector<1x64x128xf32>
    %cst_6 = arith.constant 0.000000e+00 : f32
    %18 = vector.broadcast %cst_6 : f32 to vector<1x64x128xf32>
    %19 = arith.maximumf %17, %18 : vector<1x64x128xf32>
    %20 = arith.truncf %19 : vector<1x64x128xf32> to vector<1x64x128xbf16>
    %c0_7 = arith.constant 0 : index
    %c0_8 = arith.constant 0 : index
    %c0_9 = arith.constant 0 : index
    %21 = vector.load %arg3[%c0_7, %c0_8, %c0_9] : memref<1x64x128xbf16, #tpu.memory_space<vmem>>, vector<1x64x128xbf16>
    tpu.vector_store %arg3[%c0_7, %c0_8, %c0_9], %20 {strides = array<i32>} : memref<1x64x128xbf16, #tpu.memory_space<vmem>>, vector<1x64x128xbf16>,
    return
  }
  func.func @transform_0(%arg0: i32, %arg1: i32) -> (i32, i32, i32) {
    %c0_i32 = arith.constant 0 : i32
    %c0_i32_0 = arith.constant 0 : i32
    return %arg0, %c0_i32, %arg1 : i32, i32, i32
  }
  func.func @transform_1(%arg0: i32, %arg1: i32) -> (i32, i32, i32) {
    %c0_i32 = arith.constant 0 : i32
    %c0_i32_0 = arith.constant 0 : i32
    return %arg0, %c0_i32, %arg1 : i32, i32, i32
  }
}

module attributes {stable_mosaic.version = 11 : i64} {
  func.func @_inorm_kernel(%arg0: i32, %arg1: i32, %arg2: memref<1x16x128xbf16, #tpu.memory_space<vmem>>, %arg3: memref<1x16x128xbf16, #tpu.memory_space<vmem>>) attributes {dimension_semantics = [#tpu.dimension_semantics<parallel>, #tpu.dimension_semantics<parallel>], iteration_bounds = array<i64: 2, 1>, scalar_prefetch = 0 : i64, scratch_operands = 0 : i64, tpu.core_type = #tpu.core_type<tc>, window_params = [{transform_indices = @transform_0, window_bounds = array<i64: 1, 16, 128>}, {transform_indices = @transform_1, window_bounds = array<i64: 1, 16, 128>}]} {
    %c0 = arith.constant 0 : index
    %c0_0 = arith.constant 0 : index
    %c0_1 = arith.constant 0 : index
    %0 = vector.load %arg2[%c0, %c0_0, %c0_1] : memref<1x16x128xbf16, #tpu.memory_space<vmem>>, vector<1x16x128xbf16>
    %1 = arith.extf %0 : vector<1x16x128xbf16> to vector<1x16x128xf32>
    %cst = arith.constant dense<0.000000e+00> : vector<1x128xf32>
    %2 = vector.multi_reduction <add>, %1, %cst [1] : vector<1x16x128xf32> to vector<1x128xf32>
    %3 = vector.shape_cast %2 : vector<1x128xf32> to vector<1x1x128xf32>
    %cst_2 = arith.constant 1.600000e+01 : f32
    %4 = vector.broadcast %cst_2 : f32 to vector<1x1x128xf32>
    %5 = arith.divf %3, %4 : vector<1x1x128xf32>
    %6 = vector.broadcast %5 : vector<1x1x128xf32> to vector<1x16x128xf32>
    %7 = arith.subf %1, %6 : vector<1x16x128xf32>
    %8 = arith.mulf %7, %7 : vector<1x16x128xf32>
    %cst_3 = arith.constant dense<0.000000e+00> : vector<1x128xf32>
    %9 = vector.multi_reduction <add>, %8, %cst_3 [1] : vector<1x16x128xf32> to vector<1x128xf32>
    %10 = vector.shape_cast %9 : vector<1x128xf32> to vector<1x1x128xf32>
    %cst_4 = arith.constant 1.600000e+01 : f32
    %11 = vector.broadcast %cst_4 : f32 to vector<1x1x128xf32>
    %12 = arith.divf %10, %11 : vector<1x1x128xf32>
    %cst_5 = arith.constant 9.99999974E-6 : f32
    %13 = vector.broadcast %cst_5 : f32 to vector<1x1x128xf32>
    %14 = arith.addf %12, %13 : vector<1x1x128xf32>
    %15 = math.rsqrt %14 : vector<1x1x128xf32>
    %16 = vector.broadcast %15 : vector<1x1x128xf32> to vector<1x16x128xf32>
    %17 = arith.mulf %7, %16 : vector<1x16x128xf32>
    %cst_6 = arith.constant 0.000000e+00 : f32
    %18 = vector.broadcast %cst_6 : f32 to vector<1x16x128xf32>
    %19 = arith.maximumf %17, %18 : vector<1x16x128xf32>
    %20 = arith.truncf %19 : vector<1x16x128xf32> to vector<1x16x128xbf16>
    %c0_7 = arith.constant 0 : index
    %c0_8 = arith.constant 0 : index
    %c0_9 = arith.constant 0 : index
    %21 = vector.load %arg3[%c0_7, %c0_8, %c0_9] : memref<1x16x128xbf16, #tpu.memory_space<vmem>>, vector<1x16x128xbf16>
    tpu.vector_store %arg3[%c0_7, %c0_8, %c0_9], %20 {strides = array<i32>} : memref<1x16x128xbf16, #tpu.memory_space<vmem>>, vector<1x16x128xbf16>,
    return
  }
  func.func @transform_0(%arg0: i32, %arg1: i32) -> (i32, i32, i32) {
    %c0_i32 = arith.constant 0 : i32
    %c0_i32_0 = arith.constant 0 : i32
    return %arg0, %c0_i32, %arg1 : i32, i32, i32
  }
  func.func @transform_1(%arg0: i32, %arg1: i32) -> (i32, i32, i32) {
    %c0_i32 = arith.constant 0 : i32
    %c0_i32_0 = arith.constant 0 : i32
    return %arg0, %c0_i32, %arg1 : i32, i32, i32
  }
}

module attributes {stable_mosaic.version = 11 : i64} {
  func.func @_matmul_bias_kernel(%arg0: i32, %arg1: i32, %arg2: i32, %arg3: memref<32x256xbf16, #tpu.memory_space<vmem>>, %arg4: memref<256x128xbf16, #tpu.memory_space<vmem>>, %arg5: memref<1x128xf32, #tpu.memory_space<vmem>>, %arg6: memref<32x128xbf16, #tpu.memory_space<vmem>>, %arg7: memref<32x128xf32, #tpu.memory_space<vmem>>) attributes {dimension_semantics = [#tpu.dimension_semantics<parallel>, #tpu.dimension_semantics<parallel>, #tpu.dimension_semantics<arbitrary>], iteration_bounds = array<i64: 1, 1, 1>, scalar_prefetch = 0 : i64, scratch_operands = 1 : i64, tpu.core_type = #tpu.core_type<tc>, window_params = [{transform_indices = @transform_0, window_bounds = array<i64: 32, 256>}, {transform_indices = @transform_1, window_bounds = array<i64: 256, 128>}, {transform_indices = @transform_2, window_bounds = array<i64: 1, 128>}, {transform_indices = @transform_3, window_bounds = array<i64: 32, 128>}]} {
    %c0_i32 = arith.constant 0 : i32
    %0 = arith.cmpi eq, %arg2, %c0_i32 : i32
    %1 = arith.extui %0 : i1 to i32
    %c0_i32_0 = arith.constant 0 : i32
    %2 = arith.cmpi ne, %1, %c0_i32_0 : i32
    scf.if %2 {
      %cst_10 = arith.constant 0.000000e+00 : f32
      %12 = vector.broadcast %cst_10 : f32 to vector<32x128xf32>
      %c0_11 = arith.constant 0 : index
      %c0_12 = arith.constant 0 : index
      %13 = vector.load %arg7[%c0_11, %c0_12] : memref<32x128xf32, #tpu.memory_space<vmem>>, vector<32x128xf32>
      tpu.vector_store %arg7[%c0_11, %c0_12], %12 {strides = array<i32>} : memref<32x128xf32, #tpu.memory_space<vmem>>, vector<32x128xf32>,
    } else {
    }
    %c0 = arith.constant 0 : index
    %c0_1 = arith.constant 0 : index
    %3 = vector.load %arg7[%c0, %c0_1] : memref<32x128xf32, #tpu.memory_space<vmem>>, vector<32x128xf32>
    %c0_2 = arith.constant 0 : index
    %c0_3 = arith.constant 0 : index
    %4 = vector.load %arg3[%c0_2, %c0_3] : memref<32x256xbf16, #tpu.memory_space<vmem>>, vector<32x256xbf16>
    %c0_4 = arith.constant 0 : index
    %c0_5 = arith.constant 0 : index
    %5 = vector.load %arg4[%c0_4, %c0_5] : memref<256x128xbf16, #tpu.memory_space<vmem>>, vector<256x128xbf16>
    %cst = arith.constant dense<0.000000e+00> : vector<32x128xf32>
    %6 = tpu.matmul %4, %5, %cst {dimension_numbers = #tpu.dot_dimension_numbers<[1], [0], [0], [1], [0, 0, 1, 1], [], []>} : vector<32x256xbf16>, vector<256x128xbf16>, vector<32x128xf32> -> vector<32x128xf32>
    %7 = arith.addf %3, %6 : vector<32x128xf32>
    %c0_6 = arith.constant 0 : index
    %c0_7 = arith.constant 0 : index
    %8 = vector.load %arg7[%c0_6, %c0_7] : memref<32x128xf32, #tpu.memory_space<vmem>>, vector<32x128xf32>
    tpu.vector_store %arg7[%c0_6, %c0_7], %7 {strides = array<i32>} : memref<32x128xf32, #tpu.memory_space<vmem>>, vector<32x128xf32>,
    %c0_i32_8 = arith.constant 0 : i32
    %9 = arith.cmpi eq, %arg2, %c0_i32_8 : i32
    %10 = arith.extui %9 : i1 to i32
    %c0_i32_9 = arith.constant 0 : i32
    %11 = arith.cmpi ne, %10, %c0_i32_9 : i32
    scf.if %11 {
      %c0_10 = arith.constant 0 : index
      %c0_11 = arith.constant 0 : index
      %12 = vector.load %arg7[%c0_10, %c0_11] : memref<32x128xf32, #tpu.memory_space<vmem>>, vector<32x128xf32>
      %c0_12 = arith.constant 0 : index
      %c0_13 = arith.constant 0 : index
      %13 = vector.load %arg5[%c0_12, %c0_13] : memref<1x128xf32, #tpu.memory_space<vmem>>, vector<1x128xf32>
      %14 = vector.broadcast %13 : vector<1x128xf32> to vector<32x128xf32>
      %15 = arith.addf %12, %14 : vector<32x128xf32>
      %16 = arith.truncf %15 : vector<32x128xf32> to vector<32x128xbf16>
      %c0_14 = arith.constant 0 : index
      %c0_15 = arith.constant 0 : index
      %17 = vector.load %arg6[%c0_14, %c0_15] : memref<32x128xbf16, #tpu.memory_space<vmem>>, vector<32x128xbf16>
      tpu.vector_store %arg6[%c0_14, %c0_15], %16 {strides = array<i32>} : memref<32x128xbf16, #tpu.memory_space<vmem>>, vector<32x128xbf16>,
    } else {
    }
    return
  }
  func.func @transform_0(%arg0: i32, %arg1: i32, %arg2: i32) -> (i32, i32) {
    %c0_i32 = arith.constant 0 : i32
    return %arg0, %arg2 : i32, i32
  }
  func.func @transform_1(%arg0: i32, %arg1: i32, %arg2: i32) -> (i32, i32) {
    %c0_i32 = arith.constant 0 : i32
    return %arg2, %arg1 : i32, i32
  }
  func.func @transform_2(%arg0: i32, %arg1: i32, %arg2: i32) -> (i32, i32) {
    %c0_i32 = arith.constant 0 : i32
    %c0_i32_0 = arith.constant 0 : i32
    return %c0_i32, %arg1 : i32, i32
  }
  func.func @transform_3(%arg0: i32, %arg1: i32, %arg2: i32) -> (i32, i32) {
    %c0_i32 = arith.constant 0 : i32
    return %arg0, %arg1 : i32, i32
  }
}

module attributes {stable_mosaic.version = 11 : i64} {
  func.func @_matmul_bias_kernel(%arg0: i32, %arg1: i32, %arg2: i32, %arg3: memref<32x128xbf16, #tpu.memory_space<vmem>>, %arg4: memref<128x128xbf16, #tpu.memory_space<vmem>>, %arg5: memref<1x128xf32, #tpu.memory_space<vmem>>, %arg6: memref<32x128xbf16, #tpu.memory_space<vmem>>, %arg7: memref<32x128xf32, #tpu.memory_space<vmem>>) attributes {dimension_semantics = [#tpu.dimension_semantics<parallel>, #tpu.dimension_semantics<parallel>, #tpu.dimension_semantics<arbitrary>], iteration_bounds = array<i64: 1, 1, 3>, scalar_prefetch = 0 : i64, scratch_operands = 1 : i64, tpu.core_type = #tpu.core_type<tc>, window_params = [{transform_indices = @transform_0, window_bounds = array<i64: 32, 128>}, {transform_indices = @transform_1, window_bounds = array<i64: 128, 128>}, {transform_indices = @transform_2, window_bounds = array<i64: 1, 128>}, {transform_indices = @transform_3, window_bounds = array<i64: 32, 128>}]} {
    %c0_i32 = arith.constant 0 : i32
    %0 = arith.cmpi eq, %arg2, %c0_i32 : i32
    %1 = arith.extui %0 : i1 to i32
    %c0_i32_0 = arith.constant 0 : i32
    %2 = arith.cmpi ne, %1, %c0_i32_0 : i32
    scf.if %2 {
      %cst_9 = arith.constant 0.000000e+00 : f32
      %12 = vector.broadcast %cst_9 : f32 to vector<32x128xf32>
      %c0_10 = arith.constant 0 : index
      %c0_11 = arith.constant 0 : index
      %13 = vector.load %arg7[%c0_10, %c0_11] : memref<32x128xf32, #tpu.memory_space<vmem>>, vector<32x128xf32>
      tpu.vector_store %arg7[%c0_10, %c0_11], %12 {strides = array<i32>} : memref<32x128xf32, #tpu.memory_space<vmem>>, vector<32x128xf32>,
    } else {
    }
    %c0 = arith.constant 0 : index
    %c0_1 = arith.constant 0 : index
    %3 = vector.load %arg7[%c0, %c0_1] : memref<32x128xf32, #tpu.memory_space<vmem>>, vector<32x128xf32>
    %c0_2 = arith.constant 0 : index
    %c0_3 = arith.constant 0 : index
    %4 = vector.load %arg3[%c0_2, %c0_3] : memref<32x128xbf16, #tpu.memory_space<vmem>>, vector<32x128xbf16>
    %c0_4 = arith.constant 0 : index
    %c0_5 = arith.constant 0 : index
    %5 = vector.load %arg4[%c0_4, %c0_5] : memref<128x128xbf16, #tpu.memory_space<vmem>>, vector<128x128xbf16>
    %cst = arith.constant dense<0.000000e+00> : vector<32x128xf32>
    %6 = tpu.matmul %4, %5, %cst {dimension_numbers = #tpu.dot_dimension_numbers<[1], [0], [0], [1], [0, 0, 1, 1], [], []>} : vector<32x128xbf16>, vector<128x128xbf16>, vector<32x128xf32> -> vector<32x128xf32>
    %7 = arith.addf %3, %6 : vector<32x128xf32>
    %c0_6 = arith.constant 0 : index
    %c0_7 = arith.constant 0 : index
    %8 = vector.load %arg7[%c0_6, %c0_7] : memref<32x128xf32, #tpu.memory_space<vmem>>, vector<32x128xf32>
    tpu.vector_store %arg7[%c0_6, %c0_7], %7 {strides = array<i32>} : memref<32x128xf32, #tpu.memory_space<vmem>>, vector<32x128xf32>,
    %c2_i32 = arith.constant 2 : i32
    %9 = arith.cmpi eq, %arg2, %c2_i32 : i32
    %10 = arith.extui %9 : i1 to i32
    %c0_i32_8 = arith.constant 0 : i32
    %11 = arith.cmpi ne, %10, %c0_i32_8 : i32
    scf.if %11 {
      %c0_9 = arith.constant 0 : index
      %c0_10 = arith.constant 0 : index
      %12 = vector.load %arg7[%c0_9, %c0_10] : memref<32x128xf32, #tpu.memory_space<vmem>>, vector<32x128xf32>
      %c0_11 = arith.constant 0 : index
      %c0_12 = arith.constant 0 : index
      %13 = vector.load %arg5[%c0_11, %c0_12] : memref<1x128xf32, #tpu.memory_space<vmem>>, vector<1x128xf32>
      %14 = vector.broadcast %13 : vector<1x128xf32> to vector<32x128xf32>
      %15 = arith.addf %12, %14 : vector<32x128xf32>
      %16 = arith.truncf %15 : vector<32x128xf32> to vector<32x128xbf16>
      %c0_13 = arith.constant 0 : index
      %c0_14 = arith.constant 0 : index
      %17 = vector.load %arg6[%c0_13, %c0_14] : memref<32x128xbf16, #tpu.memory_space<vmem>>, vector<32x128xbf16>
      tpu.vector_store %arg6[%c0_13, %c0_14], %16 {strides = array<i32>} : memref<32x128xbf16, #tpu.memory_space<vmem>>, vector<32x128xbf16>,
    } else {
    }
    return
  }
  func.func @transform_0(%arg0: i32, %arg1: i32, %arg2: i32) -> (i32, i32) {
    %c0_i32 = arith.constant 0 : i32
    return %arg0, %arg2 : i32, i32
  }
  func.func @transform_1(%arg0: i32, %arg1: i32, %arg2: i32) -> (i32, i32) {
    %c0_i32 = arith.constant 0 : i32
    return %arg2, %arg1 : i32, i32
  }
  func.func @transform_2(%arg0: i32, %arg1: i32, %arg2: i32) -> (i32, i32) {
    %c0_i32 = arith.constant 0 : i32
    %c0_i32_0 = arith.constant 0 : i32
    return %c0_i32, %arg1 : i32, i32
  }
  func.func @transform_3(%arg0: i32, %arg1: i32, %arg2: i32) -> (i32, i32) {
    %c0_i32 = arith.constant 0 : i32
    return %arg0, %arg1 : i32, i32
  }
}

module attributes {stable_mosaic.version = 11 : i64} {
  func.func @_inorm_residual_kernel(%arg0: i32, %arg1: i32, %arg2: memref<1x16x128xbf16, #tpu.memory_space<vmem>>, %arg3: memref<1x16x128xbf16, #tpu.memory_space<vmem>>, %arg4: memref<1x16x128xbf16, #tpu.memory_space<vmem>>) attributes {dimension_semantics = [#tpu.dimension_semantics<parallel>, #tpu.dimension_semantics<parallel>], iteration_bounds = array<i64: 2, 1>, scalar_prefetch = 0 : i64, scratch_operands = 0 : i64, tpu.core_type = #tpu.core_type<tc>, window_params = [{transform_indices = @transform_0, window_bounds = array<i64: 1, 16, 128>}, {transform_indices = @transform_1, window_bounds = array<i64: 1, 16, 128>}, {transform_indices = @transform_2, window_bounds = array<i64: 1, 16, 128>}]} {
    %c0 = arith.constant 0 : index
    %c0_0 = arith.constant 0 : index
    %c0_1 = arith.constant 0 : index
    %0 = vector.load %arg2[%c0, %c0_0, %c0_1] : memref<1x16x128xbf16, #tpu.memory_space<vmem>>, vector<1x16x128xbf16>
    %1 = arith.extf %0 : vector<1x16x128xbf16> to vector<1x16x128xf32>
    %cst = arith.constant dense<0.000000e+00> : vector<1x128xf32>
    %2 = vector.multi_reduction <add>, %1, %cst [1] : vector<1x16x128xf32> to vector<1x128xf32>
    %3 = vector.shape_cast %2 : vector<1x128xf32> to vector<1x1x128xf32>
    %cst_2 = arith.constant 1.600000e+01 : f32
    %4 = vector.broadcast %cst_2 : f32 to vector<1x1x128xf32>
    %5 = arith.divf %3, %4 : vector<1x1x128xf32>
    %6 = vector.broadcast %5 : vector<1x1x128xf32> to vector<1x16x128xf32>
    %7 = arith.subf %1, %6 : vector<1x16x128xf32>
    %8 = arith.mulf %7, %7 : vector<1x16x128xf32>
    %cst_3 = arith.constant dense<0.000000e+00> : vector<1x128xf32>
    %9 = vector.multi_reduction <add>, %8, %cst_3 [1] : vector<1x16x128xf32> to vector<1x128xf32>
    %10 = vector.shape_cast %9 : vector<1x128xf32> to vector<1x1x128xf32>
    %cst_4 = arith.constant 1.600000e+01 : f32
    %11 = vector.broadcast %cst_4 : f32 to vector<1x1x128xf32>
    %12 = arith.divf %10, %11 : vector<1x1x128xf32>
    %c0_5 = arith.constant 0 : index
    %c0_6 = arith.constant 0 : index
    %c0_7 = arith.constant 0 : index
    %13 = vector.load %arg3[%c0_5, %c0_6, %c0_7] : memref<1x16x128xbf16, #tpu.memory_space<vmem>>, vector<1x16x128xbf16>
    %14 = arith.extf %13 : vector<1x16x128xbf16> to vector<1x16x128xf32>
    %cst_8 = arith.constant 9.99999974E-6 : f32
    %15 = vector.broadcast %cst_8 : f32 to vector<1x1x128xf32>
    %16 = arith.addf %12, %15 : vector<1x1x128xf32>
    %17 = math.rsqrt %16 : vector<1x1x128xf32>
    %18 = vector.broadcast %17 : vector<1x1x128xf32> to vector<1x16x128xf32>
    %19 = arith.mulf %7, %18 : vector<1x16x128xf32>
    %20 = arith.addf %14, %19 : vector<1x16x128xf32>
    %21 = arith.truncf %20 : vector<1x16x128xf32> to vector<1x16x128xbf16>
    %c0_9 = arith.constant 0 : index
    %c0_10 = arith.constant 0 : index
    %c0_11 = arith.constant 0 : index
    %22 = vector.load %arg4[%c0_9, %c0_10, %c0_11] : memref<1x16x128xbf16, #tpu.memory_space<vmem>>, vector<1x16x128xbf16>
    tpu.vector_store %arg4[%c0_9, %c0_10, %c0_11], %21 {strides = array<i32>} : memref<1x16x128xbf16, #tpu.memory_space<vmem>>, vector<1x16x128xbf16>,
    return
  }
  func.func @transform_0(%arg0: i32, %arg1: i32) -> (i32, i32, i32) {
    %c0_i32 = arith.constant 0 : i32
    %c0_i32_0 = arith.constant 0 : i32
    return %arg0, %c0_i32, %arg1 : i32, i32, i32
  }
  func.func @transform_1(%arg0: i32, %arg1: i32) -> (i32, i32, i32) {
    %c0_i32 = arith.constant 0 : i32
    %c0_i32_0 = arith.constant 0 : i32
    return %arg0, %c0_i32, %arg1 : i32, i32, i32
  }
  func.func @transform_2(%arg0: i32, %arg1: i32) -> (i32, i32, i32) {
    %c0_i32 = arith.constant 0 : i32
    %c0_i32_0 = arith.constant 0 : i32
    return %arg0, %c0_i32, %arg1 : i32, i32, i32
  }
}

module attributes {stable_mosaic.version = 11 : i64} {
  func.func @_matmul_bias_kernel(%arg0: i32, %arg1: i32, %arg2: i32, %arg3: memref<32x128xbf16, #tpu.memory_space<vmem>>, %arg4: memref<128x128xbf16, #tpu.memory_space<vmem>>, %arg5: memref<1x128xf32, #tpu.memory_space<vmem>>, %arg6: memref<32x128xbf16, #tpu.memory_space<vmem>>, %arg7: memref<32x128xf32, #tpu.memory_space<vmem>>) attributes {dimension_semantics = [#tpu.dimension_semantics<parallel>, #tpu.dimension_semantics<parallel>, #tpu.dimension_semantics<arbitrary>], iteration_bounds = array<i64: 1, 1, 1>, scalar_prefetch = 0 : i64, scratch_operands = 1 : i64, tpu.core_type = #tpu.core_type<tc>, window_params = [{transform_indices = @transform_0, window_bounds = array<i64: 32, 128>}, {transform_indices = @transform_1, window_bounds = array<i64: 128, 128>}, {transform_indices = @transform_2, window_bounds = array<i64: 1, 128>}, {transform_indices = @transform_3, window_bounds = array<i64: 32, 128>}]} {
    %c0_i32 = arith.constant 0 : i32
    %0 = arith.cmpi eq, %arg2, %c0_i32 : i32
    %1 = arith.extui %0 : i1 to i32
    %c0_i32_0 = arith.constant 0 : i32
    %2 = arith.cmpi ne, %1, %c0_i32_0 : i32
    scf.if %2 {
      %cst_10 = arith.constant 0.000000e+00 : f32
      %12 = vector.broadcast %cst_10 : f32 to vector<32x128xf32>
      %c0_11 = arith.constant 0 : index
      %c0_12 = arith.constant 0 : index
      %13 = vector.load %arg7[%c0_11, %c0_12] : memref<32x128xf32, #tpu.memory_space<vmem>>, vector<32x128xf32>
      tpu.vector_store %arg7[%c0_11, %c0_12], %12 {strides = array<i32>} : memref<32x128xf32, #tpu.memory_space<vmem>>, vector<32x128xf32>,
    } else {
    }
    %c0 = arith.constant 0 : index
    %c0_1 = arith.constant 0 : index
    %3 = vector.load %arg7[%c0, %c0_1] : memref<32x128xf32, #tpu.memory_space<vmem>>, vector<32x128xf32>
    %c0_2 = arith.constant 0 : index
    %c0_3 = arith.constant 0 : index
    %4 = vector.load %arg3[%c0_2, %c0_3] : memref<32x128xbf16, #tpu.memory_space<vmem>>, vector<32x128xbf16>
    %c0_4 = arith.constant 0 : index
    %c0_5 = arith.constant 0 : index
    %5 = vector.load %arg4[%c0_4, %c0_5] : memref<128x128xbf16, #tpu.memory_space<vmem>>, vector<128x128xbf16>
    %cst = arith.constant dense<0.000000e+00> : vector<32x128xf32>
    %6 = tpu.matmul %4, %5, %cst {dimension_numbers = #tpu.dot_dimension_numbers<[1], [0], [0], [1], [0, 0, 1, 1], [], []>} : vector<32x128xbf16>, vector<128x128xbf16>, vector<32x128xf32> -> vector<32x128xf32>
    %7 = arith.addf %3, %6 : vector<32x128xf32>
    %c0_6 = arith.constant 0 : index
    %c0_7 = arith.constant 0 : index
    %8 = vector.load %arg7[%c0_6, %c0_7] : memref<32x128xf32, #tpu.memory_space<vmem>>, vector<32x128xf32>
    tpu.vector_store %arg7[%c0_6, %c0_7], %7 {strides = array<i32>} : memref<32x128xf32, #tpu.memory_space<vmem>>, vector<32x128xf32>,
    %c0_i32_8 = arith.constant 0 : i32
    %9 = arith.cmpi eq, %arg2, %c0_i32_8 : i32
    %10 = arith.extui %9 : i1 to i32
    %c0_i32_9 = arith.constant 0 : i32
    %11 = arith.cmpi ne, %10, %c0_i32_9 : i32
    scf.if %11 {
      %c0_10 = arith.constant 0 : index
      %c0_11 = arith.constant 0 : index
      %12 = vector.load %arg7[%c0_10, %c0_11] : memref<32x128xf32, #tpu.memory_space<vmem>>, vector<32x128xf32>
      %c0_12 = arith.constant 0 : index
      %c0_13 = arith.constant 0 : index
      %13 = vector.load %arg5[%c0_12, %c0_13] : memref<1x128xf32, #tpu.memory_space<vmem>>, vector<1x128xf32>
      %14 = vector.broadcast %13 : vector<1x128xf32> to vector<32x128xf32>
      %15 = arith.addf %12, %14 : vector<32x128xf32>
      %16 = arith.truncf %15 : vector<32x128xf32> to vector<32x128xbf16>
      %c0_14 = arith.constant 0 : index
      %c0_15 = arith.constant 0 : index
      %17 = vector.load %arg6[%c0_14, %c0_15] : memref<32x128xbf16, #tpu.memory_space<vmem>>, vector<32x128xbf16>
      tpu.vector_store %arg6[%c0_14, %c0_15], %16 {strides = array<i32>} : memref<32x128xbf16, #tpu.memory_space<vmem>>, vector<32x128xbf16>,
    } else {
    }
    return
  }
  func.func @transform_0(%arg0: i32, %arg1: i32, %arg2: i32) -> (i32, i32) {
    %c0_i32 = arith.constant 0 : i32
    return %arg0, %arg2 : i32, i32
  }
  func.func @transform_1(%arg0: i32, %arg1: i32, %arg2: i32) -> (i32, i32) {
    %c0_i32 = arith.constant 0 : i32
    return %arg2, %arg1 : i32, i32
  }
  func.func @transform_2(%arg0: i32, %arg1: i32, %arg2: i32) -> (i32, i32) {
    %c0_i32 = arith.constant 0 : i32
    %c0_i32_0 = arith.constant 0 : i32
    return %c0_i32, %arg1 : i32, i32
  }
  func.func @transform_3(%arg0: i32, %arg1: i32, %arg2: i32) -> (i32, i32) {
    %c0_i32 = arith.constant 0 : i32
    return %arg0, %arg1 : i32, i32
  }
}

module attributes {stable_mosaic.version = 11 : i64} {
  func.func @_matmul_bias_kernel(%arg0: i32, %arg1: i32, %arg2: i32, %arg3: memref<512x256xbf16, #tpu.memory_space<vmem>>, %arg4: memref<256x128xbf16, #tpu.memory_space<vmem>>, %arg5: memref<1x128xf32, #tpu.memory_space<vmem>>, %arg6: memref<512x128xbf16, #tpu.memory_space<vmem>>, %arg7: memref<512x128xf32, #tpu.memory_space<vmem>>) attributes {dimension_semantics = [#tpu.dimension_semantics<parallel>, #tpu.dimension_semantics<parallel>, #tpu.dimension_semantics<arbitrary>], iteration_bounds = array<i64: 1, 1, 2>, scalar_prefetch = 0 : i64, scratch_operands = 1 : i64, tpu.core_type = #tpu.core_type<tc>, window_params = [{transform_indices = @transform_0, window_bounds = array<i64: 512, 256>}, {transform_indices = @transform_1, window_bounds = array<i64: 256, 128>}, {transform_indices = @transform_2, window_bounds = array<i64: 1, 128>}, {transform_indices = @transform_3, window_bounds = array<i64: 512, 128>}]} {
    %c0_i32 = arith.constant 0 : i32
    %0 = arith.cmpi eq, %arg2, %c0_i32 : i32
    %1 = arith.extui %0 : i1 to i32
    %c0_i32_0 = arith.constant 0 : i32
    %2 = arith.cmpi ne, %1, %c0_i32_0 : i32
    scf.if %2 {
      %cst_9 = arith.constant 0.000000e+00 : f32
      %12 = vector.broadcast %cst_9 : f32 to vector<512x128xf32>
      %c0_10 = arith.constant 0 : index
      %c0_11 = arith.constant 0 : index
      %13 = vector.load %arg7[%c0_10, %c0_11] : memref<512x128xf32, #tpu.memory_space<vmem>>, vector<512x128xf32>
      tpu.vector_store %arg7[%c0_10, %c0_11], %12 {strides = array<i32>} : memref<512x128xf32, #tpu.memory_space<vmem>>, vector<512x128xf32>,
    } else {
    }
    %c0 = arith.constant 0 : index
    %c0_1 = arith.constant 0 : index
    %3 = vector.load %arg7[%c0, %c0_1] : memref<512x128xf32, #tpu.memory_space<vmem>>, vector<512x128xf32>
    %c0_2 = arith.constant 0 : index
    %c0_3 = arith.constant 0 : index
    %4 = vector.load %arg3[%c0_2, %c0_3] : memref<512x256xbf16, #tpu.memory_space<vmem>>, vector<512x256xbf16>
    %c0_4 = arith.constant 0 : index
    %c0_5 = arith.constant 0 : index
    %5 = vector.load %arg4[%c0_4, %c0_5] : memref<256x128xbf16, #tpu.memory_space<vmem>>, vector<256x128xbf16>
    %cst = arith.constant dense<0.000000e+00> : vector<512x128xf32>
    %6 = tpu.matmul %4, %5, %cst {dimension_numbers = #tpu.dot_dimension_numbers<[1], [0], [0], [1], [0, 0, 1, 1], [], []>} : vector<512x256xbf16>, vector<256x128xbf16>, vector<512x128xf32> -> vector<512x128xf32>
    %7 = arith.addf %3, %6 : vector<512x128xf32>
    %c0_6 = arith.constant 0 : index
    %c0_7 = arith.constant 0 : index
    %8 = vector.load %arg7[%c0_6, %c0_7] : memref<512x128xf32, #tpu.memory_space<vmem>>, vector<512x128xf32>
    tpu.vector_store %arg7[%c0_6, %c0_7], %7 {strides = array<i32>} : memref<512x128xf32, #tpu.memory_space<vmem>>, vector<512x128xf32>,
    %c1_i32 = arith.constant 1 : i32
    %9 = arith.cmpi eq, %arg2, %c1_i32 : i32
    %10 = arith.extui %9 : i1 to i32
    %c0_i32_8 = arith.constant 0 : i32
    %11 = arith.cmpi ne, %10, %c0_i32_8 : i32
    scf.if %11 {
      %c0_9 = arith.constant 0 : index
      %c0_10 = arith.constant 0 : index
      %12 = vector.load %arg7[%c0_9, %c0_10] : memref<512x128xf32, #tpu.memory_space<vmem>>, vector<512x128xf32>
      %c0_11 = arith.constant 0 : index
      %c0_12 = arith.constant 0 : index
      %13 = vector.load %arg5[%c0_11, %c0_12] : memref<1x128xf32, #tpu.memory_space<vmem>>, vector<1x128xf32>
      %14 = vector.broadcast %13 : vector<1x128xf32> to vector<512x128xf32>
      %15 = arith.addf %12, %14 : vector<512x128xf32>
      %16 = math.tanh %15 : vector<512x128xf32>
      %17 = arith.truncf %16 : vector<512x128xf32> to vector<512x128xbf16>
      %c0_13 = arith.constant 0 : index
      %c0_14 = arith.constant 0 : index
      %18 = vector.load %arg6[%c0_13, %c0_14] : memref<512x128xbf16, #tpu.memory_space<vmem>>, vector<512x128xbf16>
      tpu.vector_store %arg6[%c0_13, %c0_14], %17 {strides = array<i32>} : memref<512x128xbf16, #tpu.memory_space<vmem>>, vector<512x128xbf16>,
    } else {
    }
    return
  }
  func.func @transform_0(%arg0: i32, %arg1: i32, %arg2: i32) -> (i32, i32) {
    %c0_i32 = arith.constant 0 : i32
    return %arg0, %arg2 : i32, i32
  }
  func.func @transform_1(%arg0: i32, %arg1: i32, %arg2: i32) -> (i32, i32) {
    %c0_i32 = arith.constant 0 : i32
    return %arg2, %arg1 : i32, i32
  }
  func.func @transform_2(%arg0: i32, %arg1: i32, %arg2: i32) -> (i32, i32) {
    %c0_i32 = arith.constant 0 : i32
    %c0_i32_0 = arith.constant 0 : i32
    return %c0_i32, %arg1 : i32, i32
  }
  func.func @transform_3(%arg0: i32, %arg1: i32, %arg2: i32) -> (i32, i32) {
    %c0_i32 = arith.constant 0 : i32
    return %arg0, %arg1 : i32, i32
  }
}

</mosaic_0001>

<llo_original>
// kernel: generator_forward.20
$region0: #{generator_forward.20}
  #allocation0 [shape = 'u32[]', space=smem, size = 0x4, offset = 0x4, fixed_abs, tag = 'smem constant byte address 0x4 - core index']
  #allocation1 [shape = 'u32[72,128]{1,0:T(1,128)}', space=vmem, size = 0x9000, scoped, tag = 'internal scratch']
  %s0 = inlined_call_operand.vmem [shape: bf16[2,256,128], index: 0, kind: input, shape index: {}]
  %s1 = inlined_call_operand.vmem [shape: bf16[2,256,128], index: 1, kind: output, shape index: {}]
  %s2 = sld [smem:[#allocation0]]
  $region37: #{generator_forward.20} parent=0
    _
  %s4 = ssub.s32 1, %s2
  %s5 = scalar_select 0, %s4, %s2
  loop: start=0, step=1, limit=4
  $region2: #{generator_forward.20} parent=0 // loop_pre_header
    _
  $region3: #{generator_forward.20} parent=0 // loop_header
    %s7 = sphi 0, %s11
    %p8 = scmp.ge.s32.totalorder %s7, 4
    %s14 = sphi 0, %s26
    %s15 = sphi 0, %s22
    %s16 = sphi 0, %s14
    %s17 = sphi 0, %s15
    %s18 = sphi 0, %s16
    %s19 = sphi 0, %s17
    %s31 = sphi 0, %s33
    %s34 = sphi 0, %s31
    %s35 = sphi 0, %s34
    %s51 = sphi 0, %s35
    %s59 = sphi 0, %s61
    %s62 = sphi 0, %s59
    %s63 = sphi 0, %s62
    %s79 = sphi 0, %s63
  $region4: #{generator_forward.20} parent=0 // loop_header_branch
    %10 = sbr.rel (%p8) target = $region8
  $region5: #{generator_forward.20} parent=0 // loop_body
    %s12 = ssub.s32 %s7, 1
    %s13 = ssub.s32 %s7, 2
    %s20 = sadd.s32 1, %s15
    %p21 = scmp.ge.s32.totalorder %s20, 1
    %s22 = scalar_select %p21, 0, %s20
    %s23 = sadd.s32 1, %s14
    %s24 = scalar_select %p21, %s23, %s14
    %p25 = scmp.ge.s32.totalorder %s24, 2
    %s26 = scalar_select %p25, 0, %s24
    %s27 = ssub.s32 %s14, %s26
    %s28 = ssub.s32 %s15, %s22
    %s29 = sor.u32 %s27, %s28
    %p30 = scmp.eq.s32.totalorder %s29, 0
    %s32 = sadd.s32 %s31, 1
    %s33 = scalar_select %p30, %s31, %s32
    %p36 = pneg %p30
    %p37 = scmp.eq.s32.totalorder %s7, 1
    %p38 = por %p36, %p37
    %p39 = scmp.ne.s32.totalorder %s31, %s34
    %p40 = scmp.eq.s32.totalorder %s7, 0
    %p41 = por %p39, %p40
    %p42 = scmp.ne.s32.totalorder %s31, %s34
    %p43 = scmp.eq.s32.totalorder %s12, 1
    %p44 = por %p42, %p43
    %p45 = scmp.ne.s32.totalorder %s34, %s35
    %p46 = scmp.eq.s32.totalorder %s12, 0
    %p47 = por %p45, %p46
    %p48 = scmp.ne.s32.totalorder %s34, %s35
    %p49 = scmp.eq.s32.totalorder %s13, 1
    %p50 = por %p48, %p49
    %p52 = scmp.ne.s32.totalorder %s35, %s51
    %p53 = scmp.eq.s32.totalorder %s13, 0
    %p54 = por %p52, %p53
    %s55 = ssub.s32 %s14, %s26
    %s56 = ssub.s32 %s15, %s22
    %s57 = sor.u32 %s55, %s56
    %p58 = scmp.eq.s32.totalorder %s57, 0
    %s60 = sadd.s32 %s59, 1
    %s61 = scalar_select %p58, %s59, %s60
    %p64 = pneg %p58
    %p65 = scmp.eq.s32.totalorder %s7, 1
    %p66 = por %p64, %p65
    %p67 = scmp.ne.s32.totalorder %s59, %s62
    %p68 = scmp.eq.s32.totalorder %s7, 0
    %p69 = por %p67, %p68
    %p70 = scmp.ne.s32.totalorder %s59, %s62
    %p71 = scmp.eq.s32.totalorder %s12, 1
    %p72 = por %p70, %p71
    %p73 = scmp.ne.s32.totalorder %s62, %s63
    %p74 = scmp.eq.s32.totalorder %s12, 0
    %p75 = por %p73, %p74
    %p76 = scmp.ne.s32.totalorder %s62, %s63
    %p77 = scmp.eq.s32.totalorder %s13, 1
    %p78 = por %p76, %p77
    %p80 = scmp.ne.s32.totalorder %s63, %s79
    %p81 = scmp.eq.s32.totalorder %s13, 0
    %p82 = por %p80, %p81
    %p83 = scmp.le.s32.totalorder 1, %s7
    %p84 = scmp.lt.s32.totalorder %s7, 3
    %p85 = pnand %p83, %p84
    %p86 = pneg %p85
    // Predicated region
    $region9: #{generator_forward.20} parent=5 // pred_check
      _
    $region10: #{generator_forward.20} parent=5 // pred_check_branch
      %88 = sbr.rel (%p85) target = $region12
    $region11: #{generator_forward.20} parent=5 // pred_region
      %s89 = ssub.s32 %s7, 1
    $region12: #{generator_forward.20} parent=5 // pred_fallthru
      _
    %p90 = scmp.lt.s32.totalorder %s7, 2
    // Predicated region
    $region13: #{generator_forward.20} parent=5 // pred_check
      %p91 = pneg %p90
    $region14: #{generator_forward.20} parent=5 // pred_check_branch
      %93 = sbr.rel (%p91) target = $region16
    $region15: #{generator_forward.20} parent=5 // pred_region
      // Predicated region
      $region17: #{generator_forward.20} parent=15 // pred_check
        %p94 = pneg %p41
      $region18: #{generator_forward.20} parent=15 // pred_check_branch
        %96 = sbr.rel (%p94) target = $region20
      $region19: #{generator_forward.20} parent=15 // pred_region
        %p97 = scmp.lt.s32.totalorder %s14, 1
        %s98 = scalar_select %p97, %s14, 1
        %p99 = scmp.lt.s32.totalorder %s15, 0
        %s100 = scalar_select %p99, %s15, 0
        %s101 = smul.addr %s98, 32
        %s102 = sadd.s32 %s100, %s101
        %s103 = smul.addr %s102, 4
        %s104 = scalar_lea.vmem %s0, %s103
      $region20: #{generator_forward.20} parent=15 // pred_fallthru
        _
    $region16: #{generator_forward.20} parent=5 // pred_fallthru
      _
    %p105 = scmp.le.s32.totalorder 1, %s7
    %p106 = scmp.lt.s32.totalorder %s7, 3
    %p107 = pnand %p105, %p106
    %p108 = pneg %p107
    // Predicated region
    $region21: #{generator_forward.20} parent=5 // pred_check
      _
    $region22: #{generator_forward.20} parent=5 // pred_check_branch
      %110 = sbr.rel (%p107) target = $region24
    $region23: #{generator_forward.20} parent=5 // pred_region
      %s111 = ssub.s32 %s7, 1
      %p112 = scmp.lt.s32.totalorder %s16, 1
      %s113 = scalar_select %p112, %s16, 1
      %p114 = scmp.lt.s32.totalorder %s17, 0
      %s115 = scalar_select %p114, %s17, 0
      %s116 = smul.addr %s113, 32
      %s117 = sadd.s32 %s115, %s116
      %s118 = smul.addr %s117, 4
      %s119 = scalar_lea.vmem %s0, %s118
      %p120 = pneg %p47
      %p121 = pneg %p44
      %p122 = pneg %p75
      %p123 = pneg %p72
      %p124 = scmp.lt.s32.totalorder %s16, 1
      %s125 = scalar_select %p124, %s16, 1
      %p126 = scmp.lt.s32.totalorder %s17, 0
      %s127 = scalar_select %p126, %s17, 0
      %s128 = smul.addr %s125, 32
      %s129 = sadd.s32 %s127, %s128
      %s130 = smul.addr %s129, 4
      %s131 = scalar_lea.vmem %s1, %s130
      %p132 = scmp.lt.s32.totalorder %s16, 1
      %s133 = scalar_select %p132, %s16, 1
      %p134 = scmp.lt.s32.totalorder %s17, 0
      %s135 = scalar_select %p134, %s17, 0
      %s136 = smul.addr %s133, 32
      %s137 = sadd.s32 %s135, %s136
      %s138 = smul.addr %s137, 4
      %s139 = scalar_lea.vmem %s0, %s138
      %p140 = scmp.lt.s32.totalorder %s16, 1
      %s141 = scalar_select %p140, %s16, 1
      %p142 = scmp.lt.s32.totalorder %s17, 0
      %s143 = scalar_select %p142, %s17, 0
      %s144 = smul.addr %s141, 32
      %s145 = sadd.s32 %s143, %s144
      %s146 = smul.addr %s145, 4
      %s147 = scalar_lea.vmem %s1, %s146
      %v148 = vld [vmem:[%s139] sm:$0xf]
      %v149 = vld [vmem:[%s139 + $0x4] sm:$0xf]
      %v150 = vld [vmem:[%s139 + $0x8] sm:$0xf]
      %v151 = vld [vmem:[%s139 + $0xc] sm:$0xf]
      %v152 = vld [vmem:[%s139 + $0x10] sm:$0xf]
      %v153 = vld [vmem:[%s139 + $0x14] sm:$0xf]
      %v154 = vld [vmem:[%s139 + $0x18] sm:$0xf]
      %v155 = vld [vmem:[%s139 + $0x1c] sm:$0xf]
      %v156 = vld [vmem:[%s139 + $0x20] sm:$0xf]
      %v157 = vld [vmem:[%s139 + $0x24] sm:$0xf]
      %v158 = vld [vmem:[%s139 + $0x28] sm:$0xf]
      %v159 = vld [vmem:[%s139 + $0x2c] sm:$0xf]
      %v160 = vld [vmem:[%s139 + $0x30] sm:$0xf]
      %v161 = vld [vmem:[%s139 + $0x34] sm:$0xf]
      %v162 = vld [vmem:[%s139 + $0x38] sm:$0xf]
      %v163 = vld [vmem:[%s139 + $0x3c] sm:$0xf]
      %v164 = vld [vmem:[%s139 + $0x40] sm:$0xf]
      %v165 = vld [vmem:[%s139 + $0x44] sm:$0xf]
      %v166 = vld [vmem:[%s139 + $0x48] sm:$0xf]
      %v167 = vld [vmem:[%s139 + $0x4c] sm:$0xf]
      %v168 = vld [vmem:[%s139 + $0x50] sm:$0xf]
      %v169 = vld [vmem:[%s139 + $0x54] sm:$0xf]
      %v170 = vld [vmem:[%s139 + $0x58] sm:$0xf]
      %v171 = vld [vmem:[%s139 + $0x5c] sm:$0xf]
      %v172 = vld [vmem:[%s139 + $0x60] sm:$0xf]
      %v173 = vld [vmem:[%s139 + $0x64] sm:$0xf]
      %v174 = vld [vmem:[%s139 + $0x68] sm:$0xf]
      %v175 = vld [vmem:[%s139 + $0x6c] sm:$0xf]
      %v176 = vld [vmem:[%s139 + $0x70] sm:$0xf]
      %v177 = vld [vmem:[%s139 + $0x74] sm:$0xf]
      %v178 = vld [vmem:[%s139 + $0x78] sm:$0xf]
      %v179 = vld [vmem:[%s139 + $0x7c] sm:$0xf]
      %v180 = vunpack.c.l.bf16 %v148
      %v181 = vunpack.c.l.bf16 %v149
      %v182 = vunpack.c.l.bf16 %v150
      %v183 = vunpack.c.l.bf16 %v151
      %v184 = vunpack.c.l.bf16 %v152
      %v185 = vunpack.c.l.bf16 %v153
      %v186 = vunpack.c.l.bf16 %v154
      %v187 = vunpack.c.l.bf16 %v155
      %v188 = vunpack.c.l.bf16 %v156
      %v189 = vunpack.c.l.bf16 %v157
      %v190 = vunpack.c.l.bf16 %v158
      %v191 = vunpack.c.l.bf16 %v159
      %v192 = vunpack.c.l.bf16 %v160
      %v193 = vunpack.c.l.bf16 %v161
      %v194 = vunpack.c.l.bf16 %v162
      %v195 = vunpack.c.l.bf16 %v163
      %v196 = vunpack.c.l.bf16 %v164
      %v197 = vunpack.c.l.bf16 %v165
      %v198 = vunpack.c.l.bf16 %v166
      %v199 = vunpack.c.l.bf16 %v167
      %v200 = vunpack.c.l.bf16 %v168
      %v201 = vunpack.c.l.bf16 %v169
      %v202 = vunpack.c.l.bf16 %v170
      %v203 = vunpack.c.l.bf16 %v171
      %v204 = vunpack.c.l.bf16 %v172
      %v205 = vunpack.c.l.bf16 %v173
      %v206 = vunpack.c.l.bf16 %v174
      %v207 = vunpack.c.l.bf16 %v175
      %v208 = vunpack.c.l.bf16 %v176
      %v209 = vunpack.c.l.bf16 %v177
      %v210 = vunpack.c.l.bf16 %v178
      %v211 = vunpack.c.l.bf16 %v179
      %v212 = vadd.f32 %v180, %v181
      %v213 = vadd.f32 %v212, %v182
      %v214 = vadd.f32 %v213, %v183
      %v215 = vadd.f32 %v214, %v184
      %v216 = vadd.f32 %v215, %v185
      %v217 = vadd.f32 %v216, %v186
      %v218 = vadd.f32 %v217, %v187
      %v219 = vadd.f32 %v218, %v188
      %v220 = vadd.f32 %v219, %v189
      %v221 = vadd.f32 %v220, %v190
      %v222 = vadd.f32 %v221, %v191
      %v223 = vadd.f32 %v222, %v192
      %v224 = vadd.f32 %v223, %v193
      %v225 = vadd.f32 %v224, %v194
      %v226 = vadd.f32 %v225, %v195
      %v227 = vadd.f32 %v226, %v196
      %v228 = vadd.f32 %v227, %v197
      %v229 = vadd.f32 %v228, %v198
      %v230 = vadd.f32 %v229, %v199
      %v231 = vadd.f32 %v230, %v200
      %v232 = vadd.f32 %v231, %v201
      %v233 = vadd.f32 %v232, %v202
      %v234 = vadd.f32 %v233, %v203
      %v235 = vadd.f32 %v234, %v204
      %v236 = vadd.f32 %v235, %v205
      %v237 = vadd.f32 %v236, %v206
      %v238 = vadd.f32 %v237, %v207
      %v239 = vadd.f32 %v238, %v208
      %v240 = vadd.f32 %v239, %v209
      %v241 = vadd.f32 %v240, %v210
      %v242 = vadd.f32 %v241, %v211
      %v243 = vrot.slane %v242, 4
      %v244 = vadd.f32 %v242, %v243
      %v245 = vrot.slane %v244, 2
      %v246 = vadd.f32 %v244, %v245
      %v247 = vrot.slane %v246, 1
      %v248 = vadd.f32 %v246, %v247
      %v249 = vrcp.pop 256.0
      %v250 = vmul.f32 256.0, %v249
      %v251 = vsub.f32 1.0, %v250
      %v252 = vmul.f32 %v249, %v251
      %v253 = vadd.f32 %v249, %v252
      %vm254 = vweird.f32 %v249
      %v255 = vsel %vm254, %v249, %v253
      %v256 = vmul.f32 %v248, %v255
      %v257 = vsub.f32 %v180, %v256
      %v258 = vsub.f32 %v181, %v256
      %v259 = vsub.f32 %v182, %v256
      %v260 = vsub.f32 %v183, %v256
      %v261 = vsub.f32 %v184, %v256
      %v262 = vsub.f32 %v185, %v256
      %v263 = vsub.f32 %v186, %v256
      %v264 = vsub.f32 %v187, %v256
      %v265 = vsub.f32 %v188, %v256
      %v266 = vsub.f32 %v189, %v256
      %v267 = vsub.f32 %v190, %v256
      %v268 = vsub.f32 %v191, %v256
      %v269 = vsub.f32 %v192, %v256
      %v270 = vsub.f32 %v193, %v256
      %v271 = vsub.f32 %v194, %v256
      %v272 = vsub.f32 %v195, %v256
      %v273 = vsub.f32 %v196, %v256
      %v274 = vsub.f32 %v197, %v256
      %v275 = vsub.f32 %v198, %v256
      %v276 = vsub.f32 %v199, %v256
      %v277 = vsub.f32 %v200, %v256
      %v278 = vsub.f32 %v201, %v256
      %v279 = vsub.f32 %v202, %v256
      %v280 = vsub.f32 %v203, %v256
      %v281 = vsub.f32 %v204, %v256
      %v282 = vsub.f32 %v205, %v256
      %v283 = vsub.f32 %v206, %v256
      %v284 = vsub.f32 %v207, %v256
      %v285 = vsub.f32 %v208, %v256
      %v286 = vsub.f32 %v209, %v256
      %v287 = vsub.f32 %v210, %v256
      %v288 = vsub.f32 %v211, %v256
      %v289 = vmul.f32 %v257, %v257
      %v290 = vmul.f32 %v258, %v258
      %v291 = vmul.f32 %v259, %v259
      %v292 = vmul.f32 %v260, %v260
      %v293 = vmul.f32 %v261, %v261
      %v294 = vmul.f32 %v262, %v262
      %v295 = vmul.f32 %v263, %v263
      %v296 = vmul.f32 %v264, %v264
      %v297 = vmul.f32 %v265, %v265
      %v298 = vmul.f32 %v266, %v266
      %v299 = vmul.f32 %v267, %v267
      %v300 = vmul.f32 %v268, %v268
      %v301 = vmul.f32 %v269, %v269
      %v302 = vmul.f32 %v270, %v270
      %v303 = vmul.f32 %v271, %v271
      %v304 = vmul.f32 %v272, %v272
      %v305 = vmul.f32 %v273, %v273
      %v306 = vmul.f32 %v274, %v274
      %v307 = vmul.f32 %v275, %v275
      %v308 = vmul.f32 %v276, %v276
      %v309 = vmul.f32 %v277, %v277
      %v310 = vmul.f32 %v278, %v278
      %v311 = vmul.f32 %v279, %v279
      %v312 = vmul.f32 %v280, %v280
      %v313 = vmul.f32 %v281, %v281
      %v314 = vmul.f32 %v282, %v282
      %v315 = vmul.f32 %v283, %v283
      %v316 = vmul.f32 %v284, %v284
      %v317 = vmul.f32 %v285, %v285
      %v318 = vmul.f32 %v286, %v286
      %v319 = vmul.f32 %v287, %v287
      %v320 = vmul.f32 %v288, %v288
      %v321 = vadd.f32 %v289, %v290
      %v322 = vadd.f32 %v321, %v291
      %v323 = vadd.f32 %v322, %v292
      %v324 = vadd.f32 %v323, %v293
      %v325 = vadd.f32 %v324, %v294
      %v326 = vadd.f32 %v325, %v295
      %v327 = vadd.f32 %v326, %v296
      %v328 = vadd.f32 %v327, %v297
      %v329 = vadd.f32 %v328, %v298
      %v330 = vadd.f32 %v329, %v299
      %v331 = vadd.f32 %v330, %v300
      %v332 = vadd.f32 %v331, %v301
      %v333 = vadd.f32 %v332, %v302
      %v334 = vadd.f32 %v333, %v303
      %v335 = vadd.f32 %v334, %v304
      %v336 = vadd.f32 %v335, %v305
      %v337 = vadd.f32 %v336, %v306
      %v338 = vadd.f32 %v337, %v307
      %v339 = vadd.f32 %v338, %v308
      %v340 = vadd.f32 %v339, %v309
      %v341 = vadd.f32 %v340, %v310
      %v342 = vadd.f32 %v341, %v311
      %v343 = vadd.f32 %v342, %v312
      %v344 = vadd.f32 %v343, %v313
      %v345 = vadd.f32 %v344, %v314
      %v346 = vadd.f32 %v345, %v315
      %v347 = vadd.f32 %v346, %v316
      %v348 = vadd.f32 %v347, %v317
      %v349 = vadd.f32 %v348, %v318
      %v350 = vadd.f32 %v349, %v319
      %v351 = vadd.f32 %v350, %v320
      %v352 = vrot.slane %v351, 4
      %v353 = vadd.f32 %v351, %v352
      %v354 = vrot.slane %v353, 2
      %v355 = vadd.f32 %v353, %v354
      %v356 = vrot.slane %v355, 1
      %v357 = vadd.f32 %v355, %v356
      %v358 = vmul.f32 %v357, %v255
      %v359 = vadd.f32 %v358, 1e-05
      %v360 = vrsqrt.pop %v359
      %v361 = vmul.f32 %v360, %v359
      %v362 = vmul.f32 %v361, %v360
      %v363 = vmul.f32 0.5, %v362
      %v364 = vsub.f32 1.5, %v363
      %v365 = vmul.f32 %v360, %v364
      %vm366 = vweird.f32 %v359
      %vm367 = vweird.f32 %v360
      %vm368 = vmor %vm366, %vm367
      %v369 = vsel %vm368, %v360, %v365
      %v370 = vmul.f32 %v257, %v369
      %v371 = vmul.f32 %v258, %v369
      %v372 = vmul.f32 %v259, %v369
      %v373 = vmul.f32 %v260, %v369
      %v374 = vmul.f32 %v261, %v369
      %v375 = vmul.f32 %v262, %v369
      %v376 = vmul.f32 %v263, %v369
      %v377 = vmul.f32 %v264, %v369
      %v378 = vmul.f32 %v265, %v369
      %v379 = vmul.f32 %v266, %v369
      %v380 = vmul.f32 %v267, %v369
      %v381 = vmul.f32 %v268, %v369
      %v382 = vmul.f32 %v269, %v369
      %v383 = vmul.f32 %v270, %v369
      %v384 = vmul.f32 %v271, %v369
      %v385 = vmul.f32 %v272, %v369
      %v386 = vmul.f32 %v273, %v369
      %v387 = vmul.f32 %v274, %v369
      %v388 = vmul.f32 %v275, %v369
      %v389 = vmul.f32 %v276, %v369
      %v390 = vmul.f32 %v277, %v369
      %v391 = vmul.f32 %v278, %v369
      %v392 = vmul.f32 %v279, %v369
      %v393 = vmul.f32 %v280, %v369
      %v394 = vmul.f32 %v281, %v369
      %v395 = vmul.f32 %v282, %v369
      %v396 = vmul.f32 %v283, %v369
      %v397 = vmul.f32 %v284, %v369
      %v398 = vmul.f32 %v285, %v369
      %v399 = vmul.f32 %v286, %v369
      %v400 = vmul.f32 %v287, %v369
      %v401 = vmul.f32 %v288, %v369
      %v402 = vmax.f32 %v370, 0.0
      %v403 = vmax.f32 %v371, 0.0
      %v404 = vmax.f32 %v372, 0.0
      %v405 = vmax.f32 %v373, 0.0
      %v406 = vmax.f32 %v374, 0.0
      %v407 = vmax.f32 %v375, 0.0
      %v408 = vmax.f32 %v376, 0.0
      %v409 = vmax.f32 %v377, 0.0
      %v410 = vmax.f32 %v378, 0.0
      %v411 = vmax.f32 %v379, 0.0
      %v412 = vmax.f32 %v380, 0.0
      %v413 = vmax.f32 %v381, 0.0
      %v414 = vmax.f32 %v382, 0.0
      %v415 = vmax.f32 %v383, 0.0
      %v416 = vmax.f32 %v384, 0.0
      %v417 = vmax.f32 %v385, 0.0
      %v418 = vmax.f32 %v386, 0.0
      %v419 = vmax.f32 %v387, 0.0
      %v420 = vmax.f32 %v388, 0.0
      %v421 = vmax.f32 %v389, 0.0
      %v422 = vmax.f32 %v390, 0.0
      %v423 = vmax.f32 %v391, 0.0
      %v424 = vmax.f32 %v392, 0.0
      %v425 = vmax.f32 %v393, 0.0
      %v426 = vmax.f32 %v394, 0.0
      %v427 = vmax.f32 %v395, 0.0
      %v428 = vmax.f32 %v396, 0.0
      %v429 = vmax.f32 %v397, 0.0
      %v430 = vmax.f32 %v398, 0.0
      %v431 = vmax.f32 %v399, 0.0
      %v432 = vmax.f32 %v400, 0.0
      %v433 = vmax.f32 %v401, 0.0
      %v434 = vpack.c.bf16 %v402, %v402
      %v435 = vpack.c.bf16 %v403, %v403
      %v436 = vpack.c.bf16 %v404, %v404
      %v437 = vpack.c.bf16 %v405, %v405
      %v438 = vpack.c.bf16 %v406, %v406
      %v439 = vpack.c.bf16 %v407, %v407
      %v440 = vpack.c.bf16 %v408, %v408
      %v441 = vpack.c.bf16 %v409, %v409
      %v442 = vpack.c.bf16 %v410, %v410
      %v443 = vpack.c.bf16 %v411, %v411
      %v444 = vpack.c.bf16 %v412, %v412
      %v445 = vpack.c.bf16 %v413, %v413
      %v446 = vpack.c.bf16 %v414, %v414
      %v447 = vpack.c.bf16 %v415, %v415
      %v448 = vpack.c.bf16 %v416, %v416
      %v449 = vpack.c.bf16 %v417, %v417
      %v450 = vpack.c.bf16 %v418, %v418
      %v451 = vpack.c.bf16 %v419, %v419
      %v452 = vpack.c.bf16 %v420, %v420
      %v453 = vpack.c.bf16 %v421, %v421
      %v454 = vpack.c.bf16 %v422, %v422
      %v455 = vpack.c.bf16 %v423, %v423
      %v456 = vpack.c.bf16 %v424, %v424
      %v457 = vpack.c.bf16 %v425, %v425
      %v458 = vpack.c.bf16 %v426, %v426
      %v459 = vpack.c.bf16 %v427, %v427
      %v460 = vpack.c.bf16 %v428, %v428
      %v461 = vpack.c.bf16 %v429, %v429
      %v462 = vpack.c.bf16 %v430, %v430
      %v463 = vpack.c.bf16 %v431, %v431
      %v464 = vpack.c.bf16 %v432, %v432
      %v465 = vpack.c.bf16 %v433, %v433
      %466 = vst [vmem:[%s147] sm:$0xf] %v434
      %467 = vst [vmem:[%s147 + $0x4] sm:$0xf] %v435
      %468 = vst [vmem:[%s147 + $0x8] sm:$0xf] %v436
      %469 = vst [vmem:[%s147 + $0xc] sm:$0xf] %v437
      %470 = vst [vmem:[%s147 + $0x10] sm:$0xf] %v438
      %471 = vst [vmem:[%s147 + $0x14] sm:$0xf] %v439
      %472 = vst [vmem:[%s147 + $0x18] sm:$0xf] %v440
      %473 = vst [vmem:[%s147 + $0x1c] sm:$0xf] %v441
      %474 = vst [vmem:[%s147 + $0x20] sm:$0xf] %v442
      %475 = vst [vmem:[%s147 + $0x24] sm:$0xf] %v443
      %476 = vst [vmem:[%s147 + $0x28] sm:$0xf] %v444
      %477 = vst [vmem:[%s147 + $0x2c] sm:$0xf] %v445
      %478 = vst [vmem:[%s147 + $0x30] sm:$0xf] %v446
      %479 = vst [vmem:[%s147 + $0x34] sm:$0xf] %v447
      %480 = vst [vmem:[%s147 + $0x38] sm:$0xf] %v448
      %481 = vst [vmem:[%s147 + $0x3c] sm:$0xf] %v449
      %482 = vst [vmem:[%s147 + $0x40] sm:$0xf] %v450
      %483 = vst [vmem:[%s147 + $0x44] sm:$0xf] %v451
      %484 = vst [vmem:[%s147 + $0x48] sm:$0xf] %v452
      %485 = vst [vmem:[%s147 + $0x4c] sm:$0xf] %v453
      %486 = vst [vmem:[%s147 + $0x50] sm:$0xf] %v454
      %487 = vst [vmem:[%s147 + $0x54] sm:$0xf] %v455
      %488 = vst [vmem:[%s147 + $0x58] sm:$0xf] %v456
      %489 = vst [vmem:[%s147 + $0x5c] sm:$0xf] %v457
      %490 = vst [vmem:[%s147 + $0x60] sm:$0xf] %v458
      %491 = vst [vmem:[%s147 + $0x64] sm:$0xf] %v459
      %492 = vst [vmem:[%s147 + $0x68] sm:$0xf] %v460
      %493 = vst [vmem:[%s147 + $0x6c] sm:$0xf] %v461
      %494 = vst [vmem:[%s147 + $0x70] sm:$0xf] %v462
      %495 = vst [vmem:[%s147 + $0x74] sm:$0xf] %v463
      %496 = vst [vmem:[%s147 + $0x78] sm:$0xf] %v464
      %497 = vst [vmem:[%s147 + $0x7c] sm:$0xf] %v465
      %p498 = scmp.lt.s32.totalorder %s16, 1
      %s499 = scalar_select %p498, %s16, 1
      %p500 = scmp.lt.s32.totalorder %s17, 0
      %s501 = scalar_select %p500, %s17, 0
      %s502 = smul.addr %s499, 32
      %s503 = sadd.s32 %s501, %s502
      %s504 = smul.addr %s503, 4
      %s505 = scalar_lea.vmem %s1, %s504
      // Predicated region
      $region25: #{generator_forward.20} parent=23 // pred_check
        %p506 = pneg %p72
      $region26: #{generator_forward.20} parent=23 // pred_check_branch
        %508 = sbr.rel (%p506) target = $region28
      $region27: #{generator_forward.20} parent=23 // pred_region
        _
      $region28: #{generator_forward.20} parent=23 // pred_fallthru
        _
    $region24: #{generator_forward.20} parent=5 // pred_fallthru
      _
    %p509 = scmp.le.s32.totalorder 2, %s7
    // Predicated region
    $region29: #{generator_forward.20} parent=5 // pred_check
      %p510 = pneg %p509
    $region30: #{generator_forward.20} parent=5 // pred_check_branch
      %512 = sbr.rel (%p510) target = $region32
    $region31: #{generator_forward.20} parent=5 // pred_region
      %s513 = ssub.s32 %s7, 2
      // Predicated region
      $region33: #{generator_forward.20} parent=31 // pred_check
        %p514 = pneg %p78
      $region34: #{generator_forward.20} parent=31 // pred_check_branch
        %516 = sbr.rel (%p514) target = $region36
      $region35: #{generator_forward.20} parent=31 // pred_region
        %p517 = scmp.lt.s32.totalorder %s18, 1
        %s518 = scalar_select %p517, %s18, 1
        %p519 = scmp.lt.s32.totalorder %s19, 0
        %s520 = scalar_select %p519, %s19, 0
        %s521 = smul.addr %s518, 32
        %s522 = sadd.s32 %s520, %s521
        %s523 = smul.addr %s522, 4
        %s524 = scalar_lea.vmem %s1, %s523
      $region36: #{generator_forward.20} parent=31 // pred_fallthru
        _
    $region32: #{generator_forward.20} parent=5 // pred_fallthru
      _
  $region6: #{generator_forward.20} parent=0 // loop_footer
    %s11 = sadd.s32 1, %s7
  $region7: #{generator_forward.20} parent=0 // loop_footer_branch
    %6 = sbr.rel target = $region3
  $region8: #{generator_forward.20} parent=0 // loop_exit
    _

// kernel: generator_forward.19
$region0: #{generator_forward.19}
  #allocation0 [shape = 'u32[]', space=smem, size = 0x4, offset = 0x4, fixed_abs, tag = 'smem constant byte address 0x4 - core index']
  #allocation1 [shape = 'u32[72,128]{1,0:T(1,128)}', space=vmem, size = 0x9000, scoped, tag = 'internal scratch']
  #allocation2 [shape = 'f32[512,128]{1,0:T(8,128)}', space=vmem, size = 0x40000, scoped, tag = 'scratch operand']
  %s0 = inlined_call_operand.vmem [shape: bf16[512,256], index: 0, kind: input, shape index: {}]
  %s1 = inlined_call_operand.vmem [shape: bf16[256,128], index: 1, kind: input, shape index: {}]
  %s2 = inlined_call_operand.vmem [shape: f32[1,128], index: 2, kind: input, shape index: {}]
  %s3 = inlined_call_operand.vmem [shape: bf16[512,128], index: 3, kind: output, shape index: {}]
  %s4 = sld [smem:[#allocation0]]
  $region30: #{generator_forward.19} parent=0
    _
  %s6 = ssub.s32 1, %s4
  %s7 = scalar_select 0, %s6, %s4
  // Predicated region
  $region2: #{generator_forward.19} parent=0 // pred_check
    _
  $region3: #{generator_forward.19} parent=0 // pred_check_branch
    %9 = sbr.rel (0) target = $region5
  $region4: #{generator_forward.19} parent=0 // pred_region
    _
  $region5: #{generator_forward.19} parent=0 // pred_fallthru
    _
  // Predicated region
  $region6: #{generator_forward.19} parent=0 // pred_check
    _
  $region7: #{generator_forward.19} parent=0 // pred_check_branch
    %11 = sbr.rel (0) target = $region9
  $region8: #{generator_forward.19} parent=0 // pred_region
    _
  $region9: #{generator_forward.19} parent=0 // pred_fallthru
    _
  // Predicated region
  $region10: #{generator_forward.19} parent=0 // pred_check
    _
  $region11: #{generator_forward.19} parent=0 // pred_check_branch
    %13 = sbr.rel (0) target = $region13
  $region12: #{generator_forward.19} parent=0 // pred_region
    _
  $region13: #{generator_forward.19} parent=0 // pred_fallthru
    _
  %p14 = scmp.eq.s32.totalorder 0, 0
  // Predicated region
  $region14: #{generator_forward.19} parent=0 // pred_check
    %p15 = pneg %p14
  $region15: #{generator_forward.19} parent=0 // pred_check_branch
    %17 = sbr.rel (%p15) target = $region17
  $region16: #{generator_forward.19} parent=0 // pred_region
    %18 = vst [vmem:[#allocation2] sm:$0xff] 0.0
    %19 = vst [vmem:[#allocation2 + $0x8] sm:$0xff] 0.0
    %20 = vst [vmem:[#allocation2 + $0x10] sm:$0xff] 0.0
    %21 = vst [vmem:[#allocation2 + $0x18] sm:$0xff] 0.0
    %22 = vst [vmem:[#allocation2 + $0x20] sm:$0xff] 0.0
    %23 = vst [vmem:[#allocation2 + $0x28] sm:$0xff] 0.0
    %24 = vst [vmem:[#allocation2 + $0x30] sm:$0xff] 0.0
    %25 = vst [vmem:[#allocation2 + $0x38] sm:$0xff] 0.0
    %26 = vst [vmem:[#allocation2 + $0x40] sm:$0xff] 0.0
    %27 = vst [vmem:[#allocation2 + $0x48] sm:$0xff] 0.0
    %28 = vst [vmem:[#allocation2 + $0x50] sm:$0xff] 0.0
    %29 = vst [vmem:[#allocation2 + $0x58] sm:$0xff] 0.0
    %30 = vst [vmem:[#allocation2 + $0x60] sm:$0xff] 0.0
    %31 = vst [vmem:[#allocation2 + $0x68] sm:$0xff] 0.0
    %32 = vst [vmem:[#allocation2 + $0x70] sm:$0xff] 0.0
    %33 = vst [vmem:[#allocation2 + $0x78] sm:$0xff] 0.0
    %34 = vst [vmem:[#allocation2 + $0x80] sm:$0xff] 0.0
    %35 = vst [vmem:[#allocation2 + $0x88] sm:$0xff] 0.0
    %36 = vst [vmem:[#allocation2 + $0x90] sm:$0xff] 0.0
    %37 = vst [vmem:[#allocation2 + $0x98] sm:$0xff] 0.0
    %38 = vst [vmem:[#allocation2 + $0xa0] sm:$0xff] 0.0
    %39 = vst [vmem:[#allocation2 + $0xa8] sm:$0xff] 0.0
    %40 = vst [vmem:[#allocation2 + $0xb0] sm:$0xff] 0.0
    %41 = vst [vmem:[#allocation2 + $0xb8] sm:$0xff] 0.0
    %42 = vst [vmem:[#allocation2 + $0xc0] sm:$0xff] 0.0
    %43 = vst [vmem:[#allocation2 + $0xc8] sm:$0xff] 0.0
    %44 = vst [vmem:[#allocation2 + $0xd0] sm:$0xff] 0.0
    %45 = vst [vmem:[#allocation2 + $0xd8] sm:$0xff] 0.0
    %46 = vst [vmem:[#allocation2 + $0xe0] sm:$0xff] 0.0
    %47 = vst [vmem:[#allocation2 + $0xe8] sm:$0xff] 0.0
    %48 = vst [vmem:[#allocation2 + $0xf0] sm:$0xff] 0.0
    %49 = vst [vmem:[#allocation2 + $0xf8] sm:$0xff] 0.0
    %50 = vst [vmem:[#allocation2 + $0x100] sm:$0xff] 0.0
    %51 = vst [vmem:[#allocation2 + $0x108] sm:$0xff] 0.0
    %52 = vst [vmem:[#allocation2 + $0x110] sm:$0xff] 0.0
    %53 = vst [vmem:[#allocation2 + $0x118] sm:$0xff] 0.0
    %54 = vst [vmem:[#allocation2 + $0x120] sm:$0xff] 0.0
    %55 = vst [vmem:[#allocation2 + $0x128] sm:$0xff] 0.0
    %56 = vst [vmem:[#allocation2 + $0x130] sm:$0xff] 0.0
    %57 = vst [vmem:[#allocation2 + $0x138] sm:$0xff] 0.0
    %58 = vst [vmem:[#allocation2 + $0x140] sm:$0xff] 0.0
    %59 = vst [vmem:[#allocation2 + $0x148] sm:$0xff] 0.0
    %60 = vst [vmem:[#allocation2 + $0x150] sm:$0xff] 0.0
    %61 = vst [vmem:[#allocation2 + $0x158] sm:$0xff] 0.0
    %62 = vst [vmem:[#allocation2 + $0x160] sm:$0xff] 0.0
    %63 = vst [vmem:[#allocation2 + $0x168] sm:$0xff] 0.0
    %64 = vst [vmem:[#allocation2 + $0x170] sm:$0xff] 0.0
    %65 = vst [vmem:[#allocation2 + $0x178] sm:$0xff] 0.0
    %66 = vst [vmem:[#allocation2 + $0x180] sm:$0xff] 0.0
    %67 = vst [vmem:[#allocation2 + $0x188] sm:$0xff] 0.0
    %68 = vst [vmem:[#allocation2 + $0x190] sm:$0xff] 0.0
    %69 = vst [vmem:[#allocation2 + $0x198] sm:$0xff] 0.0
    %70 = vst [vmem:[#allocation2 + $0x1a0] sm:$0xff] 0.0
    %71 = vst [vmem:[#allocation2 + $0x1a8] sm:$0xff] 0.0
    %72 = vst [vmem:[#allocation2 + $0x1b0] sm:$0xff] 0.0
    %73 = vst [vmem:[#allocation2 + $0x1b8] sm:$0xff] 0.0
    %74 = vst [vmem:[#allocation2 + $0x1c0] sm:$0xff] 0.0
    %75 = vst [vmem:[#allocation2 + $0x1c8] sm:$0xff] 0.0
    %76 = vst [vmem:[#allocation2 + $0x1d0] sm:$0xff] 0.0
    %77 = vst [vmem:[#allocation2 + $0x1d8] sm:$0xff] 0.0
    %78 = vst [vmem:[#allocation2 + $0x1e0] sm:$0xff] 0.0
    %79 = vst [vmem:[#allocation2 + $0x1e8] sm:$0xff] 0.0
    %80 = vst [vmem:[#allocation2 + $0x1f0] sm:$0xff] 0.0
    %81 = vst [vmem:[#allocation2 + $0x1f8] sm:$0xff] 0.0
  $region17: #{generator_forward.19} parent=0 // pred_fallthru
    _
  %v82 = vld [vmem:[#allocation2] sm:$0xff]
  %v83 = vld [vmem:[#allocation2 + $0x8] sm:$0xff]
  %v84 = vld [vmem:[#allocation2 + $0x10] sm:$0xff]
  %v85 = vld [vmem:[#allocation2 + $0x18] sm:$0xff]
  %v86 = vld [vmem:[#allocation2 + $0x20] sm:$0xff]
  %v87 = vld [vmem:[#allocation2 + $0x28] sm:$0xff]
  %v88 = vld [vmem:[#allocation2 + $0x30] sm:$0xff]
  %v89 = vld [vmem:[#allocation2 + $0x38] sm:$0xff]
  %v90 = vld [vmem:[#allocation2 + $0x40] sm:$0xff]
  %v91 = vld [vmem:[#allocation2 + $0x48] sm:$0xff]
  %v92 = vld [vmem:[#allocation2 + $0x50] sm:$0xff]
  %v93 = vld [vmem:[#allocation2 + $0x58] sm:$0xff]
  %v94 = vld [vmem:[#allocation2 + $0x60] sm:$0xff]
  %v95 = vld [vmem:[#allocation2 + $0x68] sm:$0xff]
  %v96 = vld [vmem:[#allocation2 + $0x70] sm:$0xff]
  %v97 = vld [vmem:[#allocation2 + $0x78] sm:$0xff]
  %v98 = vld [vmem:[#allocation2 + $0x80] sm:$0xff]
  %v99 = vld [vmem:[#allocation2 + $0x88] sm:$0xff]
  %v100 = vld [vmem:[#allocation2 + $0x90] sm:$0xff]
  %v101 = vld [vmem:[#allocation2 + $0x98] sm:$0xff]
  %v102 = vld [vmem:[#allocation2 + $0xa0] sm:$0xff]
  %v103 = vld [vmem:[#allocation2 + $0xa8] sm:$0xff]
  %v104 = vld [vmem:[#allocation2 + $0xb0] sm:$0xff]
  %v105 = vld [vmem:[#allocation2 + $0xb8] sm:$0xff]
  %v106 = vld [vmem:[#allocation2 + $0xc0] sm:$0xff]
  %v107 = vld [vmem:[#allocation2 + $0xc8] sm:$0xff]
  %v108 = vld [vmem:[#allocation2 + $0xd0] sm:$0xff]
  %v109 = vld [vmem:[#allocation2 + $0xd8] sm:$0xff]
  %v110 = vld [vmem:[#allocation2 + $0xe0] sm:$0xff]
  %v111 = vld [vmem:[#allocation2 + $0xe8] sm:$0xff]
  %v112 = vld [vmem:[#allocation2 + $0xf0] sm:$0xff]
  %v113 = vld [vmem:[#allocation2 + $0xf8] sm:$0xff]
  %v114 = vld [vmem:[#allocation2 + $0x100] sm:$0xff]
  %v115 = vld [vmem:[#allocation2 + $0x108] sm:$0xff]
  %v116 = vld [vmem:[#allocation2 + $0x110] sm:$0xff]
  %v117 = vld [vmem:[#allocation2 + $0x118] sm:$0xff]
  %v118 = vld [vmem:[#allocation2 + $0x120] sm:$0xff]
  %v119 = vld [vmem:[#allocation2 + $0x128] sm:$0xff]
  %v120 = vld [vmem:[#allocation2 + $0x130] sm:$0xff]
  %v121 = vld [vmem:[#allocation2 + $0x138] sm:$0xff]
  %v122 = vld [vmem:[#allocation2 + $0x140] sm:$0xff]
  %v123 = vld [vmem:[#allocation2 + $0x148] sm:$0xff]
  %v124 = vld [vmem:[#allocation2 + $0x150] sm:$0xff]
  %v125 = vld [vmem:[#allocation2 + $0x158] sm:$0xff]
  %v126 = vld [vmem:[#allocation2 + $0x160] sm:$0xff]
  %v127 = vld [vmem:[#allocation2 + $0x168] sm:$0xff]
  %v128 = vld [vmem:[#allocation2 + $0x170] sm:$0xff]
  %v129 = vld [vmem:[#allocation2 + $0x178] sm:$0xff]
  %v130 = vld [vmem:[#allocation2 + $0x180] sm:$0xff]
  %v131 = vld [vmem:[#allocation2 + $0x188] sm:$0xff]
  %v132 = vld [vmem:[#allocation2 + $0x190] sm:$0xff]
  %v133 = vld [vmem:[#allocation2 + $0x198] sm:$0xff]
  %v134 = vld [vmem:[#allocation2 + $0x1a0] sm:$0xff]
  %v135 = vld [vmem:[#allocation2 + $0x1a8] sm:$0xff]
  %v136 = vld [vmem:[#allocation2 + $0x1b0] sm:$0xff]
  %v137 = vld [vmem:[#allocation2 + $0x1b8] sm:$0xff]
  %v138 = vld [vmem:[#allocation2 + $0x1c0] sm:$0xff]
  %v139 = vld [vmem:[#allocation2 + $0x1c8] sm:$0xff]
  %v140 = vld [vmem:[#allocation2 + $0x1d0] sm:$0xff]
  %v141 = vld [vmem:[#allocation2 + $0x1d8] sm:$0xff]
  %v142 = vld [vmem:[#allocation2 + $0x1e0] sm:$0xff]
  %v143 = vld [vmem:[#allocation2 + $0x1e8] sm:$0xff]
  %v144 = vld [vmem:[#allocation2 + $0x1f0] sm:$0xff]
  %v145 = vld [vmem:[#allocation2 + $0x1f8] sm:$0xff]
  %v146 = vld [vmem:[%s0] sm:$0xff]
  %v147 = vld [vmem:[%s0 + $0x8] sm:$0xff]
  %v148 = vld [vmem:[%s0 + $0x10] sm:$0xff]
  %v149 = vld [vmem:[%s0 + $0x18] sm:$0xff]
  %v150 = vld [vmem:[%s0 + $0x20] sm:$0xff]
  %v151 = vld [vmem:[%s0 + $0x28] sm:$0xff]
  %v152 = vld [vmem:[%s0 + $0x30] sm:$0xff]
  %v153 = vld [vmem:[%s0 + $0x38] sm:$0xff]
  %v154 = vld [vmem:[%s0 + $0x40] sm:$0xff]
  %v155 = vld [vmem:[%s0 + $0x48] sm:$0xff]
  %v156 = vld [vmem:[%s0 + $0x50] sm:$0xff]
  %v157 = vld [vmem:[%s0 + $0x58] sm:$0xff]
  %v158 = vld [vmem:[%s0 + $0x60] sm:$0xff]
  %v159 = vld [vmem:[%s0 + $0x68] sm:$0xff]
  %v160 = vld [vmem:[%s0 + $0x70] sm:$0xff]
  %v161 = vld [vmem:[%s0 + $0x78] sm:$0xff]
  %v162 = vld [vmem:[%s0 + $0x80] sm:$0xff]
  %v163 = vld [vmem:[%s0 + $0x88] sm:$0xff]
  %v164 = vld [vmem:[%s0 + $0x90] sm:$0xff]
  %v165 = vld [vmem:[%s0 + $0x98] sm:$0xff]
  %v166 = vld [vmem:[%s0 + $0xa0] sm:$0xff]
  %v167 = vld [vmem:[%s0 + $0xa8] sm:$0xff]
  %v168 = vld [vmem:[%s0 + $0xb0] sm:$0xff]
  %v169 = vld [vmem:[%s0 + $0xb8] sm:$0xff]
  %v170 = vld [vmem:[%s0 + $0xc0] sm:$0xff]
  %v171 = vld [vmem:[%s0 + $0xc8] sm:$0xff]
  %v172 = vld [vmem:[%s0 + $0xd0] sm:$0xff]
  %v173 = vld [vmem:[%s0 + $0xd8] sm:$0xff]
  %v174 = vld [vmem:[%s0 + $0xe0] sm:$0xff]
  %v175 = vld [vmem:[%s0 + $0xe8] sm:$0xff]
  %v176 = vld [vmem:[%s0 + $0xf0] sm:$0xff]
  %v177 = vld [vmem:[%s0 + $0xf8] sm:$0xff]
  %v178 = vld [vmem:[%s0 + $0x100] sm:$0xff]
  %v179 = vld [vmem:[%s0 + $0x108] sm:$0xff]
  %v180 = vld [vmem:[%s0 + $0x110] sm:$0xff]
  %v181 = vld [vmem:[%s0 + $0x118] sm:$0xff]
  %v182 = vld [vmem:[%s0 + $0x120] sm:$0xff]
  %v183 = vld [vmem:[%s0 + $0x128] sm:$0xff]
  %v184 = vld [vmem:[%s0 + $0x130] sm:$0xff]
  %v185 = vld [vmem:[%s0 + $0x138] sm:$0xff]
  %v186 = vld [vmem:[%s0 + $0x140] sm:$0xff]
  %v187 = vld [vmem:[%s0 + $0x148] sm:$0xff]
  %v188 = vld [vmem:[%s0 + $0x150] sm:$0xff]
  %v189 = vld [vmem:[%s0 + $0x158] sm:$0xff]
  %v190 = vld [vmem:[%s0 + $0x160] sm:$0xff]
  %v191 = vld [vmem:[%s0 + $0x168] sm:$0xff]
  %v192 = vld [vmem:[%s0 + $0x170] sm:$0xff]
  %v193 = vld [vmem:[%s0 + $0x178] sm:$0xff]
  %v194 = vld [vmem:[%s0 + $0x180] sm:$0xff]
  %v195 = vld [vmem:[%s0 + $0x188] sm:$0xff]
  %v196 = vld [vmem:[%s0 + $0x190] sm:$0xff]
  %v197 = vld [vmem:[%s0 + $0x198] sm:$0xff]
  %v198 = vld [vmem:[%s0 + $0x1a0] sm:$0xff]
  %v199 = vld [vmem:[%s0 + $0x1a8] sm:$0xff]
  %v200 = vld [vmem:[%s0 + $0x1b0] sm:$0xff]
  %v201 = vld [vmem:[%s0 + $0x1b8] sm:$0xff]
  %v202 = vld [vmem:[%s0 + $0x1c0] sm:$0xff]
  %v203 = vld [vmem:[%s0 + $0x1c8] sm:$0xff]
  %v204 = vld [vmem:[%s0 + $0x1d0] sm:$0xff]
  %v205 = vld [vmem:[%s0 + $0x1d8] sm:$0xff]
  %v206 = vld [vmem:[%s0 + $0x1e0] sm:$0xff]
  %v207 = vld [vmem:[%s0 + $0x1e8] sm:$0xff]
  %v208 = vld [vmem:[%s0 + $0x1f0] sm:$0xff]
  %v209 = vld [vmem:[%s0 + $0x1f8] sm:$0xff]
  %v210 = vld [vmem:[%s1] sm:$0xf]
  %v211 = vld [vmem:[%s1 + $0x4] sm:$0xf]
  %v212 = vld [vmem:[%s1 + $0x8] sm:$0xf]
  %v213 = vld [vmem:[%s1 + $0xc] sm:$0xf]
  %v214 = vld [vmem:[%s1 + $0x10] sm:$0xf]
  %v215 = vld [vmem:[%s1 + $0x14] sm:$0xf]
  %v216 = vld [vmem:[%s1 + $0x18] sm:$0xf]
  %v217 = vld [vmem:[%s1 + $0x1c] sm:$0xf]
  %v218 = vld [vmem:[%s1 + $0x20] sm:$0xf]
  %v219 = vld [vmem:[%s1 + $0x24] sm:$0xf]
  %v220 = vld [vmem:[%s1 + $0x28] sm:$0xf]
  %v221 = vld [vmem:[%s1 + $0x2c] sm:$0xf]
  %v222 = vld [vmem:[%s1 + $0x30] sm:$0xf]
  %v223 = vld [vmem:[%s1 + $0x34] sm:$0xf]
  %v224 = vld [vmem:[%s1 + $0x38] sm:$0xf]
  %v225 = vld [vmem:[%s1 + $0x3c] sm:$0xf]
  %v226 = vld [vmem:[%s1 + $0x40] sm:$0xf]
  %v227 = vld [vmem:[%s1 + $0x44] sm:$0xf]
  %v228 = vld [vmem:[%s1 + $0x48] sm:$0xf]
  %v229 = vld [vmem:[%s1 + $0x4c] sm:$0xf]
  %v230 = vld [vmem:[%s1 + $0x50] sm:$0xf]
  %v231 = vld [vmem:[%s1 + $0x54] sm:$0xf]
  %v232 = vld [vmem:[%s1 + $0x58] sm:$0xf]
  %v233 = vld [vmem:[%s1 + $0x5c] sm:$0xf]
  %v234 = vld [vmem:[%s1 + $0x60] sm:$0xf]
  %v235 = vld [vmem:[%s1 + $0x64] sm:$0xf]
  %v236 = vld [vmem:[%s1 + $0x68] sm:$0xf]
  %v237 = vld [vmem:[%s1 + $0x6c] sm:$0xf]
  %v238 = vld [vmem:[%s1 + $0x70] sm:$0xf]
  %v239 = vld [vmem:[%s1 + $0x74] sm:$0xf]
  %v240 = vld [vmem:[%s1 + $0x78] sm:$0xf]
  %v241 = vld [vmem:[%s1 + $0x7c] sm:$0xf]
  %v306 = vunpack.c.l.b16 %v146
  %v307 = vunpack.c.h.b16 %v146
  %v308 = vunpack.c.l.b16 %v147
  %v309 = vunpack.c.h.b16 %v147
  %v310 = vunpack.c.l.b16 %v148
  %v311 = vunpack.c.h.b16 %v148
  %v312 = vunpack.c.l.b16 %v149
  %v313 = vunpack.c.h.b16 %v149
  %v314 = vunpack.c.l.b16 %v150
  %v315 = vunpack.c.h.b16 %v150
  %v316 = vunpack.c.l.b16 %v151
  %v317 = vunpack.c.h.b16 %v151
  %v318 = vunpack.c.l.b16 %v152
  %v319 = vunpack.c.h.b16 %v152
  %v320 = vunpack.c.l.b16 %v153
  %v321 = vunpack.c.h.b16 %v153
  %v322 = vunpack.c.l.b16 %v154
  %v323 = vunpack.c.h.b16 %v154
  %v324 = vunpack.c.l.b16 %v155
  %v325 = vunpack.c.h.b16 %v155
  %v326 = vunpack.c.l.b16 %v156
  %v327 = vunpack.c.h.b16 %v156
  %v328 = vunpack.c.l.b16 %v157
  %v329 = vunpack.c.h.b16 %v157
  %v330 = vunpack.c.l.b16 %v158
  %v331 = vunpack.c.h.b16 %v158
  %v332 = vunpack.c.l.b16 %v159
  %v333 = vunpack.c.h.b16 %v159
  %v334 = vunpack.c.l.b16 %v160
  %v335 = vunpack.c.h.b16 %v160
  %v336 = vunpack.c.l.b16 %v161
  %v337 = vunpack.c.h.b16 %v161
  %v338 = vunpack.c.l.b16 %v162
  %v339 = vunpack.c.h.b16 %v162
  %v340 = vunpack.c.l.b16 %v163
  %v341 = vunpack.c.h.b16 %v163
  %v342 = vunpack.c.l.b16 %v164
  %v343 = vunpack.c.h.b16 %v164
  %v344 = vunpack.c.l.b16 %v165
  %v345 = vunpack.c.h.b16 %v165
  %v346 = vunpack.c.l.b16 %v166
  %v347 = vunpack.c.h.b16 %v166
  %v348 = vunpack.c.l.b16 %v167
  %v349 = vunpack.c.h.b16 %v167
  %v350 = vunpack.c.l.b16 %v168
  %v351 = vunpack.c.h.b16 %v168
  %v352 = vunpack.c.l.b16 %v169
  %v353 = vunpack.c.h.b16 %v169
  %v354 = vunpack.c.l.b16 %v170
  %v355 = vunpack.c.h.b16 %v170
  %v356 = vunpack.c.l.b16 %v171
  %v357 = vunpack.c.h.b16 %v171
  %v358 = vunpack.c.l.b16 %v172
  %v359 = vunpack.c.h.b16 %v172
  %v360 = vunpack.c.l.b16 %v173
  %v361 = vunpack.c.h.b16 %v173
  %v362 = vunpack.c.l.b16 %v174
  %v363 = vunpack.c.h.b16 %v174
  %v364 = vunpack.c.l.b16 %v175
  %v365 = vunpack.c.h.b16 %v175
  %v366 = vunpack.c.l.b16 %v176
  %v367 = vunpack.c.h.b16 %v176
  %v368 = vunpack.c.l.b16 %v177
  %v369 = vunpack.c.h.b16 %v177
  %v370 = vunpack.c.l.b16 %v178
  %v371 = vunpack.c.h.b16 %v178
  %v372 = vunpack.c.l.b16 %v179
  %v373 = vunpack.c.h.b16 %v179
  %v374 = vunpack.c.l.b16 %v180
  %v375 = vunpack.c.h.b16 %v180
  %v376 = vunpack.c.l.b16 %v181
  %v377 = vunpack.c.h.b16 %v181
  %v378 = vunpack.c.l.b16 %v182
  %v379 = vunpack.c.h.b16 %v182
  %v380 = vunpack.c.l.b16 %v183
  %v381 = vunpack.c.h.b16 %v183
  %v382 = vunpack.c.l.b16 %v184
  %v383 = vunpack.c.h.b16 %v184
  %v384 = vunpack.c.l.b16 %v185
  %v385 = vunpack.c.h.b16 %v185
  %v386 = vunpack.c.l.b16 %v186
  %v387 = vunpack.c.h.b16 %v186
  %v388 = vunpack.c.l.b16 %v187
  %v389 = vunpack.c.h.b16 %v187
  %v390 = vunpack.c.l.b16 %v188
  %v391 = vunpack.c.h.b16 %v188
  %v392 = vunpack.c.l.b16 %v189
  %v393 = vunpack.c.h.b16 %v189
  %v394 = vunpack.c.l.b16 %v190
  %v395 = vunpack.c.h.b16 %v190
  %v396 = vunpack.c.l.b16 %v191
  %v397 = vunpack.c.h.b16 %v191
  %v398 = vunpack.c.l.b16 %v192
  %v399 = vunpack.c.h.b16 %v192
  %v400 = vunpack.c.l.b16 %v193
  %v401 = vunpack.c.h.b16 %v193
  %v402 = vunpack.c.l.b16 %v194
  %v403 = vunpack.c.h.b16 %v194
  %v404 = vunpack.c.l.b16 %v195
  %v405 = vunpack.c.h.b16 %v195
  %v406 = vunpack.c.l.b16 %v196
  %v407 = vunpack.c.h.b16 %v196
  %v408 = vunpack.c.l.b16 %v197
  %v409 = vunpack.c.h.b16 %v197
  %v410 = vunpack.c.l.b16 %v198
  %v411 = vunpack.c.h.b16 %v198
  %v412 = vunpack.c.l.b16 %v199
  %v413 = vunpack.c.h.b16 %v199
  %v414 = vunpack.c.l.b16 %v200
  %v415 = vunpack.c.h.b16 %v200
  %v416 = vunpack.c.l.b16 %v201
  %v417 = vunpack.c.h.b16 %v201
  %v418 = vunpack.c.l.b16 %v202
  %v419 = vunpack.c.h.b16 %v202
  %v420 = vunpack.c.l.b16 %v203
  %v421 = vunpack.c.h.b16 %v203
  %v422 = vunpack.c.l.b16 %v204
  %v423 = vunpack.c.h.b16 %v204
  %v424 = vunpack.c.l.b16 %v205
  %v425 = vunpack.c.h.b16 %v205
  %v426 = vunpack.c.l.b16 %v206
  %v427 = vunpack.c.h.b16 %v206
  %v428 = vunpack.c.l.b16 %v207
  %v429 = vunpack.c.h.b16 %v207
  %v430 = vunpack.c.l.b16 %v208
  %v431 = vunpack.c.h.b16 %v208
  %v432 = vunpack.c.l.b16 %v209
  %v433 = vunpack.c.h.b16 %v209
  %v434 = vpack.c.b16 %v308, %v306
  %v435 = vpack.c.b16 %v309, %v307
  %v436 = vpack.c.b16 %v312, %v310
  %v437 = vpack.c.b16 %v313, %v311
  %v438 = vpack.c.b16 %v316, %v314
  %v439 = vpack.c.b16 %v317, %v315
  %v440 = vpack.c.b16 %v320, %v318
  %v441 = vpack.c.b16 %v321, %v319
  %v442 = vpack.c.b16 %v324, %v322
  %v443 = vpack.c.b16 %v325, %v323
  %v444 = vpack.c.b16 %v328, %v326
  %v445 = vpack.c.b16 %v329, %v327
  %v446 = vpack.c.b16 %v332, %v330
  %v447 = vpack.c.b16 %v333, %v331
  %v448 = vpack.c.b16 %v336, %v334
  %v449 = vpack.c.b16 %v337, %v335
  %v450 = vpack.c.b16 %v340, %v338
  %v451 = vpack.c.b16 %v341, %v339
  %v452 = vpack.c.b16 %v344, %v342
  %v453 = vpack.c.b16 %v345, %v343
  %v454 = vpack.c.b16 %v348, %v346
  %v455 = vpack.c.b16 %v349, %v347
  %v456 = vpack.c.b16 %v352, %v350
  %v457 = vpack.c.b16 %v353, %v351
  %v458 = vpack.c.b16 %v356, %v354
  %v459 = vpack.c.b16 %v357, %v355
  %v460 = vpack.c.b16 %v360, %v358
  %v461 = vpack.c.b16 %v361, %v359
  %v462 = vpack.c.b16 %v364, %v362
  %v463 = vpack.c.b16 %v365, %v363
  %v464 = vpack.c.b16 %v368, %v366
  %v465 = vpack.c.b16 %v369, %v367
  %v466 = vpack.c.b16 %v372, %v370
  %v467 = vpack.c.b16 %v373, %v371
  %v468 = vpack.c.b16 %v376, %v374
  %v469 = vpack.c.b16 %v377, %v375
  %v470 = vpack.c.b16 %v380, %v378
  %v471 = vpack.c.b16 %v381, %v379
  %v472 = vpack.c.b16 %v384, %v382
  %v473 = vpack.c.b16 %v385, %v383
  %v474 = vpack.c.b16 %v388, %v386
  %v475 = vpack.c.b16 %v389, %v387
  %v476 = vpack.c.b16 %v392, %v390
  %v477 = vpack.c.b16 %v393, %v391
  %v478 = vpack.c.b16 %v396, %v394
  %v479 = vpack.c.b16 %v397, %v395
  %v480 = vpack.c.b16 %v400, %v398
  %v481 = vpack.c.b16 %v401, %v399
  %v482 = vpack.c.b16 %v404, %v402
  %v483 = vpack.c.b16 %v405, %v403
  %v484 = vpack.c.b16 %v408, %v406
  %v485 = vpack.c.b16 %v409, %v407
  %v486 = vpack.c.b16 %v412, %v410
  %v487 = vpack.c.b16 %v413, %v411
  %v488 = vpack.c.b16 %v416, %v414
  %v489 = vpack.c.b16 %v417, %v415
  %v490 = vpack.c.b16 %v420, %v418
  %v491 = vpack.c.b16 %v421, %v419
  %v492 = vpack.c.b16 %v424, %v422
  %v493 = vpack.c.b16 %v425, %v423
  %v494 = vpack.c.b16 %v428, %v426
  %v495 = vpack.c.b16 %v429, %v427
  %v496 = vpack.c.b16 %v432, %v430
  %v497 = vpack.c.b16 %v433, %v431
  %v594 = vunpack.c.l.b16 %v210
  %v595 = vunpack.c.l.b16 %v211
  %v596 = vunpack.c.l.b16 %v212
  %v597 = vunpack.c.l.b16 %v213
  %v598 = vunpack.c.l.b16 %v214
  %v599 = vunpack.c.l.b16 %v215
  %v600 = vunpack.c.l.b16 %v216
  %v601 = vunpack.c.l.b16 %v217
  %v602 = vunpack.c.l.b16 %v218
  %v603 = vunpack.c.l.b16 %v219
  %v604 = vunpack.c.l.b16 %v220
  %v605 = vunpack.c.l.b16 %v221
  %v606 = vunpack.c.l.b16 %v222
  %v607 = vunpack.c.l.b16 %v223
  %v608 = vunpack.c.l.b16 %v224
  %v609 = vunpack.c.l.b16 %v225
  %v610 = vunpack.c.l.b16 %v226
  %v611 = vunpack.c.l.b16 %v227
  %v612 = vunpack.c.l.b16 %v228
  %v613 = vunpack.c.l.b16 %v229
  %v614 = vunpack.c.l.b16 %v230
  %v615 = vunpack.c.l.b16 %v231
  %v616 = vunpack.c.l.b16 %v232
  %v617 = vunpack.c.l.b16 %v233
  %v618 = vunpack.c.l.b16 %v234
  %v619 = vunpack.c.l.b16 %v235
  %v620 = vunpack.c.l.b16 %v236
  %v621 = vunpack.c.l.b16 %v237
  %v622 = vunpack.c.l.b16 %v238
  %v623 = vunpack.c.l.b16 %v239
  %v624 = vunpack.c.l.b16 %v240
  %v625 = vunpack.c.l.b16 %v241
  %v626 = vpack.c.b16 %v595, %v594
  %v627 = vpack.c.b16 %v597, %v596
  %v628 = vpack.c.b16 %v599, %v598
  %v629 = vpack.c.b16 %v601, %v600
  %v630 = vpack.c.b16 %v603, %v602
  %v631 = vpack.c.b16 %v605, %v604
  %v632 = vpack.c.b16 %v607, %v606
  %v633 = vpack.c.b16 %v609, %v608
  %v634 = vpack.c.b16 %v611, %v610
  %v635 = vpack.c.b16 %v613, %v612
  %v636 = vpack.c.b16 %v615, %v614
  %v637 = vpack.c.b16 %v617, %v616
  %v638 = vpack.c.b16 %v619, %v618
  %v639 = vpack.c.b16 %v621, %v620
  %v640 = vpack.c.b16 %v623, %v622
  %v641 = vpack.c.b16 %v625, %v624
  %658 = vmatpush.bf16.msra.mxu0 %v633
  %659 = vmatpush.bf16.msra.mxu0 %v632
  %660 = vmatpush.bf16.msra.mxu0 %v631
  %661 = vmatpush.bf16.msra.mxu0 %v630
  %662 = vmatpush.bf16.msra.mxu0 %v629
  %663 = vmatpush.bf16.msra.mxu0 %v628
  %664 = vmatpush.bf16.msra.mxu0 %v627
  %665 = vmatpush.bf16.msra.mxu0 %v626
  %666 = vmatmul.bf16.gmra.mxu0 %v434
  %v667 = vpop.f32.mrf.mxu0
  %v668 = vadd.f32 0.0, %v667
  %v669 = vpop.f32.mrf.mxu0
  %v670 = vadd.f32 0.0, %v669
  %671 = vmatmul.bf16.gmra.mxu0 %v436
  %v672 = vpop.f32.mrf.mxu0
  %v673 = vadd.f32 0.0, %v672
  %v674 = vpop.f32.mrf.mxu0
  %v675 = vadd.f32 0.0, %v674
  %676 = vmatmul.bf16.gmra.mxu0 %v438
  %v677 = vpop.f32.mrf.mxu0
  %v678 = vadd.f32 0.0, %v677
  %v679 = vpop.f32.mrf.mxu0
  %v680 = vadd.f32 0.0, %v679
  %681 = vmatmul.bf16.gmra.mxu0 %v440
  %v682 = vpop.f32.mrf.mxu0
  %v683 = vadd.f32 0.0, %v682
  %v684 = vpop.f32.mrf.mxu0
  %v685 = vadd.f32 0.0, %v684
  %686 = vmatmul.bf16.gmra.mxu0 %v442
  %v687 = vpop.f32.mrf.mxu0
  %v688 = vadd.f32 0.0, %v687
  %v689 = vpop.f32.mrf.mxu0
  %v690 = vadd.f32 0.0, %v689
  %691 = vmatmul.bf16.gmra.mxu0 %v444
  %v692 = vpop.f32.mrf.mxu0
  %v693 = vadd.f32 0.0, %v692
  %v694 = vpop.f32.mrf.mxu0
  %v695 = vadd.f32 0.0, %v694
  %696 = vmatmul.bf16.gmra.mxu0 %v446
  %v697 = vpop.f32.mrf.mxu0
  %v698 = vadd.f32 0.0, %v697
  %v699 = vpop.f32.mrf.mxu0
  %v700 = vadd.f32 0.0, %v699
  %701 = vmatmul.bf16.gmra.mxu0 %v448
  %v702 = vpop.f32.mrf.mxu0
  %v703 = vadd.f32 0.0, %v702
  %v704 = vpop.f32.mrf.mxu0
  %v705 = vadd.f32 0.0, %v704
  %706 = vmatmul.bf16.gmra.mxu0 %v450
  %v707 = vpop.f32.mrf.mxu0
  %v708 = vadd.f32 0.0, %v707
  %v709 = vpop.f32.mrf.mxu0
  %v710 = vadd.f32 0.0, %v709
  %711 = vmatmul.bf16.gmra.mxu0 %v452
  %v712 = vpop.f32.mrf.mxu0
  %v713 = vadd.f32 0.0, %v712
  %v714 = vpop.f32.mrf.mxu0
  %v715 = vadd.f32 0.0, %v714
  %716 = vmatmul.bf16.gmra.mxu0 %v454
  %v717 = vpop.f32.mrf.mxu0
  %v718 = vadd.f32 0.0, %v717
  %v719 = vpop.f32.mrf.mxu0
  %v720 = vadd.f32 0.0, %v719
  %721 = vmatmul.bf16.gmra.mxu0 %v456
  %v722 = vpop.f32.mrf.mxu0
  %v723 = vadd.f32 0.0, %v722
  %v724 = vpop.f32.mrf.mxu0
  %v725 = vadd.f32 0.0, %v724
  %726 = vmatmul.bf16.gmra.mxu0 %v458
  %v727 = vpop.f32.mrf.mxu0
  %v728 = vadd.f32 0.0, %v727
  %v729 = vpop.f32.mrf.mxu0
  %v730 = vadd.f32 0.0, %v729
  %731 = vmatmul.bf16.gmra.mxu0 %v460
  %v732 = vpop.f32.mrf.mxu0
  %v733 = vadd.f32 0.0, %v732
  %v734 = vpop.f32.mrf.mxu0
  %v735 = vadd.f32 0.0, %v734
  %736 = vmatmul.bf16.gmra.mxu0 %v462
  %v737 = vpop.f32.mrf.mxu0
  %v738 = vadd.f32 0.0, %v737
  %v739 = vpop.f32.mrf.mxu0
  %v740 = vadd.f32 0.0, %v739
  %741 = vmatmul.bf16.gmra.mxu0 %v464
  %v742 = vpop.f32.mrf.mxu0
  %v743 = vadd.f32 0.0, %v742
  %v744 = vpop.f32.mrf.mxu0
  %v745 = vadd.f32 0.0, %v744
  %746 = vmatmul.bf16.gmra.mxu0 %v466
  %v747 = vpop.f32.mrf.mxu0
  %v748 = vadd.f32 0.0, %v747
  %v749 = vpop.f32.mrf.mxu0
  %v750 = vadd.f32 0.0, %v749
  %751 = vmatmul.bf16.gmra.mxu0 %v468
  %v752 = vpop.f32.mrf.mxu0
  %v753 = vadd.f32 0.0, %v752
  %v754 = vpop.f32.mrf.mxu0
  %v755 = vadd.f32 0.0, %v754
  %756 = vmatmul.bf16.gmra.mxu0 %v470
  %v757 = vpop.f32.mrf.mxu0
  %v758 = vadd.f32 0.0, %v757
  %v759 = vpop.f32.mrf.mxu0
  %v760 = vadd.f32 0.0, %v759
  %761 = vmatmul.bf16.gmra.mxu0 %v472
  %v762 = vpop.f32.mrf.mxu0
  %v763 = vadd.f32 0.0, %v762
  %v764 = vpop.f32.mrf.mxu0
  %v765 = vadd.f32 0.0, %v764
  %766 = vmatmul.bf16.gmra.mxu0 %v474
  %v767 = vpop.f32.mrf.mxu0
  %v768 = vadd.f32 0.0, %v767
  %v769 = vpop.f32.mrf.mxu0
  %v770 = vadd.f32 0.0, %v769
  %771 = vmatmul.bf16.gmra.mxu0 %v476
  %v772 = vpop.f32.mrf.mxu0
  %v773 = vadd.f32 0.0, %v772
  %v774 = vpop.f32.mrf.mxu0
  %v775 = vadd.f32 0.0, %v774
  %776 = vmatmul.bf16.gmra.mxu0 %v478
  %v777 = vpop.f32.mrf.mxu0
  %v778 = vadd.f32 0.0, %v777
  %v779 = vpop.f32.mrf.mxu0
  %v780 = vadd.f32 0.0, %v779
  %781 = vmatmul.bf16.gmra.mxu0 %v480
  %v782 = vpop.f32.mrf.mxu0
  %v783 = vadd.f32 0.0, %v782
  %v784 = vpop.f32.mrf.mxu0
  %v785 = vadd.f32 0.0, %v784
  %786 = vmatmul.bf16.gmra.mxu0 %v482
  %v787 = vpop.f32.mrf.mxu0
  %v788 = vadd.f32 0.0, %v787
  %v789 = vpop.f32.mrf.mxu0
  %v790 = vadd.f32 0.0, %v789
  %791 = vmatmul.bf16.gmra.mxu0 %v484
  %v792 = vpop.f32.mrf.mxu0
  %v793 = vadd.f32 0.0, %v792
  %v794 = vpop.f32.mrf.mxu0
  %v795 = vadd.f32 0.0, %v794
  %796 = vmatmul.bf16.gmra.mxu0 %v486
  %v797 = vpop.f32.mrf.mxu0
  %v798 = vadd.f32 0.0, %v797
  %v799 = vpop.f32.mrf.mxu0
  %v800 = vadd.f32 0.0, %v799
  %801 = vmatmul.bf16.gmra.mxu0 %v488
  %v802 = vpop.f32.mrf.mxu0
  %v803 = vadd.f32 0.0, %v802
  %v804 = vpop.f32.mrf.mxu0
  %v805 = vadd.f32 0.0, %v804
  %806 = vmatmul.bf16.gmra.mxu0 %v490
  %v807 = vpop.f32.mrf.mxu0
  %v808 = vadd.f32 0.0, %v807
  %v809 = vpop.f32.mrf.mxu0
  %v810 = vadd.f32 0.0, %v809
  %811 = vmatmul.bf16.gmra.mxu0 %v492
  %v812 = vpop.f32.mrf.mxu0
  %v813 = vadd.f32 0.0, %v812
  %v814 = vpop.f32.mrf.mxu0
  %v815 = vadd.f32 0.0, %v814
  %816 = vmatmul.bf16.gmra.mxu0 %v494
  %v817 = vpop.f32.mrf.mxu0
  %v818 = vadd.f32 0.0, %v817
  %v819 = vpop.f32.mrf.mxu0
  %v820 = vadd.f32 0.0, %v819
  %821 = vmatmul.bf16.gmra.mxu0 %v496
  %v822 = vpop.f32.mrf.mxu0
  %v823 = vadd.f32 0.0, %v822
  %v824 = vpop.f32.mrf.mxu0
  %v825 = vadd.f32 0.0, %v824
  %826 = vdwg.mxu0
  %827 = vmatpush.bf16.msra.mxu0 %v641
  %828 = vmatpush.bf16.msra.mxu0 %v640
  %829 = vmatpush.bf16.msra.mxu0 %v639
  %830 = vmatpush.bf16.msra.mxu0 %v638
  %831 = vmatpush.bf16.msra.mxu0 %v637
  %832 = vmatpush.bf16.msra.mxu0 %v636
  %833 = vmatpush.bf16.msra.mxu0 %v635
  %834 = vmatpush.bf16.msra.mxu0 %v634
  %835 = vmatmul.bf16.gmra.mxu0 %v435
  %v836 = vpop.f32.mrf.mxu0
  %v837 = vadd.f32 %v668, %v836
  %v838 = vpop.f32.mrf.mxu0
  %v839 = vadd.f32 %v670, %v838
  %840 = vmatmul.bf16.gmra.mxu0 %v437
  %v841 = vpop.f32.mrf.mxu0
  %v842 = vadd.f32 %v673, %v841
  %v843 = vpop.f32.mrf.mxu0
  %v844 = vadd.f32 %v675, %v843
  %845 = vmatmul.bf16.gmra.mxu0 %v439
  %v846 = vpop.f32.mrf.mxu0
  %v847 = vadd.f32 %v678, %v846
  %v848 = vpop.f32.mrf.mxu0
  %v849 = vadd.f32 %v680, %v848
  %850 = vmatmul.bf16.gmra.mxu0 %v441
  %v851 = vpop.f32.mrf.mxu0
  %v852 = vadd.f32 %v683, %v851
  %v853 = vpop.f32.mrf.mxu0
  %v854 = vadd.f32 %v685, %v853
  %855 = vmatmul.bf16.gmra.mxu0 %v443
  %v856 = vpop.f32.mrf.mxu0
  %v857 = vadd.f32 %v688, %v856
  %v858 = vpop.f32.mrf.mxu0
  %v859 = vadd.f32 %v690, %v858
  %860 = vmatmul.bf16.gmra.mxu0 %v445
  %v861 = vpop.f32.mrf.mxu0
  %v862 = vadd.f32 %v693, %v861
  %v863 = vpop.f32.mrf.mxu0
  %v864 = vadd.f32 %v695, %v863
  %865 = vmatmul.bf16.gmra.mxu0 %v447
  %v866 = vpop.f32.mrf.mxu0
  %v867 = vadd.f32 %v698, %v866
  %v868 = vpop.f32.mrf.mxu0
  %v869 = vadd.f32 %v700, %v868
  %870 = vmatmul.bf16.gmra.mxu0 %v449
  %v871 = vpop.f32.mrf.mxu0
  %v872 = vadd.f32 %v703, %v871
  %v873 = vpop.f32.mrf.mxu0
  %v874 = vadd.f32 %v705, %v873
  %875 = vmatmul.bf16.gmra.mxu0 %v451
  %v876 = vpop.f32.mrf.mxu0
  %v877 = vadd.f32 %v708, %v876
  %v878 = vpop.f32.mrf.mxu0
  %v879 = vadd.f32 %v710, %v878
  %880 = vmatmul.bf16.gmra.mxu0 %v453
  %v881 = vpop.f32.mrf.mxu0
  %v882 = vadd.f32 %v713, %v881
  %v883 = vpop.f32.mrf.mxu0
  %v884 = vadd.f32 %v715, %v883
  %885 = vmatmul.bf16.gmra.mxu0 %v455
  %v886 = vpop.f32.mrf.mxu0
  %v887 = vadd.f32 %v718, %v886
  %v888 = vpop.f32.mrf.mxu0
  %v889 = vadd.f32 %v720, %v888
  %890 = vmatmul.bf16.gmra.mxu0 %v457
  %v891 = vpop.f32.mrf.mxu0
  %v892 = vadd.f32 %v723, %v891
  %v893 = vpop.f32.mrf.mxu0
  %v894 = vadd.f32 %v725, %v893
  %895 = vmatmul.bf16.gmra.mxu0 %v459
  %v896 = vpop.f32.mrf.mxu0
  %v897 = vadd.f32 %v728, %v896
  %v898 = vpop.f32.mrf.mxu0
  %v899 = vadd.f32 %v730, %v898
  %900 = vmatmul.bf16.gmra.mxu0 %v461
  %v901 = vpop.f32.mrf.mxu0
  %v902 = vadd.f32 %v733, %v901
  %v903 = vpop.f32.mrf.mxu0
  %v904 = vadd.f32 %v735, %v903
  %905 = vmatmul.bf16.gmra.mxu0 %v463
  %v906 = vpop.f32.mrf.mxu0
  %v907 = vadd.f32 %v738, %v906
  %v908 = vpop.f32.mrf.mxu0
  %v909 = vadd.f32 %v740, %v908
  %910 = vmatmul.bf16.gmra.mxu0 %v465
  %v911 = vpop.f32.mrf.mxu0
  %v912 = vadd.f32 %v743, %v911
  %v913 = vpop.f32.mrf.mxu0
  %v914 = vadd.f32 %v745, %v913
  %915 = vmatmul.bf16.gmra.mxu0 %v467
  %v916 = vpop.f32.mrf.mxu0
  %v917 = vadd.f32 %v748, %v916
  %v918 = vpop.f32.mrf.mxu0
  %v919 = vadd.f32 %v750, %v918
  %920 = vmatmul.bf16.gmra.mxu0 %v469
  %v921 = vpop.f32.mrf.mxu0
  %v922 = vadd.f32 %v753, %v921
  %v923 = vpop.f32.mrf.mxu0
  %v924 = vadd.f32 %v755, %v923
  %925 = vmatmul.bf16.gmra.mxu0 %v471
  %v926 = vpop.f32.mrf.mxu0
  %v927 = vadd.f32 %v758, %v926
  %v928 = vpop.f32.mrf.mxu0
  %v929 = vadd.f32 %v760, %v928
  %930 = vmatmul.bf16.gmra.mxu0 %v473
  %v931 = vpop.f32.mrf.mxu0
  %v932 = vadd.f32 %v763, %v931
  %v933 = vpop.f32.mrf.mxu0
  %v934 = vadd.f32 %v765, %v933
  %935 = vmatmul.bf16.gmra.mxu0 %v475
  %v936 = vpop.f32.mrf.mxu0
  %v937 = vadd.f32 %v768, %v936
  %v938 = vpop.f32.mrf.mxu0
  %v939 = vadd.f32 %v770, %v938
  %940 = vmatmul.bf16.gmra.mxu0 %v477
  %v941 = vpop.f32.mrf.mxu0
  %v942 = vadd.f32 %v773, %v941
  %v943 = vpop.f32.mrf.mxu0
  %v944 = vadd.f32 %v775, %v943
  %945 = vmatmul.bf16.gmra.mxu0 %v479
  %v946 = vpop.f32.mrf.mxu0
  %v947 = vadd.f32 %v778, %v946
  %v948 = vpop.f32.mrf.mxu0
  %v949 = vadd.f32 %v780, %v948
  %950 = vmatmul.bf16.gmra.mxu0 %v481
  %v951 = vpop.f32.mrf.mxu0
  %v952 = vadd.f32 %v783, %v951
  %v953 = vpop.f32.mrf.mxu0
  %v954 = vadd.f32 %v785, %v953
  %955 = vmatmul.bf16.gmra.mxu0 %v483
  %v956 = vpop.f32.mrf.mxu0
  %v957 = vadd.f32 %v788, %v956
  %v958 = vpop.f32.mrf.mxu0
  %v959 = vadd.f32 %v790, %v958
  %960 = vmatmul.bf16.gmra.mxu0 %v485
  %v961 = vpop.f32.mrf.mxu0
  %v962 = vadd.f32 %v793, %v961
  %v963 = vpop.f32.mrf.mxu0
  %v964 = vadd.f32 %v795, %v963
  %965 = vmatmul.bf16.gmra.mxu0 %v487
  %v966 = vpop.f32.mrf.mxu0
  %v967 = vadd.f32 %v798, %v966
  %v968 = vpop.f32.mrf.mxu0
  %v969 = vadd.f32 %v800, %v968
  %970 = vmatmul.bf16.gmra.mxu0 %v489
  %v971 = vpop.f32.mrf.mxu0
  %v972 = vadd.f32 %v803, %v971
  %v973 = vpop.f32.mrf.mxu0
  %v974 = vadd.f32 %v805, %v973
  %975 = vmatmul.bf16.gmra.mxu0 %v491
  %v976 = vpop.f32.mrf.mxu0
  %v977 = vadd.f32 %v808, %v976
  %v978 = vpop.f32.mrf.mxu0
  %v979 = vadd.f32 %v810, %v978
  %980 = vmatmul.bf16.gmra.mxu0 %v493
  %v981 = vpop.f32.mrf.mxu0
  %v982 = vadd.f32 %v813, %v981
  %v983 = vpop.f32.mrf.mxu0
  %v984 = vadd.f32 %v815, %v983
  %985 = vmatmul.bf16.gmra.mxu0 %v495
  %v986 = vpop.f32.mrf.mxu0
  %v987 = vadd.f32 %v818, %v986
  %v988 = vpop.f32.mrf.mxu0
  %v989 = vadd.f32 %v820, %v988
  %990 = vmatmul.bf16.gmra.mxu0 %v497
  %v991 = vpop.f32.mrf.mxu0
  %v992 = vadd.f32 %v823, %v991
  %v993 = vpop.f32.mrf.mxu0
  %v994 = vadd.f32 %v825, %v993
  %995 = vdwg.mxu0
  %v996 = vadd.f32 %v82, %v837
  %v997 = vadd.f32 %v83, %v839
  %v998 = vadd.f32 %v84, %v842
  %v999 = vadd.f32 %v85, %v844
  %v1000 = vadd.f32 %v86, %v847
  %v1001 = vadd.f32 %v87, %v849
  %v1002 = vadd.f32 %v88, %v852
  %v1003 = vadd.f32 %v89, %v854
  %v1004 = vadd.f32 %v90, %v857
  %v1005 = vadd.f32 %v91, %v859
  %v1006 = vadd.f32 %v92, %v862
  %v1007 = vadd.f32 %v93, %v864
  %v1008 = vadd.f32 %v94, %v867
  %v1009 = vadd.f32 %v95, %v869
  %v1010 = vadd.f32 %v96, %v872
  %v1011 = vadd.f32 %v97, %v874
  %v1012 = vadd.f32 %v98, %v877
  %v1013 = vadd.f32 %v99, %v879
  %v1014 = vadd.f32 %v100, %v882
  %v1015 = vadd.f32 %v101, %v884
  %v1016 = vadd.f32 %v102, %v887
  %v1017 = vadd.f32 %v103, %v889
  %v1018 = vadd.f32 %v104, %v892
  %v1019 = vadd.f32 %v105, %v894
  %v1020 = vadd.f32 %v106, %v897
  %v1021 = vadd.f32 %v107, %v899
  %v1022 = vadd.f32 %v108, %v902
  %v1023 = vadd.f32 %v109, %v904
  %v1024 = vadd.f32 %v110, %v907
  %v1025 = vadd.f32 %v111, %v909
  %v1026 = vadd.f32 %v112, %v912
  %v1027 = vadd.f32 %v113, %v914
  %v1028 = vadd.f32 %v114, %v917
  %v1029 = vadd.f32 %v115, %v919
  %v1030 = vadd.f32 %v116, %v922
  %v1031 = vadd.f32 %v117, %v924
  %v1032 = vadd.f32 %v118, %v927
  %v1033 = vadd.f32 %v119, %v929
  %v1034 = vadd.f32 %v120, %v932
  %v1035 = vadd.f32 %v121, %v934
  %v1036 = vadd.f32 %v122, %v937
  %v1037 = vadd.f32 %v123, %v939
  %v1038 = vadd.f32 %v124, %v942
  %v1039 = vadd.f32 %v125, %v944
  %v1040 = vadd.f32 %v126, %v947
  %v1041 = vadd.f32 %v127, %v949
  %v1042 = vadd.f32 %v128, %v952
  %v1043 = vadd.f32 %v129, %v954
  %v1044 = vadd.f32 %v130, %v957
  %v1045 = vadd.f32 %v131, %v959
  %v1046 = vadd.f32 %v132, %v962
  %v1047 = vadd.f32 %v133, %v964
  %v1048 = vadd.f32 %v134, %v967
  %v1049 = vadd.f32 %v135, %v969
  %v1050 = vadd.f32 %v136, %v972
  %v1051 = vadd.f32 %v137, %v974
  %v1052 = vadd.f32 %v138, %v977
  %v1053 = vadd.f32 %v139, %v979
  %v1054 = vadd.f32 %v140, %v982
  %v1055 = vadd.f32 %v141, %v984
  %v1056 = vadd.f32 %v142, %v987
  %v1057 = vadd.f32 %v143, %v989
  %v1058 = vadd.f32 %v144, %v992
  %v1059 = vadd.f32 %v145, %v994
  %1060 = vst [vmem:[#allocation2] sm:$0xff] %v996
  %1061 = vst [vmem:[#allocation2 + $0x8] sm:$0xff] %v997
  %1062 = vst [vmem:[#allocation2 + $0x10] sm:$0xff] %v998
  %1063 = vst [vmem:[#allocation2 + $0x18] sm:$0xff] %v999
  %1064 = vst [vmem:[#allocation2 + $0x20] sm:$0xff] %v1000
  %1065 = vst [vmem:[#allocation2 + $0x28] sm:$0xff] %v1001
  %1066 = vst [vmem:[#allocation2 + $0x30] sm:$0xff] %v1002
  %1067 = vst [vmem:[#allocation2 + $0x38] sm:$0xff] %v1003
  %1068 = vst [vmem:[#allocation2 + $0x40] sm:$0xff] %v1004
  %1069 = vst [vmem:[#allocation2 + $0x48] sm:$0xff] %v1005
  %1070 = vst [vmem:[#allocation2 + $0x50] sm:$0xff] %v1006
  %1071 = vst [vmem:[#allocation2 + $0x58] sm:$0xff] %v1007
  %1072 = vst [vmem:[#allocation2 + $0x60] sm:$0xff] %v1008
  %1073 = vst [vmem:[#allocation2 + $0x68] sm:$0xff] %v1009
  %1074 = vst [vmem:[#allocation2 + $0x70] sm:$0xff] %v1010
  %1075 = vst [vmem:[#allocation2 + $0x78] sm:$0xff] %v1011
  %1076 = vst [vmem:[#allocation2 + $0x80] sm:$0xff] %v1012
  %1077 = vst [vmem:[#allocation2 + $0x88] sm:$0xff] %v1013
  %1078 = vst [vmem:[#allocation2 + $0x90] sm:$0xff] %v1014
  %1079 = vst [vmem:[#allocation2 + $0x98] sm:$0xff] %v1015
  %1080 = vst [vmem:[#allocation2 + $0xa0] sm:$0xff] %v1016
  %1081 = vst [vmem:[#allocation2 + $0xa8] sm:$0xff] %v1017
  %1082 = vst [vmem:[#allocation2 + $0xb0] sm:$0xff] %v1018
  %1083 = vst [vmem:[#allocation2 + $0xb8] sm:$0xff] %v1019
  %1084 = vst [vmem:[#allocation2 + $0xc0] sm:$0xff] %v1020
  %1085 = vst [vmem:[#allocation2 + $0xc8] sm:$0xff] %v1021
  %1086 = vst [vmem:[#allocation2 + $0xd0] sm:$0xff] %v1022
  %1087 = vst [vmem:[#allocation2 + $0xd8] sm:$0xff] %v1023
  %1088 = vst [vmem:[#allocation2 + $0xe0] sm:$0xff] %v1024
  %1089 = vst [vmem:[#allocation2 + $0xe8] sm:$0xff] %v1025
  %1090 = vst [vmem:[#allocation2 + $0xf0] sm:$0xff] %v1026
  %1091 = vst [vmem:[#allocation2 + $0xf8] sm:$0xff] %v1027
  %1092 = vst [vmem:[#allocation2 + $0x100] sm:$0xff] %v1028
  %1093 = vst [vmem:[#allocation2 + $0x108] sm:$0xff] %v1029
  %1094 = vst [vmem:[#allocation2 + $0x110] sm:$0xff] %v1030
  %1095 = vst [vmem:[#allocation2 + $0x118] sm:$0xff] %v1031
  %1096 = vst [vmem:[#allocation2 + $0x120] sm:$0xff] %v1032
  %1097 = vst [vmem:[#allocation2 + $0x128] sm:$0xff] %v1033
  %1098 = vst [vmem:[#allocation2 + $0x130] sm:$0xff] %v1034
  %1099 = vst [vmem:[#allocation2 + $0x138] sm:$0xff] %v1035
  %1100 = vst [vmem:[#allocation2 + $0x140] sm:$0xff] %v1036
  %1101 = vst [vmem:[#allocation2 + $0x148] sm:$0xff] %v1037
  %1102 = vst [vmem:[#allocation2 + $0x150] sm:$0xff] %v1038
  %1103 = vst [vmem:[#allocation2 + $0x158] sm:$0xff] %v1039
  %1104 = vst [vmem:[#allocation2 + $0x160] sm:$0xff] %v1040
  %1105 = vst [vmem:[#allocation2 + $0x168] sm:$0xff] %v1041
  %1106 = vst [vmem:[#allocation2 + $0x170] sm:$0xff] %v1042
  %1107 = vst [vmem:[#allocation2 + $0x178] sm:$0xff] %v1043
  %1108 = vst [vmem:[#allocation2 + $0x180] sm:$0xff] %v1044
  %1109 = vst [vmem:[#allocation2 + $0x188] sm:$0xff] %v1045
  %1110 = vst [vmem:[#allocation2 + $0x190] sm:$0xff] %v1046
  %1111 = vst [vmem:[#allocation2 + $0x198] sm:$0xff] %v1047
  %1112 = vst [vmem:[#allocation2 + $0x1a0] sm:$0xff] %v1048
  %1113 = vst [vmem:[#allocation2 + $0x1a8] sm:$0xff] %v1049
  %1114 = vst [vmem:[#allocation2 + $0x1b0] sm:$0xff] %v1050
  %1115 = vst [vmem:[#allocation2 + $0x1b8] sm:$0xff] %v1051
  %1116 = vst [vmem:[#allocation2 + $0x1c0] sm:$0xff] %v1052
  %1117 = vst [vmem:[#allocation2 + $0x1c8] sm:$0xff] %v1053
  %1118 = vst [vmem:[#allocation2 + $0x1d0] sm:$0xff] %v1054
  %1119 = vst [vmem:[#allocation2 + $0x1d8] sm:$0xff] %v1055
  %1120 = vst [vmem:[#allocation2 + $0x1e0] sm:$0xff] %v1056
  %1121 = vst [vmem:[#allocation2 + $0x1e8] sm:$0xff] %v1057
  %1122 = vst [vmem:[#allocation2 + $0x1f0] sm:$0xff] %v1058
  %1123 = vst [vmem:[#allocation2 + $0x1f8] sm:$0xff] %v1059
  // Predicated region
  $region18: #{generator_forward.19} parent=0 // pred_check
    %p1124 = pneg %p14
  $region19: #{generator_forward.19} parent=0 // pred_check_branch
    %1126 = sbr.rel (%p1124) target = $region21
  $region20: #{generator_forward.19} parent=0 // pred_region
    %v1127 = vld [vmem:[#allocation2] sm:$0xff]
    %v1128 = vld [vmem:[#allocation2 + $0x8] sm:$0xff]
    %v1129 = vld [vmem:[#allocation2 + $0x10] sm:$0xff]
    %v1130 = vld [vmem:[#allocation2 + $0x18] sm:$0xff]
    %v1131 = vld [vmem:[#allocation2 + $0x20] sm:$0xff]
    %v1132 = vld [vmem:[#allocation2 + $0x28] sm:$0xff]
    %v1133 = vld [vmem:[#allocation2 + $0x30] sm:$0xff]
    %v1134 = vld [vmem:[#allocation2 + $0x38] sm:$0xff]
    %v1135 = vld [vmem:[#allocation2 + $0x40] sm:$0xff]
    %v1136 = vld [vmem:[#allocation2 + $0x48] sm:$0xff]
    %v1137 = vld [vmem:[#allocation2 + $0x50] sm:$0xff]
    %v1138 = vld [vmem:[#allocation2 + $0x58] sm:$0xff]
    %v1139 = vld [vmem:[#allocation2 + $0x60] sm:$0xff]
    %v1140 = vld [vmem:[#allocation2 + $0x68] sm:$0xff]
    %v1141 = vld [vmem:[#allocation2 + $0x70] sm:$0xff]
    %v1142 = vld [vmem:[#allocation2 + $0x78] sm:$0xff]
    %v1143 = vld [vmem:[#allocation2 + $0x80] sm:$0xff]
    %v1144 = vld [vmem:[#allocation2 + $0x88] sm:$0xff]
    %v1145 = vld [vmem:[#allocation2 + $0x90] sm:$0xff]
    %v1146 = vld [vmem:[#allocation2 + $0x98] sm:$0xff]
    %v1147 = vld [vmem:[#allocation2 + $0xa0] sm:$0xff]
    %v1148 = vld [vmem:[#allocation2 + $0xa8] sm:$0xff]
    %v1149 = vld [vmem:[#allocation2 + $0xb0] sm:$0xff]
    %v1150 = vld [vmem:[#allocation2 + $0xb8] sm:$0xff]
    %v1151 = vld [vmem:[#allocation2 + $0xc0] sm:$0xff]
    %v1152 = vld [vmem:[#allocation2 + $0xc8] sm:$0xff]
    %v1153 = vld [vmem:[#allocation2 + $0xd0] sm:$0xff]
    %v1154 = vld [vmem:[#allocation2 + $0xd8] sm:$0xff]
    %v1155 = vld [vmem:[#allocation2 + $0xe0] sm:$0xff]
    %v1156 = vld [vmem:[#allocation2 + $0xe8] sm:$0xff]
    %v1157 = vld [vmem:[#allocation2 + $0xf0] sm:$0xff]
    %v1158 = vld [vmem:[#allocation2 + $0xf8] sm:$0xff]
    %v1159 = vld [vmem:[#allocation2 + $0x100] sm:$0xff]
    %v1160 = vld [vmem:[#allocation2 + $0x108] sm:$0xff]
    %v1161 = vld [vmem:[#allocation2 + $0x110] sm:$0xff]
    %v1162 = vld [vmem:[#allocation2 + $0x118] sm:$0xff]
    %v1163 = vld [vmem:[#allocation2 + $0x120] sm:$0xff]
    %v1164 = vld [vmem:[#allocation2 + $0x128] sm:$0xff]
    %v1165 = vld [vmem:[#allocation2 + $0x130] sm:$0xff]
    %v1166 = vld [vmem:[#allocation2 + $0x138] sm:$0xff]
    %v1167 = vld [vmem:[#allocation2 + $0x140] sm:$0xff]
    %v1168 = vld [vmem:[#allocation2 + $0x148] sm:$0xff]
    %v1169 = vld [vmem:[#allocation2 + $0x150] sm:$0xff]
    %v1170 = vld [vmem:[#allocation2 + $0x158] sm:$0xff]
    %v1171 = vld [vmem:[#allocation2 + $0x160] sm:$0xff]
    %v1172 = vld [vmem:[#allocation2 + $0x168] sm:$0xff]
    %v1173 = vld [vmem:[#allocation2 + $0x170] sm:$0xff]
    %v1174 = vld [vmem:[#allocation2 + $0x178] sm:$0xff]
    %v1175 = vld [vmem:[#allocation2 + $0x180] sm:$0xff]
    %v1176 = vld [vmem:[#allocation2 + $0x188] sm:$0xff]
    %v1177 = vld [vmem:[#allocation2 + $0x190] sm:$0xff]
    %v1178 = vld [vmem:[#allocation2 + $0x198] sm:$0xff]
    %v1179 = vld [vmem:[#allocation2 + $0x1a0] sm:$0xff]
    %v1180 = vld [vmem:[#allocation2 + $0x1a8] sm:$0xff]
    %v1181 = vld [vmem:[#allocation2 + $0x1b0] sm:$0xff]
    %v1182 = vld [vmem:[#allocation2 + $0x1b8] sm:$0xff]
    %v1183 = vld [vmem:[#allocation2 + $0x1c0] sm:$0xff]
    %v1184 = vld [vmem:[#allocation2 + $0x1c8] sm:$0xff]
    %v1185 = vld [vmem:[#allocation2 + $0x1d0] sm:$0xff]
    %v1186 = vld [vmem:[#allocation2 + $0x1d8] sm:$0xff]
    %v1187 = vld [vmem:[#allocation2 + $0x1e0] sm:$0xff]
    %v1188 = vld [vmem:[#allocation2 + $0x1e8] sm:$0xff]
    %v1189 = vld [vmem:[#allocation2 + $0x1f0] sm:$0xff]
    %v1190 = vld [vmem:[#allocation2 + $0x1f8] sm:$0xff]
    %v1191 = vld [vmem:[%s2] sm:$0x1]
    %v1193 = vperm.slane %v1191, 0
    %v1195 = vadd.f32 %v1127, %v1193
    %v1196 = vadd.f32 %v1128, %v1193
    %v1197 = vadd.f32 %v1129, %v1193
    %v1198 = vadd.f32 %v1130, %v1193
    %v1199 = vadd.f32 %v1131, %v1193
    %v1200 = vadd.f32 %v1132, %v1193
    %v1201 = vadd.f32 %v1133, %v1193
    %v1202 = vadd.f32 %v1134, %v1193
    %v1203 = vadd.f32 %v1135, %v1193
    %v1204 = vadd.f32 %v1136, %v1193
    %v1205 = vadd.f32 %v1137, %v1193
    %v1206 = vadd.f32 %v1138, %v1193
    %v1207 = vadd.f32 %v1139, %v1193
    %v1208 = vadd.f32 %v1140, %v1193
    %v1209 = vadd.f32 %v1141, %v1193
    %v1210 = vadd.f32 %v1142, %v1193
    %v1211 = vadd.f32 %v1143, %v1193
    %v1212 = vadd.f32 %v1144, %v1193
    %v1213 = vadd.f32 %v1145, %v1193
    %v1214 = vadd.f32 %v1146, %v1193
    %v1215 = vadd.f32 %v1147, %v1193
    %v1216 = vadd.f32 %v1148, %v1193
    %v1217 = vadd.f32 %v1149, %v1193
    %v1218 = vadd.f32 %v1150, %v1193
    %v1219 = vadd.f32 %v1151, %v1193
    %v1220 = vadd.f32 %v1152, %v1193
    %v1221 = vadd.f32 %v1153, %v1193
    %v1222 = vadd.f32 %v1154, %v1193
    %v1223 = vadd.f32 %v1155, %v1193
    %v1224 = vadd.f32 %v1156, %v1193
    %v1225 = vadd.f32 %v1157, %v1193
    %v1226 = vadd.f32 %v1158, %v1193
    %v1227 = vadd.f32 %v1159, %v1193
    %v1228 = vadd.f32 %v1160, %v1193
    %v1229 = vadd.f32 %v1161, %v1193
    %v1230 = vadd.f32 %v1162, %v1193
    %v1231 = vadd.f32 %v1163, %v1193
    %v1232 = vadd.f32 %v1164, %v1193
    %v1233 = vadd.f32 %v1165, %v1193
    %v1234 = vadd.f32 %v1166, %v1193
    %v1235 = vadd.f32 %v1167, %v1193
    %v1236 = vadd.f32 %v1168, %v1193
    %v1237 = vadd.f32 %v1169, %v1193
    %v1238 = vadd.f32 %v1170, %v1193
    %v1239 = vadd.f32 %v1171, %v1193
    %v1240 = vadd.f32 %v1172, %v1193
    %v1241 = vadd.f32 %v1173, %v1193
    %v1242 = vadd.f32 %v1174, %v1193
    %v1243 = vadd.f32 %v1175, %v1193
    %v1244 = vadd.f32 %v1176, %v1193
    %v1245 = vadd.f32 %v1177, %v1193
    %v1246 = vadd.f32 %v1178, %v1193
    %v1247 = vadd.f32 %v1179, %v1193
    %v1248 = vadd.f32 %v1180, %v1193
    %v1249 = vadd.f32 %v1181, %v1193
    %v1250 = vadd.f32 %v1182, %v1193
    %v1251 = vadd.f32 %v1183, %v1193
    %v1252 = vadd.f32 %v1184, %v1193
    %v1253 = vadd.f32 %v1185, %v1193
    %v1254 = vadd.f32 %v1186, %v1193
    %v1255 = vadd.f32 %v1187, %v1193
    %v1256 = vadd.f32 %v1188, %v1193
    %v1257 = vadd.f32 %v1189, %v1193
    %v1258 = vadd.f32 %v1190, %v1193
    %v1259 = vpack.c.bf16 %v1195, %v1195
    %v1260 = vpack.c.bf16 %v1196, %v1196
    %v1261 = vpack.c.bf16 %v1197, %v1197
    %v1262 = vpack.c.bf16 %v1198, %v1198
    %v1263 = vpack.c.bf16 %v1199, %v1199
    %v1264 = vpack.c.bf16 %v1200, %v1200
    %v1265 = vpack.c.bf16 %v1201, %v1201
    %v1266 = vpack.c.bf16 %v1202, %v1202
    %v1267 = vpack.c.bf16 %v1203, %v1203
    %v1268 = vpack.c.bf16 %v1204, %v1204
    %v1269 = vpack.c.bf16 %v1205, %v1205
    %v1270 = vpack.c.bf16 %v1206, %v1206
    %v1271 = vpack.c.bf16 %v1207, %v1207
    %v1272 = vpack.c.bf16 %v1208, %v1208
    %v1273 = vpack.c.bf16 %v1209, %v1209
    %v1274 = vpack.c.bf16 %v1210, %v1210
    %v1275 = vpack.c.bf16 %v1211, %v1211
    %v1276 = vpack.c.bf16 %v1212, %v1212
    %v1277 = vpack.c.bf16 %v1213, %v1213
    %v1278 = vpack.c.bf16 %v1214, %v1214
    %v1279 = vpack.c.bf16 %v1215, %v1215
    %v1280 = vpack.c.bf16 %v1216, %v1216
    %v1281 = vpack.c.bf16 %v1217, %v1217
    %v1282 = vpack.c.bf16 %v1218, %v1218
    %v1283 = vpack.c.bf16 %v1219, %v1219
    %v1284 = vpack.c.bf16 %v1220, %v1220
    %v1285 = vpack.c.bf16 %v1221, %v1221
    %v1286 = vpack.c.bf16 %v1222, %v1222
    %v1287 = vpack.c.bf16 %v1223, %v1223
    %v1288 = vpack.c.bf16 %v1224, %v1224
    %v1289 = vpack.c.bf16 %v1225, %v1225
    %v1290 = vpack.c.bf16 %v1226, %v1226
    %v1291 = vpack.c.bf16 %v1227, %v1227
    %v1292 = vpack.c.bf16 %v1228, %v1228
    %v1293 = vpack.c.bf16 %v1229, %v1229
    %v1294 = vpack.c.bf16 %v1230, %v1230
    %v1295 = vpack.c.bf16 %v1231, %v1231
    %v1296 = vpack.c.bf16 %v1232, %v1232
    %v1297 = vpack.c.bf16 %v1233, %v1233
    %v1298 = vpack.c.bf16 %v1234, %v1234
    %v1299 = vpack.c.bf16 %v1235, %v1235
    %v1300 = vpack.c.bf16 %v1236, %v1236
    %v1301 = vpack.c.bf16 %v1237, %v1237
    %v1302 = vpack.c.bf16 %v1238, %v1238
    %v1303 = vpack.c.bf16 %v1239, %v1239
    %v1304 = vpack.c.bf16 %v1240, %v1240
    %v1305 = vpack.c.bf16 %v1241, %v1241
    %v1306 = vpack.c.bf16 %v1242, %v1242
    %v1307 = vpack.c.bf16 %v1243, %v1243
    %v1308 = vpack.c.bf16 %v1244, %v1244
    %v1309 = vpack.c.bf16 %v1245, %v1245
    %v1310 = vpack.c.bf16 %v1246, %v1246
    %v1311 = vpack.c.bf16 %v1247, %v1247
    %v1312 = vpack.c.bf16 %v1248, %v1248
    %v1313 = vpack.c.bf16 %v1249, %v1249
    %v1314 = vpack.c.bf16 %v1250, %v1250
    %v1315 = vpack.c.bf16 %v1251, %v1251
    %v1316 = vpack.c.bf16 %v1252, %v1252
    %v1317 = vpack.c.bf16 %v1253, %v1253
    %v1318 = vpack.c.bf16 %v1254, %v1254
    %v1319 = vpack.c.bf16 %v1255, %v1255
    %v1320 = vpack.c.bf16 %v1256, %v1256
    %v1321 = vpack.c.bf16 %v1257, %v1257
    %v1322 = vpack.c.bf16 %v1258, %v1258
    %1323 = vst [vmem:[%s3] sm:$0xf] %v1259
    %1324 = vst [vmem:[%s3 + $0x4] sm:$0xf] %v1260
    %1325 = vst [vmem:[%s3 + $0x8] sm:$0xf] %v1261
    %1326 = vst [vmem:[%s3 + $0xc] sm:$0xf] %v1262
    %1327 = vst [vmem:[%s3 + $0x10] sm:$0xf] %v1263
    %1328 = vst [vmem:[%s3 + $0x14] sm:$0xf] %v1264
    %1329 = vst [vmem:[%s3 + $0x18] sm:$0xf] %v1265
    %1330 = vst [vmem:[%s3 + $0x1c] sm:$0xf] %v1266
    %1331 = vst [vmem:[%s3 + $0x20] sm:$0xf] %v1267
    %1332 = vst [vmem:[%s3 + $0x24] sm:$0xf] %v1268
    %1333 = vst [vmem:[%s3 + $0x28] sm:$0xf] %v1269
    %1334 = vst [vmem:[%s3 + $0x2c] sm:$0xf] %v1270
    %1335 = vst [vmem:[%s3 + $0x30] sm:$0xf] %v1271
    %1336 = vst [vmem:[%s3 + $0x34] sm:$0xf] %v1272
    %1337 = vst [vmem:[%s3 + $0x38] sm:$0xf] %v1273
    %1338 = vst [vmem:[%s3 + $0x3c] sm:$0xf] %v1274
    %1339 = vst [vmem:[%s3 + $0x40] sm:$0xf] %v1275
    %1340 = vst [vmem:[%s3 + $0x44] sm:$0xf] %v1276
    %1341 = vst [vmem:[%s3 + $0x48] sm:$0xf] %v1277
    %1342 = vst [vmem:[%s3 + $0x4c] sm:$0xf] %v1278
    %1343 = vst [vmem:[%s3 + $0x50] sm:$0xf] %v1279
    %1344 = vst [vmem:[%s3 + $0x54] sm:$0xf] %v1280
    %1345 = vst [vmem:[%s3 + $0x58] sm:$0xf] %v1281
    %1346 = vst [vmem:[%s3 + $0x5c] sm:$0xf] %v1282
    %1347 = vst [vmem:[%s3 + $0x60] sm:$0xf] %v1283
    %1348 = vst [vmem:[%s3 + $0x64] sm:$0xf] %v1284
    %1349 = vst [vmem:[%s3 + $0x68] sm:$0xf] %v1285
    %1350 = vst [vmem:[%s3 + $0x6c] sm:$0xf] %v1286
    %1351 = vst [vmem:[%s3 + $0x70] sm:$0xf] %v1287
    %1352 = vst [vmem:[%s3 + $0x74] sm:$0xf] %v1288
    %1353 = vst [vmem:[%s3 + $0x78] sm:$0xf] %v1289
    %1354 = vst [vmem:[%s3 + $0x7c] sm:$0xf] %v1290
    %1355 = vst [vmem:[%s3 + $0x80] sm:$0xf] %v1291
    %1356 = vst [vmem:[%s3 + $0x84] sm:$0xf] %v1292
    %1357 = vst [vmem:[%s3 + $0x88] sm:$0xf] %v1293
    %1358 = vst [vmem:[%s3 + $0x8c] sm:$0xf] %v1294
    %1359 = vst [vmem:[%s3 + $0x90] sm:$0xf] %v1295
    %1360 = vst [vmem:[%s3 + $0x94] sm:$0xf] %v1296
    %1361 = vst [vmem:[%s3 + $0x98] sm:$0xf] %v1297
    %1362 = vst [vmem:[%s3 + $0x9c] sm:$0xf] %v1298
    %1363 = vst [vmem:[%s3 + $0xa0] sm:$0xf] %v1299
    %1364 = vst [vmem:[%s3 + $0xa4] sm:$0xf] %v1300
    %1365 = vst [vmem:[%s3 + $0xa8] sm:$0xf] %v1301
    %1366 = vst [vmem:[%s3 + $0xac] sm:$0xf] %v1302
    %1367 = vst [vmem:[%s3 + $0xb0] sm:$0xf] %v1303
    %1368 = vst [vmem:[%s3 + $0xb4] sm:$0xf] %v1304
    %1369 = vst [vmem:[%s3 + $0xb8] sm:$0xf] %v1305
    %1370 = vst [vmem:[%s3 + $0xbc] sm:$0xf] %v1306
    %1371 = vst [vmem:[%s3 + $0xc0] sm:$0xf] %v1307
    %1372 = vst [vmem:[%s3 + $0xc4] sm:$0xf] %v1308
    %1373 = vst [vmem:[%s3 + $0xc8] sm:$0xf] %v1309
    %1374 = vst [vmem:[%s3 + $0xcc] sm:$0xf] %v1310
    %1375 = vst [vmem:[%s3 + $0xd0] sm:$0xf] %v1311
    %1376 = vst [vmem:[%s3 + $0xd4] sm:$0xf] %v1312
    %1377 = vst [vmem:[%s3 + $0xd8] sm:$0xf] %v1313
    %1378 = vst [vmem:[%s3 + $0xdc] sm:$0xf] %v1314
    %1379 = vst [vmem:[%s3 + $0xe0] sm:$0xf] %v1315
    %1380 = vst [vmem:[%s3 + $0xe4] sm:$0xf] %v1316
    %1381 = vst [vmem:[%s3 + $0xe8] sm:$0xf] %v1317
    %1382 = vst [vmem:[%s3 + $0xec] sm:$0xf] %v1318
    %1383 = vst [vmem:[%s3 + $0xf0] sm:$0xf] %v1319
    %1384 = vst [vmem:[%s3 + $0xf4] sm:$0xf] %v1320
    %1385 = vst [vmem:[%s3 + $0xf8] sm:$0xf] %v1321
    %1386 = vst [vmem:[%s3 + $0xfc] sm:$0xf] %v1322
  $region21: #{generator_forward.19} parent=0 // pred_fallthru
    _
  // Predicated region
  $region22: #{generator_forward.19} parent=0 // pred_check
    _
  $region23: #{generator_forward.19} parent=0 // pred_check_branch
    %1388 = sbr.rel (0) target = $region25
  $region24: #{generator_forward.19} parent=0 // pred_region
    _
  $region25: #{generator_forward.19} parent=0 // pred_fallthru
    _
  // Predicated region
  $region26: #{generator_forward.19} parent=0 // pred_check
    _
  $region27: #{generator_forward.19} parent=0 // pred_check_branch
    %1390 = sbr.rel (0) target = $region29
  $region28: #{generator_forward.19} parent=0 // pred_region
    _
  $region29: #{generator_forward.19} parent=0 // pred_fallthru
    _

// kernel: generator_forward.21
$region0: #{generator_forward.21}
  #allocation0 [shape = 'u32[]', space=smem, size = 0x4, offset = 0x4, fixed_abs, tag = 'smem constant byte address 0x4 - core index']
  #allocation1 [shape = 'u32[72,128]{1,0:T(1,128)}', space=vmem, size = 0x9000, scoped, tag = 'internal scratch']
  #allocation2 [shape = 'f32[128,128]{1,0:T(8,128)}', space=vmem, size = 0x10000, scoped, tag = 'scratch operand']
  %s0 = inlined_call_operand.vmem [shape: bf16[128,128], index: 0, kind: input, shape index: {}]
  %s1 = inlined_call_operand.vmem [shape: bf16[128,128], index: 1, kind: input, shape index: {}]
  %s2 = inlined_call_operand.vmem [shape: f32[1,128], index: 2, kind: input, shape index: {}]
  %s3 = inlined_call_operand.vmem [shape: bf16[128,128], index: 3, kind: output, shape index: {}]
  %s4 = sld [smem:[#allocation0]]
  $region30: #{generator_forward.21} parent=0
    _
  %s6 = ssub.s32 1, %s4
  %s7 = scalar_select 0, %s6, %s4
  // Predicated region
  $region2: #{generator_forward.21} parent=0 // pred_check
    _
  $region3: #{generator_forward.21} parent=0 // pred_check_branch
    %9 = sbr.rel (0) target = $region5
  $region4: #{generator_forward.21} parent=0 // pred_region
    _
  $region5: #{generator_forward.21} parent=0 // pred_fallthru
    _
  // Predicated region
  $region6: #{generator_forward.21} parent=0 // pred_check
    _
  $region7: #{generator_forward.21} parent=0 // pred_check_branch
    %11 = sbr.rel (0) target = $region9
  $region8: #{generator_forward.21} parent=0 // pred_region
    _
  $region9: #{generator_forward.21} parent=0 // pred_fallthru
    _
  // Predicated region
  $region10: #{generator_forward.21} parent=0 // pred_check
    _
  $region11: #{generator_forward.21} parent=0 // pred_check_branch
    %13 = sbr.rel (0) target = $region13
  $region12: #{generator_forward.21} parent=0 // pred_region
    _
  $region13: #{generator_forward.21} parent=0 // pred_fallthru
    _
  %p14 = scmp.eq.s32.totalorder 0, 0
  // Predicated region
  $region14: #{generator_forward.21} parent=0 // pred_check
    %p15 = pneg %p14
  $region15: #{generator_forward.21} parent=0 // pred_check_branch
    %17 = sbr.rel (%p15) target = $region17
  $region16: #{generator_forward.21} parent=0 // pred_region
    %18 = vst [vmem:[#allocation2] sm:$0xff] 0.0
    %19 = vst [vmem:[#allocation2 + $0x8] sm:$0xff] 0.0
    %20 = vst [vmem:[#allocation2 + $0x10] sm:$0xff] 0.0
    %21 = vst [vmem:[#allocation2 + $0x18] sm:$0xff] 0.0
    %22 = vst [vmem:[#allocation2 + $0x20] sm:$0xff] 0.0
    %23 = vst [vmem:[#allocation2 + $0x28] sm:$0xff] 0.0
    %24 = vst [vmem:[#allocation2 + $0x30] sm:$0xff] 0.0
    %25 = vst [vmem:[#allocation2 + $0x38] sm:$0xff] 0.0
    %26 = vst [vmem:[#allocation2 + $0x40] sm:$0xff] 0.0
    %27 = vst [vmem:[#allocation2 + $0x48] sm:$0xff] 0.0
    %28 = vst [vmem:[#allocation2 + $0x50] sm:$0xff] 0.0
    %29 = vst [vmem:[#allocation2 + $0x58] sm:$0xff] 0.0
    %30 = vst [vmem:[#allocation2 + $0x60] sm:$0xff] 0.0
    %31 = vst [vmem:[#allocation2 + $0x68] sm:$0xff] 0.0
    %32 = vst [vmem:[#allocation2 + $0x70] sm:$0xff] 0.0
    %33 = vst [vmem:[#allocation2 + $0x78] sm:$0xff] 0.0
  $region17: #{generator_forward.21} parent=0 // pred_fallthru
    _
  %v34 = vld [vmem:[#allocation2] sm:$0xff]
  %v35 = vld [vmem:[#allocation2 + $0x8] sm:$0xff]
  %v36 = vld [vmem:[#allocation2 + $0x10] sm:$0xff]
  %v37 = vld [vmem:[#allocation2 + $0x18] sm:$0xff]
  %v38 = vld [vmem:[#allocation2 + $0x20] sm:$0xff]
  %v39 = vld [vmem:[#allocation2 + $0x28] sm:$0xff]
  %v40 = vld [vmem:[#allocation2 + $0x30] sm:$0xff]
  %v41 = vld [vmem:[#allocation2 + $0x38] sm:$0xff]
  %v42 = vld [vmem:[#allocation2 + $0x40] sm:$0xff]
  %v43 = vld [vmem:[#allocation2 + $0x48] sm:$0xff]
  %v44 = vld [vmem:[#allocation2 + $0x50] sm:$0xff]
  %v45 = vld [vmem:[#allocation2 + $0x58] sm:$0xff]
  %v46 = vld [vmem:[#allocation2 + $0x60] sm:$0xff]
  %v47 = vld [vmem:[#allocation2 + $0x68] sm:$0xff]
  %v48 = vld [vmem:[#allocation2 + $0x70] sm:$0xff]
  %v49 = vld [vmem:[#allocation2 + $0x78] sm:$0xff]
  %v50 = vld [vmem:[%s0] sm:$0xf]
  %v51 = vld [vmem:[%s0 + $0x4] sm:$0xf]
  %v52 = vld [vmem:[%s0 + $0x8] sm:$0xf]
  %v53 = vld [vmem:[%s0 + $0xc] sm:$0xf]
  %v54 = vld [vmem:[%s0 + $0x10] sm:$0xf]
  %v55 = vld [vmem:[%s0 + $0x14] sm:$0xf]
  %v56 = vld [vmem:[%s0 + $0x18] sm:$0xf]
  %v57 = vld [vmem:[%s0 + $0x1c] sm:$0xf]
  %v58 = vld [vmem:[%s0 + $0x20] sm:$0xf]
  %v59 = vld [vmem:[%s0 + $0x24] sm:$0xf]
  %v60 = vld [vmem:[%s0 + $0x28] sm:$0xf]
  %v61 = vld [vmem:[%s0 + $0x2c] sm:$0xf]
  %v62 = vld [vmem:[%s0 + $0x30] sm:$0xf]
  %v63 = vld [vmem:[%s0 + $0x34] sm:$0xf]
  %v64 = vld [vmem:[%s0 + $0x38] sm:$0xf]
  %v65 = vld [vmem:[%s0 + $0x3c] sm:$0xf]
  %v66 = vld [vmem:[%s1] sm:$0xf]
  %v67 = vld [vmem:[%s1 + $0x4] sm:$0xf]
  %v68 = vld [vmem:[%s1 + $0x8] sm:$0xf]
  %v69 = vld [vmem:[%s1 + $0xc] sm:$0xf]
  %v70 = vld [vmem:[%s1 + $0x10] sm:$0xf]
  %v71 = vld [vmem:[%s1 + $0x14] sm:$0xf]
  %v72 = vld [vmem:[%s1 + $0x18] sm:$0xf]
  %v73 = vld [vmem:[%s1 + $0x1c] sm:$0xf]
  %v74 = vld [vmem:[%s1 + $0x20] sm:$0xf]
  %v75 = vld [vmem:[%s1 + $0x24] sm:$0xf]
  %v76 = vld [vmem:[%s1 + $0x28] sm:$0xf]
  %v77 = vld [vmem:[%s1 + $0x2c] sm:$0xf]
  %v78 = vld [vmem:[%s1 + $0x30] sm:$0xf]
  %v79 = vld [vmem:[%s1 + $0x34] sm:$0xf]
  %v80 = vld [vmem:[%s1 + $0x38] sm:$0xf]
  %v81 = vld [vmem:[%s1 + $0x3c] sm:$0xf]
  %v98 = vunpack.c.l.b16 %v50
  %v99 = vunpack.c.l.b16 %v51
  %v100 = vunpack.c.l.b16 %v52
  %v101 = vunpack.c.l.b16 %v53
  %v102 = vunpack.c.l.b16 %v54
  %v103 = vunpack.c.l.b16 %v55
  %v104 = vunpack.c.l.b16 %v56
  %v105 = vunpack.c.l.b16 %v57
  %v106 = vunpack.c.l.b16 %v58
  %v107 = vunpack.c.l.b16 %v59
  %v108 = vunpack.c.l.b16 %v60
  %v109 = vunpack.c.l.b16 %v61
  %v110 = vunpack.c.l.b16 %v62
  %v111 = vunpack.c.l.b16 %v63
  %v112 = vunpack.c.l.b16 %v64
  %v113 = vunpack.c.l.b16 %v65
  %v114 = vpack.c.b16 %v99, %v98
  %v115 = vpack.c.b16 %v101, %v100
  %v116 = vpack.c.b16 %v103, %v102
  %v117 = vpack.c.b16 %v105, %v104
  %v118 = vpack.c.b16 %v107, %v106
  %v119 = vpack.c.b16 %v109, %v108
  %v120 = vpack.c.b16 %v111, %v110
  %v121 = vpack.c.b16 %v113, %v112
  %v146 = vunpack.c.l.b16 %v66
  %v147 = vunpack.c.l.b16 %v67
  %v148 = vunpack.c.l.b16 %v68
  %v149 = vunpack.c.l.b16 %v69
  %v150 = vunpack.c.l.b16 %v70
  %v151 = vunpack.c.l.b16 %v71
  %v152 = vunpack.c.l.b16 %v72
  %v153 = vunpack.c.l.b16 %v73
  %v154 = vunpack.c.l.b16 %v74
  %v155 = vunpack.c.l.b16 %v75
  %v156 = vunpack.c.l.b16 %v76
  %v157 = vunpack.c.l.b16 %v77
  %v158 = vunpack.c.l.b16 %v78
  %v159 = vunpack.c.l.b16 %v79
  %v160 = vunpack.c.l.b16 %v80
  %v161 = vunpack.c.l.b16 %v81
  %v162 = vpack.c.b16 %v147, %v146
  %v163 = vpack.c.b16 %v149, %v148
  %v164 = vpack.c.b16 %v151, %v150
  %v165 = vpack.c.b16 %v153, %v152
  %v166 = vpack.c.b16 %v155, %v154
  %v167 = vpack.c.b16 %v157, %v156
  %v168 = vpack.c.b16 %v159, %v158
  %v169 = vpack.c.b16 %v161, %v160
  %178 = vmatpush.bf16.msra.mxu0 %v169
  %179 = vmatpush.bf16.msra.mxu0 %v168
  %180 = vmatpush.bf16.msra.mxu0 %v167
  %181 = vmatpush.bf16.msra.mxu0 %v166
  %182 = vmatpush.bf16.msra.mxu0 %v165
  %183 = vmatpush.bf16.msra.mxu0 %v164
  %184 = vmatpush.bf16.msra.mxu0 %v163
  %185 = vmatpush.bf16.msra.mxu0 %v162
  %186 = vmatmul.bf16.gmra.mxu0 %v114
  %v187 = vpop.f32.mrf.mxu0
  %v188 = vadd.f32 0.0, %v187
  %v189 = vpop.f32.mrf.mxu0
  %v190 = vadd.f32 0.0, %v189
  %191 = vmatmul.bf16.gmra.mxu0 %v115
  %v192 = vpop.f32.mrf.mxu0
  %v193 = vadd.f32 0.0, %v192
  %v194 = vpop.f32.mrf.mxu0
  %v195 = vadd.f32 0.0, %v194
  %196 = vmatmul.bf16.gmra.mxu0 %v116
  %v197 = vpop.f32.mrf.mxu0
  %v198 = vadd.f32 0.0, %v197
  %v199 = vpop.f32.mrf.mxu0
  %v200 = vadd.f32 0.0, %v199
  %201 = vmatmul.bf16.gmra.mxu0 %v117
  %v202 = vpop.f32.mrf.mxu0
  %v203 = vadd.f32 0.0, %v202
  %v204 = vpop.f32.mrf.mxu0
  %v205 = vadd.f32 0.0, %v204
  %206 = vmatmul.bf16.gmra.mxu0 %v118
  %v207 = vpop.f32.mrf.mxu0
  %v208 = vadd.f32 0.0, %v207
  %v209 = vpop.f32.mrf.mxu0
  %v210 = vadd.f32 0.0, %v209
  %211 = vmatmul.bf16.gmra.mxu0 %v119
  %v212 = vpop.f32.mrf.mxu0
  %v213 = vadd.f32 0.0, %v212
  %v214 = vpop.f32.mrf.mxu0
  %v215 = vadd.f32 0.0, %v214
  %216 = vmatmul.bf16.gmra.mxu0 %v120
  %v217 = vpop.f32.mrf.mxu0
  %v218 = vadd.f32 0.0, %v217
  %v219 = vpop.f32.mrf.mxu0
  %v220 = vadd.f32 0.0, %v219
  %221 = vmatmul.bf16.gmra.mxu0 %v121
  %v222 = vpop.f32.mrf.mxu0
  %v223 = vadd.f32 0.0, %v222
  %v224 = vpop.f32.mrf.mxu0
  %v225 = vadd.f32 0.0, %v224
  %226 = vdwg.mxu0
  %v227 = vadd.f32 %v34, %v188
  %v228 = vadd.f32 %v35, %v190
  %v229 = vadd.f32 %v36, %v193
  %v230 = vadd.f32 %v37, %v195
  %v231 = vadd.f32 %v38, %v198
  %v232 = vadd.f32 %v39, %v200
  %v233 = vadd.f32 %v40, %v203
  %v234 = vadd.f32 %v41, %v205
  %v235 = vadd.f32 %v42, %v208
  %v236 = vadd.f32 %v43, %v210
  %v237 = vadd.f32 %v44, %v213
  %v238 = vadd.f32 %v45, %v215
  %v239 = vadd.f32 %v46, %v218
  %v240 = vadd.f32 %v47, %v220
  %v241 = vadd.f32 %v48, %v223
  %v242 = vadd.f32 %v49, %v225
  %243 = vst [vmem:[#allocation2] sm:$0xff] %v227
  %244 = vst [vmem:[#allocation2 + $0x8] sm:$0xff] %v228
  %245 = vst [vmem:[#allocation2 + $0x10] sm:$0xff] %v229
  %246 = vst [vmem:[#allocation2 + $0x18] sm:$0xff] %v230
  %247 = vst [vmem:[#allocation2 + $0x20] sm:$0xff] %v231
  %248 = vst [vmem:[#allocation2 + $0x28] sm:$0xff] %v232
  %249 = vst [vmem:[#allocation2 + $0x30] sm:$0xff] %v233
  %250 = vst [vmem:[#allocation2 + $0x38] sm:$0xff] %v234
  %251 = vst [vmem:[#allocation2 + $0x40] sm:$0xff] %v235
  %252 = vst [vmem:[#allocation2 + $0x48] sm:$0xff] %v236
  %253 = vst [vmem:[#allocation2 + $0x50] sm:$0xff] %v237
  %254 = vst [vmem:[#allocation2 + $0x58] sm:$0xff] %v238
  %255 = vst [vmem:[#allocation2 + $0x60] sm:$0xff] %v239
  %256 = vst [vmem:[#allocation2 + $0x68] sm:$0xff] %v240
  %257 = vst [vmem:[#allocation2 + $0x70] sm:$0xff] %v241
  %258 = vst [vmem:[#allocation2 + $0x78] sm:$0xff] %v242
  // Predicated region
  $region18: #{generator_forward.21} parent=0 // pred_check
    %p259 = pneg %p14
  $region19: #{generator_forward.21} parent=0 // pred_check_branch
    %261 = sbr.rel (%p259) target = $region21
  $region20: #{generator_forward.21} parent=0 // pred_region
    %v262 = vld [vmem:[#allocation2] sm:$0xff]
    %v263 = vld [vmem:[#allocation2 + $0x8] sm:$0xff]
    %v264 = vld [vmem:[#allocation2 + $0x10] sm:$0xff]
    %v265 = vld [vmem:[#allocation2 + $0x18] sm:$0xff]
    %v266 = vld [vmem:[#allocation2 + $0x20] sm:$0xff]
    %v267 = vld [vmem:[#allocation2 + $0x28] sm:$0xff]
    %v268 = vld [vmem:[#allocation2 + $0x30] sm:$0xff]
    %v269 = vld [vmem:[#allocation2 + $0x38] sm:$0xff]
    %v270 = vld [vmem:[#allocation2 + $0x40] sm:$0xff]
    %v271 = vld [vmem:[#allocation2 + $0x48] sm:$0xff]
    %v272 = vld [vmem:[#allocation2 + $0x50] sm:$0xff]
    %v273 = vld [vmem:[#allocation2 + $0x58] sm:$0xff]
    %v274 = vld [vmem:[#allocation2 + $0x60] sm:$0xff]
    %v275 = vld [vmem:[#allocation2 + $0x68] sm:$0xff]
    %v276 = vld [vmem:[#allocation2 + $0x70] sm:$0xff]
    %v277 = vld [vmem:[#allocation2 + $0x78] sm:$0xff]
    %v278 = vld [vmem:[%s2] sm:$0x1]
    %v280 = vperm.slane %v278, 0
    %v282 = vadd.f32 %v262, %v280
    %v283 = vadd.f32 %v263, %v280
    %v284 = vadd.f32 %v264, %v280
    %v285 = vadd.f32 %v265, %v280
    %v286 = vadd.f32 %v266, %v280
    %v287 = vadd.f32 %v267, %v280
    %v288 = vadd.f32 %v268, %v280
    %v289 = vadd.f32 %v269, %v280
    %v290 = vadd.f32 %v270, %v280
    %v291 = vadd.f32 %v271, %v280
    %v292 = vadd.f32 %v272, %v280
    %v293 = vadd.f32 %v273, %v280
    %v294 = vadd.f32 %v274, %v280
    %v295 = vadd.f32 %v275, %v280
    %v296 = vadd.f32 %v276, %v280
    %v297 = vadd.f32 %v277, %v280
    %v298 = vpack.c.bf16 %v282, %v282
    %v299 = vpack.c.bf16 %v283, %v283
    %v300 = vpack.c.bf16 %v284, %v284
    %v301 = vpack.c.bf16 %v285, %v285
    %v302 = vpack.c.bf16 %v286, %v286
    %v303 = vpack.c.bf16 %v287, %v287
    %v304 = vpack.c.bf16 %v288, %v288
    %v305 = vpack.c.bf16 %v289, %v289
    %v306 = vpack.c.bf16 %v290, %v290
    %v307 = vpack.c.bf16 %v291, %v291
    %v308 = vpack.c.bf16 %v292, %v292
    %v309 = vpack.c.bf16 %v293, %v293
    %v310 = vpack.c.bf16 %v294, %v294
    %v311 = vpack.c.bf16 %v295, %v295
    %v312 = vpack.c.bf16 %v296, %v296
    %v313 = vpack.c.bf16 %v297, %v297
    %314 = vst [vmem:[%s3] sm:$0xf] %v298
    %315 = vst [vmem:[%s3 + $0x4] sm:$0xf] %v299
    %316 = vst [vmem:[%s3 + $0x8] sm:$0xf] %v300
    %317 = vst [vmem:[%s3 + $0xc] sm:$0xf] %v301
    %318 = vst [vmem:[%s3 + $0x10] sm:$0xf] %v302
    %319 = vst [vmem:[%s3 + $0x14] sm:$0xf] %v303
    %320 = vst [vmem:[%s3 + $0x18] sm:$0xf] %v304
    %321 = vst [vmem:[%s3 + $0x1c] sm:$0xf] %v305
    %322 = vst [vmem:[%s3 + $0x20] sm:$0xf] %v306
    %323 = vst [vmem:[%s3 + $0x24] sm:$0xf] %v307
    %324 = vst [vmem:[%s3 + $0x28] sm:$0xf] %v308
    %325 = vst [vmem:[%s3 + $0x2c] sm:$0xf] %v309
    %326 = vst [vmem:[%s3 + $0x30] sm:$0xf] %v310
    %327 = vst [vmem:[%s3 + $0x34] sm:$0xf] %v311
    %328 = vst [vmem:[%s3 + $0x38] sm:$0xf] %v312
    %329 = vst [vmem:[%s3 + $0x3c] sm:$0xf] %v313
  $region21: #{generator_forward.21} parent=0 // pred_fallthru
    _
  // Predicated region
  $region22: #{generator_forward.21} parent=0 // pred_check
    _
  $region23: #{generator_forward.21} parent=0 // pred_check_branch
    %331 = sbr.rel (0) target = $region25
  $region24: #{generator_forward.21} parent=0 // pred_region
    _
  $region25: #{generator_forward.21} parent=0 // pred_fallthru
    _
  // Predicated region
  $region26: #{generator_forward.21} parent=0 // pred_check
    _
  $region27: #{generator_forward.21} parent=0 // pred_check_branch
    %333 = sbr.rel (0) target = $region29
  $region28: #{generator_forward.21} parent=0 // pred_region
    _
  $region29: #{generator_forward.21} parent=0 // pred_fallthru
    _

// kernel: generator_forward.22
$region0: #{generator_forward.22}
  #allocation0 [shape = 'u32[]', space=smem, size = 0x4, offset = 0x4, fixed_abs, tag = 'smem constant byte address 0x4 - core index']
  #allocation1 [shape = 'u32[72,128]{1,0:T(1,128)}', space=vmem, size = 0x9000, scoped, tag = 'internal scratch']
  %s0 = inlined_call_operand.vmem [shape: bf16[2,64,128], index: 0, kind: input, shape index: {}]
  %s1 = inlined_call_operand.vmem [shape: bf16[2,64,128], index: 1, kind: output, shape index: {}]
  %s2 = sld [smem:[#allocation0]]
  $region37: #{generator_forward.22} parent=0
    _
  %s4 = ssub.s32 1, %s2
  %s5 = scalar_select 0, %s4, %s2
  loop: start=0, step=1, limit=4
  $region2: #{generator_forward.22} parent=0 // loop_pre_header
    _
  $region3: #{generator_forward.22} parent=0 // loop_header
    %s7 = sphi 0, %s11
    %p8 = scmp.ge.s32.totalorder %s7, 4
    %s14 = sphi 0, %s26
    %s15 = sphi 0, %s22
    %s16 = sphi 0, %s14
    %s17 = sphi 0, %s15
    %s18 = sphi 0, %s16
    %s19 = sphi 0, %s17
    %s31 = sphi 0, %s33
    %s34 = sphi 0, %s31
    %s35 = sphi 0, %s34
    %s51 = sphi 0, %s35
    %s59 = sphi 0, %s61
    %s62 = sphi 0, %s59
    %s63 = sphi 0, %s62
    %s79 = sphi 0, %s63
  $region4: #{generator_forward.22} parent=0 // loop_header_branch
    %10 = sbr.rel (%p8) target = $region8
  $region5: #{generator_forward.22} parent=0 // loop_body
    %s12 = ssub.s32 %s7, 1
    %s13 = ssub.s32 %s7, 2
    %s20 = sadd.s32 1, %s15
    %p21 = scmp.ge.s32.totalorder %s20, 1
    %s22 = scalar_select %p21, 0, %s20
    %s23 = sadd.s32 1, %s14
    %s24 = scalar_select %p21, %s23, %s14
    %p25 = scmp.ge.s32.totalorder %s24, 2
    %s26 = scalar_select %p25, 0, %s24
    %s27 = ssub.s32 %s14, %s26
    %s28 = ssub.s32 %s15, %s22
    %s29 = sor.u32 %s27, %s28
    %p30 = scmp.eq.s32.totalorder %s29, 0
    %s32 = sadd.s32 %s31, 1
    %s33 = scalar_select %p30, %s31, %s32
    %p36 = pneg %p30
    %p37 = scmp.eq.s32.totalorder %s7, 1
    %p38 = por %p36, %p37
    %p39 = scmp.ne.s32.totalorder %s31, %s34
    %p40 = scmp.eq.s32.totalorder %s7, 0
    %p41 = por %p39, %p40
    %p42 = scmp.ne.s32.totalorder %s31, %s34
    %p43 = scmp.eq.s32.totalorder %s12, 1
    %p44 = por %p42, %p43
    %p45 = scmp.ne.s32.totalorder %s34, %s35
    %p46 = scmp.eq.s32.totalorder %s12, 0
    %p47 = por %p45, %p46
    %p48 = scmp.ne.s32.totalorder %s34, %s35
    %p49 = scmp.eq.s32.totalorder %s13, 1
    %p50 = por %p48, %p49
    %p52 = scmp.ne.s32.totalorder %s35, %s51
    %p53 = scmp.eq.s32.totalorder %s13, 0
    %p54 = por %p52, %p53
    %s55 = ssub.s32 %s14, %s26
    %s56 = ssub.s32 %s15, %s22
    %s57 = sor.u32 %s55, %s56
    %p58 = scmp.eq.s32.totalorder %s57, 0
    %s60 = sadd.s32 %s59, 1
    %s61 = scalar_select %p58, %s59, %s60
    %p64 = pneg %p58
    %p65 = scmp.eq.s32.totalorder %s7, 1
    %p66 = por %p64, %p65
    %p67 = scmp.ne.s32.totalorder %s59, %s62
    %p68 = scmp.eq.s32.totalorder %s7, 0
    %p69 = por %p67, %p68
    %p70 = scmp.ne.s32.totalorder %s59, %s62
    %p71 = scmp.eq.s32.totalorder %s12, 1
    %p72 = por %p70, %p71
    %p73 = scmp.ne.s32.totalorder %s62, %s63
    %p74 = scmp.eq.s32.totalorder %s12, 0
    %p75 = por %p73, %p74
    %p76 = scmp.ne.s32.totalorder %s62, %s63
    %p77 = scmp.eq.s32.totalorder %s13, 1
    %p78 = por %p76, %p77
    %p80 = scmp.ne.s32.totalorder %s63, %s79
    %p81 = scmp.eq.s32.totalorder %s13, 0
    %p82 = por %p80, %p81
    %p83 = scmp.le.s32.totalorder 1, %s7
    %p84 = scmp.lt.s32.totalorder %s7, 3
    %p85 = pnand %p83, %p84
    %p86 = pneg %p85
    // Predicated region
    $region9: #{generator_forward.22} parent=5 // pred_check
      _
    $region10: #{generator_forward.22} parent=5 // pred_check_branch
      %88 = sbr.rel (%p85) target = $region12
    $region11: #{generator_forward.22} parent=5 // pred_region
      %s89 = ssub.s32 %s7, 1
    $region12: #{generator_forward.22} parent=5 // pred_fallthru
      _
    %p90 = scmp.lt.s32.totalorder %s7, 2
    // Predicated region
    $region13: #{generator_forward.22} parent=5 // pred_check
      %p91 = pneg %p90
    $region14: #{generator_forward.22} parent=5 // pred_check_branch
      %93 = sbr.rel (%p91) target = $region16
    $region15: #{generator_forward.22} parent=5 // pred_region
      // Predicated region
      $region17: #{generator_forward.22} parent=15 // pred_check
        %p94 = pneg %p41
      $region18: #{generator_forward.22} parent=15 // pred_check_branch
        %96 = sbr.rel (%p94) target = $region20
      $region19: #{generator_forward.22} parent=15 // pred_region
        %p97 = scmp.lt.s32.totalorder %s14, 1
        %s98 = scalar_select %p97, %s14, 1
        %p99 = scmp.lt.s32.totalorder %s15, 0
        %s100 = scalar_select %p99, %s15, 0
        %s101 = smul.addr %s98, 8
        %s102 = sadd.s32 %s100, %s101
        %s103 = smul.addr %s102, 4
        %s104 = scalar_lea.vmem %s0, %s103
      $region20: #{generator_forward.22} parent=15 // pred_fallthru
        _
    $region16: #{generator_forward.22} parent=5 // pred_fallthru
      _
    %p105 = scmp.le.s32.totalorder 1, %s7
    %p106 = scmp.lt.s32.totalorder %s7, 3
    %p107 = pnand %p105, %p106
    %p108 = pneg %p107
    // Predicated region
    $region21: #{generator_forward.22} parent=5 // pred_check
      _
    $region22: #{generator_forward.22} parent=5 // pred_check_branch
      %110 = sbr.rel (%p107) target = $region24
    $region23: #{generator_forward.22} parent=5 // pred_region
      %s111 = ssub.s32 %s7, 1
      %p112 = scmp.lt.s32.totalorder %s16, 1
      %s113 = scalar_select %p112, %s16, 1
      %p114 = scmp.lt.s32.totalorder %s17, 0
      %s115 = scalar_select %p114, %s17, 0
      %s116 = smul.addr %s113, 8
      %s117 = sadd.s32 %s115, %s116
      %s118 = smul.addr %s117, 4
      %s119 = scalar_lea.vmem %s0, %s118
      %p120 = pneg %p47
      %p121 = pneg %p44
      %p122 = pneg %p75
      %p123 = pneg %p72
      %p124 = scmp.lt.s32.totalorder %s16, 1
      %s125 = scalar_select %p124, %s16, 1
      %p126 = scmp.lt.s32.totalorder %s17, 0
      %s127 = scalar_select %p126, %s17, 0
      %s128 = smul.addr %s125, 8
      %s129 = sadd.s32 %s127, %s128
      %s130 = smul.addr %s129, 4
      %s131 = scalar_lea.vmem %s1, %s130
      %p132 = scmp.lt.s32.totalorder %s16, 1
      %s133 = scalar_select %p132, %s16, 1
      %p134 = scmp.lt.s32.totalorder %s17, 0
      %s135 = scalar_select %p134, %s17, 0
      %s136 = smul.addr %s133, 8
      %s137 = sadd.s32 %s135, %s136
      %s138 = smul.addr %s137, 4
      %s139 = scalar_lea.vmem %s0, %s138
      %p140 = scmp.lt.s32.totalorder %s16, 1
      %s141 = scalar_select %p140, %s16, 1
      %p142 = scmp.lt.s32.totalorder %s17, 0
      %s143 = scalar_select %p142, %s17, 0
      %s144 = smul.addr %s141, 8
      %s145 = sadd.s32 %s143, %s144
      %s146 = smul.addr %s145, 4
      %s147 = scalar_lea.vmem %s1, %s146
      %v148 = vld [vmem:[%s139] sm:$0xf]
      %v149 = vld [vmem:[%s139 + $0x4] sm:$0xf]
      %v150 = vld [vmem:[%s139 + $0x8] sm:$0xf]
      %v151 = vld [vmem:[%s139 + $0xc] sm:$0xf]
      %v152 = vld [vmem:[%s139 + $0x10] sm:$0xf]
      %v153 = vld [vmem:[%s139 + $0x14] sm:$0xf]
      %v154 = vld [vmem:[%s139 + $0x18] sm:$0xf]
      %v155 = vld [vmem:[%s139 + $0x1c] sm:$0xf]
      %v156 = vunpack.c.l.bf16 %v148
      %v157 = vunpack.c.l.bf16 %v149
      %v158 = vunpack.c.l.bf16 %v150
      %v159 = vunpack.c.l.bf16 %v151
      %v160 = vunpack.c.l.bf16 %v152
      %v161 = vunpack.c.l.bf16 %v153
      %v162 = vunpack.c.l.bf16 %v154
      %v163 = vunpack.c.l.bf16 %v155
      %v164 = vadd.f32 %v156, %v157
      %v165 = vadd.f32 %v164, %v158
      %v166 = vadd.f32 %v165, %v159
      %v167 = vadd.f32 %v166, %v160
      %v168 = vadd.f32 %v167, %v161
      %v169 = vadd.f32 %v168, %v162
      %v170 = vadd.f32 %v169, %v163
      %v171 = vrot.slane %v170, 4
      %v172 = vadd.f32 %v170, %v171
      %v173 = vrot.slane %v172, 2
      %v174 = vadd.f32 %v172, %v173
      %v175 = vrot.slane %v174, 1
      %v176 = vadd.f32 %v174, %v175
      %v177 = vrcp.pop 64.0
      %v178 = vmul.f32 64.0, %v177
      %v179 = vsub.f32 1.0, %v178
      %v180 = vmul.f32 %v177, %v179
      %v181 = vadd.f32 %v177, %v180
      %vm182 = vweird.f32 %v177
      %v183 = vsel %vm182, %v177, %v181
      %v184 = vmul.f32 %v176, %v183
      %v185 = vsub.f32 %v156, %v184
      %v186 = vsub.f32 %v157, %v184
      %v187 = vsub.f32 %v158, %v184
      %v188 = vsub.f32 %v159, %v184
      %v189 = vsub.f32 %v160, %v184
      %v190 = vsub.f32 %v161, %v184
      %v191 = vsub.f32 %v162, %v184
      %v192 = vsub.f32 %v163, %v184
      %v193 = vmul.f32 %v185, %v185
      %v194 = vmul.f32 %v186, %v186
      %v195 = vmul.f32 %v187, %v187
      %v196 = vmul.f32 %v188, %v188
      %v197 = vmul.f32 %v189, %v189
      %v198 = vmul.f32 %v190, %v190
      %v199 = vmul.f32 %v191, %v191
      %v200 = vmul.f32 %v192, %v192
      %v201 = vadd.f32 %v193, %v194
      %v202 = vadd.f32 %v201, %v195
      %v203 = vadd.f32 %v202, %v196
      %v204 = vadd.f32 %v203, %v197
      %v205 = vadd.f32 %v204, %v198
      %v206 = vadd.f32 %v205, %v199
      %v207 = vadd.f32 %v206, %v200
      %v208 = vrot.slane %v207, 4
      %v209 = vadd.f32 %v207, %v208
      %v210 = vrot.slane %v209, 2
      %v211 = vadd.f32 %v209, %v210
      %v212 = vrot.slane %v211, 1
      %v213 = vadd.f32 %v211, %v212
      %v214 = vmul.f32 %v213, %v183
      %v215 = vadd.f32 %v214, 1e-05
      %v216 = vrsqrt.pop %v215
      %v217 = vmul.f32 %v216, %v215
      %v218 = vmul.f32 %v217, %v216
      %v219 = vmul.f32 0.5, %v218
      %v220 = vsub.f32 1.5, %v219
      %v221 = vmul.f32 %v216, %v220
      %vm222 = vweird.f32 %v215
      %vm223 = vweird.f32 %v216
      %vm224 = vmor %vm222, %vm223
      %v225 = vsel %vm224, %v216, %v221
      %v226 = vmul.f32 %v185, %v225
      %v227 = vmul.f32 %v186, %v225
      %v228 = vmul.f32 %v187, %v225
      %v229 = vmul.f32 %v188, %v225
      %v230 = vmul.f32 %v189, %v225
      %v231 = vmul.f32 %v190, %v225
      %v232 = vmul.f32 %v191, %v225
      %v233 = vmul.f32 %v192, %v225
      %v234 = vmax.f32 %v226, 0.0
      %v235 = vmax.f32 %v227, 0.0
      %v236 = vmax.f32 %v228, 0.0
      %v237 = vmax.f32 %v229, 0.0
      %v238 = vmax.f32 %v230, 0.0
      %v239 = vmax.f32 %v231, 0.0
      %v240 = vmax.f32 %v232, 0.0
      %v241 = vmax.f32 %v233, 0.0
      %v242 = vpack.c.bf16 %v234, %v234
      %v243 = vpack.c.bf16 %v235, %v235
      %v244 = vpack.c.bf16 %v236, %v236
      %v245 = vpack.c.bf16 %v237, %v237
      %v246 = vpack.c.bf16 %v238, %v238
      %v247 = vpack.c.bf16 %v239, %v239
      %v248 = vpack.c.bf16 %v240, %v240
      %v249 = vpack.c.bf16 %v241, %v241
      %250 = vst [vmem:[%s147] sm:$0xf] %v242
      %251 = vst [vmem:[%s147 + $0x4] sm:$0xf] %v243
      %252 = vst [vmem:[%s147 + $0x8] sm:$0xf] %v244
      %253 = vst [vmem:[%s147 + $0xc] sm:$0xf] %v245
      %254 = vst [vmem:[%s147 + $0x10] sm:$0xf] %v246
      %255 = vst [vmem:[%s147 + $0x14] sm:$0xf] %v247
      %256 = vst [vmem:[%s147 + $0x18] sm:$0xf] %v248
      %257 = vst [vmem:[%s147 + $0x1c] sm:$0xf] %v249
      %p258 = scmp.lt.s32.totalorder %s16, 1
      %s259 = scalar_select %p258, %s16, 1
      %p260 = scmp.lt.s32.totalorder %s17, 0
      %s261 = scalar_select %p260, %s17, 0
      %s262 = smul.addr %s259, 8
      %s263 = sadd.s32 %s261, %s262
      %s264 = smul.addr %s263, 4
      %s265 = scalar_lea.vmem %s1, %s264
      // Predicated region
      $region25: #{generator_forward.22} parent=23 // pred_check
        %p266 = pneg %p72
      $region26: #{generator_forward.22} parent=23 // pred_check_branch
        %268 = sbr.rel (%p266) target = $region28
      $region27: #{generator_forward.22} parent=23 // pred_region
        _
      $region28: #{generator_forward.22} parent=23 // pred_fallthru
        _
    $region24: #{generator_forward.22} parent=5 // pred_fallthru
      _
    %p269 = scmp.le.s32.totalorder 2, %s7
    // Predicated region
    $region29: #{generator_forward.22} parent=5 // pred_check
      %p270 = pneg %p269
    $region30: #{generator_forward.22} parent=5 // pred_check_branch
      %272 = sbr.rel (%p270) target = $region32
    $region31: #{generator_forward.22} parent=5 // pred_region
      %s273 = ssub.s32 %s7, 2
      // Predicated region
      $region33: #{generator_forward.22} parent=31 // pred_check
        %p274 = pneg %p78
      $region34: #{generator_forward.22} parent=31 // pred_check_branch
        %276 = sbr.rel (%p274) target = $region36
      $region35: #{generator_forward.22} parent=31 // pred_region
        %p277 = scmp.lt.s32.totalorder %s18, 1
        %s278 = scalar_select %p277, %s18, 1
        %p279 = scmp.lt.s32.totalorder %s19, 0
        %s280 = scalar_select %p279, %s19, 0
        %s281 = smul.addr %s278, 8
        %s282 = sadd.s32 %s280, %s281
        %s283 = smul.addr %s282, 4
        %s284 = scalar_lea.vmem %s1, %s283
      $region36: #{generator_forward.22} parent=31 // pred_fallthru
        _
    $region32: #{generator_forward.22} parent=5 // pred_fallthru
      _
  $region6: #{generator_forward.22} parent=0 // loop_footer
    %s11 = sadd.s32 1, %s7
  $region7: #{generator_forward.22} parent=0 // loop_footer_branch
    %6 = sbr.rel target = $region3
  $region8: #{generator_forward.22} parent=0 // loop_exit
    _

// kernel: generator_forward.24
$region0: #{generator_forward.24}
  #allocation0 [shape = 'u32[]', space=smem, size = 0x4, offset = 0x4, fixed_abs, tag = 'smem constant byte address 0x4 - core index']
  #allocation1 [shape = 'u32[72,128]{1,0:T(1,128)}', space=vmem, size = 0x9000, scoped, tag = 'internal scratch']
  %s0 = inlined_call_operand.vmem [shape: bf16[2,16,128], index: 0, kind: input, shape index: {}]
  %s1 = inlined_call_operand.vmem [shape: bf16[2,16,128], index: 1, kind: output, shape index: {}]
  %s2 = sld [smem:[#allocation0]]
  $region37: #{generator_forward.24} parent=0
    _
  %s4 = ssub.s32 1, %s2
  %s5 = scalar_select 0, %s4, %s2
  loop: start=0, step=1, limit=4
  $region2: #{generator_forward.24} parent=0 // loop_pre_header
    _
  $region3: #{generator_forward.24} parent=0 // loop_header
    %s7 = sphi 0, %s11
    %p8 = scmp.ge.s32.totalorder %s7, 4
    %s14 = sphi 0, %s26
    %s15 = sphi 0, %s22
    %s16 = sphi 0, %s14
    %s17 = sphi 0, %s15
    %s18 = sphi 0, %s16
    %s19 = sphi 0, %s17
    %s31 = sphi 0, %s33
    %s34 = sphi 0, %s31
    %s35 = sphi 0, %s34
    %s51 = sphi 0, %s35
    %s59 = sphi 0, %s61
    %s62 = sphi 0, %s59
    %s63 = sphi 0, %s62
    %s79 = sphi 0, %s63
  $region4: #{generator_forward.24} parent=0 // loop_header_branch
    %10 = sbr.rel (%p8) target = $region8
  $region5: #{generator_forward.24} parent=0 // loop_body
    %s12 = ssub.s32 %s7, 1
    %s13 = ssub.s32 %s7, 2
    %s20 = sadd.s32 1, %s15
    %p21 = scmp.ge.s32.totalorder %s20, 1
    %s22 = scalar_select %p21, 0, %s20
    %s23 = sadd.s32 1, %s14
    %s24 = scalar_select %p21, %s23, %s14
    %p25 = scmp.ge.s32.totalorder %s24, 2
    %s26 = scalar_select %p25, 0, %s24
    %s27 = ssub.s32 %s14, %s26
    %s28 = ssub.s32 %s15, %s22
    %s29 = sor.u32 %s27, %s28
    %p30 = scmp.eq.s32.totalorder %s29, 0
    %s32 = sadd.s32 %s31, 1
    %s33 = scalar_select %p30, %s31, %s32
    %p36 = pneg %p30
    %p37 = scmp.eq.s32.totalorder %s7, 1
    %p38 = por %p36, %p37
    %p39 = scmp.ne.s32.totalorder %s31, %s34
    %p40 = scmp.eq.s32.totalorder %s7, 0
    %p41 = por %p39, %p40
    %p42 = scmp.ne.s32.totalorder %s31, %s34
    %p43 = scmp.eq.s32.totalorder %s12, 1
    %p44 = por %p42, %p43
    %p45 = scmp.ne.s32.totalorder %s34, %s35
    %p46 = scmp.eq.s32.totalorder %s12, 0
    %p47 = por %p45, %p46
    %p48 = scmp.ne.s32.totalorder %s34, %s35
    %p49 = scmp.eq.s32.totalorder %s13, 1
    %p50 = por %p48, %p49
    %p52 = scmp.ne.s32.totalorder %s35, %s51
    %p53 = scmp.eq.s32.totalorder %s13, 0
    %p54 = por %p52, %p53
    %s55 = ssub.s32 %s14, %s26
    %s56 = ssub.s32 %s15, %s22
    %s57 = sor.u32 %s55, %s56
    %p58 = scmp.eq.s32.totalorder %s57, 0
    %s60 = sadd.s32 %s59, 1
    %s61 = scalar_select %p58, %s59, %s60
    %p64 = pneg %p58
    %p65 = scmp.eq.s32.totalorder %s7, 1
    %p66 = por %p64, %p65
    %p67 = scmp.ne.s32.totalorder %s59, %s62
    %p68 = scmp.eq.s32.totalorder %s7, 0
    %p69 = por %p67, %p68
    %p70 = scmp.ne.s32.totalorder %s59, %s62
    %p71 = scmp.eq.s32.totalorder %s12, 1
    %p72 = por %p70, %p71
    %p73 = scmp.ne.s32.totalorder %s62, %s63
    %p74 = scmp.eq.s32.totalorder %s12, 0
    %p75 = por %p73, %p74
    %p76 = scmp.ne.s32.totalorder %s62, %s63
    %p77 = scmp.eq.s32.totalorder %s13, 1
    %p78 = por %p76, %p77
    %p80 = scmp.ne.s32.totalorder %s63, %s79
    %p81 = scmp.eq.s32.totalorder %s13, 0
    %p82 = por %p80, %p81
    %p83 = scmp.le.s32.totalorder 1, %s7
    %p84 = scmp.lt.s32.totalorder %s7, 3
    %p85 = pnand %p83, %p84
    %p86 = pneg %p85
    // Predicated region
    $region9: #{generator_forward.24} parent=5 // pred_check
      _
    $region10: #{generator_forward.24} parent=5 // pred_check_branch
      %88 = sbr.rel (%p85) target = $region12
    $region11: #{generator_forward.24} parent=5 // pred_region
      %s89 = ssub.s32 %s7, 1
    $region12: #{generator_forward.24} parent=5 // pred_fallthru
      _
    %p90 = scmp.lt.s32.totalorder %s7, 2
    // Predicated region
    $region13: #{generator_forward.24} parent=5 // pred_check
      %p91 = pneg %p90
    $region14: #{generator_forward.24} parent=5 // pred_check_branch
      %93 = sbr.rel (%p91) target = $region16
    $region15: #{generator_forward.24} parent=5 // pred_region
      // Predicated region
      $region17: #{generator_forward.24} parent=15 // pred_check
        %p94 = pneg %p41
      $region18: #{generator_forward.24} parent=15 // pred_check_branch
        %96 = sbr.rel (%p94) target = $region20
      $region19: #{generator_forward.24} parent=15 // pred_region
        %p97 = scmp.lt.s32.totalorder %s14, 1
        %s98 = scalar_select %p97, %s14, 1
        %p99 = scmp.lt.s32.totalorder %s15, 0
        %s100 = scalar_select %p99, %s15, 0
        %s101 = smul.addr %s98, 2
        %s102 = sadd.s32 %s100, %s101
        %s103 = smul.addr %s102, 4
        %s104 = scalar_lea.vmem %s0, %s103
      $region20: #{generator_forward.24} parent=15 // pred_fallthru
        _
    $region16: #{generator_forward.24} parent=5 // pred_fallthru
      _
    %p105 = scmp.le.s32.totalorder 1, %s7
    %p106 = scmp.lt.s32.totalorder %s7, 3
    %p107 = pnand %p105, %p106
    %p108 = pneg %p107
    // Predicated region
    $region21: #{generator_forward.24} parent=5 // pred_check
      _
    $region22: #{generator_forward.24} parent=5 // pred_check_branch
      %110 = sbr.rel (%p107) target = $region24
    $region23: #{generator_forward.24} parent=5 // pred_region
      %s111 = ssub.s32 %s7, 1
      %p112 = scmp.lt.s32.totalorder %s16, 1
      %s113 = scalar_select %p112, %s16, 1
      %p114 = scmp.lt.s32.totalorder %s17, 0
      %s115 = scalar_select %p114, %s17, 0
      %s116 = smul.addr %s113, 2
      %s117 = sadd.s32 %s115, %s116
      %s118 = smul.addr %s117, 4
      %s119 = scalar_lea.vmem %s0, %s118
      %p120 = pneg %p47
      %p121 = pneg %p44
      %p122 = pneg %p75
      %p123 = pneg %p72
      %p124 = scmp.lt.s32.totalorder %s16, 1
      %s125 = scalar_select %p124, %s16, 1
      %p126 = scmp.lt.s32.totalorder %s17, 0
      %s127 = scalar_select %p126, %s17, 0
      %s128 = smul.addr %s125, 2
      %s129 = sadd.s32 %s127, %s128
      %s130 = smul.addr %s129, 4
      %s131 = scalar_lea.vmem %s1, %s130
      %p132 = scmp.lt.s32.totalorder %s16, 1
      %s133 = scalar_select %p132, %s16, 1
      %p134 = scmp.lt.s32.totalorder %s17, 0
      %s135 = scalar_select %p134, %s17, 0
      %s136 = smul.addr %s133, 2
      %s137 = sadd.s32 %s135, %s136
      %s138 = smul.addr %s137, 4
      %s139 = scalar_lea.vmem %s0, %s138
      %p140 = scmp.lt.s32.totalorder %s16, 1
      %s141 = scalar_select %p140, %s16, 1
      %p142 = scmp.lt.s32.totalorder %s17, 0
      %s143 = scalar_select %p142, %s17, 0
      %s144 = smul.addr %s141, 2
      %s145 = sadd.s32 %s143, %s144
      %s146 = smul.addr %s145, 4
      %s147 = scalar_lea.vmem %s1, %s146
      %v148 = vld [vmem:[%s139] sm:$0xf]
      %v149 = vld [vmem:[%s139 + $0x4] sm:$0xf]
      %v150 = vunpack.c.l.bf16 %v148
      %v151 = vunpack.c.l.bf16 %v149
      %v152 = vadd.f32 %v150, %v151
      %v153 = vrot.slane %v152, 4
      %v154 = vadd.f32 %v152, %v153
      %v155 = vrot.slane %v154, 2
      %v156 = vadd.f32 %v154, %v155
      %v157 = vrot.slane %v156, 1
      %v158 = vadd.f32 %v156, %v157
      %v159 = vrcp.pop 16.0
      %v160 = vmul.f32 16.0, %v159
      %v161 = vsub.f32 1.0, %v160
      %v162 = vmul.f32 %v159, %v161
      %v163 = vadd.f32 %v159, %v162
      %vm164 = vweird.f32 %v159
      %v165 = vsel %vm164, %v159, %v163
      %v166 = vmul.f32 %v158, %v165
      %v167 = vsub.f32 %v150, %v166
      %v168 = vsub.f32 %v151, %v166
      %v169 = vmul.f32 %v167, %v167
      %v170 = vmul.f32 %v168, %v168
      %v171 = vadd.f32 %v169, %v170
      %v172 = vrot.slane %v171, 4
      %v173 = vadd.f32 %v171, %v172
      %v174 = vrot.slane %v173, 2
      %v175 = vadd.f32 %v173, %v174
      %v176 = vrot.slane %v175, 1
      %v177 = vadd.f32 %v175, %v176
      %v178 = vmul.f32 %v177, %v165
      %v179 = vadd.f32 %v178, 1e-05
      %v180 = vrsqrt.pop %v179
      %v181 = vmul.f32 %v180, %v179
      %v182 = vmul.f32 %v181, %v180
      %v183 = vmul.f32 0.5, %v182
      %v184 = vsub.f32 1.5, %v183
      %v185 = vmul.f32 %v180, %v184
      %vm186 = vweird.f32 %v179
      %vm187 = vweird.f32 %v180
      %vm188 = vmor %vm186, %vm187
      %v189 = vsel %vm188, %v180, %v185
      %v190 = vmul.f32 %v167, %v189
      %v191 = vmul.f32 %v168, %v189
      %v192 = vmax.f32 %v190, 0.0
      %v193 = vmax.f32 %v191, 0.0
      %v194 = vpack.c.bf16 %v192, %v192
      %v195 = vpack.c.bf16 %v193, %v193
      %196 = vst [vmem:[%s147] sm:$0xf] %v194
      %197 = vst [vmem:[%s147 + $0x4] sm:$0xf] %v195
      %p198 = scmp.lt.s32.totalorder %s16, 1
      %s199 = scalar_select %p198, %s16, 1
      %p200 = scmp.lt.s32.totalorder %s17, 0
      %s201 = scalar_select %p200, %s17, 0
      %s202 = smul.addr %s199, 2
      %s203 = sadd.s32 %s201, %s202
      %s204 = smul.addr %s203, 4
      %s205 = scalar_lea.vmem %s1, %s204
      // Predicated region
      $region25: #{generator_forward.24} parent=23 // pred_check
        %p206 = pneg %p72
      $region26: #{generator_forward.24} parent=23 // pred_check_branch
        %208 = sbr.rel (%p206) target = $region28
      $region27: #{generator_forward.24} parent=23 // pred_region
        _
      $region28: #{generator_forward.24} parent=23 // pred_fallthru
        _
    $region24: #{generator_forward.24} parent=5 // pred_fallthru
      _
    %p209 = scmp.le.s32.totalorder 2, %s7
    // Predicated region
    $region29: #{generator_forward.24} parent=5 // pred_check
      %p210 = pneg %p209
    $region30: #{generator_forward.24} parent=5 // pred_check_branch
      %212 = sbr.rel (%p210) target = $region32
    $region31: #{generator_forward.24} parent=5 // pred_region
      %s213 = ssub.s32 %s7, 2
      // Predicated region
      $region33: #{generator_forward.24} parent=31 // pred_check
        %p214 = pneg %p78
      $region34: #{generator_forward.24} parent=31 // pred_check_branch
        %216 = sbr.rel (%p214) target = $region36
      $region35: #{generator_forward.24} parent=31 // pred_region
        %p217 = scmp.lt.s32.totalorder %s18, 1
        %s218 = scalar_select %p217, %s18, 1
        %p219 = scmp.lt.s32.totalorder %s19, 0
        %s220 = scalar_select %p219, %s19, 0
        %s221 = smul.addr %s218, 2
        %s222 = sadd.s32 %s220, %s221
        %s223 = smul.addr %s222, 4
        %s224 = scalar_lea.vmem %s1, %s223
      $region36: #{generator_forward.24} parent=31 // pred_fallthru
        _
    $region32: #{generator_forward.24} parent=5 // pred_fallthru
      _
  $region6: #{generator_forward.24} parent=0 // loop_footer
    %s11 = sadd.s32 1, %s7
  $region7: #{generator_forward.24} parent=0 // loop_footer_branch
    %6 = sbr.rel target = $region3
  $region8: #{generator_forward.24} parent=0 // loop_exit
    _

// kernel: generator_forward.23
$region0: #{generator_forward.23}
  #allocation0 [shape = 'u32[]', space=smem, size = 0x4, offset = 0x4, fixed_abs, tag = 'smem constant byte address 0x4 - core index']
  #allocation1 [shape = 'u32[72,128]{1,0:T(1,128)}', space=vmem, size = 0x9000, scoped, tag = 'internal scratch']
  #allocation2 [shape = 'f32[32,128]{1,0:T(8,128)}', space=vmem, size = 0x4000, scoped, tag = 'scratch operand']
  %s0 = inlined_call_operand.vmem [shape: bf16[32,256], index: 0, kind: input, shape index: {}]
  %s1 = inlined_call_operand.vmem [shape: bf16[256,128], index: 1, kind: input, shape index: {}]
  %s2 = inlined_call_operand.vmem [shape: f32[1,128], index: 2, kind: input, shape index: {}]
  %s3 = inlined_call_operand.vmem [shape: bf16[32,128], index: 3, kind: output, shape index: {}]
  %s4 = sld [smem:[#allocation0]]
  $region30: #{generator_forward.23} parent=0
    _
  %s6 = ssub.s32 1, %s4
  %s7 = scalar_select 0, %s6, %s4
  // Predicated region
  $region2: #{generator_forward.23} parent=0 // pred_check
    _
  $region3: #{generator_forward.23} parent=0 // pred_check_branch
    %9 = sbr.rel (0) target = $region5
  $region4: #{generator_forward.23} parent=0 // pred_region
    _
  $region5: #{generator_forward.23} parent=0 // pred_fallthru
    _
  // Predicated region
  $region6: #{generator_forward.23} parent=0 // pred_check
    _
  $region7: #{generator_forward.23} parent=0 // pred_check_branch
    %11 = sbr.rel (0) target = $region9
  $region8: #{generator_forward.23} parent=0 // pred_region
    _
  $region9: #{generator_forward.23} parent=0 // pred_fallthru
    _
  // Predicated region
  $region10: #{generator_forward.23} parent=0 // pred_check
    _
  $region11: #{generator_forward.23} parent=0 // pred_check_branch
    %13 = sbr.rel (0) target = $region13
  $region12: #{generator_forward.23} parent=0 // pred_region
    _
  $region13: #{generator_forward.23} parent=0 // pred_fallthru
    _
  %p14 = scmp.eq.s32.totalorder 0, 0
  // Predicated region
  $region14: #{generator_forward.23} parent=0 // pred_check
    %p15 = pneg %p14
  $region15: #{generator_forward.23} parent=0 // pred_check_branch
    %17 = sbr.rel (%p15) target = $region17
  $region16: #{generator_forward.23} parent=0 // pred_region
    %18 = vst [vmem:[#allocation2] sm:$0xff] 0.0
    %19 = vst [vmem:[#allocation2 + $0x8] sm:$0xff] 0.0
    %20 = vst [vmem:[#allocation2 + $0x10] sm:$0xff] 0.0
    %21 = vst [vmem:[#allocation2 + $0x18] sm:$0xff] 0.0
  $region17: #{generator_forward.23} parent=0 // pred_fallthru
    _
  %v22 = vld [vmem:[#allocation2] sm:$0xff]
  %v23 = vld [vmem:[#allocation2 + $0x8] sm:$0xff]
  %v24 = vld [vmem:[#allocation2 + $0x10] sm:$0xff]
  %v25 = vld [vmem:[#allocation2 + $0x18] sm:$0xff]
  %v26 = vld [vmem:[%s0] sm:$0xff]
  %v27 = vld [vmem:[%s0 + $0x8] sm:$0xff]
  %v28 = vld [vmem:[%s0 + $0x10] sm:$0xff]
  %v29 = vld [vmem:[%s0 + $0x18] sm:$0xff]
  %v30 = vld [vmem:[%s1] sm:$0xf]
  %v31 = vld [vmem:[%s1 + $0x4] sm:$0xf]
  %v32 = vld [vmem:[%s1 + $0x8] sm:$0xf]
  %v33 = vld [vmem:[%s1 + $0xc] sm:$0xf]
  %v34 = vld [vmem:[%s1 + $0x10] sm:$0xf]
  %v35 = vld [vmem:[%s1 + $0x14] sm:$0xf]
  %v36 = vld [vmem:[%s1 + $0x18] sm:$0xf]
  %v37 = vld [vmem:[%s1 + $0x1c] sm:$0xf]
  %v38 = vld [vmem:[%s1 + $0x20] sm:$0xf]
  %v39 = vld [vmem:[%s1 + $0x24] sm:$0xf]
  %v40 = vld [vmem:[%s1 + $0x28] sm:$0xf]
  %v41 = vld [vmem:[%s1 + $0x2c] sm:$0xf]
  %v42 = vld [vmem:[%s1 + $0x30] sm:$0xf]
  %v43 = vld [vmem:[%s1 + $0x34] sm:$0xf]
  %v44 = vld [vmem:[%s1 + $0x38] sm:$0xf]
  %v45 = vld [vmem:[%s1 + $0x3c] sm:$0xf]
  %v46 = vld [vmem:[%s1 + $0x40] sm:$0xf]
  %v47 = vld [vmem:[%s1 + $0x44] sm:$0xf]
  %v48 = vld [vmem:[%s1 + $0x48] sm:$0xf]
  %v49 = vld [vmem:[%s1 + $0x4c] sm:$0xf]
  %v50 = vld [vmem:[%s1 + $0x50] sm:$0xf]
  %v51 = vld [vmem:[%s1 + $0x54] sm:$0xf]
  %v52 = vld [vmem:[%s1 + $0x58] sm:$0xf]
  %v53 = vld [vmem:[%s1 + $0x5c] sm:$0xf]
  %v54 = vld [vmem:[%s1 + $0x60] sm:$0xf]
  %v55 = vld [vmem:[%s1 + $0x64] sm:$0xf]
  %v56 = vld [vmem:[%s1 + $0x68] sm:$0xf]
  %v57 = vld [vmem:[%s1 + $0x6c] sm:$0xf]
  %v58 = vld [vmem:[%s1 + $0x70] sm:$0xf]
  %v59 = vld [vmem:[%s1 + $0x74] sm:$0xf]
  %v60 = vld [vmem:[%s1 + $0x78] sm:$0xf]
  %v61 = vld [vmem:[%s1 + $0x7c] sm:$0xf]
  %v66 = vunpack.c.l.b16 %v26
  %v67 = vunpack.c.h.b16 %v26
  %v68 = vunpack.c.l.b16 %v27
  %v69 = vunpack.c.h.b16 %v27
  %v70 = vunpack.c.l.b16 %v28
  %v71 = vunpack.c.h.b16 %v28
  %v72 = vunpack.c.l.b16 %v29
  %v73 = vunpack.c.h.b16 %v29
  %v74 = vpack.c.b16 %v68, %v66
  %v75 = vpack.c.b16 %v69, %v67
  %v76 = vpack.c.b16 %v72, %v70
  %v77 = vpack.c.b16 %v73, %v71
  %v114 = vunpack.c.l.b16 %v30
  %v115 = vunpack.c.l.b16 %v31
  %v116 = vunpack.c.l.b16 %v32
  %v117 = vunpack.c.l.b16 %v33
  %v118 = vunpack.c.l.b16 %v34
  %v119 = vunpack.c.l.b16 %v35
  %v120 = vunpack.c.l.b16 %v36
  %v121 = vunpack.c.l.b16 %v37
  %v122 = vunpack.c.l.b16 %v38
  %v123 = vunpack.c.l.b16 %v39
  %v124 = vunpack.c.l.b16 %v40
  %v125 = vunpack.c.l.b16 %v41
  %v126 = vunpack.c.l.b16 %v42
  %v127 = vunpack.c.l.b16 %v43
  %v128 = vunpack.c.l.b16 %v44
  %v129 = vunpack.c.l.b16 %v45
  %v130 = vunpack.c.l.b16 %v46
  %v131 = vunpack.c.l.b16 %v47
  %v132 = vunpack.c.l.b16 %v48
  %v133 = vunpack.c.l.b16 %v49
  %v134 = vunpack.c.l.b16 %v50
  %v135 = vunpack.c.l.b16 %v51
  %v136 = vunpack.c.l.b16 %v52
  %v137 = vunpack.c.l.b16 %v53
  %v138 = vunpack.c.l.b16 %v54
  %v139 = vunpack.c.l.b16 %v55
  %v140 = vunpack.c.l.b16 %v56
  %v141 = vunpack.c.l.b16 %v57
  %v142 = vunpack.c.l.b16 %v58
  %v143 = vunpack.c.l.b16 %v59
  %v144 = vunpack.c.l.b16 %v60
  %v145 = vunpack.c.l.b16 %v61
  %v146 = vpack.c.b16 %v115, %v114
  %v147 = vpack.c.b16 %v117, %v116
  %v148 = vpack.c.b16 %v119, %v118
  %v149 = vpack.c.b16 %v121, %v120
  %v150 = vpack.c.b16 %v123, %v122
  %v151 = vpack.c.b16 %v125, %v124
  %v152 = vpack.c.b16 %v127, %v126
  %v153 = vpack.c.b16 %v129, %v128
  %v154 = vpack.c.b16 %v131, %v130
  %v155 = vpack.c.b16 %v133, %v132
  %v156 = vpack.c.b16 %v135, %v134
  %v157 = vpack.c.b16 %v137, %v136
  %v158 = vpack.c.b16 %v139, %v138
  %v159 = vpack.c.b16 %v141, %v140
  %v160 = vpack.c.b16 %v143, %v142
  %v161 = vpack.c.b16 %v145, %v144
  %178 = vmatpush.bf16.msra.mxu0 %v153
  %179 = vmatpush.bf16.msra.mxu0 %v152
  %180 = vmatpush.bf16.msra.mxu0 %v151
  %181 = vmatpush.bf16.msra.mxu0 %v150
  %182 = vmatpush.bf16.msra.mxu0 %v149
  %183 = vmatpush.bf16.msra.mxu0 %v148
  %184 = vmatpush.bf16.msra.mxu0 %v147
  %185 = vmatpush.bf16.msra.mxu0 %v146
  %186 = vmatmul.bf16.gmra.mxu0 %v74
  %v187 = vpop.f32.mrf.mxu0
  %v188 = vadd.f32 0.0, %v187
  %v189 = vpop.f32.mrf.mxu0
  %v190 = vadd.f32 0.0, %v189
  %191 = vmatmul.bf16.gmra.mxu0 %v76
  %v192 = vpop.f32.mrf.mxu0
  %v193 = vadd.f32 0.0, %v192
  %v194 = vpop.f32.mrf.mxu0
  %v195 = vadd.f32 0.0, %v194
  %196 = vdwg.mxu0
  %197 = vmatpush.bf16.msra.mxu0 %v161
  %198 = vmatpush.bf16.msra.mxu0 %v160
  %199 = vmatpush.bf16.msra.mxu0 %v159
  %200 = vmatpush.bf16.msra.mxu0 %v158
  %201 = vmatpush.bf16.msra.mxu0 %v157
  %202 = vmatpush.bf16.msra.mxu0 %v156
  %203 = vmatpush.bf16.msra.mxu0 %v155
  %204 = vmatpush.bf16.msra.mxu0 %v154
  %205 = vmatmul.bf16.gmra.mxu0 %v75
  %v206 = vpop.f32.mrf.mxu0
  %v207 = vadd.f32 %v188, %v206
  %v208 = vpop.f32.mrf.mxu0
  %v209 = vadd.f32 %v190, %v208
  %210 = vmatmul.bf16.gmra.mxu0 %v77
  %v211 = vpop.f32.mrf.mxu0
  %v212 = vadd.f32 %v193, %v211
  %v213 = vpop.f32.mrf.mxu0
  %v214 = vadd.f32 %v195, %v213
  %215 = vdwg.mxu0
  %v216 = vadd.f32 %v22, %v207
  %v217 = vadd.f32 %v23, %v209
  %v218 = vadd.f32 %v24, %v212
  %v219 = vadd.f32 %v25, %v214
  %220 = vst [vmem:[#allocation2] sm:$0xff] %v216
  %221 = vst [vmem:[#allocation2 + $0x8] sm:$0xff] %v217
  %222 = vst [vmem:[#allocation2 + $0x10] sm:$0xff] %v218
  %223 = vst [vmem:[#allocation2 + $0x18] sm:$0xff] %v219
  // Predicated region
  $region18: #{generator_forward.23} parent=0 // pred_check
    %p224 = pneg %p14
  $region19: #{generator_forward.23} parent=0 // pred_check_branch
    %226 = sbr.rel (%p224) target = $region21
  $region20: #{generator_forward.23} parent=0 // pred_region
    %v227 = vld [vmem:[#allocation2] sm:$0xff]
    %v228 = vld [vmem:[#allocation2 + $0x8] sm:$0xff]
    %v229 = vld [vmem:[#allocation2 + $0x10] sm:$0xff]
    %v230 = vld [vmem:[#allocation2 + $0x18] sm:$0xff]
    %v231 = vld [vmem:[%s2] sm:$0x1]
    %v233 = vperm.slane %v231, 0
    %v235 = vadd.f32 %v227, %v233
    %v236 = vadd.f32 %v228, %v233
    %v237 = vadd.f32 %v229, %v233
    %v238 = vadd.f32 %v230, %v233
    %v239 = vpack.c.bf16 %v235, %v235
    %v240 = vpack.c.bf16 %v236, %v236
    %v241 = vpack.c.bf16 %v237, %v237
    %v242 = vpack.c.bf16 %v238, %v238
    %243 = vst [vmem:[%s3] sm:$0xf] %v239
    %244 = vst [vmem:[%s3 + $0x4] sm:$0xf] %v240
    %245 = vst [vmem:[%s3 + $0x8] sm:$0xf] %v241
    %246 = vst [vmem:[%s3 + $0xc] sm:$0xf] %v242
  $region21: #{generator_forward.23} parent=0 // pred_fallthru
    _
  // Predicated region
  $region22: #{generator_forward.23} parent=0 // pred_check
    _
  $region23: #{generator_forward.23} parent=0 // pred_check_branch
    %248 = sbr.rel (0) target = $region25
  $region24: #{generator_forward.23} parent=0 // pred_region
    _
  $region25: #{generator_forward.23} parent=0 // pred_fallthru
    _
  // Predicated region
  $region26: #{generator_forward.23} parent=0 // pred_check
    _
  $region27: #{generator_forward.23} parent=0 // pred_check_branch
    %250 = sbr.rel (0) target = $region29
  $region28: #{generator_forward.23} parent=0 // pred_region
    _
  $region29: #{generator_forward.23} parent=0 // pred_fallthru
    _

// kernel: generator_forward.25
$region0: #{generator_forward.25}
  #allocation0 [shape = 'u32[]', space=smem, size = 0x4, offset = 0x4, fixed_abs, tag = 'smem constant byte address 0x4 - core index']
  #allocation1 [shape = 'u32[72,128]{1,0:T(1,128)}', space=vmem, size = 0x9000, scoped, tag = 'internal scratch']
  #allocation2 [shape = 'f32[32,128]{1,0:T(8,128)}', space=vmem, size = 0x4000, scoped, tag = 'scratch operand']
  %s0 = inlined_call_operand.vmem [shape: bf16[32,384], index: 0, kind: input, shape index: {}]
  %s1 = inlined_call_operand.vmem [shape: bf16[384,128], index: 1, kind: input, shape index: {}]
  %s2 = inlined_call_operand.vmem [shape: f32[1,128], index: 2, kind: input, shape index: {}]
  %s3 = inlined_call_operand.vmem [shape: bf16[32,128], index: 3, kind: output, shape index: {}]
  %s4 = sld [smem:[#allocation0]]
  $region94: #{generator_forward.25} parent=0
    _
  %s6 = ssub.s32 1, %s4
  %s7 = scalar_select 0, %s6, %s4
  $region1: #{generator_forward.25} parent=0
    #allocation3 [shape = 'u8[16384]{0}', space=vmem, size = 0x4000, scoped, tag = 'input window, operand 0']
    loop: start=0, step=1, limit=5
    $region2: #{generator_forward.25} parent=1 // loop_pre_header
      _
    $region3: #{generator_forward.25} parent=1 // loop_header
      %s9 = sphi 0, %s13
      %p10 = scmp.ge.s32.totalorder %s9, 5
      %s16 = sphi 0, %s35
      %s17 = sphi 0, %s31
      %s18 = sphi 0, %s27
      %s19 = sphi 0, %s16
      %s20 = sphi 0, %s17
      %s21 = sphi 0, %s18
      %s22 = sphi 0, %s19
      %s23 = sphi 0, %s20
      %s24 = sphi 0, %s21
      %s40 = sphi 0, %s42
      %s43 = sphi 0, %s40
      %s44 = sphi 0, %s43
      %s60 = sphi 0, %s44
      %s68 = sphi 0, %s70
      %s71 = sphi 0, %s68
      %s72 = sphi 0, %s71
      %s88 = sphi 0, %s72
      %s94 = sphi 0, %s96
      %s97 = sphi 0, %s94
      %s98 = sphi 0, %s97
      %s114 = sphi 0, %s98
      %s122 = sphi 0, %s124
      %s125 = sphi 0, %s122
      %s126 = sphi 0, %s125
      %s142 = sphi 0, %s126
    $region4: #{generator_forward.25} parent=1 // loop_header_branch
      %12 = sbr.rel (%p10) target = $region8
    $region5: #{generator_forward.25} parent=1 // loop_body
      %s14 = ssub.s32 %s9, 1
      %s15 = ssub.s32 %s9, 2
      %s25 = sadd.s32 1, %s18
      %p26 = scmp.ge.s32.totalorder %s25, 3
      %s27 = scalar_select %p26, 0, %s25
      %s28 = sadd.s32 1, %s17
      %s29 = scalar_select %p26, %s28, %s17
      %p30 = scmp.ge.s32.totalorder %s29, 1
      %s31 = scalar_select %p30, 0, %s29
      %s32 = sadd.s32 1, %s16
      %s33 = scalar_select %p30, %s32, %s16
      %p34 = scmp.ge.s32.totalorder %s33, 1
      %s35 = scalar_select %p34, 0, %s33
      %s36 = ssub.s32 %s16, %s35
      %s37 = ssub.s32 %s18, %s27
      %s38 = sor.u32 %s36, %s37
      %p39 = scmp.eq.s32.totalorder %s38, 0
      %s41 = sadd.s32 %s40, 1
      %s42 = scalar_select %p39, %s40, %s41
      %p45 = pneg %p39
      %p46 = scmp.eq.s32.totalorder %s9, 2
      %p47 = por %p45, %p46
      %p48 = scmp.ne.s32.totalorder %s40, %s43
      %p49 = scmp.eq.s32.totalorder %s9, 0
      %p50 = por %p48, %p49
      %p51 = scmp.ne.s32.totalorder %s40, %s43
      %p52 = scmp.eq.s32.totalorder %s14, 2
      %p53 = por %p51, %p52
      %p54 = scmp.ne.s32.totalorder %s43, %s44
      %p55 = scmp.eq.s32.totalorder %s14, 0
      %p56 = por %p54, %p55
      %p57 = scmp.ne.s32.totalorder %s43, %s44
      %p58 = scmp.eq.s32.totalorder %s15, 2
      %p59 = por %p57, %p58
      %p61 = scmp.ne.s32.totalorder %s44, %s60
      %p62 = scmp.eq.s32.totalorder %s15, 0
      %p63 = por %p61, %p62
      %s64 = ssub.s32 %s18, %s27
      %s65 = ssub.s32 %s17, %s31
      %s66 = sor.u32 %s64, %s65
      %p67 = scmp.eq.s32.totalorder %s66, 0
      %s69 = sadd.s32 %s68, 1
      %s70 = scalar_select %p67, %s68, %s69
      %p73 = pneg %p67
      %p74 = scmp.eq.s32.totalorder %s9, 2
      %p75 = por %p73, %p74
      %p76 = scmp.ne.s32.totalorder %s68, %s71
      %p77 = scmp.eq.s32.totalorder %s9, 0
      %p78 = por %p76, %p77
      %p79 = scmp.ne.s32.totalorder %s68, %s71
      %p80 = scmp.eq.s32.totalorder %s14, 2
      %p81 = por %p79, %p80
      %p82 = scmp.ne.s32.totalorder %s71, %s72
      %p83 = scmp.eq.s32.totalorder %s14, 0
      %p84 = por %p82, %p83
      %p85 = scmp.ne.s32.totalorder %s71, %s72
      %p86 = scmp.eq.s32.totalorder %s15, 2
      %p87 = por %p85, %p86
      %p89 = scmp.ne.s32.totalorder %s72, %s88
      %p90 = scmp.eq.s32.totalorder %s15, 0
      %p91 = por %p89, %p90
      %s92 = ssub.s32 %s17, %s31
      %p93 = scmp.eq.s32.totalorder %s92, 0
      %s95 = sadd.s32 %s94, 1
      %s96 = scalar_select %p93, %s94, %s95
      %p99 = pneg %p93
      %p100 = scmp.eq.s32.totalorder %s9, 2
      %p101 = por %p99, %p100
      %p102 = scmp.ne.s32.totalorder %s94, %s97
      %p103 = scmp.eq.s32.totalorder %s9, 0
      %p104 = por %p102, %p103
      %p105 = scmp.ne.s32.totalorder %s94, %s97
      %p106 = scmp.eq.s32.totalorder %s14, 2
      %p107 = por %p105, %p106
      %p108 = scmp.ne.s32.totalorder %s97, %s98
      %p109 = scmp.eq.s32.totalorder %s14, 0
      %p110 = por %p108, %p109
      %p111 = scmp.ne.s32.totalorder %s97, %s98
      %p112 = scmp.eq.s32.totalorder %s15, 2
      %p113 = por %p111, %p112
      %p115 = scmp.ne.s32.totalorder %s98, %s114
      %p116 = scmp.eq.s32.totalorder %s15, 0
      %p117 = por %p115, %p116
      %s118 = ssub.s32 %s16, %s35
      %s119 = ssub.s32 %s17, %s31
      %s120 = sor.u32 %s118, %s119
      %p121 = scmp.eq.s32.totalorder %s120, 0
      %s123 = sadd.s32 %s122, 1
      %s124 = scalar_select %p121, %s122, %s123
      %p127 = pneg %p121
      %p128 = scmp.eq.s32.totalorder %s9, 2
      %p129 = por %p127, %p128
      %p130 = scmp.ne.s32.totalorder %s122, %s125
      %p131 = scmp.eq.s32.totalorder %s9, 0
      %p132 = por %p130, %p131
      %p133 = scmp.ne.s32.totalorder %s122, %s125
      %p134 = scmp.eq.s32.totalorder %s14, 2
      %p135 = por %p133, %p134
      %p136 = scmp.ne.s32.totalorder %s125, %s126
      %p137 = scmp.eq.s32.totalorder %s14, 0
      %p138 = por %p136, %p137
      %p139 = scmp.ne.s32.totalorder %s125, %s126
      %p140 = scmp.eq.s32.totalorder %s15, 2
      %p141 = por %p139, %p140
      %p143 = scmp.ne.s32.totalorder %s126, %s142
      %p144 = scmp.eq.s32.totalorder %s15, 0
      %p145 = por %p143, %p144
      %p146 = scmp.le.s32.totalorder 1, %s9
      %p147 = scmp.lt.s32.totalorder %s9, 4
      %p148 = pnand %p146, %p147
      %p149 = pneg %p148
      // Predicated region
      $region9: #{generator_forward.25} parent=5 // pred_check
        _
      $region10: #{generator_forward.25} parent=5 // pred_check_branch
        %151 = sbr.rel (%p148) target = $region12
      $region11: #{generator_forward.25} parent=5 // pred_region
        %s152 = ssub.s32 %s9, 1
        // Predicated region
        $region13: #{generator_forward.25} parent=11 // pred_check
          %p153 = pneg %p110
        $region14: #{generator_forward.25} parent=11 // pred_check_branch
          %155 = sbr.rel (%p153) target = $region16
        $region15: #{generator_forward.25} parent=11 // pred_region
          %p156 = scmp.lt.s32.totalorder %s20, 0
          %s157 = scalar_select %p156, %s20, 0
          %s158 = scalar_lea.vmem %s2, %s157
        $region16: #{generator_forward.25} parent=11 // pred_fallthru
          _
      $region12: #{generator_forward.25} parent=5 // pred_fallthru
        _
      %p159 = scmp.lt.s32.totalorder %s9, 3
      // Predicated region
      $region17: #{generator_forward.25} parent=5 // pred_check
        %p160 = pneg %p159
      $region18: #{generator_forward.25} parent=5 // pred_check_branch
        %162 = sbr.rel (%p160) target = $region20
      $region19: #{generator_forward.25} parent=5 // pred_region
        // Predicated region
        $region21: #{generator_forward.25} parent=19 // pred_check
          %p163 = pneg %p50
        $region22: #{generator_forward.25} parent=19 // pred_check_branch
          %165 = sbr.rel (%p163) target = $region24
        $region23: #{generator_forward.25} parent=19 // pred_region
          %s166 = sand.u32 %s40, 1
          %s167 = sand.u32 %s40, 1
          %s168 = smul.addr %s167, 16
          %s169 = scalar_lea.vmem [#allocation3], %s168
          %s170 = smul.u32 4, %s16
          %s171 = smul.addr %s170, 3
          %s172 = sadd.s32 %s18, %s171
          %s173 = smul.addr %s172, 4
          %s174 = scalar_lea.vmem %s0, %s173
          // Predicated region
          $region25: #{generator_forward.25} parent=23 // pred_check
            _
          $region26: #{generator_forward.25} parent=23 // pred_check_branch
            %176 = sbr.rel (0) target = $region28
          $region27: #{generator_forward.25} parent=23 // pred_region
            // Predicated region
            $region29: #{generator_forward.25} parent=27 // pred_check
              _
            $region30: #{generator_forward.25} parent=27 // pred_check_branch
              %178 = sbr.rel target = $region32
            $region31: #{generator_forward.25} parent=27 // pred_region
              // Predicated region
              $region44: #{generator_forward.25} parent=31 // pred_check
                _
              $region45: #{generator_forward.25} parent=31 // pred_check_branch
                %200 = sbr.rel (0) target = $region47
              $region46: #{generator_forward.25} parent=31 // pred_region
                loop: start=0, step=1, limit=1
                $region48: #{generator_forward.25} parent=46 // loop_pre_header
                  _
                $region49: #{generator_forward.25} parent=46 // loop_header
                  %s202 = sphi 0, %s206
                  %p203 = scmp.ge.s32.totalorder %s202, 1
                  %s207 = sphi %s174, %s174
                  %s208 = sphi %s169, %s169
                $region50: #{generator_forward.25} parent=46 // loop_header_branch
                  %205 = sbr.rel (%p203) target = $region54
                $region51: #{generator_forward.25} parent=46 // loop_body
                  _
                $region52: #{generator_forward.25} parent=46 // loop_footer
                  %s206 = sadd.s32 1, %s202
                $region53: #{generator_forward.25} parent=46 // loop_footer_branch
                  %201 = sbr.rel target = $region49
                $region54: #{generator_forward.25} parent=46 // loop_exit
                  _
                %s210 = ssub.s32 16, 1
                loop: start=0, step=1, limit=1
                $region55: #{generator_forward.25} parent=46 // loop_pre_header
                  _
                $region56: #{generator_forward.25} parent=46 // loop_header
                  %s212 = sphi 0, %s216
                  %p213 = scmp.ge.s32.totalorder %s212, 1
                  %s217 = sphi %s174, %s174
                  %s218 = sphi %s169, %s169
                $region57: #{generator_forward.25} parent=46 // loop_header_branch
                  %215 = sbr.rel (%p213) target = $region61
                $region58: #{generator_forward.25} parent=46 // loop_body
                  %v219 = vld [vmem:[%s217] sm:%s210]
                  %220 = vst [vmem:[%s218] sm:%s210] %v219
                  %v221 = vld [vmem:[%s217 + $0xc] sm:%s210]
                  %222 = vst [vmem:[%s218 + $0x4] sm:%s210] %v221
                  %v223 = vld [vmem:[%s217 + $0x18] sm:%s210]
                  %224 = vst [vmem:[%s218 + $0x8] sm:%s210] %v223
                  %v225 = vld [vmem:[%s217 + $0x24] sm:%s210]
                  %226 = vst [vmem:[%s218 + $0xc] sm:%s210] %v225
                $region59: #{generator_forward.25} parent=46 // loop_footer
                  %s216 = sadd.s32 1, %s212
                $region60: #{generator_forward.25} parent=46 // loop_footer_branch
                  %211 = sbr.rel target = $region56
                $region61: #{generator_forward.25} parent=46 // loop_exit
                  _
              $region47: #{generator_forward.25} parent=31 // pred_fallthru
                _
            $region32: #{generator_forward.25} parent=27 // pred_fallthru
              _
            // Predicated region
            $region33: #{generator_forward.25} parent=27 // pred_check
              _
            $region34: #{generator_forward.25} parent=27 // pred_check_branch
              %180 = sbr.rel (0) target = $region36
            $region35: #{generator_forward.25} parent=27 // pred_region
              %s182 = ssub.s32 16, 1
              loop: start=0, step=1, limit=1
              $region37: #{generator_forward.25} parent=35 // loop_pre_header
                _
              $region38: #{generator_forward.25} parent=35 // loop_header
                %s184 = sphi 0, %s188
                %p185 = scmp.ge.s32.totalorder %s184, 1
                %s189 = sphi %s174, %s174
                %s190 = sphi %s169, %s169
              $region39: #{generator_forward.25} parent=35 // loop_header_branch
                %187 = sbr.rel (%p185) target = $region43
              $region40: #{generator_forward.25} parent=35 // loop_body
                %v191 = vld [vmem:[%s189] sm:%s182]
                %192 = vst [vmem:[%s190] sm:%s182] %v191
                %v193 = vld [vmem:[%s189 + $0xc] sm:%s182]
                %194 = vst [vmem:[%s190 + $0x4] sm:%s182] %v193
                %v195 = vld [vmem:[%s189 + $0x18] sm:%s182]
                %196 = vst [vmem:[%s190 + $0x8] sm:%s182] %v195
                %v197 = vld [vmem:[%s189 + $0x24] sm:%s182]
                %198 = vst [vmem:[%s190 + $0xc] sm:%s182] %v197
              $region41: #{generator_forward.25} parent=35 // loop_footer
                %s188 = sadd.s32 1, %s184
              $region42: #{generator_forward.25} parent=35 // loop_footer_branch
                %183 = sbr.rel target = $region38
              $region43: #{generator_forward.25} parent=35 // loop_exit
                _
            $region36: #{generator_forward.25} parent=27 // pred_fallthru
              _
          $region28: #{generator_forward.25} parent=23 // pred_fallthru
            _
          %227 = vnop
        $region24: #{generator_forward.25} parent=19 // pred_fallthru
          _
        // Predicated region
        $region62: #{generator_forward.25} parent=19 // pred_check
          %p228 = pneg %p78
        $region63: #{generator_forward.25} parent=19 // pred_check_branch
          %230 = sbr.rel (%p228) target = $region65
        $region64: #{generator_forward.25} parent=19 // pred_region
          %s231 = smul.u32 16, %s18
          %p232 = scmp.lt.s32.totalorder %s231, 47
          %s233 = scalar_select %p232, %s231, 47
          %p234 = scmp.lt.s32.totalorder %s17, 0
          %s235 = scalar_select %p234, %s17, 0
          %s236 = sadd.s32 %s235, %s233
          %s237 = smul.addr %s236, 4
          %s238 = scalar_lea.vmem %s1, %s237
          %s239 = smul.u32 16, %s18
        $region65: #{generator_forward.25} parent=19 // pred_fallthru
          _
      $region20: #{generator_forward.25} parent=5 // pred_fallthru
        _
      %p240 = scmp.le.s32.totalorder 1, %s9
      %p241 = scmp.lt.s32.totalorder %s9, 4
      %p242 = pnand %p240, %p241
      %p243 = pneg %p242
      // Predicated region
      $region66: #{generator_forward.25} parent=5 // pred_check
        _
      $region67: #{generator_forward.25} parent=5 // pred_check_branch
        %245 = sbr.rel (%p242) target = $region69
      $region68: #{generator_forward.25} parent=5 // pred_region
        %s246 = ssub.s32 %s9, 1
        %s247 = sand.u32 %s43, 1
        %s248 = sand.u32 %s43, 1
        %s249 = smul.addr %s248, 16
        %s250 = scalar_lea.vmem [#allocation3], %s249
        // Predicated region
        $region70: #{generator_forward.25} parent=68 // pred_check
          %p251 = pneg %p56
        $region71: #{generator_forward.25} parent=68 // pred_check_branch
          %253 = sbr.rel (%p251) target = $region73
        $region72: #{generator_forward.25} parent=68 // pred_region
          _
        $region73: #{generator_forward.25} parent=68 // pred_fallthru
          _
        %s254 = sand.u32 %s43, 1
        %s255 = sand.u32 %s43, 1
        %s256 = smul.addr %s255, 16
        %s257 = scalar_lea.vmem [#allocation3], %s256
        %p258 = pneg %p56
        %p259 = pneg %p53
        %s260 = smul.u32 16, %s21
        %p261 = scmp.lt.s32.totalorder %s260, 47
        %s262 = scalar_select %p261, %s260, 47
        %p263 = scmp.lt.s32.totalorder %s20, 0
        %s264 = scalar_select %p263, %s20, 0
        %s265 = sadd.s32 %s264, %s262
        %s266 = smul.addr %s265, 4
        %s267 = scalar_lea.vmem %s1, %s266
        %p268 = pneg %p84
        %p269 = pneg %p81
        %p270 = scmp.lt.s32.totalorder %s20, 0
        %s271 = scalar_select %p270, %s20, 0
        %s272 = scalar_lea.vmem %s2, %s271
        %p273 = pneg %p110
        %p274 = pneg %p107
        %p275 = pneg %p138
        %p276 = pneg %p135
        %s277 = smul.u32 4, %s19
        %p278 = scmp.lt.s32.totalorder %s277, 3
        %s279 = scalar_select %p278, %s277, 3
        %p280 = scmp.lt.s32.totalorder %s20, 0
        %s281 = scalar_select %p280, %s20, 0
        %s282 = sadd.s32 %s281, %s279
        %s283 = smul.addr %s282, 4
        %s284 = scalar_lea.vmem %s3, %s283
        %s285 = smul.u32 4, %s19
        %s286 = smul.u32 16, %s21
        %p287 = scmp.lt.s32.totalorder %s286, 47
        %s288 = scalar_select %p287, %s286, 47
        %p289 = scmp.lt.s32.totalorder %s20, 0
        %s290 = scalar_select %p289, %s20, 0
        %s291 = sadd.s32 %s290, %s288
        %s292 = smul.addr %s291, 4
        %s293 = scalar_lea.vmem %s1, %s292
        %s294 = smul.u32 16, %s21
        %p295 = scmp.lt.s32.totalorder %s20, 0
        %s296 = scalar_select %p295, %s20, 0
        %s297 = scalar_lea.vmem %s2, %s296
        %s298 = smul.u32 4, %s19
        %p299 = scmp.lt.s32.totalorder %s298, 3
        %s300 = scalar_select %p299, %s298, 3
        %p301 = scmp.lt.s32.totalorder %s20, 0
        %s302 = scalar_select %p301, %s20, 0
        %s303 = sadd.s32 %s302, %s300
        %s304 = smul.addr %s303, 4
        %s305 = scalar_lea.vmem %s3, %s304
        %s306 = smul.u32 4, %s19
        %p307 = scmp.eq.s32.totalorder %s21, 0
        // Predicated region
        $region74: #{generator_forward.25} parent=68 // pred_check
          %p308 = pneg %p307
        $region75: #{generator_forward.25} parent=68 // pred_check_branch
          %310 = sbr.rel (%p308) target = $region77
        $region76: #{generator_forward.25} parent=68 // pred_region
          %311 = vst [vmem:[#allocation2] sm:$0xff] 0.0
          %312 = vst [vmem:[#allocation2 + $0x8] sm:$0xff] 0.0
          %313 = vst [vmem:[#allocation2 + $0x10] sm:$0xff] 0.0
          %314 = vst [vmem:[#allocation2 + $0x18] sm:$0xff] 0.0
        $region77: #{generator_forward.25} parent=68 // pred_fallthru
          _
        %v315 = vld [vmem:[#allocation2] sm:$0xff]
        %v316 = vld [vmem:[#allocation2 + $0x8] sm:$0xff]
        %v317 = vld [vmem:[#allocation2 + $0x10] sm:$0xff]
        %v318 = vld [vmem:[#allocation2 + $0x18] sm:$0xff]
        %v319 = vld [vmem:[%s250] sm:$0xf]
        %v320 = vld [vmem:[%s250 + $0x4] sm:$0xf]
        %v321 = vld [vmem:[%s250 + $0x8] sm:$0xf]
        %v322 = vld [vmem:[%s250 + $0xc] sm:$0xf]
        %v323 = vld [vmem:[%s293] sm:$0xf]
        %v324 = vld [vmem:[%s293 + $0x4] sm:$0xf]
        %v325 = vld [vmem:[%s293 + $0x8] sm:$0xf]
        %v326 = vld [vmem:[%s293 + $0xc] sm:$0xf]
        %v327 = vld [vmem:[%s293 + $0x10] sm:$0xf]
        %v328 = vld [vmem:[%s293 + $0x14] sm:$0xf]
        %v329 = vld [vmem:[%s293 + $0x18] sm:$0xf]
        %v330 = vld [vmem:[%s293 + $0x1c] sm:$0xf]
        %v331 = vld [vmem:[%s293 + $0x20] sm:$0xf]
        %v332 = vld [vmem:[%s293 + $0x24] sm:$0xf]
        %v333 = vld [vmem:[%s293 + $0x28] sm:$0xf]
        %v334 = vld [vmem:[%s293 + $0x2c] sm:$0xf]
        %v335 = vld [vmem:[%s293 + $0x30] sm:$0xf]
        %v336 = vld [vmem:[%s293 + $0x34] sm:$0xf]
        %v337 = vld [vmem:[%s293 + $0x38] sm:$0xf]
        %v338 = vld [vmem:[%s293 + $0x3c] sm:$0xf]
        %v343 = vunpack.c.l.b16 %v319
        %v344 = vunpack.c.l.b16 %v320
        %v345 = vunpack.c.l.b16 %v321
        %v346 = vunpack.c.l.b16 %v322
        %v347 = vpack.c.b16 %v344, %v343
        %v348 = vpack.c.b16 %v346, %v345
        %v367 = vunpack.c.l.b16 %v323
        %v368 = vunpack.c.l.b16 %v324
        %v369 = vunpack.c.l.b16 %v325
        %v370 = vunpack.c.l.b16 %v326
        %v371 = vunpack.c.l.b16 %v327
        %v372 = vunpack.c.l.b16 %v328
        %v373 = vunpack.c.l.b16 %v329
        %v374 = vunpack.c.l.b16 %v330
        %v375 = vunpack.c.l.b16 %v331
        %v376 = vunpack.c.l.b16 %v332
        %v377 = vunpack.c.l.b16 %v333
        %v378 = vunpack.c.l.b16 %v334
        %v379 = vunpack.c.l.b16 %v335
        %v380 = vunpack.c.l.b16 %v336
        %v381 = vunpack.c.l.b16 %v337
        %v382 = vunpack.c.l.b16 %v338
        %v383 = vpack.c.b16 %v368, %v367
        %v384 = vpack.c.b16 %v370, %v369
        %v385 = vpack.c.b16 %v372, %v371
        %v386 = vpack.c.b16 %v374, %v373
        %v387 = vpack.c.b16 %v376, %v375
        %v388 = vpack.c.b16 %v378, %v377
        %v389 = vpack.c.b16 %v380, %v379
        %v390 = vpack.c.b16 %v382, %v381
        %399 = vmatpush.bf16.msra.mxu0 %v390
        %400 = vmatpush.bf16.msra.mxu0 %v389
        %401 = vmatpush.bf16.msra.mxu0 %v388
        %402 = vmatpush.bf16.msra.mxu0 %v387
        %403 = vmatpush.bf16.msra.mxu0 %v386
        %404 = vmatpush.bf16.msra.mxu0 %v385
        %405 = vmatpush.bf16.msra.mxu0 %v384
        %406 = vmatpush.bf16.msra.mxu0 %v383
        %407 = vmatmul.bf16.gmra.mxu0 %v347
        %v408 = vpop.f32.mrf.mxu0
        %v409 = vadd.f32 0.0, %v408
        %v410 = vpop.f32.mrf.mxu0
        %v411 = vadd.f32 0.0, %v410
        %412 = vmatmul.bf16.gmra.mxu0 %v348
        %v413 = vpop.f32.mrf.mxu0
        %v414 = vadd.f32 0.0, %v413
        %v415 = vpop.f32.mrf.mxu0
        %v416 = vadd.f32 0.0, %v415
        %417 = vdwg.mxu0
        %v418 = vadd.f32 %v315, %v409
        %v419 = vadd.f32 %v316, %v411
        %v420 = vadd.f32 %v317, %v414
        %v421 = vadd.f32 %v318, %v416
        %422 = vst [vmem:[#allocation2] sm:$0xff] %v418
        %423 = vst [vmem:[#allocation2 + $0x8] sm:$0xff] %v419
        %424 = vst [vmem:[#allocation2 + $0x10] sm:$0xff] %v420
        %425 = vst [vmem:[#allocation2 + $0x18] sm:$0xff] %v421
        %p426 = scmp.eq.s32.totalorder %s21, 2
        // Predicated region
        $region78: #{generator_forward.25} parent=68 // pred_check
          %p427 = pneg %p426
        $region79: #{generator_forward.25} parent=68 // pred_check_branch
          %429 = sbr.rel (%p427) target = $region81
        $region80: #{generator_forward.25} parent=68 // pred_region
          %v430 = vld [vmem:[#allocation2] sm:$0xff]
          %v431 = vld [vmem:[#allocation2 + $0x8] sm:$0xff]
          %v432 = vld [vmem:[#allocation2 + $0x10] sm:$0xff]
          %v433 = vld [vmem:[#allocation2 + $0x18] sm:$0xff]
          %v434 = vld [vmem:[%s297] sm:$0x1]
          %v436 = vperm.slane %v434, 0
          %v438 = vadd.f32 %v430, %v436
          %v439 = vadd.f32 %v431, %v436
          %v440 = vadd.f32 %v432, %v436
          %v441 = vadd.f32 %v433, %v436
          %v442 = vpack.c.bf16 %v438, %v438
          %v443 = vpack.c.bf16 %v439, %v439
          %v444 = vpack.c.bf16 %v440, %v440
          %v445 = vpack.c.bf16 %v441, %v441
          %446 = vst [vmem:[%s305] sm:$0xf] %v442
          %447 = vst [vmem:[%s305 + $0x4] sm:$0xf] %v443
          %448 = vst [vmem:[%s305 + $0x8] sm:$0xf] %v444
          %449 = vst [vmem:[%s305 + $0xc] sm:$0xf] %v445
        $region81: #{generator_forward.25} parent=68 // pred_fallthru
          _
        %s450 = smul.u32 4, %s19
        %p451 = scmp.lt.s32.totalorder %s450, 3
        %s452 = scalar_select %p451, %s450, 3
        %p453 = scmp.lt.s32.totalorder %s20, 0
        %s454 = scalar_select %p453, %s20, 0
        %s455 = sadd.s32 %s454, %s452
        %s456 = smul.addr %s455, 4
        %s457 = scalar_lea.vmem %s3, %s456
        // Predicated region
        $region82: #{generator_forward.25} parent=68 // pred_check
          %p458 = pneg %p135
        $region83: #{generator_forward.25} parent=68 // pred_check_branch
          %460 = sbr.rel (%p458) target = $region85
        $region84: #{generator_forward.25} parent=68 // pred_region
          %s461 = smul.u32 4, %s19
        $region85: #{generator_forward.25} parent=68 // pred_fallthru
          _
        // Predicated region
        $region86: #{generator_forward.25} parent=68 // pred_check
          %p462 = pneg %p135
        $region87: #{generator_forward.25} parent=68 // pred_check_branch
          %464 = sbr.rel (%p462) target = $region89
        $region88: #{generator_forward.25} parent=68 // pred_region
          %s465 = smul.u32 4, %s19
          %p466 = scmp.lt.s32.totalorder %s465, 3
          %s467 = scalar_select %p466, %s465, 3
          %p468 = scmp.lt.s32.totalorder %s20, 0
          %s469 = scalar_select %p468, %s20, 0
          %s470 = sadd.s32 %s469, %s467
          %s471 = smul.addr %s470, 4
          %s472 = scalar_lea.vmem %s3, %s471
        $region89: #{generator_forward.25} parent=68 // pred_fallthru
          _
      $region69: #{generator_forward.25} parent=5 // pred_fallthru
        _
      %p473 = scmp.le.s32.totalorder 2, %s9
      // Predicated region
      $region90: #{generator_forward.25} parent=5 // pred_check
        %p474 = pneg %p473
      $region91: #{generator_forward.25} parent=5 // pred_check_branch
        %476 = sbr.rel (%p474) target = $region93
      $region92: #{generator_forward.25} parent=5 // pred_region
        %s477 = ssub.s32 %s9, 2
      $region93: #{generator_forward.25} parent=5 // pred_fallthru
        _
    $region6: #{generator_forward.25} parent=1 // loop_footer
      %s13 = sadd.s32 1, %s9
    $region7: #{generator_forward.25} parent=1 // loop_footer_branch
      %8 = sbr.rel target = $region3
    $region8: #{generator_forward.25} parent=1 // loop_exit
      _

// kernel: generator_forward.28
$region0: #{generator_forward.28}
  #allocation0 [shape = 'u32[]', space=smem, size = 0x4, offset = 0x4, fixed_abs, tag = 'smem constant byte address 0x4 - core index']
  #allocation1 [shape = 'u32[72,128]{1,0:T(1,128)}', space=vmem, size = 0x9000, scoped, tag = 'internal scratch']
  %s0 = inlined_call_operand.vmem [shape: bf16[2,16,128], index: 0, kind: input, shape index: {}]
  %s1 = inlined_call_operand.vmem [shape: bf16[2,16,128], index: 1, kind: input, shape index: {}]
  %s2 = inlined_call_operand.vmem [shape: bf16[2,16,128], index: 2, kind: output, shape index: {}]
  %s3 = sld [smem:[#allocation0]]
  $region41: #{generator_forward.28} parent=0
    _
  %s5 = ssub.s32 1, %s3
  %s6 = scalar_select 0, %s5, %s3
  loop: start=0, step=1, limit=4
  $region2: #{generator_forward.28} parent=0 // loop_pre_header
    _
  $region3: #{generator_forward.28} parent=0 // loop_header
    %s8 = sphi 0, %s12
    %p9 = scmp.ge.s32.totalorder %s8, 4
    %s15 = sphi 0, %s27
    %s16 = sphi 0, %s23
    %s17 = sphi 0, %s15
    %s18 = sphi 0, %s16
    %s19 = sphi 0, %s17
    %s20 = sphi 0, %s18
    %s32 = sphi 0, %s34
    %s35 = sphi 0, %s32
    %s36 = sphi 0, %s35
    %s52 = sphi 0, %s36
    %s60 = sphi 0, %s62
    %s63 = sphi 0, %s60
    %s64 = sphi 0, %s63
    %s80 = sphi 0, %s64
    %s88 = sphi 0, %s90
    %s91 = sphi 0, %s88
    %s92 = sphi 0, %s91
    %s108 = sphi 0, %s92
  $region4: #{generator_forward.28} parent=0 // loop_header_branch
    %11 = sbr.rel (%p9) target = $region8
  $region5: #{generator_forward.28} parent=0 // loop_body
    %s13 = ssub.s32 %s8, 1
    %s14 = ssub.s32 %s8, 2
    %s21 = sadd.s32 1, %s16
    %p22 = scmp.ge.s32.totalorder %s21, 1
    %s23 = scalar_select %p22, 0, %s21
    %s24 = sadd.s32 1, %s15
    %s25 = scalar_select %p22, %s24, %s15
    %p26 = scmp.ge.s32.totalorder %s25, 2
    %s27 = scalar_select %p26, 0, %s25
    %s28 = ssub.s32 %s15, %s27
    %s29 = ssub.s32 %s16, %s23
    %s30 = sor.u32 %s28, %s29
    %p31 = scmp.eq.s32.totalorder %s30, 0
    %s33 = sadd.s32 %s32, 1
    %s34 = scalar_select %p31, %s32, %s33
    %p37 = pneg %p31
    %p38 = scmp.eq.s32.totalorder %s8, 1
    %p39 = por %p37, %p38
    %p40 = scmp.ne.s32.totalorder %s32, %s35
    %p41 = scmp.eq.s32.totalorder %s8, 0
    %p42 = por %p40, %p41
    %p43 = scmp.ne.s32.totalorder %s32, %s35
    %p44 = scmp.eq.s32.totalorder %s13, 1
    %p45 = por %p43, %p44
    %p46 = scmp.ne.s32.totalorder %s35, %s36
    %p47 = scmp.eq.s32.totalorder %s13, 0
    %p48 = por %p46, %p47
    %p49 = scmp.ne.s32.totalorder %s35, %s36
    %p50 = scmp.eq.s32.totalorder %s14, 1
    %p51 = por %p49, %p50
    %p53 = scmp.ne.s32.totalorder %s36, %s52
    %p54 = scmp.eq.s32.totalorder %s14, 0
    %p55 = por %p53, %p54
    %s56 = ssub.s32 %s15, %s27
    %s57 = ssub.s32 %s16, %s23
    %s58 = sor.u32 %s56, %s57
    %p59 = scmp.eq.s32.totalorder %s58, 0
    %s61 = sadd.s32 %s60, 1
    %s62 = scalar_select %p59, %s60, %s61
    %p65 = pneg %p59
    %p66 = scmp.eq.s32.totalorder %s8, 1
    %p67 = por %p65, %p66
    %p68 = scmp.ne.s32.totalorder %s60, %s63
    %p69 = scmp.eq.s32.totalorder %s8, 0
    %p70 = por %p68, %p69
    %p71 = scmp.ne.s32.totalorder %s60, %s63
    %p72 = scmp.eq.s32.totalorder %s13, 1
    %p73 = por %p71, %p72
    %p74 = scmp.ne.s32.totalorder %s63, %s64
    %p75 = scmp.eq.s32.totalorder %s13, 0
    %p76 = por %p74, %p75
    %p77 = scmp.ne.s32.totalorder %s63, %s64
    %p78 = scmp.eq.s32.totalorder %s14, 1
    %p79 = por %p77, %p78
    %p81 = scmp.ne.s32.totalorder %s64, %s80
    %p82 = scmp.eq.s32.totalorder %s14, 0
    %p83 = por %p81, %p82
    %s84 = ssub.s32 %s15, %s27
    %s85 = ssub.s32 %s16, %s23
    %s86 = sor.u32 %s84, %s85
    %p87 = scmp.eq.s32.totalorder %s86, 0
    %s89 = sadd.s32 %s88, 1
    %s90 = scalar_select %p87, %s88, %s89
    %p93 = pneg %p87
    %p94 = scmp.eq.s32.totalorder %s8, 1
    %p95 = por %p93, %p94
    %p96 = scmp.ne.s32.totalorder %s88, %s91
    %p97 = scmp.eq.s32.totalorder %s8, 0
    %p98 = por %p96, %p97
    %p99 = scmp.ne.s32.totalorder %s88, %s91
    %p100 = scmp.eq.s32.totalorder %s13, 1
    %p101 = por %p99, %p100
    %p102 = scmp.ne.s32.totalorder %s91, %s92
    %p103 = scmp.eq.s32.totalorder %s13, 0
    %p104 = por %p102, %p103
    %p105 = scmp.ne.s32.totalorder %s91, %s92
    %p106 = scmp.eq.s32.totalorder %s14, 1
    %p107 = por %p105, %p106
    %p109 = scmp.ne.s32.totalorder %s92, %s108
    %p110 = scmp.eq.s32.totalorder %s14, 0
    %p111 = por %p109, %p110
    %p112 = scmp.le.s32.totalorder 1, %s8
    %p113 = scmp.lt.s32.totalorder %s8, 3
    %p114 = pnand %p112, %p113
    %p115 = pneg %p114
    // Predicated region
    $region9: #{generator_forward.28} parent=5 // pred_check
      _
    $region10: #{generator_forward.28} parent=5 // pred_check_branch
      %117 = sbr.rel (%p114) target = $region12
    $region11: #{generator_forward.28} parent=5 // pred_region
      %s118 = ssub.s32 %s8, 1
    $region12: #{generator_forward.28} parent=5 // pred_fallthru
      _
    %p119 = scmp.lt.s32.totalorder %s8, 2
    // Predicated region
    $region13: #{generator_forward.28} parent=5 // pred_check
      %p120 = pneg %p119
    $region14: #{generator_forward.28} parent=5 // pred_check_branch
      %122 = sbr.rel (%p120) target = $region16
    $region15: #{generator_forward.28} parent=5 // pred_region
      // Predicated region
      $region17: #{generator_forward.28} parent=15 // pred_check
        %p123 = pneg %p42
      $region18: #{generator_forward.28} parent=15 // pred_check_branch
        %125 = sbr.rel (%p123) target = $region20
      $region19: #{generator_forward.28} parent=15 // pred_region
        %p126 = scmp.lt.s32.totalorder %s15, 1
        %s127 = scalar_select %p126, %s15, 1
        %p128 = scmp.lt.s32.totalorder %s16, 0
        %s129 = scalar_select %p128, %s16, 0
        %s130 = smul.addr %s127, 2
        %s131 = sadd.s32 %s129, %s130
        %s132 = smul.addr %s131, 4
        %s133 = scalar_lea.vmem %s0, %s132
      $region20: #{generator_forward.28} parent=15 // pred_fallthru
        _
      // Predicated region
      $region21: #{generator_forward.28} parent=15 // pred_check
        %p134 = pneg %p70
      $region22: #{generator_forward.28} parent=15 // pred_check_branch
        %136 = sbr.rel (%p134) target = $region24
      $region23: #{generator_forward.28} parent=15 // pred_region
        %p137 = scmp.lt.s32.totalorder %s15, 1
        %s138 = scalar_select %p137, %s15, 1
        %p139 = scmp.lt.s32.totalorder %s16, 0
        %s140 = scalar_select %p139, %s16, 0
        %s141 = smul.addr %s138, 2
        %s142 = sadd.s32 %s140, %s141
        %s143 = smul.addr %s142, 4
        %s144 = scalar_lea.vmem %s1, %s143
      $region24: #{generator_forward.28} parent=15 // pred_fallthru
        _
    $region16: #{generator_forward.28} parent=5 // pred_fallthru
      _
    %p145 = scmp.le.s32.totalorder 1, %s8
    %p146 = scmp.lt.s32.totalorder %s8, 3
    %p147 = pnand %p145, %p146
    %p148 = pneg %p147
    // Predicated region
    $region25: #{generator_forward.28} parent=5 // pred_check
      _
    $region26: #{generator_forward.28} parent=5 // pred_check_branch
      %150 = sbr.rel (%p147) target = $region28
    $region27: #{generator_forward.28} parent=5 // pred_region
      %s151 = ssub.s32 %s8, 1
      %p152 = scmp.lt.s32.totalorder %s17, 1
      %s153 = scalar_select %p152, %s17, 1
      %p154 = scmp.lt.s32.totalorder %s18, 0
      %s155 = scalar_select %p154, %s18, 0
      %s156 = smul.addr %s153, 2
      %s157 = sadd.s32 %s155, %s156
      %s158 = smul.addr %s157, 4
      %s159 = scalar_lea.vmem %s0, %s158
      %p160 = pneg %p48
      %p161 = pneg %p45
      %p162 = scmp.lt.s32.totalorder %s17, 1
      %s163 = scalar_select %p162, %s17, 1
      %p164 = scmp.lt.s32.totalorder %s18, 0
      %s165 = scalar_select %p164, %s18, 0
      %s166 = smul.addr %s163, 2
      %s167 = sadd.s32 %s165, %s166
      %s168 = smul.addr %s167, 4
      %s169 = scalar_lea.vmem %s1, %s168
      %p170 = pneg %p76
      %p171 = pneg %p73
      %p172 = pneg %p104
      %p173 = pneg %p101
      %p174 = scmp.lt.s32.totalorder %s17, 1
      %s175 = scalar_select %p174, %s17, 1
      %p176 = scmp.lt.s32.totalorder %s18, 0
      %s177 = scalar_select %p176, %s18, 0
      %s178 = smul.addr %s175, 2
      %s179 = sadd.s32 %s177, %s178
      %s180 = smul.addr %s179, 4
      %s181 = scalar_lea.vmem %s2, %s180
      %p182 = scmp.lt.s32.totalorder %s17, 1
      %s183 = scalar_select %p182, %s17, 1
      %p184 = scmp.lt.s32.totalorder %s18, 0
      %s185 = scalar_select %p184, %s18, 0
      %s186 = smul.addr %s183, 2
      %s187 = sadd.s32 %s185, %s186
      %s188 = smul.addr %s187, 4
      %s189 = scalar_lea.vmem %s0, %s188
      %p190 = scmp.lt.s32.totalorder %s17, 1
      %s191 = scalar_select %p190, %s17, 1
      %p192 = scmp.lt.s32.totalorder %s18, 0
      %s193 = scalar_select %p192, %s18, 0
      %s194 = smul.addr %s191, 2
      %s195 = sadd.s32 %s193, %s194
      %s196 = smul.addr %s195, 4
      %s197 = scalar_lea.vmem %s1, %s196
      %p198 = scmp.lt.s32.totalorder %s17, 1
      %s199 = scalar_select %p198, %s17, 1
      %p200 = scmp.lt.s32.totalorder %s18, 0
      %s201 = scalar_select %p200, %s18, 0
      %s202 = smul.addr %s199, 2
      %s203 = sadd.s32 %s201, %s202
      %s204 = smul.addr %s203, 4
      %s205 = scalar_lea.vmem %s2, %s204
      %v206 = vld [vmem:[%s189] sm:$0xf]
      %v207 = vld [vmem:[%s189 + $0x4] sm:$0xf]
      %v208 = vunpack.c.l.bf16 %v206
      %v209 = vunpack.c.l.bf16 %v207
      %v210 = vadd.f32 %v208, %v209
      %v211 = vrot.slane %v210, 4
      %v212 = vadd.f32 %v210, %v211
      %v213 = vrot.slane %v212, 2
      %v214 = vadd.f32 %v212, %v213
      %v215 = vrot.slane %v214, 1
      %v216 = vadd.f32 %v214, %v215
      %v217 = vrcp.pop 16.0
      %v218 = vmul.f32 16.0, %v217
      %v219 = vsub.f32 1.0, %v218
      %v220 = vmul.f32 %v217, %v219
      %v221 = vadd.f32 %v217, %v220
      %vm222 = vweird.f32 %v217
      %v223 = vsel %vm222, %v217, %v221
      %v224 = vmul.f32 %v216, %v223
      %v225 = vsub.f32 %v208, %v224
      %v226 = vsub.f32 %v209, %v224
      %v227 = vmul.f32 %v225, %v225
      %v228 = vmul.f32 %v226, %v226
      %v229 = vadd.f32 %v227, %v228
      %v230 = vrot.slane %v229, 4
      %v231 = vadd.f32 %v229, %v230
      %v232 = vrot.slane %v231, 2
      %v233 = vadd.f32 %v231, %v232
      %v234 = vrot.slane %v233, 1
      %v235 = vadd.f32 %v233, %v234
      %v236 = vmul.f32 %v235, %v223
      %v237 = vld [vmem:[%s197] sm:$0xf]
      %v238 = vld [vmem:[%s197 + $0x4] sm:$0xf]
      %v239 = vunpack.c.l.bf16 %v237
      %v240 = vunpack.c.l.bf16 %v238
      %v241 = vadd.f32 %v236, 1e-05
      %v242 = vrsqrt.pop %v241
      %v243 = vmul.f32 %v242, %v241
      %v244 = vmul.f32 %v243, %v242
      %v245 = vmul.f32 0.5, %v244
      %v246 = vsub.f32 1.5, %v245
      %v247 = vmul.f32 %v242, %v246
      %vm248 = vweird.f32 %v241
      %vm249 = vweird.f32 %v242
      %vm250 = vmor %vm248, %vm249
      %v251 = vsel %vm250, %v242, %v247
      %v252 = vmul.f32 %v225, %v251
      %v253 = vmul.f32 %v226, %v251
      %v254 = vadd.f32 %v239, %v252
      %v255 = vadd.f32 %v240, %v253
      %v256 = vpack.c.bf16 %v254, %v254
      %v257 = vpack.c.bf16 %v255, %v255
      %258 = vst [vmem:[%s205] sm:$0xf] %v256
      %259 = vst [vmem:[%s205 + $0x4] sm:$0xf] %v257
      %p260 = scmp.lt.s32.totalorder %s17, 1
      %s261 = scalar_select %p260, %s17, 1
      %p262 = scmp.lt.s32.totalorder %s18, 0
      %s263 = scalar_select %p262, %s18, 0
      %s264 = smul.addr %s261, 2
      %s265 = sadd.s32 %s263, %s264
      %s266 = smul.addr %s265, 4
      %s267 = scalar_lea.vmem %s2, %s266
      // Predicated region
      $region29: #{generator_forward.28} parent=27 // pred_check
        %p268 = pneg %p101
      $region30: #{generator_forward.28} parent=27 // pred_check_branch
        %270 = sbr.rel (%p268) target = $region32
      $region31: #{generator_forward.28} parent=27 // pred_region
        _
      $region32: #{generator_forward.28} parent=27 // pred_fallthru
        _
    $region28: #{generator_forward.28} parent=5 // pred_fallthru
      _
    %p271 = scmp.le.s32.totalorder 2, %s8
    // Predicated region
    $region33: #{generator_forward.28} parent=5 // pred_check
      %p272 = pneg %p271
    $region34: #{generator_forward.28} parent=5 // pred_check_branch
      %274 = sbr.rel (%p272) target = $region36
    $region35: #{generator_forward.28} parent=5 // pred_region
      %s275 = ssub.s32 %s8, 2
      // Predicated region
      $region37: #{generator_forward.28} parent=35 // pred_check
        %p276 = pneg %p107
      $region38: #{generator_forward.28} parent=35 // pred_check_branch
        %278 = sbr.rel (%p276) target = $region40
      $region39: #{generator_forward.28} parent=35 // pred_region
        %p279 = scmp.lt.s32.totalorder %s19, 1
        %s280 = scalar_select %p279, %s19, 1
        %p281 = scmp.lt.s32.totalorder %s20, 0
        %s282 = scalar_select %p281, %s20, 0
        %s283 = smul.addr %s280, 2
        %s284 = sadd.s32 %s282, %s283
        %s285 = smul.addr %s284, 4
        %s286 = scalar_lea.vmem %s2, %s285
      $region40: #{generator_forward.28} parent=35 // pred_fallthru
        _
    $region36: #{generator_forward.28} parent=5 // pred_fallthru
      _
  $region6: #{generator_forward.28} parent=0 // loop_footer
    %s12 = sadd.s32 1, %s8
  $region7: #{generator_forward.28} parent=0 // loop_footer_branch
    %7 = sbr.rel target = $region3
  $region8: #{generator_forward.28} parent=0 // loop_exit
    _

// kernel: tile.13
$region0: #{tile.13}
  #allocation0 [shape = 's32[1]{0}', space=sflag, size = 0x4, scoped, tag = 'scoped memory for tile.13']
  %s0 = inlined_call_operand.vmem [shape: f32[16], index: 0, kind: input, shape index: {}]
  %s1 = inlined_call_operand.vmem [shape: f32[4,16], index: 1, kind: output, shape index: {}]
  // Predicated region
  $region2: #{tile.13} parent=0 // pred_check
    _
  $region3: #{tile.13} parent=0 // pred_check_branch
    %3 = sbr.rel (0) target = $region5
  $region4: #{tile.13} parent=0 // pred_region
    _
  $region5: #{tile.13} parent=0 // pred_fallthru
    _
  %v4 = vld [vmem:[%s0] ss:$0 sm:$0xff]
  %5 = vst [vmem:[%s1] sm:$0xf] %v4

// kernel: tile.14
$region0: #{tile.14}
  %s0 = inlined_call_operand.vmem [shape: f32[4,16], index: 0, kind: input, shape index: {}]
  %s1 = inlined_call_operand.vmem [shape: f32[64], index: 1, kind: output, shape index: {}]
  $region1: #{tile.14} parent=0
    #allocation0 [shape = 'u8[4096]{0}', space=vmem, size = 0x1000, scoped, tag = 'scoped mem for output reshape']
    #allocation1 [shape = 'u8[4096]{0}', space=vmem, size = 0x1000, scoped, tag = 'scoped mem for input reshape']
    %s3 = ssub.s32 16, 1
    %v4 = vld [vmem:[%s0] sm:%s3]
    %5 = vst [vmem:[#allocation1] sm:%s3] %v4
    %v6 = vld [vmem:[#allocation1] sm:$0x1]
    %vm7 = vcmask 130048
    %8 = vst.msk [vmem:[#allocation0] sm:$0x1] %vm7, %v6
    %s9 = scalar_lea.vmem [#allocation1], 3
    %v10 = vld [vmem:[%s9] sm:$0x1]
    %11 = vrot.lane.b32.xlu0 %v10, 48
    %v12 = vpop.permute.xlu0 %11
    %vm13 = vcmask 523648
    %14 = vst.msk [vmem:[#allocation0] sm:$0x1] %vm13, %v12
    %s15 = scalar_lea.vmem [#allocation1], 2
    %v16 = vld [vmem:[%s15] sm:$0x1]
    %17 = vrot.lane.b32.xlu0 %v16, 32
    %v18 = vpop.permute.xlu0 %17
    %vm19 = vcmask 392448
    %20 = vst.msk [vmem:[#allocation0] sm:$0x1] %vm19, %v18
    %s21 = scalar_lea.vmem [#allocation1], 1
    %v22 = vld [vmem:[%s21] sm:$0x1]
    %23 = vrot.lane.b32.xlu0 %v22, 16
    %v24 = vpop.permute.xlu0 %23
    %vm25 = vcmask 261248
    %26 = vst.msk [vmem:[#allocation0] sm:$0x1] %vm25, %v24
    %s28 = ssub.s32 2, 1
    %v29 = vld [vmem:[#allocation0] sm:%s28]
    %s31 = ssub.s32 2, 1
    %32 = vst [vmem:[%s1] sm:%s31] %v29

// kernel: generator_forward.33
$region0: #{generator_forward.33}
  #allocation0 [shape = 'u32[]', space=smem, size = 0x4, offset = 0x4, fixed_abs, tag = 'smem constant byte address 0x4 - core index']
  #allocation1 [shape = 'u32[72,128]{1,0:T(1,128)}', space=vmem, size = 0x9000, scoped, tag = 'internal scratch']
  #allocation2 [shape = 'f32[32,128]{1,0:T(8,128)}', space=vmem, size = 0x4000, scoped, tag = 'scratch operand']
  %s0 = inlined_call_operand.vmem [shape: bf16[32,128], index: 0, kind: input, shape index: {}]
  %s1 = inlined_call_operand.vmem [shape: bf16[128,128], index: 1, kind: input, shape index: {}]
  %s2 = inlined_call_operand.vmem [shape: f32[1,128], index: 2, kind: input, shape index: {}]
  %s3 = inlined_call_operand.vmem [shape: bf16[32,128], index: 3, kind: output, shape index: {}]
  %s4 = sld [smem:[#allocation0]]
  $region30: #{generator_forward.33} parent=0
    _
  %s6 = ssub.s32 1, %s4
  %s7 = scalar_select 0, %s6, %s4
  // Predicated region
  $region2: #{generator_forward.33} parent=0 // pred_check
    _
  $region3: #{generator_forward.33} parent=0 // pred_check_branch
    %9 = sbr.rel (0) target = $region5
  $region4: #{generator_forward.33} parent=0 // pred_region
    _
  $region5: #{generator_forward.33} parent=0 // pred_fallthru
    _
  // Predicated region
  $region6: #{generator_forward.33} parent=0 // pred_check
    _
  $region7: #{generator_forward.33} parent=0 // pred_check_branch
    %11 = sbr.rel (0) target = $region9
  $region8: #{generator_forward.33} parent=0 // pred_region
    _
  $region9: #{generator_forward.33} parent=0 // pred_fallthru
    _
  // Predicated region
  $region10: #{generator_forward.33} parent=0 // pred_check
    _
  $region11: #{generator_forward.33} parent=0 // pred_check_branch
    %13 = sbr.rel (0) target = $region13
  $region12: #{generator_forward.33} parent=0 // pred_region
    _
  $region13: #{generator_forward.33} parent=0 // pred_fallthru
    _
  %p14 = scmp.eq.s32.totalorder 0, 0
  // Predicated region
  $region14: #{generator_forward.33} parent=0 // pred_check
    %p15 = pneg %p14
  $region15: #{generator_forward.33} parent=0 // pred_check_branch
    %17 = sbr.rel (%p15) target = $region17
  $region16: #{generator_forward.33} parent=0 // pred_region
    %18 = vst [vmem:[#allocation2] sm:$0xff] 0.0
    %19 = vst [vmem:[#allocation2 + $0x8] sm:$0xff] 0.0
    %20 = vst [vmem:[#allocation2 + $0x10] sm:$0xff] 0.0
    %21 = vst [vmem:[#allocation2 + $0x18] sm:$0xff] 0.0
  $region17: #{generator_forward.33} parent=0 // pred_fallthru
    _
  %v22 = vld [vmem:[#allocation2] sm:$0xff]
  %v23 = vld [vmem:[#allocation2 + $0x8] sm:$0xff]
  %v24 = vld [vmem:[#allocation2 + $0x10] sm:$0xff]
  %v25 = vld [vmem:[#allocation2 + $0x18] sm:$0xff]
  %v26 = vld [vmem:[%s0] sm:$0xf]
  %v27 = vld [vmem:[%s0 + $0x4] sm:$0xf]
  %v28 = vld [vmem:[%s0 + $0x8] sm:$0xf]
  %v29 = vld [vmem:[%s0 + $0xc] sm:$0xf]
  %v30 = vld [vmem:[%s1] sm:$0xf]
  %v31 = vld [vmem:[%s1 + $0x4] sm:$0xf]
  %v32 = vld [vmem:[%s1 + $0x8] sm:$0xf]
  %v33 = vld [vmem:[%s1 + $0xc] sm:$0xf]
  %v34 = vld [vmem:[%s1 + $0x10] sm:$0xf]
  %v35 = vld [vmem:[%s1 + $0x14] sm:$0xf]
  %v36 = vld [vmem:[%s1 + $0x18] sm:$0xf]
  %v37 = vld [vmem:[%s1 + $0x1c] sm:$0xf]
  %v38 = vld [vmem:[%s1 + $0x20] sm:$0xf]
  %v39 = vld [vmem:[%s1 + $0x24] sm:$0xf]
  %v40 = vld [vmem:[%s1 + $0x28] sm:$0xf]
  %v41 = vld [vmem:[%s1 + $0x2c] sm:$0xf]
  %v42 = vld [vmem:[%s1 + $0x30] sm:$0xf]
  %v43 = vld [vmem:[%s1 + $0x34] sm:$0xf]
  %v44 = vld [vmem:[%s1 + $0x38] sm:$0xf]
  %v45 = vld [vmem:[%s1 + $0x3c] sm:$0xf]
  %v50 = vunpack.c.l.b16 %v26
  %v51 = vunpack.c.l.b16 %v27
  %v52 = vunpack.c.l.b16 %v28
  %v53 = vunpack.c.l.b16 %v29
  %v54 = vpack.c.b16 %v51, %v50
  %v55 = vpack.c.b16 %v53, %v52
  %v74 = vunpack.c.l.b16 %v30
  %v75 = vunpack.c.l.b16 %v31
  %v76 = vunpack.c.l.b16 %v32
  %v77 = vunpack.c.l.b16 %v33
  %v78 = vunpack.c.l.b16 %v34
  %v79 = vunpack.c.l.b16 %v35
  %v80 = vunpack.c.l.b16 %v36
  %v81 = vunpack.c.l.b16 %v37
  %v82 = vunpack.c.l.b16 %v38
  %v83 = vunpack.c.l.b16 %v39
  %v84 = vunpack.c.l.b16 %v40
  %v85 = vunpack.c.l.b16 %v41
  %v86 = vunpack.c.l.b16 %v42
  %v87 = vunpack.c.l.b16 %v43
  %v88 = vunpack.c.l.b16 %v44
  %v89 = vunpack.c.l.b16 %v45
  %v90 = vpack.c.b16 %v75, %v74
  %v91 = vpack.c.b16 %v77, %v76
  %v92 = vpack.c.b16 %v79, %v78
  %v93 = vpack.c.b16 %v81, %v80
  %v94 = vpack.c.b16 %v83, %v82
  %v95 = vpack.c.b16 %v85, %v84
  %v96 = vpack.c.b16 %v87, %v86
  %v97 = vpack.c.b16 %v89, %v88
  %106 = vmatpush.bf16.msra.mxu0 %v97
  %107 = vmatpush.bf16.msra.mxu0 %v96
  %108 = vmatpush.bf16.msra.mxu0 %v95
  %109 = vmatpush.bf16.msra.mxu0 %v94
  %110 = vmatpush.bf16.msra.mxu0 %v93
  %111 = vmatpush.bf16.msra.mxu0 %v92
  %112 = vmatpush.bf16.msra.mxu0 %v91
  %113 = vmatpush.bf16.msra.mxu0 %v90
  %114 = vmatmul.bf16.gmra.mxu0 %v54
  %v115 = vpop.f32.mrf.mxu0
  %v116 = vadd.f32 0.0, %v115
  %v117 = vpop.f32.mrf.mxu0
  %v118 = vadd.f32 0.0, %v117
  %119 = vmatmul.bf16.gmra.mxu0 %v55
  %v120 = vpop.f32.mrf.mxu0
  %v121 = vadd.f32 0.0, %v120
  %v122 = vpop.f32.mrf.mxu0
  %v123 = vadd.f32 0.0, %v122
  %124 = vdwg.mxu0
  %v125 = vadd.f32 %v22, %v116
  %v126 = vadd.f32 %v23, %v118
  %v127 = vadd.f32 %v24, %v121
  %v128 = vadd.f32 %v25, %v123
  %129 = vst [vmem:[#allocation2] sm:$0xff] %v125
  %130 = vst [vmem:[#allocation2 + $0x8] sm:$0xff] %v126
  %131 = vst [vmem:[#allocation2 + $0x10] sm:$0xff] %v127
  %132 = vst [vmem:[#allocation2 + $0x18] sm:$0xff] %v128
  // Predicated region
  $region18: #{generator_forward.33} parent=0 // pred_check
    %p133 = pneg %p14
  $region19: #{generator_forward.33} parent=0 // pred_check_branch
    %135 = sbr.rel (%p133) target = $region21
  $region20: #{generator_forward.33} parent=0 // pred_region
    %v136 = vld [vmem:[#allocation2] sm:$0xff]
    %v137 = vld [vmem:[#allocation2 + $0x8] sm:$0xff]
    %v138 = vld [vmem:[#allocation2 + $0x10] sm:$0xff]
    %v139 = vld [vmem:[#allocation2 + $0x18] sm:$0xff]
    %v140 = vld [vmem:[%s2] sm:$0x1]
    %v142 = vperm.slane %v140, 0
    %v144 = vadd.f32 %v136, %v142
    %v145 = vadd.f32 %v137, %v142
    %v146 = vadd.f32 %v138, %v142
    %v147 = vadd.f32 %v139, %v142
    %v148 = vpack.c.bf16 %v144, %v144
    %v149 = vpack.c.bf16 %v145, %v145
    %v150 = vpack.c.bf16 %v146, %v146
    %v151 = vpack.c.bf16 %v147, %v147
    %152 = vst [vmem:[%s3] sm:$0xf] %v148
    %153 = vst [vmem:[%s3 + $0x4] sm:$0xf] %v149
    %154 = vst [vmem:[%s3 + $0x8] sm:$0xf] %v150
    %155 = vst [vmem:[%s3 + $0xc] sm:$0xf] %v151
  $region21: #{generator_forward.33} parent=0 // pred_fallthru
    _
  // Predicated region
  $region22: #{generator_forward.33} parent=0 // pred_check
    _
  $region23: #{generator_forward.33} parent=0 // pred_check_branch
    %157 = sbr.rel (0) target = $region25
  $region24: #{generator_forward.33} parent=0 // pred_region
    _
  $region25: #{generator_forward.33} parent=0 // pred_fallthru
    _
  // Predicated region
  $region26: #{generator_forward.33} parent=0 // pred_check
    _
  $region27: #{generator_forward.33} parent=0 // pred_check_branch
    %159 = sbr.rel (0) target = $region29
  $region28: #{generator_forward.33} parent=0 // pred_region
    _
  $region29: #{generator_forward.33} parent=0 // pred_fallthru
    _

// kernel: tile.18
$region0: #{tile.18}
  #allocation0 [shape = 's32[1]{0}', space=sflag, size = 0x4, scoped, tag = 'scoped memory for tile.18']
  %s0 = inlined_call_operand.vmem [shape: f32[8], index: 0, kind: input, shape index: {}]
  %s1 = inlined_call_operand.vmem [shape: f32[4,8], index: 1, kind: output, shape index: {}]
  // Predicated region
  $region2: #{tile.18} parent=0 // pred_check
    _
  $region3: #{tile.18} parent=0 // pred_check_branch
    %3 = sbr.rel (0) target = $region5
  $region4: #{tile.18} parent=0 // pred_region
    _
  $region5: #{tile.18} parent=0 // pred_fallthru
    _
  %v4 = vld [vmem:[%s0] ss:$0 sm:$0xff]
  %5 = vst [vmem:[%s1] sm:$0xf] %v4

// kernel: tile.19
$region0: #{tile.19}
  %s0 = inlined_call_operand.vmem [shape: f32[4,8], index: 0, kind: input, shape index: {}]
  %s1 = inlined_call_operand.vmem [shape: f32[32], index: 1, kind: output, shape index: {}]
  $region1: #{tile.19} parent=0
    #allocation0 [shape = 'u8[4096]{0}', space=vmem, size = 0x1000, scoped, tag = 'scoped mem for output reshape']
    #allocation1 [shape = 'u8[4096]{0}', space=vmem, size = 0x1000, scoped, tag = 'scoped mem for input reshape']
    %s3 = ssub.s32 16, 1
    %v4 = vld [vmem:[%s0] sm:%s3]
    %5 = vst [vmem:[#allocation1] sm:%s3] %v4
    %v6 = vld [vmem:[#allocation1] sm:$0x1]
    %vm7 = vcmask 64512
    %8 = vst.msk [vmem:[#allocation0] sm:$0x1] %vm7, %v6
    %s9 = scalar_lea.vmem [#allocation1], 3
    %v10 = vld [vmem:[%s9] sm:$0x1]
    %11 = vrot.lane.b32.xlu0 %v10, 24
    %v12 = vpop.permute.xlu0 %11
    %vm13 = vcmask 261312
    %14 = vst.msk [vmem:[#allocation0] sm:$0x1] %vm13, %v12
    %s15 = scalar_lea.vmem [#allocation1], 2
    %v16 = vld [vmem:[%s15] sm:$0x1]
    %17 = vrot.lane.b32.xlu0 %v16, 16
    %v18 = vpop.permute.xlu0 %17
    %vm19 = vcmask 195712
    %20 = vst.msk [vmem:[#allocation0] sm:$0x1] %vm19, %v18
    %s21 = scalar_lea.vmem [#allocation1], 1
    %v22 = vld [vmem:[%s21] sm:$0x1]
    %23 = vrot.lane.b32.xlu0 %v22, 8
    %v24 = vpop.permute.xlu0 %23
    %vm25 = vcmask 130112
    %26 = vst.msk [vmem:[#allocation0] sm:$0x1] %vm25, %v24
    %s28 = ssub.s32 2, 1
    %v29 = vld [vmem:[#allocation0] sm:%s28]
    %s31 = ssub.s32 2, 1
    %32 = vst [vmem:[%s1] sm:%s31] %v29

// kernel: generator_forward.37
$region0: #{generator_forward.37}
  #allocation0 [shape = 'u32[]', space=smem, size = 0x4, offset = 0x4, fixed_abs, tag = 'smem constant byte address 0x4 - core index']
  #allocation1 [shape = 'u32[72,128]{1,0:T(1,128)}', space=vmem, size = 0x9000, scoped, tag = 'internal scratch']
  #allocation2 [shape = 'f32[512,128]{1,0:T(8,128)}', space=vmem, size = 0x40000, scoped, tag = 'scratch operand']
  %s0 = inlined_call_operand.vmem [shape: bf16[512,512], index: 0, kind: input, shape index: {}]
  %s1 = inlined_call_operand.vmem [shape: bf16[512,128], index: 1, kind: input, shape index: {}]
  %s2 = inlined_call_operand.vmem [shape: f32[1,128], index: 2, kind: input, shape index: {}]
  %s3 = inlined_call_operand.vmem [shape: bf16[512,128], index: 3, kind: output, shape index: {}]
  %s4 = sld [smem:[#allocation0]]
  $region91: #{generator_forward.37} parent=0
    _
  %s6 = ssub.s32 1, %s4
  %s7 = scalar_select 0, %s6, %s4
  $region1: #{generator_forward.37} parent=0
    #allocation3 [shape = 'u8[524288]{0}', space=vmem, size = 0x80000, scoped, tag = 'input window, operand 0']
    loop: start=0, step=1, limit=4
    $region2: #{generator_forward.37} parent=1 // loop_pre_header
      _
    $region3: #{generator_forward.37} parent=1 // loop_header
      %s9 = sphi 0, %s13
      %p10 = scmp.ge.s32.totalorder %s9, 4
      %s16 = sphi 0, %s35
      %s17 = sphi 0, %s31
      %s18 = sphi 0, %s27
      %s19 = sphi 0, %s16
      %s20 = sphi 0, %s17
      %s21 = sphi 0, %s18
      %s22 = sphi 0, %s19
      %s23 = sphi 0, %s20
      %s24 = sphi 0, %s21
      %s40 = sphi 0, %s42
      %s43 = sphi 0, %s40
      %s44 = sphi 0, %s43
      %s60 = sphi 0, %s44
      %s68 = sphi 0, %s70
      %s71 = sphi 0, %s68
      %s72 = sphi 0, %s71
      %s88 = sphi 0, %s72
      %s94 = sphi 0, %s96
      %s97 = sphi 0, %s94
      %s98 = sphi 0, %s97
      %s114 = sphi 0, %s98
      %s122 = sphi 0, %s124
      %s125 = sphi 0, %s122
      %s126 = sphi 0, %s125
      %s142 = sphi 0, %s126
    $region4: #{generator_forward.37} parent=1 // loop_header_branch
      %12 = sbr.rel (%p10) target = $region8
    $region5: #{generator_forward.37} parent=1 // loop_body
      %s14 = ssub.s32 %s9, 1
      %s15 = ssub.s32 %s9, 2
      %s25 = sadd.s32 1, %s18
      %p26 = scmp.ge.s32.totalorder %s25, 2
      %s27 = scalar_select %p26, 0, %s25
      %s28 = sadd.s32 1, %s17
      %s29 = scalar_select %p26, %s28, %s17
      %p30 = scmp.ge.s32.totalorder %s29, 1
      %s31 = scalar_select %p30, 0, %s29
      %s32 = sadd.s32 1, %s16
      %s33 = scalar_select %p30, %s32, %s16
      %p34 = scmp.ge.s32.totalorder %s33, 1
      %s35 = scalar_select %p34, 0, %s33
      %s36 = ssub.s32 %s16, %s35
      %s37 = ssub.s32 %s18, %s27
      %s38 = sor.u32 %s36, %s37
      %p39 = scmp.eq.s32.totalorder %s38, 0
      %s41 = sadd.s32 %s40, 1
      %s42 = scalar_select %p39, %s40, %s41
      %p45 = pneg %p39
      %p46 = scmp.eq.s32.totalorder %s9, 1
      %p47 = por %p45, %p46
      %p48 = scmp.ne.s32.totalorder %s40, %s43
      %p49 = scmp.eq.s32.totalorder %s9, 0
      %p50 = por %p48, %p49
      %p51 = scmp.ne.s32.totalorder %s40, %s43
      %p52 = scmp.eq.s32.totalorder %s14, 1
      %p53 = por %p51, %p52
      %p54 = scmp.ne.s32.totalorder %s43, %s44
      %p55 = scmp.eq.s32.totalorder %s14, 0
      %p56 = por %p54, %p55
      %p57 = scmp.ne.s32.totalorder %s43, %s44
      %p58 = scmp.eq.s32.totalorder %s15, 1
      %p59 = por %p57, %p58
      %p61 = scmp.ne.s32.totalorder %s44, %s60
      %p62 = scmp.eq.s32.totalorder %s15, 0
      %p63 = por %p61, %p62
      %s64 = ssub.s32 %s18, %s27
      %s65 = ssub.s32 %s17, %s31
      %s66 = sor.u32 %s64, %s65
      %p67 = scmp.eq.s32.totalorder %s66, 0
      %s69 = sadd.s32 %s68, 1
      %s70 = scalar_select %p67, %s68, %s69
      %p73 = pneg %p67
      %p74 = scmp.eq.s32.totalorder %s9, 1
      %p75 = por %p73, %p74
      %p76 = scmp.ne.s32.totalorder %s68, %s71
      %p77 = scmp.eq.s32.totalorder %s9, 0
      %p78 = por %p76, %p77
      %p79 = scmp.ne.s32.totalorder %s68, %s71
      %p80 = scmp.eq.s32.totalorder %s14, 1
      %p81 = por %p79, %p80
      %p82 = scmp.ne.s32.totalorder %s71, %s72
      %p83 = scmp.eq.s32.totalorder %s14, 0
      %p84 = por %p82, %p83
      %p85 = scmp.ne.s32.totalorder %s71, %s72
      %p86 = scmp.eq.s32.totalorder %s15, 1
      %p87 = por %p85, %p86
      %p89 = scmp.ne.s32.totalorder %s72, %s88
      %p90 = scmp.eq.s32.totalorder %s15, 0
      %p91 = por %p89, %p90
      %s92 = ssub.s32 %s17, %s31
      %p93 = scmp.eq.s32.totalorder %s92, 0
      %s95 = sadd.s32 %s94, 1
      %s96 = scalar_select %p93, %s94, %s95
      %p99 = pneg %p93
      %p100 = scmp.eq.s32.totalorder %s9, 1
      %p101 = por %p99, %p100
      %p102 = scmp.ne.s32.totalorder %s94, %s97
      %p103 = scmp.eq.s32.totalorder %s9, 0
      %p104 = por %p102, %p103
      %p105 = scmp.ne.s32.totalorder %s94, %s97
      %p106 = scmp.eq.s32.totalorder %s14, 1
      %p107 = por %p105, %p106
      %p108 = scmp.ne.s32.totalorder %s97, %s98
      %p109 = scmp.eq.s32.totalorder %s14, 0
      %p110 = por %p108, %p109
      %p111 = scmp.ne.s32.totalorder %s97, %s98
      %p112 = scmp.eq.s32.totalorder %s15, 1
      %p113 = por %p111, %p112
      %p115 = scmp.ne.s32.totalorder %s98, %s114
      %p116 = scmp.eq.s32.totalorder %s15, 0
      %p117 = por %p115, %p116
      %s118 = ssub.s32 %s16, %s35
      %s119 = ssub.s32 %s17, %s31
      %s120 = sor.u32 %s118, %s119
      %p121 = scmp.eq.s32.totalorder %s120, 0
      %s123 = sadd.s32 %s122, 1
      %s124 = scalar_select %p121, %s122, %s123
      %p127 = pneg %p121
      %p128 = scmp.eq.s32.totalorder %s9, 1
      %p129 = por %p127, %p128
      %p130 = scmp.ne.s32.totalorder %s122, %s125
      %p131 = scmp.eq.s32.totalorder %s9, 0
      %p132 = por %p130, %p131
      %p133 = scmp.ne.s32.totalorder %s122, %s125
      %p134 = scmp.eq.s32.totalorder %s14, 1
      %p135 = por %p133, %p134
      %p136 = scmp.ne.s32.totalorder %s125, %s126
      %p137 = scmp.eq.s32.totalorder %s14, 0
      %p138 = por %p136, %p137
      %p139 = scmp.ne.s32.totalorder %s125, %s126
      %p140 = scmp.eq.s32.totalorder %s15, 1
      %p141 = por %p139, %p140
      %p143 = scmp.ne.s32.totalorder %s126, %s142
      %p144 = scmp.eq.s32.totalorder %s15, 0
      %p145 = por %p143, %p144
      %p146 = scmp.le.s32.totalorder 1, %s9
      %p147 = scmp.lt.s32.totalorder %s9, 3
      %p148 = pnand %p146, %p147
      %p149 = pneg %p148
      // Predicated region
      $region9: #{generator_forward.37} parent=5 // pred_check
        _
      $region10: #{generator_forward.37} parent=5 // pred_check_branch
        %151 = sbr.rel (%p148) target = $region12
      $region11: #{generator_forward.37} parent=5 // pred_region
        %s152 = ssub.s32 %s9, 1
        // Predicated region
        $region13: #{generator_forward.37} parent=11 // pred_check
          %p153 = pneg %p110
        $region14: #{generator_forward.37} parent=11 // pred_check_branch
          %155 = sbr.rel (%p153) target = $region16
        $region15: #{generator_forward.37} parent=11 // pred_region
          %p156 = scmp.lt.s32.totalorder %s20, 0
          %s157 = scalar_select %p156, %s20, 0
          %s158 = scalar_lea.vmem %s2, %s157
        $region16: #{generator_forward.37} parent=11 // pred_fallthru
          _
      $region12: #{generator_forward.37} parent=5 // pred_fallthru
        _
      %p159 = scmp.lt.s32.totalorder %s9, 2
      // Predicated region
      $region17: #{generator_forward.37} parent=5 // pred_check
        %p160 = pneg %p159
      $region18: #{generator_forward.37} parent=5 // pred_check_branch
        %162 = sbr.rel (%p160) target = $region20
      $region19: #{generator_forward.37} parent=5 // pred_region
        // Predicated region
        $region21: #{generator_forward.37} parent=19 // pred_check
          %p163 = pneg %p50
        $region22: #{generator_forward.37} parent=19 // pred_check_branch
          %165 = sbr.rel (%p163) target = $region24
        $region23: #{generator_forward.37} parent=19 // pred_region
          %s166 = sand.u32 %s40, 1
          %s167 = sand.u32 %s40, 1
          %s168 = smul.addr %s167, 512
          %s169 = scalar_lea.vmem [#allocation3], %s168
          %s170 = smul.u32 64, %s16
          %s171 = smul.u32 2, %s18
          %s172 = smul.addr %s170, 4
          %s173 = sadd.s32 %s171, %s172
          %s174 = smul.addr %s173, 4
          %s175 = scalar_lea.vmem %s0, %s174
          // Predicated region
          $region25: #{generator_forward.37} parent=23 // pred_check
            _
          $region26: #{generator_forward.37} parent=23 // pred_check_branch
            %177 = sbr.rel (0) target = $region28
          $region27: #{generator_forward.37} parent=23 // pred_region
            // Predicated region
            $region29: #{generator_forward.37} parent=27 // pred_check
              _
            $region30: #{generator_forward.37} parent=27 // pred_check_branch
              %179 = sbr.rel (0) target = $region32
            $region31: #{generator_forward.37} parent=27 // pred_region
              // Predicated region
              $region44: #{generator_forward.37} parent=31 // pred_check
                _
              $region45: #{generator_forward.37} parent=31 // pred_check_branch
                %321 = sbr.rel (0) target = $region47
              $region46: #{generator_forward.37} parent=31 // pred_region
                loop: start=0, step=1, limit=1
                $region48: #{generator_forward.37} parent=46 // loop_pre_header
                  _
                $region49: #{generator_forward.37} parent=46 // loop_header
                  %s323 = sphi 0, %s327
                  %p324 = scmp.ge.s32.totalorder %s323, 1
                  %s328 = sphi %s175, %s175
                  %s329 = sphi %s169, %s169
                $region50: #{generator_forward.37} parent=46 // loop_header_branch
                  %326 = sbr.rel (%p324) target = $region54
                $region51: #{generator_forward.37} parent=46 // loop_body
                  %v330 = vld [vmem:[%s328] sm:$0xff]
                  %331 = vst [vmem:[%s329] sm:$0xff] %v330
                  %v332 = vld [vmem:[%s328 + $0x10] sm:$0xff]
                  %333 = vst [vmem:[%s329 + $0x8] sm:$0xff] %v332
                  %v334 = vld [vmem:[%s328 + $0x20] sm:$0xff]
                  %335 = vst [vmem:[%s329 + $0x10] sm:$0xff] %v334
                  %v336 = vld [vmem:[%s328 + $0x30] sm:$0xff]
                  %337 = vst [vmem:[%s329 + $0x18] sm:$0xff] %v336
                  %v338 = vld [vmem:[%s328 + $0x40] sm:$0xff]
                  %339 = vst [vmem:[%s329 + $0x20] sm:$0xff] %v338
                  %v340 = vld [vmem:[%s328 + $0x50] sm:$0xff]
                  %341 = vst [vmem:[%s329 + $0x28] sm:$0xff] %v340
                  %v342 = vld [vmem:[%s328 + $0x60] sm:$0xff]
                  %343 = vst [vmem:[%s329 + $0x30] sm:$0xff] %v342
                  %v344 = vld [vmem:[%s328 + $0x70] sm:$0xff]
                  %345 = vst [vmem:[%s329 + $0x38] sm:$0xff] %v344
                  %v346 = vld [vmem:[%s328 + $0x80] sm:$0xff]
                  %347 = vst [vmem:[%s329 + $0x40] sm:$0xff] %v346
                  %v348 = vld [vmem:[%s328 + $0x90] sm:$0xff]
                  %349 = vst [vmem:[%s329 + $0x48] sm:$0xff] %v348
                  %v350 = vld [vmem:[%s328 + $0xa0] sm:$0xff]
                  %351 = vst [vmem:[%s329 + $0x50] sm:$0xff] %v350
                  %v352 = vld [vmem:[%s328 + $0xb0] sm:$0xff]
                  %353 = vst [vmem:[%s329 + $0x58] sm:$0xff] %v352
                  %v354 = vld [vmem:[%s328 + $0xc0] sm:$0xff]
                  %355 = vst [vmem:[%s329 + $0x60] sm:$0xff] %v354
                  %v356 = vld [vmem:[%s328 + $0xd0] sm:$0xff]
                  %357 = vst [vmem:[%s329 + $0x68] sm:$0xff] %v356
                  %v358 = vld [vmem:[%s328 + $0xe0] sm:$0xff]
                  %359 = vst [vmem:[%s329 + $0x70] sm:$0xff] %v358
                  %v360 = vld [vmem:[%s328 + $0xf0] sm:$0xff]
                  %361 = vst [vmem:[%s329 + $0x78] sm:$0xff] %v360
                  %v362 = vld [vmem:[%s328 + $0x100] sm:$0xff]
                  %363 = vst [vmem:[%s329 + $0x80] sm:$0xff] %v362
                  %v364 = vld [vmem:[%s328 + $0x110] sm:$0xff]
                  %365 = vst [vmem:[%s329 + $0x88] sm:$0xff] %v364
                  %v366 = vld [vmem:[%s328 + $0x120] sm:$0xff]
                  %367 = vst [vmem:[%s329 + $0x90] sm:$0xff] %v366
                  %v368 = vld [vmem:[%s328 + $0x130] sm:$0xff]
                  %369 = vst [vmem:[%s329 + $0x98] sm:$0xff] %v368
                  %v370 = vld [vmem:[%s328 + $0x140] sm:$0xff]
                  %371 = vst [vmem:[%s329 + $0xa0] sm:$0xff] %v370
                  %v372 = vld [vmem:[%s328 + $0x150] sm:$0xff]
                  %373 = vst [vmem:[%s329 + $0xa8] sm:$0xff] %v372
                  %v374 = vld [vmem:[%s328 + $0x160] sm:$0xff]
                  %375 = vst [vmem:[%s329 + $0xb0] sm:$0xff] %v374
                  %v376 = vld [vmem:[%s328 + $0x170] sm:$0xff]
                  %377 = vst [vmem:[%s329 + $0xb8] sm:$0xff] %v376
                  %v378 = vld [vmem:[%s328 + $0x180] sm:$0xff]
                  %379 = vst [vmem:[%s329 + $0xc0] sm:$0xff] %v378
                  %v380 = vld [vmem:[%s328 + $0x190] sm:$0xff]
                  %381 = vst [vmem:[%s329 + $0xc8] sm:$0xff] %v380
                  %v382 = vld [vmem:[%s328 + $0x1a0] sm:$0xff]
                  %383 = vst [vmem:[%s329 + $0xd0] sm:$0xff] %v382
                  %v384 = vld [vmem:[%s328 + $0x1b0] sm:$0xff]
                  %385 = vst [vmem:[%s329 + $0xd8] sm:$0xff] %v384
                  %v386 = vld [vmem:[%s328 + $0x1c0] sm:$0xff]
                  %387 = vst [vmem:[%s329 + $0xe0] sm:$0xff] %v386
                  %v388 = vld [vmem:[%s328 + $0x1d0] sm:$0xff]
                  %389 = vst [vmem:[%s329 + $0xe8] sm:$0xff] %v388
                  %v390 = vld [vmem:[%s328 + $0x1e0] sm:$0xff]
                  %391 = vst [vmem:[%s329 + $0xf0] sm:$0xff] %v390
                  %v392 = vld [vmem:[%s328 + $0x1f0] sm:$0xff]
                  %393 = vst [vmem:[%s329 + $0xf8] sm:$0xff] %v392
                  %v394 = vld [vmem:[%s328 + $0x200] sm:$0xff]
                  %395 = vst [vmem:[%s329 + $0x100] sm:$0xff] %v394
                  %v396 = vld [vmem:[%s328 + $0x210] sm:$0xff]
                  %397 = vst [vmem:[%s329 + $0x108] sm:$0xff] %v396
                  %v398 = vld [vmem:[%s328 + $0x220] sm:$0xff]
                  %399 = vst [vmem:[%s329 + $0x110] sm:$0xff] %v398
                  %v400 = vld [vmem:[%s328 + $0x230] sm:$0xff]
                  %401 = vst [vmem:[%s329 + $0x118] sm:$0xff] %v400
                  %v402 = vld [vmem:[%s328 + $0x240] sm:$0xff]
                  %403 = vst [vmem:[%s329 + $0x120] sm:$0xff] %v402
                  %v404 = vld [vmem:[%s328 + $0x250] sm:$0xff]
                  %405 = vst [vmem:[%s329 + $0x128] sm:$0xff] %v404
                  %v406 = vld [vmem:[%s328 + $0x260] sm:$0xff]
                  %407 = vst [vmem:[%s329 + $0x130] sm:$0xff] %v406
                  %v408 = vld [vmem:[%s328 + $0x270] sm:$0xff]
                  %409 = vst [vmem:[%s329 + $0x138] sm:$0xff] %v408
                  %v410 = vld [vmem:[%s328 + $0x280] sm:$0xff]
                  %411 = vst [vmem:[%s329 + $0x140] sm:$0xff] %v410
                  %v412 = vld [vmem:[%s328 + $0x290] sm:$0xff]
                  %413 = vst [vmem:[%s329 + $0x148] sm:$0xff] %v412
                  %v414 = vld [vmem:[%s328 + $0x2a0] sm:$0xff]
                  %415 = vst [vmem:[%s329 + $0x150] sm:$0xff] %v414
                  %v416 = vld [vmem:[%s328 + $0x2b0] sm:$0xff]
                  %417 = vst [vmem:[%s329 + $0x158] sm:$0xff] %v416
                  %v418 = vld [vmem:[%s328 + $0x2c0] sm:$0xff]
                  %419 = vst [vmem:[%s329 + $0x160] sm:$0xff] %v418
                  %v420 = vld [vmem:[%s328 + $0x2d0] sm:$0xff]
                  %421 = vst [vmem:[%s329 + $0x168] sm:$0xff] %v420
                  %v422 = vld [vmem:[%s328 + $0x2e0] sm:$0xff]
                  %423 = vst [vmem:[%s329 + $0x170] sm:$0xff] %v422
                  %v424 = vld [vmem:[%s328 + $0x2f0] sm:$0xff]
                  %425 = vst [vmem:[%s329 + $0x178] sm:$0xff] %v424
                  %v426 = vld [vmem:[%s328 + $0x300] sm:$0xff]
                  %427 = vst [vmem:[%s329 + $0x180] sm:$0xff] %v426
                  %v428 = vld [vmem:[%s328 + $0x310] sm:$0xff]
                  %429 = vst [vmem:[%s329 + $0x188] sm:$0xff] %v428
                  %v430 = vld [vmem:[%s328 + $0x320] sm:$0xff]
                  %431 = vst [vmem:[%s329 + $0x190] sm:$0xff] %v430
                  %v432 = vld [vmem:[%s328 + $0x330] sm:$0xff]
                  %433 = vst [vmem:[%s329 + $0x198] sm:$0xff] %v432
                  %v434 = vld [vmem:[%s328 + $0x340] sm:$0xff]
                  %435 = vst [vmem:[%s329 + $0x1a0] sm:$0xff] %v434
                  %v436 = vld [vmem:[%s328 + $0x350] sm:$0xff]
                  %437 = vst [vmem:[%s329 + $0x1a8] sm:$0xff] %v436
                  %v438 = vld [vmem:[%s328 + $0x360] sm:$0xff]
                  %439 = vst [vmem:[%s329 + $0x1b0] sm:$0xff] %v438
                  %v440 = vld [vmem:[%s328 + $0x370] sm:$0xff]
                  %441 = vst [vmem:[%s329 + $0x1b8] sm:$0xff] %v440
                  %v442 = vld [vmem:[%s328 + $0x380] sm:$0xff]
                  %443 = vst [vmem:[%s329 + $0x1c0] sm:$0xff] %v442
                  %v444 = vld [vmem:[%s328 + $0x390] sm:$0xff]
                  %445 = vst [vmem:[%s329 + $0x1c8] sm:$0xff] %v444
                  %v446 = vld [vmem:[%s328 + $0x3a0] sm:$0xff]
                  %447 = vst [vmem:[%s329 + $0x1d0] sm:$0xff] %v446
                  %v448 = vld [vmem:[%s328 + $0x3b0] sm:$0xff]
                  %449 = vst [vmem:[%s329 + $0x1d8] sm:$0xff] %v448
                  %v450 = vld [vmem:[%s328 + $0x3c0] sm:$0xff]
                  %451 = vst [vmem:[%s329 + $0x1e0] sm:$0xff] %v450
                  %v452 = vld [vmem:[%s328 + $0x3d0] sm:$0xff]
                  %453 = vst [vmem:[%s329 + $0x1e8] sm:$0xff] %v452
                  %v454 = vld [vmem:[%s328 + $0x3e0] sm:$0xff]
                  %455 = vst [vmem:[%s329 + $0x1f0] sm:$0xff] %v454
                  %v456 = vld [vmem:[%s328 + $0x3f0] sm:$0xff]
                  %457 = vst [vmem:[%s329 + $0x1f8] sm:$0xff] %v456
                $region52: #{generator_forward.37} parent=46 // loop_footer
                  %s327 = sadd.s32 1, %s323
                $region53: #{generator_forward.37} parent=46 // loop_footer_branch
                  %322 = sbr.rel target = $region49
                $region54: #{generator_forward.37} parent=46 // loop_exit
                  _
              $region47: #{generator_forward.37} parent=31 // pred_fallthru
                _
              // Predicated region
              $region55: #{generator_forward.37} parent=31 // pred_check
                _
              $region56: #{generator_forward.37} parent=31 // pred_check_branch
                %459 = sbr.rel target = $region58
              $region57: #{generator_forward.37} parent=31 // pred_region
                _
              $region58: #{generator_forward.37} parent=31 // pred_fallthru
                _
            $region32: #{generator_forward.37} parent=27 // pred_fallthru
              _
            // Predicated region
            $region33: #{generator_forward.37} parent=27 // pred_check
              _
            $region34: #{generator_forward.37} parent=27 // pred_check_branch
              %181 = sbr.rel target = $region36
            $region35: #{generator_forward.37} parent=27 // pred_region
              %s183 = ssub.s32 256, 1
              loop: start=0, step=1, limit=1
              $region37: #{generator_forward.37} parent=35 // loop_pre_header
                _
              $region38: #{generator_forward.37} parent=35 // loop_header
                %s185 = sphi 0, %s189
                %p186 = scmp.ge.s32.totalorder %s185, 1
                %s190 = sphi %s175, %s175
                %s191 = sphi %s169, %s169
              $region39: #{generator_forward.37} parent=35 // loop_header_branch
                %188 = sbr.rel (%p186) target = $region43
              $region40: #{generator_forward.37} parent=35 // loop_body
                %v192 = vld [vmem:[%s190] sm:%s183]
                %193 = vst [vmem:[%s191] sm:%s183] %v192
                %v194 = vld [vmem:[%s190 + $0x10] sm:%s183]
                %195 = vst [vmem:[%s191 + $0x8] sm:%s183] %v194
                %v196 = vld [vmem:[%s190 + $0x20] sm:%s183]
                %197 = vst [vmem:[%s191 + $0x10] sm:%s183] %v196
                %v198 = vld [vmem:[%s190 + $0x30] sm:%s183]
                %199 = vst [vmem:[%s191 + $0x18] sm:%s183] %v198
                %v200 = vld [vmem:[%s190 + $0x40] sm:%s183]
                %201 = vst [vmem:[%s191 + $0x20] sm:%s183] %v200
                %v202 = vld [vmem:[%s190 + $0x50] sm:%s183]
                %203 = vst [vmem:[%s191 + $0x28] sm:%s183] %v202
                %v204 = vld [vmem:[%s190 + $0x60] sm:%s183]
                %205 = vst [vmem:[%s191 + $0x30] sm:%s183] %v204
                %v206 = vld [vmem:[%s190 + $0x70] sm:%s183]
                %207 = vst [vmem:[%s191 + $0x38] sm:%s183] %v206
                %v208 = vld [vmem:[%s190 + $0x80] sm:%s183]
                %209 = vst [vmem:[%s191 + $0x40] sm:%s183] %v208
                %v210 = vld [vmem:[%s190 + $0x90] sm:%s183]
                %211 = vst [vmem:[%s191 + $0x48] sm:%s183] %v210
                %v212 = vld [vmem:[%s190 + $0xa0] sm:%s183]
                %213 = vst [vmem:[%s191 + $0x50] sm:%s183] %v212
                %v214 = vld [vmem:[%s190 + $0xb0] sm:%s183]
                %215 = vst [vmem:[%s191 + $0x58] sm:%s183] %v214
                %v216 = vld [vmem:[%s190 + $0xc0] sm:%s183]
                %217 = vst [vmem:[%s191 + $0x60] sm:%s183] %v216
                %v218 = vld [vmem:[%s190 + $0xd0] sm:%s183]
                %219 = vst [vmem:[%s191 + $0x68] sm:%s183] %v218
                %v220 = vld [vmem:[%s190 + $0xe0] sm:%s183]
                %221 = vst [vmem:[%s191 + $0x70] sm:%s183] %v220
                %v222 = vld [vmem:[%s190 + $0xf0] sm:%s183]
                %223 = vst [vmem:[%s191 + $0x78] sm:%s183] %v222
                %v224 = vld [vmem:[%s190 + $0x100] sm:%s183]
                %225 = vst [vmem:[%s191 + $0x80] sm:%s183] %v224
                %v226 = vld [vmem:[%s190 + $0x110] sm:%s183]
                %227 = vst [vmem:[%s191 + $0x88] sm:%s183] %v226
                %v228 = vld [vmem:[%s190 + $0x120] sm:%s183]
                %229 = vst [vmem:[%s191 + $0x90] sm:%s183] %v228
                %v230 = vld [vmem:[%s190 + $0x130] sm:%s183]
                %231 = vst [vmem:[%s191 + $0x98] sm:%s183] %v230
                %v232 = vld [vmem:[%s190 + $0x140] sm:%s183]
                %233 = vst [vmem:[%s191 + $0xa0] sm:%s183] %v232
                %v234 = vld [vmem:[%s190 + $0x150] sm:%s183]
                %235 = vst [vmem:[%s191 + $0xa8] sm:%s183] %v234
                %v236 = vld [vmem:[%s190 + $0x160] sm:%s183]
                %237 = vst [vmem:[%s191 + $0xb0] sm:%s183] %v236
                %v238 = vld [vmem:[%s190 + $0x170] sm:%s183]
                %239 = vst [vmem:[%s191 + $0xb8] sm:%s183] %v238
                %v240 = vld [vmem:[%s190 + $0x180] sm:%s183]
                %241 = vst [vmem:[%s191 + $0xc0] sm:%s183] %v240
                %v242 = vld [vmem:[%s190 + $0x190] sm:%s183]
                %243 = vst [vmem:[%s191 + $0xc8] sm:%s183] %v242
                %v244 = vld [vmem:[%s190 + $0x1a0] sm:%s183]
                %245 = vst [vmem:[%s191 + $0xd0] sm:%s183] %v244
                %v246 = vld [vmem:[%s190 + $0x1b0] sm:%s183]
                %247 = vst [vmem:[%s191 + $0xd8] sm:%s183] %v246
                %v248 = vld [vmem:[%s190 + $0x1c0] sm:%s183]
                %249 = vst [vmem:[%s191 + $0xe0] sm:%s183] %v248
                %v250 = vld [vmem:[%s190 + $0x1d0] sm:%s183]
                %251 = vst [vmem:[%s191 + $0xe8] sm:%s183] %v250
                %v252 = vld [vmem:[%s190 + $0x1e0] sm:%s183]
                %253 = vst [vmem:[%s191 + $0xf0] sm:%s183] %v252
                %v254 = vld [vmem:[%s190 + $0x1f0] sm:%s183]
                %255 = vst [vmem:[%s191 + $0xf8] sm:%s183] %v254
                %v256 = vld [vmem:[%s190 + $0x200] sm:%s183]
                %257 = vst [vmem:[%s191 + $0x100] sm:%s183] %v256
                %v258 = vld [vmem:[%s190 + $0x210] sm:%s183]
                %259 = vst [vmem:[%s191 + $0x108] sm:%s183] %v258
                %v260 = vld [vmem:[%s190 + $0x220] sm:%s183]
                %261 = vst [vmem:[%s191 + $0x110] sm:%s183] %v260
                %v262 = vld [vmem:[%s190 + $0x230] sm:%s183]
                %263 = vst [vmem:[%s191 + $0x118] sm:%s183] %v262
                %v264 = vld [vmem:[%s190 + $0x240] sm:%s183]
                %265 = vst [vmem:[%s191 + $0x120] sm:%s183] %v264
                %v266 = vld [vmem:[%s190 + $0x250] sm:%s183]
                %267 = vst [vmem:[%s191 + $0x128] sm:%s183] %v266
                %v268 = vld [vmem:[%s190 + $0x260] sm:%s183]
                %269 = vst [vmem:[%s191 + $0x130] sm:%s183] %v268
                %v270 = vld [vmem:[%s190 + $0x270] sm:%s183]
                %271 = vst [vmem:[%s191 + $0x138] sm:%s183] %v270
                %v272 = vld [vmem:[%s190 + $0x280] sm:%s183]
                %273 = vst [vmem:[%s191 + $0x140] sm:%s183] %v272
                %v274 = vld [vmem:[%s190 + $0x290] sm:%s183]
                %275 = vst [vmem:[%s191 + $0x148] sm:%s183] %v274
                %v276 = vld [vmem:[%s190 + $0x2a0] sm:%s183]
                %277 = vst [vmem:[%s191 + $0x150] sm:%s183] %v276
                %v278 = vld [vmem:[%s190 + $0x2b0] sm:%s183]
                %279 = vst [vmem:[%s191 + $0x158] sm:%s183] %v278
                %v280 = vld [vmem:[%s190 + $0x2c0] sm:%s183]
                %281 = vst [vmem:[%s191 + $0x160] sm:%s183] %v280
                %v282 = vld [vmem:[%s190 + $0x2d0] sm:%s183]
                %283 = vst [vmem:[%s191 + $0x168] sm:%s183] %v282
                %v284 = vld [vmem:[%s190 + $0x2e0] sm:%s183]
                %285 = vst [vmem:[%s191 + $0x170] sm:%s183] %v284
                %v286 = vld [vmem:[%s190 + $0x2f0] sm:%s183]
                %287 = vst [vmem:[%s191 + $0x178] sm:%s183] %v286
                %v288 = vld [vmem:[%s190 + $0x300] sm:%s183]
                %289 = vst [vmem:[%s191 + $0x180] sm:%s183] %v288
                %v290 = vld [vmem:[%s190 + $0x310] sm:%s183]
                %291 = vst [vmem:[%s191 + $0x188] sm:%s183] %v290
                %v292 = vld [vmem:[%s190 + $0x320] sm:%s183]
                %293 = vst [vmem:[%s191 + $0x190] sm:%s183] %v292
                %v294 = vld [vmem:[%s190 + $0x330] sm:%s183]
                %295 = vst [vmem:[%s191 + $0x198] sm:%s183] %v294
                %v296 = vld [vmem:[%s190 + $0x340] sm:%s183]
                %297 = vst [vmem:[%s191 + $0x1a0] sm:%s183] %v296
                %v298 = vld [vmem:[%s190 + $0x350] sm:%s183]
                %299 = vst [vmem:[%s191 + $0x1a8] sm:%s183] %v298
                %v300 = vld [vmem:[%s190 + $0x360] sm:%s183]
                %301 = vst [vmem:[%s191 + $0x1b0] sm:%s183] %v300
                %v302 = vld [vmem:[%s190 + $0x370] sm:%s183]
                %303 = vst [vmem:[%s191 + $0x1b8] sm:%s183] %v302
                %v304 = vld [vmem:[%s190 + $0x380] sm:%s183]
                %305 = vst [vmem:[%s191 + $0x1c0] sm:%s183] %v304
                %v306 = vld [vmem:[%s190 + $0x390] sm:%s183]
                %307 = vst [vmem:[%s191 + $0x1c8] sm:%s183] %v306
                %v308 = vld [vmem:[%s190 + $0x3a0] sm:%s183]
                %309 = vst [vmem:[%s191 + $0x1d0] sm:%s183] %v308
                %v310 = vld [vmem:[%s190 + $0x3b0] sm:%s183]
                %311 = vst [vmem:[%s191 + $0x1d8] sm:%s183] %v310
                %v312 = vld [vmem:[%s190 + $0x3c0] sm:%s183]
                %313 = vst [vmem:[%s191 + $0x1e0] sm:%s183] %v312
                %v314 = vld [vmem:[%s190 + $0x3d0] sm:%s183]
                %315 = vst [vmem:[%s191 + $0x1e8] sm:%s183] %v314
                %v316 = vld [vmem:[%s190 + $0x3e0] sm:%s183]
                %317 = vst [vmem:[%s191 + $0x1f0] sm:%s183] %v316
                %v318 = vld [vmem:[%s190 + $0x3f0] sm:%s183]
                %319 = vst [vmem:[%s191 + $0x1f8] sm:%s183] %v318
              $region41: #{generator_forward.37} parent=35 // loop_footer
                %s189 = sadd.s32 1, %s185
              $region42: #{generator_forward.37} parent=35 // loop_footer_branch
                %184 = sbr.rel target = $region38
              $region43: #{generator_forward.37} parent=35 // loop_exit
                _
            $region36: #{generator_forward.37} parent=27 // pred_fallthru
              _
          $region28: #{generator_forward.37} parent=23 // pred_fallthru
            _
          %460 = vnop
        $region24: #{generator_forward.37} parent=19 // pred_fallthru
          _
        // Predicated region
        $region59: #{generator_forward.37} parent=19 // pred_check
          %p461 = pneg %p78
        $region60: #{generator_forward.37} parent=19 // pred_check_branch
          %463 = sbr.rel (%p461) target = $region62
        $region61: #{generator_forward.37} parent=19 // pred_region
          %s464 = smul.u32 32, %s18
          %p465 = scmp.lt.s32.totalorder %s464, 63
          %s466 = scalar_select %p465, %s464, 63
          %p467 = scmp.lt.s32.totalorder %s17, 0
          %s468 = scalar_select %p467, %s17, 0
          %s469 = sadd.s32 %s468, %s466
          %s470 = smul.addr %s469, 4
          %s471 = scalar_lea.vmem %s1, %s470
          %s472 = smul.u32 32, %s18
        $region62: #{generator_forward.37} parent=19 // pred_fallthru
          _
      $region20: #{generator_forward.37} parent=5 // pred_fallthru
        _
      %p473 = scmp.le.s32.totalorder 1, %s9
      %p474 = scmp.lt.s32.totalorder %s9, 3
      %p475 = pnand %p473, %p474
      %p476 = pneg %p475
      // Predicated region
      $region63: #{generator_forward.37} parent=5 // pred_check
        _
      $region64: #{generator_forward.37} parent=5 // pred_check_branch
        %478 = sbr.rel (%p475) target = $region66
      $region65: #{generator_forward.37} parent=5 // pred_region
        %s479 = ssub.s32 %s9, 1
        %s480 = sand.u32 %s43, 1
        %s481 = sand.u32 %s43, 1
        %s482 = smul.addr %s481, 512
        %s483 = scalar_lea.vmem [#allocation3], %s482
        // Predicated region
        $region67: #{generator_forward.37} parent=65 // pred_check
          %p484 = pneg %p56
        $region68: #{generator_forward.37} parent=65 // pred_check_branch
          %486 = sbr.rel (%p484) target = $region70
        $region69: #{generator_forward.37} parent=65 // pred_region
          _
        $region70: #{generator_forward.37} parent=65 // pred_fallthru
          _
        %s487 = sand.u32 %s43, 1
        %s488 = sand.u32 %s43, 1
        %s489 = smul.addr %s488, 512
        %s490 = scalar_lea.vmem [#allocation3], %s489
        %p491 = pneg %p56
        %p492 = pneg %p53
        %s493 = smul.u32 32, %s21
        %p494 = scmp.lt.s32.totalorder %s493, 63
        %s495 = scalar_select %p494, %s493, 63
        %p496 = scmp.lt.s32.totalorder %s20, 0
        %s497 = scalar_select %p496, %s20, 0
        %s498 = sadd.s32 %s497, %s495
        %s499 = smul.addr %s498, 4
        %s500 = scalar_lea.vmem %s1, %s499
        %p501 = pneg %p84
        %p502 = pneg %p81
        %p503 = scmp.lt.s32.totalorder %s20, 0
        %s504 = scalar_select %p503, %s20, 0
        %s505 = scalar_lea.vmem %s2, %s504
        %p506 = pneg %p110
        %p507 = pneg %p107
        %p508 = pneg %p138
        %p509 = pneg %p135
        %s510 = smul.u32 64, %s19
        %p511 = scmp.lt.s32.totalorder %s510, 63
        %s512 = scalar_select %p511, %s510, 63
        %p513 = scmp.lt.s32.totalorder %s20, 0
        %s514 = scalar_select %p513, %s20, 0
        %s515 = sadd.s32 %s514, %s512
        %s516 = smul.addr %s515, 4
        %s517 = scalar_lea.vmem %s3, %s516
        %s518 = smul.u32 64, %s19
        %s519 = smul.u32 2, %s21
        %s520 = smul.u32 32, %s21
        %p521 = scmp.lt.s32.totalorder %s520, 63
        %s522 = scalar_select %p521, %s520, 63
        %p523 = scmp.lt.s32.totalorder %s20, 0
        %s524 = scalar_select %p523, %s20, 0
        %s525 = sadd.s32 %s524, %s522
        %s526 = smul.addr %s525, 4
        %s527 = scalar_lea.vmem %s1, %s526
        %s528 = smul.u32 32, %s21
        %p529 = scmp.lt.s32.totalorder %s20, 0
        %s530 = scalar_select %p529, %s20, 0
        %s531 = scalar_lea.vmem %s2, %s530
        %s532 = smul.u32 64, %s19
        %p533 = scmp.lt.s32.totalorder %s532, 63
        %s534 = scalar_select %p533, %s532, 63
        %p535 = scmp.lt.s32.totalorder %s20, 0
        %s536 = scalar_select %p535, %s20, 0
        %s537 = sadd.s32 %s536, %s534
        %s538 = smul.addr %s537, 4
        %s539 = scalar_lea.vmem %s3, %s538
        %s540 = smul.u32 64, %s19
        %p541 = scmp.eq.s32.totalorder %s21, 0
        // Predicated region
        $region71: #{generator_forward.37} parent=65 // pred_check
          %p542 = pneg %p541
        $region72: #{generator_forward.37} parent=65 // pred_check_branch
          %544 = sbr.rel (%p542) target = $region74
        $region73: #{generator_forward.37} parent=65 // pred_region
          %545 = vst [vmem:[#allocation2] sm:$0xff] 0.0
          %546 = vst [vmem:[#allocation2 + $0x8] sm:$0xff] 0.0
          %547 = vst [vmem:[#allocation2 + $0x10] sm:$0xff] 0.0
          %548 = vst [vmem:[#allocation2 + $0x18] sm:$0xff] 0.0
          %549 = vst [vmem:[#allocation2 + $0x20] sm:$0xff] 0.0
          %550 = vst [vmem:[#allocation2 + $0x28] sm:$0xff] 0.0
          %551 = vst [vmem:[#allocation2 + $0x30] sm:$0xff] 0.0
          %552 = vst [vmem:[#allocation2 + $0x38] sm:$0xff] 0.0
          %553 = vst [vmem:[#allocation2 + $0x40] sm:$0xff] 0.0
          %554 = vst [vmem:[#allocation2 + $0x48] sm:$0xff] 0.0
          %555 = vst [vmem:[#allocation2 + $0x50] sm:$0xff] 0.0
          %556 = vst [vmem:[#allocation2 + $0x58] sm:$0xff] 0.0
          %557 = vst [vmem:[#allocation2 + $0x60] sm:$0xff] 0.0
          %558 = vst [vmem:[#allocation2 + $0x68] sm:$0xff] 0.0
          %559 = vst [vmem:[#allocation2 + $0x70] sm:$0xff] 0.0
          %560 = vst [vmem:[#allocation2 + $0x78] sm:$0xff] 0.0
          %561 = vst [vmem:[#allocation2 + $0x80] sm:$0xff] 0.0
          %562 = vst [vmem:[#allocation2 + $0x88] sm:$0xff] 0.0
          %563 = vst [vmem:[#allocation2 + $0x90] sm:$0xff] 0.0
          %564 = vst [vmem:[#allocation2 + $0x98] sm:$0xff] 0.0
          %565 = vst [vmem:[#allocation2 + $0xa0] sm:$0xff] 0.0
          %566 = vst [vmem:[#allocation2 + $0xa8] sm:$0xff] 0.0
          %567 = vst [vmem:[#allocation2 + $0xb0] sm:$0xff] 0.0
          %568 = vst [vmem:[#allocation2 + $0xb8] sm:$0xff] 0.0
          %569 = vst [vmem:[#allocation2 + $0xc0] sm:$0xff] 0.0
          %570 = vst [vmem:[#allocation2 + $0xc8] sm:$0xff] 0.0
          %571 = vst [vmem:[#allocation2 + $0xd0] sm:$0xff] 0.0
          %572 = vst [vmem:[#allocation2 + $0xd8] sm:$0xff] 0.0
          %573 = vst [vmem:[#allocation2 + $0xe0] sm:$0xff] 0.0
          %574 = vst [vmem:[#allocation2 + $0xe8] sm:$0xff] 0.0
          %575 = vst [vmem:[#allocation2 + $0xf0] sm:$0xff] 0.0
          %576 = vst [vmem:[#allocation2 + $0xf8] sm:$0xff] 0.0
          %577 = vst [vmem:[#allocation2 + $0x100] sm:$0xff] 0.0
          %578 = vst [vmem:[#allocation2 + $0x108] sm:$0xff] 0.0
          %579 = vst [vmem:[#allocation2 + $0x110] sm:$0xff] 0.0
          %580 = vst [vmem:[#allocation2 + $0x118] sm:$0xff] 0.0
          %581 = vst [vmem:[#allocation2 + $0x120] sm:$0xff] 0.0
          %582 = vst [vmem:[#allocation2 + $0x128] sm:$0xff] 0.0
          %583 = vst [vmem:[#allocation2 + $0x130] sm:$0xff] 0.0
          %584 = vst [vmem:[#allocation2 + $0x138] sm:$0xff] 0.0
          %585 = vst [vmem:[#allocation2 + $0x140] sm:$0xff] 0.0
          %586 = vst [vmem:[#allocation2 + $0x148] sm:$0xff] 0.0
          %587 = vst [vmem:[#allocation2 + $0x150] sm:$0xff] 0.0
          %588 = vst [vmem:[#allocation2 + $0x158] sm:$0xff] 0.0
          %589 = vst [vmem:[#allocation2 + $0x160] sm:$0xff] 0.0
          %590 = vst [vmem:[#allocation2 + $0x168] sm:$0xff] 0.0
          %591 = vst [vmem:[#allocation2 + $0x170] sm:$0xff] 0.0
          %592 = vst [vmem:[#allocation2 + $0x178] sm:$0xff] 0.0
          %593 = vst [vmem:[#allocation2 + $0x180] sm:$0xff] 0.0
          %594 = vst [vmem:[#allocation2 + $0x188] sm:$0xff] 0.0
          %595 = vst [vmem:[#allocation2 + $0x190] sm:$0xff] 0.0
          %596 = vst [vmem:[#allocation2 + $0x198] sm:$0xff] 0.0
          %597 = vst [vmem:[#allocation2 + $0x1a0] sm:$0xff] 0.0
          %598 = vst [vmem:[#allocation2 + $0x1a8] sm:$0xff] 0.0
          %599 = vst [vmem:[#allocation2 + $0x1b0] sm:$0xff] 0.0
          %600 = vst [vmem:[#allocation2 + $0x1b8] sm:$0xff] 0.0
          %601 = vst [vmem:[#allocation2 + $0x1c0] sm:$0xff] 0.0
          %602 = vst [vmem:[#allocation2 + $0x1c8] sm:$0xff] 0.0
          %603 = vst [vmem:[#allocation2 + $0x1d0] sm:$0xff] 0.0
          %604 = vst [vmem:[#allocation2 + $0x1d8] sm:$0xff] 0.0
          %605 = vst [vmem:[#allocation2 + $0x1e0] sm:$0xff] 0.0
          %606 = vst [vmem:[#allocation2 + $0x1e8] sm:$0xff] 0.0
          %607 = vst [vmem:[#allocation2 + $0x1f0] sm:$0xff] 0.0
          %608 = vst [vmem:[#allocation2 + $0x1f8] sm:$0xff] 0.0
        $region74: #{generator_forward.37} parent=65 // pred_fallthru
          _
        %v609 = vld [vmem:[#allocation2] sm:$0xff]
        %v610 = vld [vmem:[#allocation2 + $0x8] sm:$0xff]
        %v611 = vld [vmem:[#allocation2 + $0x10] sm:$0xff]
        %v612 = vld [vmem:[#allocation2 + $0x18] sm:$0xff]
        %v613 = vld [vmem:[#allocation2 + $0x20] sm:$0xff]
        %v614 = vld [vmem:[#allocation2 + $0x28] sm:$0xff]
        %v615 = vld [vmem:[#allocation2 + $0x30] sm:$0xff]
        %v616 = vld [vmem:[#allocation2 + $0x38] sm:$0xff]
        %v617 = vld [vmem:[#allocation2 + $0x40] sm:$0xff]
        %v618 = vld [vmem:[#allocation2 + $0x48] sm:$0xff]
        %v619 = vld [vmem:[#allocation2 + $0x50] sm:$0xff]
        %v620 = vld [vmem:[#allocation2 + $0x58] sm:$0xff]
        %v621 = vld [vmem:[#allocation2 + $0x60] sm:$0xff]
        %v622 = vld [vmem:[#allocation2 + $0x68] sm:$0xff]
        %v623 = vld [vmem:[#allocation2 + $0x70] sm:$0xff]
        %v624 = vld [vmem:[#allocation2 + $0x78] sm:$0xff]
        %v625 = vld [vmem:[#allocation2 + $0x80] sm:$0xff]
        %v626 = vld [vmem:[#allocation2 + $0x88] sm:$0xff]
        %v627 = vld [vmem:[#allocation2 + $0x90] sm:$0xff]
        %v628 = vld [vmem:[#allocation2 + $0x98] sm:$0xff]
        %v629 = vld [vmem:[#allocation2 + $0xa0] sm:$0xff]
        %v630 = vld [vmem:[#allocation2 + $0xa8] sm:$0xff]
        %v631 = vld [vmem:[#allocation2 + $0xb0] sm:$0xff]
        %v632 = vld [vmem:[#allocation2 + $0xb8] sm:$0xff]
        %v633 = vld [vmem:[#allocation2 + $0xc0] sm:$0xff]
        %v634 = vld [vmem:[#allocation2 + $0xc8] sm:$0xff]
        %v635 = vld [vmem:[#allocation2 + $0xd0] sm:$0xff]
        %v636 = vld [vmem:[#allocation2 + $0xd8] sm:$0xff]
        %v637 = vld [vmem:[#allocation2 + $0xe0] sm:$0xff]
        %v638 = vld [vmem:[#allocation2 + $0xe8] sm:$0xff]
        %v639 = vld [vmem:[#allocation2 + $0xf0] sm:$0xff]
        %v640 = vld [vmem:[#allocation2 + $0xf8] sm:$0xff]
        %v641 = vld [vmem:[#allocation2 + $0x100] sm:$0xff]
        %v642 = vld [vmem:[#allocation2 + $0x108] sm:$0xff]
        %v643 = vld [vmem:[#allocation2 + $0x110] sm:$0xff]
        %v644 = vld [vmem:[#allocation2 + $0x118] sm:$0xff]
        %v645 = vld [vmem:[#allocation2 + $0x120] sm:$0xff]
        %v646 = vld [vmem:[#allocation2 + $0x128] sm:$0xff]
        %v647 = vld [vmem:[#allocation2 + $0x130] sm:$0xff]
        %v648 = vld [vmem:[#allocation2 + $0x138] sm:$0xff]
        %v649 = vld [vmem:[#allocation2 + $0x140] sm:$0xff]
        %v650 = vld [vmem:[#allocation2 + $0x148] sm:$0xff]
        %v651 = vld [vmem:[#allocation2 + $0x150] sm:$0xff]
        %v652 = vld [vmem:[#allocation2 + $0x158] sm:$0xff]
        %v653 = vld [vmem:[#allocation2 + $0x160] sm:$0xff]
        %v654 = vld [vmem:[#allocation2 + $0x168] sm:$0xff]
        %v655 = vld [vmem:[#allocation2 + $0x170] sm:$0xff]
        %v656 = vld [vmem:[#allocation2 + $0x178] sm:$0xff]
        %v657 = vld [vmem:[#allocation2 + $0x180] sm:$0xff]
        %v658 = vld [vmem:[#allocation2 + $0x188] sm:$0xff]
        %v659 = vld [vmem:[#allocation2 + $0x190] sm:$0xff]
        %v660 = vld [vmem:[#allocation2 + $0x198] sm:$0xff]
        %v661 = vld [vmem:[#allocation2 + $0x1a0] sm:$0xff]
        %v662 = vld [vmem:[#allocation2 + $0x1a8] sm:$0xff]
        %v663 = vld [vmem:[#allocation2 + $0x1b0] sm:$0xff]
        %v664 = vld [vmem:[#allocation2 + $0x1b8] sm:$0xff]
        %v665 = vld [vmem:[#allocation2 + $0x1c0] sm:$0xff]
        %v666 = vld [vmem:[#allocation2 + $0x1c8] sm:$0xff]
        %v667 = vld [vmem:[#allocation2 + $0x1d0] sm:$0xff]
        %v668 = vld [vmem:[#allocation2 + $0x1d8] sm:$0xff]
        %v669 = vld [vmem:[#allocation2 + $0x1e0] sm:$0xff]
        %v670 = vld [vmem:[#allocation2 + $0x1e8] sm:$0xff]
        %v671 = vld [vmem:[#allocation2 + $0x1f0] sm:$0xff]
        %v672 = vld [vmem:[#allocation2 + $0x1f8] sm:$0xff]
        %v673 = vld [vmem:[%s483] sm:$0xff]
        %v674 = vld [vmem:[%s483 + $0x8] sm:$0xff]
        %v675 = vld [vmem:[%s483 + $0x10] sm:$0xff]
        %v676 = vld [vmem:[%s483 + $0x18] sm:$0xff]
        %v677 = vld [vmem:[%s483 + $0x20] sm:$0xff]
        %v678 = vld [vmem:[%s483 + $0x28] sm:$0xff]
        %v679 = vld [vmem:[%s483 + $0x30] sm:$0xff]
        %v680 = vld [vmem:[%s483 + $0x38] sm:$0xff]
        %v681 = vld [vmem:[%s483 + $0x40] sm:$0xff]
        %v682 = vld [vmem:[%s483 + $0x48] sm:$0xff]
        %v683 = vld [vmem:[%s483 + $0x50] sm:$0xff]
        %v684 = vld [vmem:[%s483 + $0x58] sm:$0xff]
        %v685 = vld [vmem:[%s483 + $0x60] sm:$0xff]
        %v686 = vld [vmem:[%s483 + $0x68] sm:$0xff]
        %v687 = vld [vmem:[%s483 + $0x70] sm:$0xff]
        %v688 = vld [vmem:[%s483 + $0x78] sm:$0xff]
        %v689 = vld [vmem:[%s483 + $0x80] sm:$0xff]
        %v690 = vld [vmem:[%s483 + $0x88] sm:$0xff]
        %v691 = vld [vmem:[%s483 + $0x90] sm:$0xff]
        %v692 = vld [vmem:[%s483 + $0x98] sm:$0xff]
        %v693 = vld [vmem:[%s483 + $0xa0] sm:$0xff]
        %v694 = vld [vmem:[%s483 + $0xa8] sm:$0xff]
        %v695 = vld [vmem:[%s483 + $0xb0] sm:$0xff]
        %v696 = vld [vmem:[%s483 + $0xb8] sm:$0xff]
        %v697 = vld [vmem:[%s483 + $0xc0] sm:$0xff]
        %v698 = vld [vmem:[%s483 + $0xc8] sm:$0xff]
        %v699 = vld [vmem:[%s483 + $0xd0] sm:$0xff]
        %v700 = vld [vmem:[%s483 + $0xd8] sm:$0xff]
        %v701 = vld [vmem:[%s483 + $0xe0] sm:$0xff]
        %v702 = vld [vmem:[%s483 + $0xe8] sm:$0xff]
        %v703 = vld [vmem:[%s483 + $0xf0] sm:$0xff]
        %v704 = vld [vmem:[%s483 + $0xf8] sm:$0xff]
        %v705 = vld [vmem:[%s483 + $0x100] sm:$0xff]
        %v706 = vld [vmem:[%s483 + $0x108] sm:$0xff]
        %v707 = vld [vmem:[%s483 + $0x110] sm:$0xff]
        %v708 = vld [vmem:[%s483 + $0x118] sm:$0xff]
        %v709 = vld [vmem:[%s483 + $0x120] sm:$0xff]
        %v710 = vld [vmem:[%s483 + $0x128] sm:$0xff]
        %v711 = vld [vmem:[%s483 + $0x130] sm:$0xff]
        %v712 = vld [vmem:[%s483 + $0x138] sm:$0xff]
        %v713 = vld [vmem:[%s483 + $0x140] sm:$0xff]
        %v714 = vld [vmem:[%s483 + $0x148] sm:$0xff]
        %v715 = vld [vmem:[%s483 + $0x150] sm:$0xff]
        %v716 = vld [vmem:[%s483 + $0x158] sm:$0xff]
        %v717 = vld [vmem:[%s483 + $0x160] sm:$0xff]
        %v718 = vld [vmem:[%s483 + $0x168] sm:$0xff]
        %v719 = vld [vmem:[%s483 + $0x170] sm:$0xff]
        %v720 = vld [vmem:[%s483 + $0x178] sm:$0xff]
        %v721 = vld [vmem:[%s483 + $0x180] sm:$0xff]
        %v722 = vld [vmem:[%s483 + $0x188] sm:$0xff]
        %v723 = vld [vmem:[%s483 + $0x190] sm:$0xff]
        %v724 = vld [vmem:[%s483 + $0x198] sm:$0xff]
        %v725 = vld [vmem:[%s483 + $0x1a0] sm:$0xff]
        %v726 = vld [vmem:[%s483 + $0x1a8] sm:$0xff]
        %v727 = vld [vmem:[%s483 + $0x1b0] sm:$0xff]
        %v728 = vld [vmem:[%s483 + $0x1b8] sm:$0xff]
        %v729 = vld [vmem:[%s483 + $0x1c0] sm:$0xff]
        %v730 = vld [vmem:[%s483 + $0x1c8] sm:$0xff]
        %v731 = vld [vmem:[%s483 + $0x1d0] sm:$0xff]
        %v732 = vld [vmem:[%s483 + $0x1d8] sm:$0xff]
        %v733 = vld [vmem:[%s483 + $0x1e0] sm:$0xff]
        %v734 = vld [vmem:[%s483 + $0x1e8] sm:$0xff]
        %v735 = vld [vmem:[%s483 + $0x1f0] sm:$0xff]
        %v736 = vld [vmem:[%s483 + $0x1f8] sm:$0xff]
        %v737 = vld [vmem:[%s527] sm:$0xf]
        %v738 = vld [vmem:[%s527 + $0x4] sm:$0xf]
        %v739 = vld [vmem:[%s527 + $0x8] sm:$0xf]
        %v740 = vld [vmem:[%s527 + $0xc] sm:$0xf]
        %v741 = vld [vmem:[%s527 + $0x10] sm:$0xf]
        %v742 = vld [vmem:[%s527 + $0x14] sm:$0xf]
        %v743 = vld [vmem:[%s527 + $0x18] sm:$0xf]
        %v744 = vld [vmem:[%s527 + $0x1c] sm:$0xf]
        %v745 = vld [vmem:[%s527 + $0x20] sm:$0xf]
        %v746 = vld [vmem:[%s527 + $0x24] sm:$0xf]
        %v747 = vld [vmem:[%s527 + $0x28] sm:$0xf]
        %v748 = vld [vmem:[%s527 + $0x2c] sm:$0xf]
        %v749 = vld [vmem:[%s527 + $0x30] sm:$0xf]
        %v750 = vld [vmem:[%s527 + $0x34] sm:$0xf]
        %v751 = vld [vmem:[%s527 + $0x38] sm:$0xf]
        %v752 = vld [vmem:[%s527 + $0x3c] sm:$0xf]
        %v753 = vld [vmem:[%s527 + $0x40] sm:$0xf]
        %v754 = vld [vmem:[%s527 + $0x44] sm:$0xf]
        %v755 = vld [vmem:[%s527 + $0x48] sm:$0xf]
        %v756 = vld [vmem:[%s527 + $0x4c] sm:$0xf]
        %v757 = vld [vmem:[%s527 + $0x50] sm:$0xf]
        %v758 = vld [vmem:[%s527 + $0x54] sm:$0xf]
        %v759 = vld [vmem:[%s527 + $0x58] sm:$0xf]
        %v760 = vld [vmem:[%s527 + $0x5c] sm:$0xf]
        %v761 = vld [vmem:[%s527 + $0x60] sm:$0xf]
        %v762 = vld [vmem:[%s527 + $0x64] sm:$0xf]
        %v763 = vld [vmem:[%s527 + $0x68] sm:$0xf]
        %v764 = vld [vmem:[%s527 + $0x6c] sm:$0xf]
        %v765 = vld [vmem:[%s527 + $0x70] sm:$0xf]
        %v766 = vld [vmem:[%s527 + $0x74] sm:$0xf]
        %v767 = vld [vmem:[%s527 + $0x78] sm:$0xf]
        %v768 = vld [vmem:[%s527 + $0x7c] sm:$0xf]
        %v833 = vunpack.c.l.b16 %v673
        %v834 = vunpack.c.h.b16 %v673
        %v835 = vunpack.c.l.b16 %v674
        %v836 = vunpack.c.h.b16 %v674
        %v837 = vunpack.c.l.b16 %v675
        %v838 = vunpack.c.h.b16 %v675
        %v839 = vunpack.c.l.b16 %v676
        %v840 = vunpack.c.h.b16 %v676
        %v841 = vunpack.c.l.b16 %v677
        %v842 = vunpack.c.h.b16 %v677
        %v843 = vunpack.c.l.b16 %v678
        %v844 = vunpack.c.h.b16 %v678
        %v845 = vunpack.c.l.b16 %v679
        %v846 = vunpack.c.h.b16 %v679
        %v847 = vunpack.c.l.b16 %v680
        %v848 = vunpack.c.h.b16 %v680
        %v849 = vunpack.c.l.b16 %v681
        %v850 = vunpack.c.h.b16 %v681
        %v851 = vunpack.c.l.b16 %v682
        %v852 = vunpack.c.h.b16 %v682
        %v853 = vunpack.c.l.b16 %v683
        %v854 = vunpack.c.h.b16 %v683
        %v855 = vunpack.c.l.b16 %v684
        %v856 = vunpack.c.h.b16 %v684
        %v857 = vunpack.c.l.b16 %v685
        %v858 = vunpack.c.h.b16 %v685
        %v859 = vunpack.c.l.b16 %v686
        %v860 = vunpack.c.h.b16 %v686
        %v861 = vunpack.c.l.b16 %v687
        %v862 = vunpack.c.h.b16 %v687
        %v863 = vunpack.c.l.b16 %v688
        %v864 = vunpack.c.h.b16 %v688
        %v865 = vunpack.c.l.b16 %v689
        %v866 = vunpack.c.h.b16 %v689
        %v867 = vunpack.c.l.b16 %v690
        %v868 = vunpack.c.h.b16 %v690
        %v869 = vunpack.c.l.b16 %v691
        %v870 = vunpack.c.h.b16 %v691
        %v871 = vunpack.c.l.b16 %v692
        %v872 = vunpack.c.h.b16 %v692
        %v873 = vunpack.c.l.b16 %v693
        %v874 = vunpack.c.h.b16 %v693
        %v875 = vunpack.c.l.b16 %v694
        %v876 = vunpack.c.h.b16 %v694
        %v877 = vunpack.c.l.b16 %v695
        %v878 = vunpack.c.h.b16 %v695
        %v879 = vunpack.c.l.b16 %v696
        %v880 = vunpack.c.h.b16 %v696
        %v881 = vunpack.c.l.b16 %v697
        %v882 = vunpack.c.h.b16 %v697
        %v883 = vunpack.c.l.b16 %v698
        %v884 = vunpack.c.h.b16 %v698
        %v885 = vunpack.c.l.b16 %v699
        %v886 = vunpack.c.h.b16 %v699
        %v887 = vunpack.c.l.b16 %v700
        %v888 = vunpack.c.h.b16 %v700
        %v889 = vunpack.c.l.b16 %v701
        %v890 = vunpack.c.h.b16 %v701
        %v891 = vunpack.c.l.b16 %v702
        %v892 = vunpack.c.h.b16 %v702
        %v893 = vunpack.c.l.b16 %v703
        %v894 = vunpack.c.h.b16 %v703
        %v895 = vunpack.c.l.b16 %v704
        %v896 = vunpack.c.h.b16 %v704
        %v897 = vunpack.c.l.b16 %v705
        %v898 = vunpack.c.h.b16 %v705
        %v899 = vunpack.c.l.b16 %v706
        %v900 = vunpack.c.h.b16 %v706
        %v901 = vunpack.c.l.b16 %v707
        %v902 = vunpack.c.h.b16 %v707
        %v903 = vunpack.c.l.b16 %v708
        %v904 = vunpack.c.h.b16 %v708
        %v905 = vunpack.c.l.b16 %v709
        %v906 = vunpack.c.h.b16 %v709
        %v907 = vunpack.c.l.b16 %v710
        %v908 = vunpack.c.h.b16 %v710
        %v909 = vunpack.c.l.b16 %v711
        %v910 = vunpack.c.h.b16 %v711
        %v911 = vunpack.c.l.b16 %v712
        %v912 = vunpack.c.h.b16 %v712
        %v913 = vunpack.c.l.b16 %v713
        %v914 = vunpack.c.h.b16 %v713
        %v915 = vunpack.c.l.b16 %v714
        %v916 = vunpack.c.h.b16 %v714
        %v917 = vunpack.c.l.b16 %v715
        %v918 = vunpack.c.h.b16 %v715
        %v919 = vunpack.c.l.b16 %v716
        %v920 = vunpack.c.h.b16 %v716
        %v921 = vunpack.c.l.b16 %v717
        %v922 = vunpack.c.h.b16 %v717
        %v923 = vunpack.c.l.b16 %v718
        %v924 = vunpack.c.h.b16 %v718
        %v925 = vunpack.c.l.b16 %v719
        %v926 = vunpack.c.h.b16 %v719
        %v927 = vunpack.c.l.b16 %v720
        %v928 = vunpack.c.h.b16 %v720
        %v929 = vunpack.c.l.b16 %v721
        %v930 = vunpack.c.h.b16 %v721
        %v931 = vunpack.c.l.b16 %v722
        %v932 = vunpack.c.h.b16 %v722
        %v933 = vunpack.c.l.b16 %v723
        %v934 = vunpack.c.h.b16 %v723
        %v935 = vunpack.c.l.b16 %v724
        %v936 = vunpack.c.h.b16 %v724
        %v937 = vunpack.c.l.b16 %v725
        %v938 = vunpack.c.h.b16 %v725
        %v939 = vunpack.c.l.b16 %v726
        %v940 = vunpack.c.h.b16 %v726
        %v941 = vunpack.c.l.b16 %v727
        %v942 = vunpack.c.h.b16 %v727
        %v943 = vunpack.c.l.b16 %v728
        %v944 = vunpack.c.h.b16 %v728
        %v945 = vunpack.c.l.b16 %v729
        %v946 = vunpack.c.h.b16 %v729
        %v947 = vunpack.c.l.b16 %v730
        %v948 = vunpack.c.h.b16 %v730
        %v949 = vunpack.c.l.b16 %v731
        %v950 = vunpack.c.h.b16 %v731
        %v951 = vunpack.c.l.b16 %v732
        %v952 = vunpack.c.h.b16 %v732
        %v953 = vunpack.c.l.b16 %v733
        %v954 = vunpack.c.h.b16 %v733
        %v955 = vunpack.c.l.b16 %v734
        %v956 = vunpack.c.h.b16 %v734
        %v957 = vunpack.c.l.b16 %v735
        %v958 = vunpack.c.h.b16 %v735
        %v959 = vunpack.c.l.b16 %v736
        %v960 = vunpack.c.h.b16 %v736
        %v961 = vpack.c.b16 %v835, %v833
        %v962 = vpack.c.b16 %v836, %v834
        %v963 = vpack.c.b16 %v839, %v837
        %v964 = vpack.c.b16 %v840, %v838
        %v965 = vpack.c.b16 %v843, %v841
        %v966 = vpack.c.b16 %v844, %v842
        %v967 = vpack.c.b16 %v847, %v845
        %v968 = vpack.c.b16 %v848, %v846
        %v969 = vpack.c.b16 %v851, %v849
        %v970 = vpack.c.b16 %v852, %v850
        %v971 = vpack.c.b16 %v855, %v853
        %v972 = vpack.c.b16 %v856, %v854
        %v973 = vpack.c.b16 %v859, %v857
        %v974 = vpack.c.b16 %v860, %v858
        %v975 = vpack.c.b16 %v863, %v861
        %v976 = vpack.c.b16 %v864, %v862
        %v977 = vpack.c.b16 %v867, %v865
        %v978 = vpack.c.b16 %v868, %v866
        %v979 = vpack.c.b16 %v871, %v869
        %v980 = vpack.c.b16 %v872, %v870
        %v981 = vpack.c.b16 %v875, %v873
        %v982 = vpack.c.b16 %v876, %v874
        %v983 = vpack.c.b16 %v879, %v877
        %v984 = vpack.c.b16 %v880, %v878
        %v985 = vpack.c.b16 %v883, %v881
        %v986 = vpack.c.b16 %v884, %v882
        %v987 = vpack.c.b16 %v887, %v885
        %v988 = vpack.c.b16 %v888, %v886
        %v989 = vpack.c.b16 %v891, %v889
        %v990 = vpack.c.b16 %v892, %v890
        %v991 = vpack.c.b16 %v895, %v893
        %v992 = vpack.c.b16 %v896, %v894
        %v993 = vpack.c.b16 %v899, %v897
        %v994 = vpack.c.b16 %v900, %v898
        %v995 = vpack.c.b16 %v903, %v901
        %v996 = vpack.c.b16 %v904, %v902
        %v997 = vpack.c.b16 %v907, %v905
        %v998 = vpack.c.b16 %v908, %v906
        %v999 = vpack.c.b16 %v911, %v909
        %v1000 = vpack.c.b16 %v912, %v910
        %v1001 = vpack.c.b16 %v915, %v913
        %v1002 = vpack.c.b16 %v916, %v914
        %v1003 = vpack.c.b16 %v919, %v917
        %v1004 = vpack.c.b16 %v920, %v918
        %v1005 = vpack.c.b16 %v923, %v921
        %v1006 = vpack.c.b16 %v924, %v922
        %v1007 = vpack.c.b16 %v927, %v925
        %v1008 = vpack.c.b16 %v928, %v926
        %v1009 = vpack.c.b16 %v931, %v929
        %v1010 = vpack.c.b16 %v932, %v930
        %v1011 = vpack.c.b16 %v935, %v933
        %v1012 = vpack.c.b16 %v936, %v934
        %v1013 = vpack.c.b16 %v939, %v937
        %v1014 = vpack.c.b16 %v940, %v938
        %v1015 = vpack.c.b16 %v943, %v941
        %v1016 = vpack.c.b16 %v944, %v942
        %v1017 = vpack.c.b16 %v947, %v945
        %v1018 = vpack.c.b16 %v948, %v946
        %v1019 = vpack.c.b16 %v951, %v949
        %v1020 = vpack.c.b16 %v952, %v950
        %v1021 = vpack.c.b16 %v955, %v953
        %v1022 = vpack.c.b16 %v956, %v954
        %v1023 = vpack.c.b16 %v959, %v957
        %v1024 = vpack.c.b16 %v960, %v958
        %v1121 = vunpack.c.l.b16 %v737
        %v1122 = vunpack.c.l.b16 %v738
        %v1123 = vunpack.c.l.b16 %v739
        %v1124 = vunpack.c.l.b16 %v740
        %v1125 = vunpack.c.l.b16 %v741
        %v1126 = vunpack.c.l.b16 %v742
        %v1127 = vunpack.c.l.b16 %v743
        %v1128 = vunpack.c.l.b16 %v744
        %v1129 = vunpack.c.l.b16 %v745
        %v1130 = vunpack.c.l.b16 %v746
        %v1131 = vunpack.c.l.b16 %v747
        %v1132 = vunpack.c.l.b16 %v748
        %v1133 = vunpack.c.l.b16 %v749
        %v1134 = vunpack.c.l.b16 %v750
        %v1135 = vunpack.c.l.b16 %v751
        %v1136 = vunpack.c.l.b16 %v752
        %v1137 = vunpack.c.l.b16 %v753
        %v1138 = vunpack.c.l.b16 %v754
        %v1139 = vunpack.c.l.b16 %v755
        %v1140 = vunpack.c.l.b16 %v756
        %v1141 = vunpack.c.l.b16 %v757
        %v1142 = vunpack.c.l.b16 %v758
        %v1143 = vunpack.c.l.b16 %v759
        %v1144 = vunpack.c.l.b16 %v760
        %v1145 = vunpack.c.l.b16 %v761
        %v1146 = vunpack.c.l.b16 %v762
        %v1147 = vunpack.c.l.b16 %v763
        %v1148 = vunpack.c.l.b16 %v764
        %v1149 = vunpack.c.l.b16 %v765
        %v1150 = vunpack.c.l.b16 %v766
        %v1151 = vunpack.c.l.b16 %v767
        %v1152 = vunpack.c.l.b16 %v768
        %v1153 = vpack.c.b16 %v1122, %v1121
        %v1154 = vpack.c.b16 %v1124, %v1123
        %v1155 = vpack.c.b16 %v1126, %v1125
        %v1156 = vpack.c.b16 %v1128, %v1127
        %v1157 = vpack.c.b16 %v1130, %v1129
        %v1158 = vpack.c.b16 %v1132, %v1131
        %v1159 = vpack.c.b16 %v1134, %v1133
        %v1160 = vpack.c.b16 %v1136, %v1135
        %v1161 = vpack.c.b16 %v1138, %v1137
        %v1162 = vpack.c.b16 %v1140, %v1139
        %v1163 = vpack.c.b16 %v1142, %v1141
        %v1164 = vpack.c.b16 %v1144, %v1143
        %v1165 = vpack.c.b16 %v1146, %v1145
        %v1166 = vpack.c.b16 %v1148, %v1147
        %v1167 = vpack.c.b16 %v1150, %v1149
        %v1168 = vpack.c.b16 %v1152, %v1151
        %1185 = vmatpush.bf16.msra.mxu0 %v1160
        %1186 = vmatpush.bf16.msra.mxu0 %v1159
        %1187 = vmatpush.bf16.msra.mxu0 %v1158
        %1188 = vmatpush.bf16.msra.mxu0 %v1157
        %1189 = vmatpush.bf16.msra.mxu0 %v1156
        %1190 = vmatpush.bf16.msra.mxu0 %v1155
        %1191 = vmatpush.bf16.msra.mxu0 %v1154
        %1192 = vmatpush.bf16.msra.mxu0 %v1153
        %1193 = vmatmul.bf16.gmra.mxu0 %v961
        %v1194 = vpop.f32.mrf.mxu0
        %v1195 = vadd.f32 0.0, %v1194
        %v1196 = vpop.f32.mrf.mxu0
        %v1197 = vadd.f32 0.0, %v1196
        %1198 = vmatmul.bf16.gmra.mxu0 %v963
        %v1199 = vpop.f32.mrf.mxu0
        %v1200 = vadd.f32 0.0, %v1199
        %v1201 = vpop.f32.mrf.mxu0
        %v1202 = vadd.f32 0.0, %v1201
        %1203 = vmatmul.bf16.gmra.mxu0 %v965
        %v1204 = vpop.f32.mrf.mxu0
        %v1205 = vadd.f32 0.0, %v1204
        %v1206 = vpop.f32.mrf.mxu0
        %v1207 = vadd.f32 0.0, %v1206
        %1208 = vmatmul.bf16.gmra.mxu0 %v967
        %v1209 = vpop.f32.mrf.mxu0
        %v1210 = vadd.f32 0.0, %v1209
        %v1211 = vpop.f32.mrf.mxu0
        %v1212 = vadd.f32 0.0, %v1211
        %1213 = vmatmul.bf16.gmra.mxu0 %v969
        %v1214 = vpop.f32.mrf.mxu0
        %v1215 = vadd.f32 0.0, %v1214
        %v1216 = vpop.f32.mrf.mxu0
        %v1217 = vadd.f32 0.0, %v1216
        %1218 = vmatmul.bf16.gmra.mxu0 %v971
        %v1219 = vpop.f32.mrf.mxu0
        %v1220 = vadd.f32 0.0, %v1219
        %v1221 = vpop.f32.mrf.mxu0
        %v1222 = vadd.f32 0.0, %v1221
        %1223 = vmatmul.bf16.gmra.mxu0 %v973
        %v1224 = vpop.f32.mrf.mxu0
        %v1225 = vadd.f32 0.0, %v1224
        %v1226 = vpop.f32.mrf.mxu0
        %v1227 = vadd.f32 0.0, %v1226
        %1228 = vmatmul.bf16.gmra.mxu0 %v975
        %v1229 = vpop.f32.mrf.mxu0
        %v1230 = vadd.f32 0.0, %v1229
        %v1231 = vpop.f32.mrf.mxu0
        %v1232 = vadd.f32 0.0, %v1231
        %1233 = vmatmul.bf16.gmra.mxu0 %v977
        %v1234 = vpop.f32.mrf.mxu0
        %v1235 = vadd.f32 0.0, %v1234
        %v1236 = vpop.f32.mrf.mxu0
        %v1237 = vadd.f32 0.0, %v1236
        %1238 = vmatmul.bf16.gmra.mxu0 %v979
        %v1239 = vpop.f32.mrf.mxu0
        %v1240 = vadd.f32 0.0, %v1239
        %v1241 = vpop.f32.mrf.mxu0
        %v1242 = vadd.f32 0.0, %v1241
        %1243 = vmatmul.bf16.gmra.mxu0 %v981
        %v1244 = vpop.f32.mrf.mxu0
        %v1245 = vadd.f32 0.0, %v1244
        %v1246 = vpop.f32.mrf.mxu0
        %v1247 = vadd.f32 0.0, %v1246
        %1248 = vmatmul.bf16.gmra.mxu0 %v983
        %v1249 = vpop.f32.mrf.mxu0
        %v1250 = vadd.f32 0.0, %v1249
        %v1251 = vpop.f32.mrf.mxu0
        %v1252 = vadd.f32 0.0, %v1251
        %1253 = vmatmul.bf16.gmra.mxu0 %v985
        %v1254 = vpop.f32.mrf.mxu0
        %v1255 = vadd.f32 0.0, %v1254
        %v1256 = vpop.f32.mrf.mxu0
        %v1257 = vadd.f32 0.0, %v1256
        %1258 = vmatmul.bf16.gmra.mxu0 %v987
        %v1259 = vpop.f32.mrf.mxu0
        %v1260 = vadd.f32 0.0, %v1259
        %v1261 = vpop.f32.mrf.mxu0
        %v1262 = vadd.f32 0.0, %v1261
        %1263 = vmatmul.bf16.gmra.mxu0 %v989
        %v1264 = vpop.f32.mrf.mxu0
        %v1265 = vadd.f32 0.0, %v1264
        %v1266 = vpop.f32.mrf.mxu0
        %v1267 = vadd.f32 0.0, %v1266
        %1268 = vmatmul.bf16.gmra.mxu0 %v991
        %v1269 = vpop.f32.mrf.mxu0
        %v1270 = vadd.f32 0.0, %v1269
        %v1271 = vpop.f32.mrf.mxu0
        %v1272 = vadd.f32 0.0, %v1271
        %1273 = vmatmul.bf16.gmra.mxu0 %v993
        %v1274 = vpop.f32.mrf.mxu0
        %v1275 = vadd.f32 0.0, %v1274
        %v1276 = vpop.f32.mrf.mxu0
        %v1277 = vadd.f32 0.0, %v1276
        %1278 = vmatmul.bf16.gmra.mxu0 %v995
        %v1279 = vpop.f32.mrf.mxu0
        %v1280 = vadd.f32 0.0, %v1279
        %v1281 = vpop.f32.mrf.mxu0
        %v1282 = vadd.f32 0.0, %v1281
        %1283 = vmatmul.bf16.gmra.mxu0 %v997
        %v1284 = vpop.f32.mrf.mxu0
        %v1285 = vadd.f32 0.0, %v1284
        %v1286 = vpop.f32.mrf.mxu0
        %v1287 = vadd.f32 0.0, %v1286
        %1288 = vmatmul.bf16.gmra.mxu0 %v999
        %v1289 = vpop.f32.mrf.mxu0
        %v1290 = vadd.f32 0.0, %v1289
        %v1291 = vpop.f32.mrf.mxu0
        %v1292 = vadd.f32 0.0, %v1291
        %1293 = vmatmul.bf16.gmra.mxu0 %v1001
        %v1294 = vpop.f32.mrf.mxu0
        %v1295 = vadd.f32 0.0, %v1294
        %v1296 = vpop.f32.mrf.mxu0
        %v1297 = vadd.f32 0.0, %v1296
        %1298 = vmatmul.bf16.gmra.mxu0 %v1003
        %v1299 = vpop.f32.mrf.mxu0
        %v1300 = vadd.f32 0.0, %v1299
        %v1301 = vpop.f32.mrf.mxu0
        %v1302 = vadd.f32 0.0, %v1301
        %1303 = vmatmul.bf16.gmra.mxu0 %v1005
        %v1304 = vpop.f32.mrf.mxu0
        %v1305 = vadd.f32 0.0, %v1304
        %v1306 = vpop.f32.mrf.mxu0
        %v1307 = vadd.f32 0.0, %v1306
        %1308 = vmatmul.bf16.gmra.mxu0 %v1007
        %v1309 = vpop.f32.mrf.mxu0
        %v1310 = vadd.f32 0.0, %v1309
        %v1311 = vpop.f32.mrf.mxu0
        %v1312 = vadd.f32 0.0, %v1311
        %1313 = vmatmul.bf16.gmra.mxu0 %v1009
        %v1314 = vpop.f32.mrf.mxu0
        %v1315 = vadd.f32 0.0, %v1314
        %v1316 = vpop.f32.mrf.mxu0
        %v1317 = vadd.f32 0.0, %v1316
        %1318 = vmatmul.bf16.gmra.mxu0 %v1011
        %v1319 = vpop.f32.mrf.mxu0
        %v1320 = vadd.f32 0.0, %v1319
        %v1321 = vpop.f32.mrf.mxu0
        %v1322 = vadd.f32 0.0, %v1321
        %1323 = vmatmul.bf16.gmra.mxu0 %v1013
        %v1324 = vpop.f32.mrf.mxu0
        %v1325 = vadd.f32 0.0, %v1324
        %v1326 = vpop.f32.mrf.mxu0
        %v1327 = vadd.f32 0.0, %v1326
        %1328 = vmatmul.bf16.gmra.mxu0 %v1015
        %v1329 = vpop.f32.mrf.mxu0
        %v1330 = vadd.f32 0.0, %v1329
        %v1331 = vpop.f32.mrf.mxu0
        %v1332 = vadd.f32 0.0, %v1331
        %1333 = vmatmul.bf16.gmra.mxu0 %v1017
        %v1334 = vpop.f32.mrf.mxu0
        %v1335 = vadd.f32 0.0, %v1334
        %v1336 = vpop.f32.mrf.mxu0
        %v1337 = vadd.f32 0.0, %v1336
        %1338 = vmatmul.bf16.gmra.mxu0 %v1019
        %v1339 = vpop.f32.mrf.mxu0
        %v1340 = vadd.f32 0.0, %v1339
        %v1341 = vpop.f32.mrf.mxu0
        %v1342 = vadd.f32 0.0, %v1341
        %1343 = vmatmul.bf16.gmra.mxu0 %v1021
        %v1344 = vpop.f32.mrf.mxu0
        %v1345 = vadd.f32 0.0, %v1344
        %v1346 = vpop.f32.mrf.mxu0
        %v1347 = vadd.f32 0.0, %v1346
        %1348 = vmatmul.bf16.gmra.mxu0 %v1023
        %v1349 = vpop.f32.mrf.mxu0
        %v1350 = vadd.f32 0.0, %v1349
        %v1351 = vpop.f32.mrf.mxu0
        %v1352 = vadd.f32 0.0, %v1351
        %1353 = vdwg.mxu0
        %1354 = vmatpush.bf16.msra.mxu0 %v1168
        %1355 = vmatpush.bf16.msra.mxu0 %v1167
        %1356 = vmatpush.bf16.msra.mxu0 %v1166
        %1357 = vmatpush.bf16.msra.mxu0 %v1165
        %1358 = vmatpush.bf16.msra.mxu0 %v1164
        %1359 = vmatpush.bf16.msra.mxu0 %v1163
        %1360 = vmatpush.bf16.msra.mxu0 %v1162
        %1361 = vmatpush.bf16.msra.mxu0 %v1161
        %1362 = vmatmul.bf16.gmra.mxu0 %v962
        %v1363 = vpop.f32.mrf.mxu0
        %v1364 = vadd.f32 %v1195, %v1363
        %v1365 = vpop.f32.mrf.mxu0
        %v1366 = vadd.f32 %v1197, %v1365
        %1367 = vmatmul.bf16.gmra.mxu0 %v964
        %v1368 = vpop.f32.mrf.mxu0
        %v1369 = vadd.f32 %v1200, %v1368
        %v1370 = vpop.f32.mrf.mxu0
        %v1371 = vadd.f32 %v1202, %v1370
        %1372 = vmatmul.bf16.gmra.mxu0 %v966
        %v1373 = vpop.f32.mrf.mxu0
        %v1374 = vadd.f32 %v1205, %v1373
        %v1375 = vpop.f32.mrf.mxu0
        %v1376 = vadd.f32 %v1207, %v1375
        %1377 = vmatmul.bf16.gmra.mxu0 %v968
        %v1378 = vpop.f32.mrf.mxu0
        %v1379 = vadd.f32 %v1210, %v1378
        %v1380 = vpop.f32.mrf.mxu0
        %v1381 = vadd.f32 %v1212, %v1380
        %1382 = vmatmul.bf16.gmra.mxu0 %v970
        %v1383 = vpop.f32.mrf.mxu0
        %v1384 = vadd.f32 %v1215, %v1383
        %v1385 = vpop.f32.mrf.mxu0
        %v1386 = vadd.f32 %v1217, %v1385
        %1387 = vmatmul.bf16.gmra.mxu0 %v972
        %v1388 = vpop.f32.mrf.mxu0
        %v1389 = vadd.f32 %v1220, %v1388
        %v1390 = vpop.f32.mrf.mxu0
        %v1391 = vadd.f32 %v1222, %v1390
        %1392 = vmatmul.bf16.gmra.mxu0 %v974
        %v1393 = vpop.f32.mrf.mxu0
        %v1394 = vadd.f32 %v1225, %v1393
        %v1395 = vpop.f32.mrf.mxu0
        %v1396 = vadd.f32 %v1227, %v1395
        %1397 = vmatmul.bf16.gmra.mxu0 %v976
        %v1398 = vpop.f32.mrf.mxu0
        %v1399 = vadd.f32 %v1230, %v1398
        %v1400 = vpop.f32.mrf.mxu0
        %v1401 = vadd.f32 %v1232, %v1400
        %1402 = vmatmul.bf16.gmra.mxu0 %v978
        %v1403 = vpop.f32.mrf.mxu0
        %v1404 = vadd.f32 %v1235, %v1403
        %v1405 = vpop.f32.mrf.mxu0
        %v1406 = vadd.f32 %v1237, %v1405
        %1407 = vmatmul.bf16.gmra.mxu0 %v980
        %v1408 = vpop.f32.mrf.mxu0
        %v1409 = vadd.f32 %v1240, %v1408
        %v1410 = vpop.f32.mrf.mxu0
        %v1411 = vadd.f32 %v1242, %v1410
        %1412 = vmatmul.bf16.gmra.mxu0 %v982
        %v1413 = vpop.f32.mrf.mxu0
        %v1414 = vadd.f32 %v1245, %v1413
        %v1415 = vpop.f32.mrf.mxu0
        %v1416 = vadd.f32 %v1247, %v1415
        %1417 = vmatmul.bf16.gmra.mxu0 %v984
        %v1418 = vpop.f32.mrf.mxu0
        %v1419 = vadd.f32 %v1250, %v1418
        %v1420 = vpop.f32.mrf.mxu0
        %v1421 = vadd.f32 %v1252, %v1420
        %1422 = vmatmul.bf16.gmra.mxu0 %v986
        %v1423 = vpop.f32.mrf.mxu0
        %v1424 = vadd.f32 %v1255, %v1423
        %v1425 = vpop.f32.mrf.mxu0
        %v1426 = vadd.f32 %v1257, %v1425
        %1427 = vmatmul.bf16.gmra.mxu0 %v988
        %v1428 = vpop.f32.mrf.mxu0
        %v1429 = vadd.f32 %v1260, %v1428
        %v1430 = vpop.f32.mrf.mxu0
        %v1431 = vadd.f32 %v1262, %v1430
        %1432 = vmatmul.bf16.gmra.mxu0 %v990
        %v1433 = vpop.f32.mrf.mxu0
        %v1434 = vadd.f32 %v1265, %v1433
        %v1435 = vpop.f32.mrf.mxu0
        %v1436 = vadd.f32 %v1267, %v1435
        %1437 = vmatmul.bf16.gmra.mxu0 %v992
        %v1438 = vpop.f32.mrf.mxu0
        %v1439 = vadd.f32 %v1270, %v1438
        %v1440 = vpop.f32.mrf.mxu0
        %v1441 = vadd.f32 %v1272, %v1440
        %1442 = vmatmul.bf16.gmra.mxu0 %v994
        %v1443 = vpop.f32.mrf.mxu0
        %v1444 = vadd.f32 %v1275, %v1443
        %v1445 = vpop.f32.mrf.mxu0
        %v1446 = vadd.f32 %v1277, %v1445
        %1447 = vmatmul.bf16.gmra.mxu0 %v996
        %v1448 = vpop.f32.mrf.mxu0
        %v1449 = vadd.f32 %v1280, %v1448
        %v1450 = vpop.f32.mrf.mxu0
        %v1451 = vadd.f32 %v1282, %v1450
        %1452 = vmatmul.bf16.gmra.mxu0 %v998
        %v1453 = vpop.f32.mrf.mxu0
        %v1454 = vadd.f32 %v1285, %v1453
        %v1455 = vpop.f32.mrf.mxu0
        %v1456 = vadd.f32 %v1287, %v1455
        %1457 = vmatmul.bf16.gmra.mxu0 %v1000
        %v1458 = vpop.f32.mrf.mxu0
        %v1459 = vadd.f32 %v1290, %v1458
        %v1460 = vpop.f32.mrf.mxu0
        %v1461 = vadd.f32 %v1292, %v1460
        %1462 = vmatmul.bf16.gmra.mxu0 %v1002
        %v1463 = vpop.f32.mrf.mxu0
        %v1464 = vadd.f32 %v1295, %v1463
        %v1465 = vpop.f32.mrf.mxu0
        %v1466 = vadd.f32 %v1297, %v1465
        %1467 = vmatmul.bf16.gmra.mxu0 %v1004
        %v1468 = vpop.f32.mrf.mxu0
        %v1469 = vadd.f32 %v1300, %v1468
        %v1470 = vpop.f32.mrf.mxu0
        %v1471 = vadd.f32 %v1302, %v1470
        %1472 = vmatmul.bf16.gmra.mxu0 %v1006
        %v1473 = vpop.f32.mrf.mxu0
        %v1474 = vadd.f32 %v1305, %v1473
        %v1475 = vpop.f32.mrf.mxu0
        %v1476 = vadd.f32 %v1307, %v1475
        %1477 = vmatmul.bf16.gmra.mxu0 %v1008
        %v1478 = vpop.f32.mrf.mxu0
        %v1479 = vadd.f32 %v1310, %v1478
        %v1480 = vpop.f32.mrf.mxu0
        %v1481 = vadd.f32 %v1312, %v1480
        %1482 = vmatmul.bf16.gmra.mxu0 %v1010
        %v1483 = vpop.f32.mrf.mxu0
        %v1484 = vadd.f32 %v1315, %v1483
        %v1485 = vpop.f32.mrf.mxu0
        %v1486 = vadd.f32 %v1317, %v1485
        %1487 = vmatmul.bf16.gmra.mxu0 %v1012
        %v1488 = vpop.f32.mrf.mxu0
        %v1489 = vadd.f32 %v1320, %v1488
        %v1490 = vpop.f32.mrf.mxu0
        %v1491 = vadd.f32 %v1322, %v1490
        %1492 = vmatmul.bf16.gmra.mxu0 %v1014
        %v1493 = vpop.f32.mrf.mxu0
        %v1494 = vadd.f32 %v1325, %v1493
        %v1495 = vpop.f32.mrf.mxu0
        %v1496 = vadd.f32 %v1327, %v1495
        %1497 = vmatmul.bf16.gmra.mxu0 %v1016
        %v1498 = vpop.f32.mrf.mxu0
        %v1499 = vadd.f32 %v1330, %v1498
        %v1500 = vpop.f32.mrf.mxu0
        %v1501 = vadd.f32 %v1332, %v1500
        %1502 = vmatmul.bf16.gmra.mxu0 %v1018
        %v1503 = vpop.f32.mrf.mxu0
        %v1504 = vadd.f32 %v1335, %v1503
        %v1505 = vpop.f32.mrf.mxu0
        %v1506 = vadd.f32 %v1337, %v1505
        %1507 = vmatmul.bf16.gmra.mxu0 %v1020
        %v1508 = vpop.f32.mrf.mxu0
        %v1509 = vadd.f32 %v1340, %v1508
        %v1510 = vpop.f32.mrf.mxu0
        %v1511 = vadd.f32 %v1342, %v1510
        %1512 = vmatmul.bf16.gmra.mxu0 %v1022
        %v1513 = vpop.f32.mrf.mxu0
        %v1514 = vadd.f32 %v1345, %v1513
        %v1515 = vpop.f32.mrf.mxu0
        %v1516 = vadd.f32 %v1347, %v1515
        %1517 = vmatmul.bf16.gmra.mxu0 %v1024
        %v1518 = vpop.f32.mrf.mxu0
        %v1519 = vadd.f32 %v1350, %v1518
        %v1520 = vpop.f32.mrf.mxu0
        %v1521 = vadd.f32 %v1352, %v1520
        %1522 = vdwg.mxu0
        %v1523 = vadd.f32 %v609, %v1364
        %v1524 = vadd.f32 %v610, %v1366
        %v1525 = vadd.f32 %v611, %v1369
        %v1526 = vadd.f32 %v612, %v1371
        %v1527 = vadd.f32 %v613, %v1374
        %v1528 = vadd.f32 %v614, %v1376
        %v1529 = vadd.f32 %v615, %v1379
        %v1530 = vadd.f32 %v616, %v1381
        %v1531 = vadd.f32 %v617, %v1384
        %v1532 = vadd.f32 %v618, %v1386
        %v1533 = vadd.f32 %v619, %v1389
        %v1534 = vadd.f32 %v620, %v1391
        %v1535 = vadd.f32 %v621, %v1394
        %v1536 = vadd.f32 %v622, %v1396
        %v1537 = vadd.f32 %v623, %v1399
        %v1538 = vadd.f32 %v624, %v1401
        %v1539 = vadd.f32 %v625, %v1404
        %v1540 = vadd.f32 %v626, %v1406
        %v1541 = vadd.f32 %v627, %v1409
        %v1542 = vadd.f32 %v628, %v1411
        %v1543 = vadd.f32 %v629, %v1414
        %v1544 = vadd.f32 %v630, %v1416
        %v1545 = vadd.f32 %v631, %v1419
        %v1546 = vadd.f32 %v632, %v1421
        %v1547 = vadd.f32 %v633, %v1424
        %v1548 = vadd.f32 %v634, %v1426
        %v1549 = vadd.f32 %v635, %v1429
        %v1550 = vadd.f32 %v636, %v1431
        %v1551 = vadd.f32 %v637, %v1434
        %v1552 = vadd.f32 %v638, %v1436
        %v1553 = vadd.f32 %v639, %v1439
        %v1554 = vadd.f32 %v640, %v1441
        %v1555 = vadd.f32 %v641, %v1444
        %v1556 = vadd.f32 %v642, %v1446
        %v1557 = vadd.f32 %v643, %v1449
        %v1558 = vadd.f32 %v644, %v1451
        %v1559 = vadd.f32 %v645, %v1454
        %v1560 = vadd.f32 %v646, %v1456
        %v1561 = vadd.f32 %v647, %v1459
        %v1562 = vadd.f32 %v648, %v1461
        %v1563 = vadd.f32 %v649, %v1464
        %v1564 = vadd.f32 %v650, %v1466
        %v1565 = vadd.f32 %v651, %v1469
        %v1566 = vadd.f32 %v652, %v1471
        %v1567 = vadd.f32 %v653, %v1474
        %v1568 = vadd.f32 %v654, %v1476
        %v1569 = vadd.f32 %v655, %v1479
        %v1570 = vadd.f32 %v656, %v1481
        %v1571 = vadd.f32 %v657, %v1484
        %v1572 = vadd.f32 %v658, %v1486
        %v1573 = vadd.f32 %v659, %v1489
        %v1574 = vadd.f32 %v660, %v1491
        %v1575 = vadd.f32 %v661, %v1494
        %v1576 = vadd.f32 %v662, %v1496
        %v1577 = vadd.f32 %v663, %v1499
        %v1578 = vadd.f32 %v664, %v1501
        %v1579 = vadd.f32 %v665, %v1504
        %v1580 = vadd.f32 %v666, %v1506
        %v1581 = vadd.f32 %v667, %v1509
        %v1582 = vadd.f32 %v668, %v1511
        %v1583 = vadd.f32 %v669, %v1514
        %v1584 = vadd.f32 %v670, %v1516
        %v1585 = vadd.f32 %v671, %v1519
        %v1586 = vadd.f32 %v672, %v1521
        %1587 = vst [vmem:[#allocation2] sm:$0xff] %v1523
        %1588 = vst [vmem:[#allocation2 + $0x8] sm:$0xff] %v1524
        %1589 = vst [vmem:[#allocation2 + $0x10] sm:$0xff] %v1525
        %1590 = vst [vmem:[#allocation2 + $0x18] sm:$0xff] %v1526
        %1591 = vst [vmem:[#allocation2 + $0x20] sm:$0xff] %v1527
        %1592 = vst [vmem:[#allocation2 + $0x28] sm:$0xff] %v1528
        %1593 = vst [vmem:[#allocation2 + $0x30] sm:$0xff] %v1529
        %1594 = vst [vmem:[#allocation2 + $0x38] sm:$0xff] %v1530
        %1595 = vst [vmem:[#allocation2 + $0x40] sm:$0xff] %v1531
        %1596 = vst [vmem:[#allocation2 + $0x48] sm:$0xff] %v1532
        %1597 = vst [vmem:[#allocation2 + $0x50] sm:$0xff] %v1533
        %1598 = vst [vmem:[#allocation2 + $0x58] sm:$0xff] %v1534
        %1599 = vst [vmem:[#allocation2 + $0x60] sm:$0xff] %v1535
        %1600 = vst [vmem:[#allocation2 + $0x68] sm:$0xff] %v1536
        %1601 = vst [vmem:[#allocation2 + $0x70] sm:$0xff] %v1537
        %1602 = vst [vmem:[#allocation2 + $0x78] sm:$0xff] %v1538
        %1603 = vst [vmem:[#allocation2 + $0x80] sm:$0xff] %v1539
        %1604 = vst [vmem:[#allocation2 + $0x88] sm:$0xff] %v1540
        %1605 = vst [vmem:[#allocation2 + $0x90] sm:$0xff] %v1541
        %1606 = vst [vmem:[#allocation2 + $0x98] sm:$0xff] %v1542
        %1607 = vst [vmem:[#allocation2 + $0xa0] sm:$0xff] %v1543
        %1608 = vst [vmem:[#allocation2 + $0xa8] sm:$0xff] %v1544
        %1609 = vst [vmem:[#allocation2 + $0xb0] sm:$0xff] %v1545
        %1610 = vst [vmem:[#allocation2 + $0xb8] sm:$0xff] %v1546
        %1611 = vst [vmem:[#allocation2 + $0xc0] sm:$0xff] %v1547
        %1612 = vst [vmem:[#allocation2 + $0xc8] sm:$0xff] %v1548
        %1613 = vst [vmem:[#allocation2 + $0xd0] sm:$0xff] %v1549
        %1614 = vst [vmem:[#allocation2 + $0xd8] sm:$0xff] %v1550
        %1615 = vst [vmem:[#allocation2 + $0xe0] sm:$0xff] %v1551
        %1616 = vst [vmem:[#allocation2 + $0xe8] sm:$0xff] %v1552
        %1617 = vst [vmem:[#allocation2 + $0xf0] sm:$0xff] %v1553
        %1618 = vst [vmem:[#allocation2 + $0xf8] sm:$0xff] %v1554
        %1619 = vst [vmem:[#allocation2 + $0x100] sm:$0xff] %v1555
        %1620 = vst [vmem:[#allocation2 + $0x108] sm:$0xff] %v1556
        %1621 = vst [vmem:[#allocation2 + $0x110] sm:$0xff] %v1557
        %1622 = vst [vmem:[#allocation2 + $0x118] sm:$0xff] %v1558
        %1623 = vst [vmem:[#allocation2 + $0x120] sm:$0xff] %v1559
        %1624 = vst [vmem:[#allocation2 + $0x128] sm:$0xff] %v1560
        %1625 = vst [vmem:[#allocation2 + $0x130] sm:$0xff] %v1561
        %1626 = vst [vmem:[#allocation2 + $0x138] sm:$0xff] %v1562
        %1627 = vst [vmem:[#allocation2 + $0x140] sm:$0xff] %v1563
        %1628 = vst [vmem:[#allocation2 + $0x148] sm:$0xff] %v1564
        %1629 = vst [vmem:[#allocation2 + $0x150] sm:$0xff] %v1565
        %1630 = vst [vmem:[#allocation2 + $0x158] sm:$0xff] %v1566
        %1631 = vst [vmem:[#allocation2 + $0x160] sm:$0xff] %v1567
        %1632 = vst [vmem:[#allocation2 + $0x168] sm:$0xff] %v1568
        %1633 = vst [vmem:[#allocation2 + $0x170] sm:$0xff] %v1569
        %1634 = vst [vmem:[#allocation2 + $0x178] sm:$0xff] %v1570
        %1635 = vst [vmem:[#allocation2 + $0x180] sm:$0xff] %v1571
        %1636 = vst [vmem:[#allocation2 + $0x188] sm:$0xff] %v1572
        %1637 = vst [vmem:[#allocation2 + $0x190] sm:$0xff] %v1573
        %1638 = vst [vmem:[#allocation2 + $0x198] sm:$0xff] %v1574
        %1639 = vst [vmem:[#allocation2 + $0x1a0] sm:$0xff] %v1575
        %1640 = vst [vmem:[#allocation2 + $0x1a8] sm:$0xff] %v1576
        %1641 = vst [vmem:[#allocation2 + $0x1b0] sm:$0xff] %v1577
        %1642 = vst [vmem:[#allocation2 + $0x1b8] sm:$0xff] %v1578
        %1643 = vst [vmem:[#allocation2 + $0x1c0] sm:$0xff] %v1579
        %1644 = vst [vmem:[#allocation2 + $0x1c8] sm:$0xff] %v1580
        %1645 = vst [vmem:[#allocation2 + $0x1d0] sm:$0xff] %v1581
        %1646 = vst [vmem:[#allocation2 + $0x1d8] sm:$0xff] %v1582
        %1647 = vst [vmem:[#allocation2 + $0x1e0] sm:$0xff] %v1583
        %1648 = vst [vmem:[#allocation2 + $0x1e8] sm:$0xff] %v1584
        %1649 = vst [vmem:[#allocation2 + $0x1f0] sm:$0xff] %v1585
        %1650 = vst [vmem:[#allocation2 + $0x1f8] sm:$0xff] %v1586
        %p1651 = scmp.eq.s32.totalorder %s21, 1
        // Predicated region
        $region75: #{generator_forward.37} parent=65 // pred_check
          %p1652 = pneg %p1651
        $region76: #{generator_forward.37} parent=65 // pred_check_branch
          %1654 = sbr.rel (%p1652) target = $region78
        $region77: #{generator_forward.37} parent=65 // pred_region
          %v1655 = vld [vmem:[#allocation2] sm:$0xff]
          %v1656 = vld [vmem:[#allocation2 + $0x8] sm:$0xff]
          %v1657 = vld [vmem:[#allocation2 + $0x10] sm:$0xff]
          %v1658 = vld [vmem:[#allocation2 + $0x18] sm:$0xff]
          %v1659 = vld [vmem:[#allocation2 + $0x20] sm:$0xff]
          %v1660 = vld [vmem:[#allocation2 + $0x28] sm:$0xff]
          %v1661 = vld [vmem:[#allocation2 + $0x30] sm:$0xff]
          %v1662 = vld [vmem:[#allocation2 + $0x38] sm:$0xff]
          %v1663 = vld [vmem:[#allocation2 + $0x40] sm:$0xff]
          %v1664 = vld [vmem:[#allocation2 + $0x48] sm:$0xff]
          %v1665 = vld [vmem:[#allocation2 + $0x50] sm:$0xff]
          %v1666 = vld [vmem:[#allocation2 + $0x58] sm:$0xff]
          %v1667 = vld [vmem:[#allocation2 + $0x60] sm:$0xff]
          %v1668 = vld [vmem:[#allocation2 + $0x68] sm:$0xff]
          %v1669 = vld [vmem:[#allocation2 + $0x70] sm:$0xff]
          %v1670 = vld [vmem:[#allocation2 + $0x78] sm:$0xff]
          %v1671 = vld [vmem:[#allocation2 + $0x80] sm:$0xff]
          %v1672 = vld [vmem:[#allocation2 + $0x88] sm:$0xff]
          %v1673 = vld [vmem:[#allocation2 + $0x90] sm:$0xff]
          %v1674 = vld [vmem:[#allocation2 + $0x98] sm:$0xff]
          %v1675 = vld [vmem:[#allocation2 + $0xa0] sm:$0xff]
          %v1676 = vld [vmem:[#allocation2 + $0xa8] sm:$0xff]
          %v1677 = vld [vmem:[#allocation2 + $0xb0] sm:$0xff]
          %v1678 = vld [vmem:[#allocation2 + $0xb8] sm:$0xff]
          %v1679 = vld [vmem:[#allocation2 + $0xc0] sm:$0xff]
          %v1680 = vld [vmem:[#allocation2 + $0xc8] sm:$0xff]
          %v1681 = vld [vmem:[#allocation2 + $0xd0] sm:$0xff]
          %v1682 = vld [vmem:[#allocation2 + $0xd8] sm:$0xff]
          %v1683 = vld [vmem:[#allocation2 + $0xe0] sm:$0xff]
          %v1684 = vld [vmem:[#allocation2 + $0xe8] sm:$0xff]
          %v1685 = vld [vmem:[#allocation2 + $0xf0] sm:$0xff]
          %v1686 = vld [vmem:[#allocation2 + $0xf8] sm:$0xff]
          %v1687 = vld [vmem:[#allocation2 + $0x100] sm:$0xff]
          %v1688 = vld [vmem:[#allocation2 + $0x108] sm:$0xff]
          %v1689 = vld [vmem:[#allocation2 + $0x110] sm:$0xff]
          %v1690 = vld [vmem:[#allocation2 + $0x118] sm:$0xff]
          %v1691 = vld [vmem:[#allocation2 + $0x120] sm:$0xff]
          %v1692 = vld [vmem:[#allocation2 + $0x128] sm:$0xff]
          %v1693 = vld [vmem:[#allocation2 + $0x130] sm:$0xff]
          %v1694 = vld [vmem:[#allocation2 + $0x138] sm:$0xff]
          %v1695 = vld [vmem:[#allocation2 + $0x140] sm:$0xff]
          %v1696 = vld [vmem:[#allocation2 + $0x148] sm:$0xff]
          %v1697 = vld [vmem:[#allocation2 + $0x150] sm:$0xff]
          %v1698 = vld [vmem:[#allocation2 + $0x158] sm:$0xff]
          %v1699 = vld [vmem:[#allocation2 + $0x160] sm:$0xff]
          %v1700 = vld [vmem:[#allocation2 + $0x168] sm:$0xff]
          %v1701 = vld [vmem:[#allocation2 + $0x170] sm:$0xff]
          %v1702 = vld [vmem:[#allocation2 + $0x178] sm:$0xff]
          %v1703 = vld [vmem:[#allocation2 + $0x180] sm:$0xff]
          %v1704 = vld [vmem:[#allocation2 + $0x188] sm:$0xff]
          %v1705 = vld [vmem:[#allocation2 + $0x190] sm:$0xff]
          %v1706 = vld [vmem:[#allocation2 + $0x198] sm:$0xff]
          %v1707 = vld [vmem:[#allocation2 + $0x1a0] sm:$0xff]
          %v1708 = vld [vmem:[#allocation2 + $0x1a8] sm:$0xff]
          %v1709 = vld [vmem:[#allocation2 + $0x1b0] sm:$0xff]
          %v1710 = vld [vmem:[#allocation2 + $0x1b8] sm:$0xff]
          %v1711 = vld [vmem:[#allocation2 + $0x1c0] sm:$0xff]
          %v1712 = vld [vmem:[#allocation2 + $0x1c8] sm:$0xff]
          %v1713 = vld [vmem:[#allocation2 + $0x1d0] sm:$0xff]
          %v1714 = vld [vmem:[#allocation2 + $0x1d8] sm:$0xff]
          %v1715 = vld [vmem:[#allocation2 + $0x1e0] sm:$0xff]
          %v1716 = vld [vmem:[#allocation2 + $0x1e8] sm:$0xff]
          %v1717 = vld [vmem:[#allocation2 + $0x1f0] sm:$0xff]
          %v1718 = vld [vmem:[#allocation2 + $0x1f8] sm:$0xff]
          %v1719 = vld [vmem:[%s531] sm:$0x1]
          %v1721 = vperm.slane %v1719, 0
          %v1723 = vadd.f32 %v1655, %v1721
          %v1724 = vadd.f32 %v1656, %v1721
          %v1725 = vadd.f32 %v1657, %v1721
          %v1726 = vadd.f32 %v1658, %v1721
          %v1727 = vadd.f32 %v1659, %v1721
          %v1728 = vadd.f32 %v1660, %v1721
          %v1729 = vadd.f32 %v1661, %v1721
          %v1730 = vadd.f32 %v1662, %v1721
          %v1731 = vadd.f32 %v1663, %v1721
          %v1732 = vadd.f32 %v1664, %v1721
          %v1733 = vadd.f32 %v1665, %v1721
          %v1734 = vadd.f32 %v1666, %v1721
          %v1735 = vadd.f32 %v1667, %v1721
          %v1736 = vadd.f32 %v1668, %v1721
          %v1737 = vadd.f32 %v1669, %v1721
          %v1738 = vadd.f32 %v1670, %v1721
          %v1739 = vadd.f32 %v1671, %v1721
          %v1740 = vadd.f32 %v1672, %v1721
          %v1741 = vadd.f32 %v1673, %v1721
          %v1742 = vadd.f32 %v1674, %v1721
          %v1743 = vadd.f32 %v1675, %v1721
          %v1744 = vadd.f32 %v1676, %v1721
          %v1745 = vadd.f32 %v1677, %v1721
          %v1746 = vadd.f32 %v1678, %v1721
          %v1747 = vadd.f32 %v1679, %v1721
          %v1748 = vadd.f32 %v1680, %v1721
          %v1749 = vadd.f32 %v1681, %v1721
          %v1750 = vadd.f32 %v1682, %v1721
          %v1751 = vadd.f32 %v1683, %v1721
          %v1752 = vadd.f32 %v1684, %v1721
          %v1753 = vadd.f32 %v1685, %v1721
          %v1754 = vadd.f32 %v1686, %v1721
          %v1755 = vadd.f32 %v1687, %v1721
          %v1756 = vadd.f32 %v1688, %v1721
          %v1757 = vadd.f32 %v1689, %v1721
          %v1758 = vadd.f32 %v1690, %v1721
          %v1759 = vadd.f32 %v1691, %v1721
          %v1760 = vadd.f32 %v1692, %v1721
          %v1761 = vadd.f32 %v1693, %v1721
          %v1762 = vadd.f32 %v1694, %v1721
          %v1763 = vadd.f32 %v1695, %v1721
          %v1764 = vadd.f32 %v1696, %v1721
          %v1765 = vadd.f32 %v1697, %v1721
          %v1766 = vadd.f32 %v1698, %v1721
          %v1767 = vadd.f32 %v1699, %v1721
          %v1768 = vadd.f32 %v1700, %v1721
          %v1769 = vadd.f32 %v1701, %v1721
          %v1770 = vadd.f32 %v1702, %v1721
          %v1771 = vadd.f32 %v1703, %v1721
          %v1772 = vadd.f32 %v1704, %v1721
          %v1773 = vadd.f32 %v1705, %v1721
          %v1774 = vadd.f32 %v1706, %v1721
          %v1775 = vadd.f32 %v1707, %v1721
          %v1776 = vadd.f32 %v1708, %v1721
          %v1777 = vadd.f32 %v1709, %v1721
          %v1778 = vadd.f32 %v1710, %v1721
          %v1779 = vadd.f32 %v1711, %v1721
          %v1780 = vadd.f32 %v1712, %v1721
          %v1781 = vadd.f32 %v1713, %v1721
          %v1782 = vadd.f32 %v1714, %v1721
          %v1783 = vadd.f32 %v1715, %v1721
          %v1784 = vadd.f32 %v1716, %v1721
          %v1785 = vadd.f32 %v1717, %v1721
          %v1786 = vadd.f32 %v1718, %v1721
          %v1787 = vtanh.pop %v1723
          %v1788 = vtanh.pop %v1724
          %v1789 = vtanh.pop %v1725
          %v1790 = vtanh.pop %v1726
          %v1791 = vtanh.pop %v1727
          %v1792 = vtanh.pop %v1728
          %v1793 = vtanh.pop %v1729
          %v1794 = vtanh.pop %v1730
          %v1795 = vtanh.pop %v1731
          %v1796 = vtanh.pop %v1732
          %v1797 = vtanh.pop %v1733
          %v1798 = vtanh.pop %v1734
          %v1799 = vtanh.pop %v1735
          %v1800 = vtanh.pop %v1736
          %v1801 = vtanh.pop %v1737
          %v1802 = vtanh.pop %v1738
          %v1803 = vtanh.pop %v1739
          %v1804 = vtanh.pop %v1740
          %v1805 = vtanh.pop %v1741
          %v1806 = vtanh.pop %v1742
          %v1807 = vtanh.pop %v1743
          %v1808 = vtanh.pop %v1744
          %v1809 = vtanh.pop %v1745
          %v1810 = vtanh.pop %v1746
          %v1811 = vtanh.pop %v1747
          %v1812 = vtanh.pop %v1748
          %v1813 = vtanh.pop %v1749
          %v1814 = vtanh.pop %v1750
          %v1815 = vtanh.pop %v1751
          %v1816 = vtanh.pop %v1752
          %v1817 = vtanh.pop %v1753
          %v1818 = vtanh.pop %v1754
          %v1819 = vtanh.pop %v1755
          %v1820 = vtanh.pop %v1756
          %v1821 = vtanh.pop %v1757
          %v1822 = vtanh.pop %v1758
          %v1823 = vtanh.pop %v1759
          %v1824 = vtanh.pop %v1760
          %v1825 = vtanh.pop %v1761
          %v1826 = vtanh.pop %v1762
          %v1827 = vtanh.pop %v1763
          %v1828 = vtanh.pop %v1764
          %v1829 = vtanh.pop %v1765
          %v1830 = vtanh.pop %v1766
          %v1831 = vtanh.pop %v1767
          %v1832 = vtanh.pop %v1768
          %v1833 = vtanh.pop %v1769
          %v1834 = vtanh.pop %v1770
          %v1835 = vtanh.pop %v1771
          %v1836 = vtanh.pop %v1772
          %v1837 = vtanh.pop %v1773
          %v1838 = vtanh.pop %v1774
          %v1839 = vtanh.pop %v1775
          %v1840 = vtanh.pop %v1776
          %v1841 = vtanh.pop %v1777
          %v1842 = vtanh.pop %v1778
          %v1843 = vtanh.pop %v1779
          %v1844 = vtanh.pop %v1780
          %v1845 = vtanh.pop %v1781
          %v1846 = vtanh.pop %v1782
          %v1847 = vtanh.pop %v1783
          %v1848 = vtanh.pop %v1784
          %v1849 = vtanh.pop %v1785
          %v1850 = vtanh.pop %v1786
          %v1851 = vpack.c.bf16 %v1787, %v1787
          %v1852 = vpack.c.bf16 %v1788, %v1788
          %v1853 = vpack.c.bf16 %v1789, %v1789
          %v1854 = vpack.c.bf16 %v1790, %v1790
          %v1855 = vpack.c.bf16 %v1791, %v1791
          %v1856 = vpack.c.bf16 %v1792, %v1792
          %v1857 = vpack.c.bf16 %v1793, %v1793
          %v1858 = vpack.c.bf16 %v1794, %v1794
          %v1859 = vpack.c.bf16 %v1795, %v1795
          %v1860 = vpack.c.bf16 %v1796, %v1796
          %v1861 = vpack.c.bf16 %v1797, %v1797
          %v1862 = vpack.c.bf16 %v1798, %v1798
          %v1863 = vpack.c.bf16 %v1799, %v1799
          %v1864 = vpack.c.bf16 %v1800, %v1800
          %v1865 = vpack.c.bf16 %v1801, %v1801
          %v1866 = vpack.c.bf16 %v1802, %v1802
          %v1867 = vpack.c.bf16 %v1803, %v1803
          %v1868 = vpack.c.bf16 %v1804, %v1804
          %v1869 = vpack.c.bf16 %v1805, %v1805
          %v1870 = vpack.c.bf16 %v1806, %v1806
          %v1871 = vpack.c.bf16 %v1807, %v1807
          %v1872 = vpack.c.bf16 %v1808, %v1808
          %v1873 = vpack.c.bf16 %v1809, %v1809
          %v1874 = vpack.c.bf16 %v1810, %v1810
          %v1875 = vpack.c.bf16 %v1811, %v1811
          %v1876 = vpack.c.bf16 %v1812, %v1812
          %v1877 = vpack.c.bf16 %v1813, %v1813
          %v1878 = vpack.c.bf16 %v1814, %v1814
          %v1879 = vpack.c.bf16 %v1815, %v1815
          %v1880 = vpack.c.bf16 %v1816, %v1816
          %v1881 = vpack.c.bf16 %v1817, %v1817
          %v1882 = vpack.c.bf16 %v1818, %v1818
          %v1883 = vpack.c.bf16 %v1819, %v1819
          %v1884 = vpack.c.bf16 %v1820, %v1820
          %v1885 = vpack.c.bf16 %v1821, %v1821
          %v1886 = vpack.c.bf16 %v1822, %v1822
          %v1887 = vpack.c.bf16 %v1823, %v1823
          %v1888 = vpack.c.bf16 %v1824, %v1824
          %v1889 = vpack.c.bf16 %v1825, %v1825
          %v1890 = vpack.c.bf16 %v1826, %v1826
          %v1891 = vpack.c.bf16 %v1827, %v1827
          %v1892 = vpack.c.bf16 %v1828, %v1828
          %v1893 = vpack.c.bf16 %v1829, %v1829
          %v1894 = vpack.c.bf16 %v1830, %v1830
          %v1895 = vpack.c.bf16 %v1831, %v1831
          %v1896 = vpack.c.bf16 %v1832, %v1832
          %v1897 = vpack.c.bf16 %v1833, %v1833
          %v1898 = vpack.c.bf16 %v1834, %v1834
          %v1899 = vpack.c.bf16 %v1835, %v1835
          %v1900 = vpack.c.bf16 %v1836, %v1836
          %v1901 = vpack.c.bf16 %v1837, %v1837
          %v1902 = vpack.c.bf16 %v1838, %v1838
          %v1903 = vpack.c.bf16 %v1839, %v1839
          %v1904 = vpack.c.bf16 %v1840, %v1840
          %v1905 = vpack.c.bf16 %v1841, %v1841
          %v1906 = vpack.c.bf16 %v1842, %v1842
          %v1907 = vpack.c.bf16 %v1843, %v1843
          %v1908 = vpack.c.bf16 %v1844, %v1844
          %v1909 = vpack.c.bf16 %v1845, %v1845
          %v1910 = vpack.c.bf16 %v1846, %v1846
          %v1911 = vpack.c.bf16 %v1847, %v1847
          %v1912 = vpack.c.bf16 %v1848, %v1848
          %v1913 = vpack.c.bf16 %v1849, %v1849
          %v1914 = vpack.c.bf16 %v1850, %v1850
          %1915 = vst [vmem:[%s539] sm:$0xf] %v1851
          %1916 = vst [vmem:[%s539 + $0x4] sm:$0xf] %v1852
          %1917 = vst [vmem:[%s539 + $0x8] sm:$0xf] %v1853
          %1918 = vst [vmem:[%s539 + $0xc] sm:$0xf] %v1854
          %1919 = vst [vmem:[%s539 + $0x10] sm:$0xf] %v1855
          %1920 = vst [vmem:[%s539 + $0x14] sm:$0xf] %v1856
          %1921 = vst [vmem:[%s539 + $0x18] sm:$0xf] %v1857
          %1922 = vst [vmem:[%s539 + $0x1c] sm:$0xf] %v1858
          %1923 = vst [vmem:[%s539 + $0x20] sm:$0xf] %v1859
          %1924 = vst [vmem:[%s539 + $0x24] sm:$0xf] %v1860
          %1925 = vst [vmem:[%s539 + $0x28] sm:$0xf] %v1861
          %1926 = vst [vmem:[%s539 + $0x2c] sm:$0xf] %v1862
          %1927 = vst [vmem:[%s539 + $0x30] sm:$0xf] %v1863
          %1928 = vst [vmem:[%s539 + $0x34] sm:$0xf] %v1864
          %1929 = vst [vmem:[%s539 + $0x38] sm:$0xf] %v1865
          %1930 = vst [vmem:[%s539 + $0x3c] sm:$0xf] %v1866
          %1931 = vst [vmem:[%s539 + $0x40] sm:$0xf] %v1867
          %1932 = vst [vmem:[%s539 + $0x44] sm:$0xf] %v1868
          %1933 = vst [vmem:[%s539 + $0x48] sm:$0xf] %v1869
          %1934 = vst [vmem:[%s539 + $0x4c] sm:$0xf] %v1870
          %1935 = vst [vmem:[%s539 + $0x50] sm:$0xf] %v1871
          %1936 = vst [vmem:[%s539 + $0x54] sm:$0xf] %v1872
          %1937 = vst [vmem:[%s539 + $0x58] sm:$0xf] %v1873
          %1938 = vst [vmem:[%s539 + $0x5c] sm:$0xf] %v1874
          %1939 = vst [vmem:[%s539 + $0x60] sm:$0xf] %v1875
          %1940 = vst [vmem:[%s539 + $0x64] sm:$0xf] %v1876
          %1941 = vst [vmem:[%s539 + $0x68] sm:$0xf] %v1877
          %1942 = vst [vmem:[%s539 + $0x6c] sm:$0xf] %v1878
          %1943 = vst [vmem:[%s539 + $0x70] sm:$0xf] %v1879
          %1944 = vst [vmem:[%s539 + $0x74] sm:$0xf] %v1880
          %1945 = vst [vmem:[%s539 + $0x78] sm:$0xf] %v1881
          %1946 = vst [vmem:[%s539 + $0x7c] sm:$0xf] %v1882
          %1947 = vst [vmem:[%s539 + $0x80] sm:$0xf] %v1883
          %1948 = vst [vmem:[%s539 + $0x84] sm:$0xf] %v1884
          %1949 = vst [vmem:[%s539 + $0x88] sm:$0xf] %v1885
          %1950 = vst [vmem:[%s539 + $0x8c] sm:$0xf] %v1886
          %1951 = vst [vmem:[%s539 + $0x90] sm:$0xf] %v1887
          %1952 = vst [vmem:[%s539 + $0x94] sm:$0xf] %v1888
          %1953 = vst [vmem:[%s539 + $0x98] sm:$0xf] %v1889
          %1954 = vst [vmem:[%s539 + $0x9c] sm:$0xf] %v1890
          %1955 = vst [vmem:[%s539 + $0xa0] sm:$0xf] %v1891
          %1956 = vst [vmem:[%s539 + $0xa4] sm:$0xf] %v1892
          %1957 = vst [vmem:[%s539 + $0xa8] sm:$0xf] %v1893
          %1958 = vst [vmem:[%s539 + $0xac] sm:$0xf] %v1894
          %1959 = vst [vmem:[%s539 + $0xb0] sm:$0xf] %v1895
          %1960 = vst [vmem:[%s539 + $0xb4] sm:$0xf] %v1896
          %1961 = vst [vmem:[%s539 + $0xb8] sm:$0xf] %v1897
          %1962 = vst [vmem:[%s539 + $0xbc] sm:$0xf] %v1898
          %1963 = vst [vmem:[%s539 + $0xc0] sm:$0xf] %v1899
          %1964 = vst [vmem:[%s539 + $0xc4] sm:$0xf] %v1900
          %1965 = vst [vmem:[%s539 + $0xc8] sm:$0xf] %v1901
          %1966 = vst [vmem:[%s539 + $0xcc] sm:$0xf] %v1902
          %1967 = vst [vmem:[%s539 + $0xd0] sm:$0xf] %v1903
          %1968 = vst [vmem:[%s539 + $0xd4] sm:$0xf] %v1904
          %1969 = vst [vmem:[%s539 + $0xd8] sm:$0xf] %v1905
          %1970 = vst [vmem:[%s539 + $0xdc] sm:$0xf] %v1906
          %1971 = vst [vmem:[%s539 + $0xe0] sm:$0xf] %v1907
          %1972 = vst [vmem:[%s539 + $0xe4] sm:$0xf] %v1908
          %1973 = vst [vmem:[%s539 + $0xe8] sm:$0xf] %v1909
          %1974 = vst [vmem:[%s539 + $0xec] sm:$0xf] %v1910
          %1975 = vst [vmem:[%s539 + $0xf0] sm:$0xf] %v1911
          %1976 = vst [vmem:[%s539 + $0xf4] sm:$0xf] %v1912
          %1977 = vst [vmem:[%s539 + $0xf8] sm:$0xf] %v1913
          %1978 = vst [vmem:[%s539 + $0xfc] sm:$0xf] %v1914
        $region78: #{generator_forward.37} parent=65 // pred_fallthru
          _
        %s1979 = smul.u32 64, %s19
        %p1980 = scmp.lt.s32.totalorder %s1979, 63
        %s1981 = scalar_select %p1980, %s1979, 63
        %p1982 = scmp.lt.s32.totalorder %s20, 0
        %s1983 = scalar_select %p1982, %s20, 0
        %s1984 = sadd.s32 %s1983, %s1981
        %s1985 = smul.addr %s1984, 4
        %s1986 = scalar_lea.vmem %s3, %s1985
        // Predicated region
        $region79: #{generator_forward.37} parent=65 // pred_check
          %p1987 = pneg %p135
        $region80: #{generator_forward.37} parent=65 // pred_check_branch
          %1989 = sbr.rel (%p1987) target = $region82
        $region81: #{generator_forward.37} parent=65 // pred_region
          %s1990 = smul.u32 64, %s19
        $region82: #{generator_forward.37} parent=65 // pred_fallthru
          _
        // Predicated region
        $region83: #{generator_forward.37} parent=65 // pred_check
          %p1991 = pneg %p135
        $region84: #{generator_forward.37} parent=65 // pred_check_branch
          %1993 = sbr.rel (%p1991) target = $region86
        $region85: #{generator_forward.37} parent=65 // pred_region
          %s1994 = smul.u32 64, %s19
          %p1995 = scmp.lt.s32.totalorder %s1994, 63
          %s1996 = scalar_select %p1995, %s1994, 63
          %p1997 = scmp.lt.s32.totalorder %s20, 0
          %s1998 = scalar_select %p1997, %s20, 0
          %s1999 = sadd.s32 %s1998, %s1996
          %s2000 = smul.addr %s1999, 4
          %s2001 = scalar_lea.vmem %s3, %s2000
        $region86: #{generator_forward.37} parent=65 // pred_fallthru
          _
      $region66: #{generator_forward.37} parent=5 // pred_fallthru
        _
      %p2002 = scmp.le.s32.totalorder 2, %s9
      // Predicated region
      $region87: #{generator_forward.37} parent=5 // pred_check
        %p2003 = pneg %p2002
      $region88: #{generator_forward.37} parent=5 // pred_check_branch
        %2005 = sbr.rel (%p2003) target = $region90
      $region89: #{generator_forward.37} parent=5 // pred_region
        %s2006 = ssub.s32 %s9, 2
      $region90: #{generator_forward.37} parent=5 // pred_fallthru
        _
    $region6: #{generator_forward.37} parent=1 // loop_footer
      %s13 = sadd.s32 1, %s9
    $region7: #{generator_forward.37} parent=1 // loop_footer_branch
      %8 = sbr.rel target = $region3
    $region8: #{generator_forward.37} parent=1 // loop_exit
      _

</llo_original>
